<compile_context>
chip_gen: v6e
topology: v6e:2x2x1
jax: 0.10.0
libtpu: 0.0.40
codegen_flags: <defaults>
</compile_context>

<pallas_src>
import functools

import jax
import jax.numpy as jnp
from jax.experimental import pallas as pl
from jax.experimental.pallas import tpu as pltpu


def _round_up(n, m):
    return (n + m - 1) // m * m


def _pick_batch_tile(batch):
    """One grid program per TensorCore for small batches (cap at 1024)."""
    try:
        kind = jax.devices()[0].device_kind.lower()
    except Exception:
        kind = ""
    num_tc = 2 if "v7" in kind else 1          # v7x: 2 TensorCores / chip
    per_core = -(-batch // num_tc)             # ceil
    return max(128, min(_round_up(per_core, 128), 1024))


def _mlp_kernel(x_ref, w1_ref, b1_ref, w2_ref, b2_ref, w3_ref, b3_ref,
                w4t_ref, b4t_ref, o_ref):
    # f32 activations from HBM, cast to bf16 in-kernel; f32 MXU accumulation.
    x = x_ref[...].astype(jnp.bfloat16)

    h = jnp.dot(x, w1_ref[...], preferred_element_type=jnp.float32)
    h = jnp.maximum(h + b1_ref[...], 0.0).astype(jnp.bfloat16)

    h = jnp.dot(h, w2_ref[...], preferred_element_type=jnp.float32)
    h = jnp.maximum(h + b2_ref[...], 0.0).astype(jnp.bfloat16)

    h = jnp.dot(h, w3_ref[...], preferred_element_type=jnp.float32)
    h = jnp.maximum(h + b3_ref[...], 0.0).astype(jnp.bfloat16)

    # Final layer with the weight pre-transposed: contract both operands' last
    # dims -> [out_p, T] comes straight off the MXU (no f32 result transpose).
    z = jax.lax.dot_general(
        w4t_ref[...], h,
        dimension_numbers=(((1,), (1,)), ((), ())),
        preferred_element_type=jnp.float32)
    z = z + b4t_ref[...]                        # [out_p, T] + [out_p, 1]

    n_out = o_ref.shape[0]
    o_ref[...] = jax.nn.sigmoid(z[:n_out, :]).astype(o_ref.dtype)


def discriminator_forward(x, params, *, out_features, batch_tile=None):
    """Discriminator forward. x: [B, inp] float32 -> [B, out_features] float32."""
    B, inp = x.shape
    if batch_tile is None:
        batch_tile = _pick_batch_tile(B)
    assert batch_tile % 128 == 0

    w1, b1 = params["w1"], params["b1"]
    w2, b2 = params["w2"], params["b2"]
    w3, b3 = params["w3"], params["b3"]
    w4t, b4t = params["w4t"], params["b4t"]
    assert w1.shape[0] == inp

    grid = (pl.cdiv(B, batch_tile),)
    full = lambda arr: pl.BlockSpec(arr.shape, lambda i: (0, 0))

    weights = (w1, b1, w2, b2, w3, b3, w4t, b4t)
    flops = 2 * B * (inp * 300 + 300 * 300 + 300 * 200 + 200 * out_features)
    bytes_accessed = (int(x.size) * x.dtype.itemsize
                      + sum(int(p.size) * p.dtype.itemsize for p in weights)
                      + B * out_features * 4)
    cost = pl.CostEstimate(flops=flops,
                           transcendentals=B * out_features,
                           bytes_accessed=bytes_accessed)

    out_t = pl.pallas_call(
        _mlp_kernel,
        out_shape=jax.ShapeDtypeStruct((out_features, B), jnp.float32),
        grid_spec=pltpu.PrefetchScalarGridSpec(
            num_scalar_prefetch=0,
            grid=grid,
            in_specs=[
                # f32 x, full feature width (784) — no wrapper pad / cast.
                pl.BlockSpec((batch_tile, inp), lambda i: (i, 0)),
                full(w1), full(b1),
                full(w2), full(b2),
                full(w3), full(b3),
                full(w4t), full(b4t),
            ],
            # Batch on the lane axis -> dense stores; the ragged tail block
            # (B not a multiple of batch_tile) is masked by Pallas on store.
            out_specs=pl.BlockSpec((out_features, batch_tile),
                                   lambda i: (0, i)),
        ),
        compiler_params=pltpu.CompilerParams(
            dimension_semantics=("parallel",)),
        cost_estimate=cost,
    )(x, w1, b1, w2, b2, w3, b3, w4t, b4t)

    # Back to the PyTorch [B, out] layout.
    return out_t.T


def init_params(key, inp, out):
    """nn.Linear-style init U(-1/sqrt(fan_in), +). Returns (kernel, reference)."""
    dims = [(inp, 300), (300, 300), (300, 200), (200, out)]
    params_ref = {}
    for idx, (fin, fout) in enumerate(dims, start=1):
        key, kw, kb = jax.random.split(key, 3)
        bound = 1.0 / float(fin) ** 0.5
        params_ref[f"w{idx}"] = jax.random.uniform(
            kw, (fin, fout), jnp.float32, -bound, bound)
        params_ref[f"b{idx}"] = jax.random.uniform(
            kb, (fout,), jnp.float32, -bound, bound)

    # Kernel-side parameters: fan-in of layer 1 stays un-padded (784); fan-out
    # dims lane-padded to 384 / 384 / 256; layer 4 stored pre-transposed.
    h1, h2, h3 = _round_up(300, 128), _round_up(300, 128), _round_up(200, 128)
    out_p = _round_up(out, 16)                 # bf16 sublane tile

    def padw(w, r, c):
        return jnp.zeros((r, c), jnp.float32).at[:w.shape[0], :w.shape[1]].set(w)

    def padb(b, c):
        return jnp.zeros((1, c), jnp.float32).at[0, :b.shape[0]].set(b)

    params = {
        "w1": padw(params_ref["w1"], inp, h1).astype(jnp.bfloat16),
        "b1": padb(params_ref["b1"], h1),
        "w2": padw(params_ref["w2"], h1, h2).astype(jnp.bfloat16),
        "b2": padb(params_ref["b2"], h2),
        "w3": padw(params_ref["w3"], h2, h3).astype(jnp.bfloat16),
        "b3": padb(params_ref["b3"], h3),
        "w4t": (jnp.zeros((out_p, h3), jnp.float32)
                .at[:out, :200].set(params_ref["w4"].T).astype(jnp.bfloat16)),
        "b4t": (jnp.zeros((out_p, 1), jnp.float32)
                .at[:out, 0].set(params_ref["b4"])),
    }
    return params, params_ref


def reference_forward(x, p):
    h = jnp.maximum(x @ p["w1"] + p["b1"], 0.0)
    h = jnp.maximum(h @ p["w2"] + p["b2"], 0.0)
    h = jnp.maximum(h @ p["w3"] + p["b3"], 0.0)
    return jax.nn.sigmoid(h @ p["w4"] + p["b4"])


if __name__ == "__main__":
    # MNIST-GAN discriminator shapes: inp=784, out=1; ragged batch (500)
    # exercises the masked last tile and the per-generation tiling choice
    # (one program on v5e/v6e, two programs on v7x).
    batch, inp, out = 500, 784, 1

    key = jax.random.PRNGKey(0)
    key, kx = jax.random.split(key)
    x = jax.random.normal(kx, (batch, inp), jnp.float32)

    params, params_ref = init_params(key, inp, out)

    fwd = jax.jit(functools.partial(discriminator_forward, out_features=out))
    y = fwd(x, params)
    jax.block_until_ready(y)

    y_ref = reference_forward(x, params_ref)
    assert y.shape == (batch, out)
    # bf16 weights/activations with f32 accumulation vs a pure-f32 reference.
    assert jnp.allclose(y, y_ref, atol=5e-2, rtol=0.0), "mismatch vs reference"

    print("KERNEL_OK")
</pallas_src>

<mosaic_0001>
module attributes {stable_mosaic.version = 11 : i64} {
  func.func @_mlp_kernel(%arg0: i32, %arg1: memref<512x784xf32, #tpu.memory_space<vmem>>, %arg2: memref<784x384xbf16, #tpu.memory_space<vmem>>, %arg3: memref<1x384xf32, #tpu.memory_space<vmem>>, %arg4: memref<384x384xbf16, #tpu.memory_space<vmem>>, %arg5: memref<1x384xf32, #tpu.memory_space<vmem>>, %arg6: memref<384x256xbf16, #tpu.memory_space<vmem>>, %arg7: memref<1x256xf32, #tpu.memory_space<vmem>>, %arg8: memref<16x256xbf16, #tpu.memory_space<vmem>>, %arg9: memref<16x1xf32, #tpu.memory_space<vmem>>, %arg10: memref<1x512xf32, #tpu.memory_space<vmem>>) attributes {dimension_semantics = [#tpu.dimension_semantics<parallel>], iteration_bounds = array<i64: 1>, scalar_prefetch = 0 : i64, scratch_operands = 0 : i64, tpu.core_type = #tpu.core_type<tc>, window_params = [{transform_indices = @transform_0, window_bounds = array<i64: 512, 784>}, {pipeline_mode = #tpu.pipeline_mode<synchronous>, transform_indices = @transform_1, window_bounds = array<i64: 784, 384>}, {pipeline_mode = #tpu.pipeline_mode<synchronous>, transform_indices = @transform_2, window_bounds = array<i64: 1, 384>}, {pipeline_mode = #tpu.pipeline_mode<synchronous>, transform_indices = @transform_3, window_bounds = array<i64: 384, 384>}, {pipeline_mode = #tpu.pipeline_mode<synchronous>, transform_indices = @transform_4, window_bounds = array<i64: 1, 384>}, {pipeline_mode = #tpu.pipeline_mode<synchronous>, transform_indices = @transform_5, window_bounds = array<i64: 384, 256>}, {pipeline_mode = #tpu.pipeline_mode<synchronous>, transform_indices = @transform_6, window_bounds = array<i64: 1, 256>}, {pipeline_mode = #tpu.pipeline_mode<synchronous>, transform_indices = @transform_7, window_bounds = array<i64: 16, 256>}, {pipeline_mode = #tpu.pipeline_mode<synchronous>, transform_indices = @transform_8, window_bounds = array<i64: 16, 1>}, {transform_indices = @transform_9, window_bounds = array<i64: 1, 512>}]} {
    %c0 = arith.constant 0 : index
    %c0_0 = arith.constant 0 : index
    %0 = vector.load %arg1[%c0, %c0_0] : memref<512x784xf32, #tpu.memory_space<vmem>>, vector<512x784xf32>
    %1 = arith.truncf %0 : vector<512x784xf32> to vector<512x784xbf16>
    %c0_1 = arith.constant 0 : index
    %c0_2 = arith.constant 0 : index
    %2 = vector.load %arg2[%c0_1, %c0_2] : memref<784x384xbf16, #tpu.memory_space<vmem>>, vector<784x384xbf16>
    %cst = arith.constant dense<0.000000e+00> : vector<512x384xf32>
    %3 = tpu.matmul %1, %2, %cst {dimension_numbers = #tpu.dot_dimension_numbers<[1], [0], [0], [1], [0, 0, 1, 1], [], []>} : vector<512x784xbf16>, vector<784x384xbf16>, vector<512x384xf32> -> vector<512x384xf32>
    %c0_3 = arith.constant 0 : index
    %c0_4 = arith.constant 0 : index
    %4 = vector.load %arg3[%c0_3, %c0_4] : memref<1x384xf32, #tpu.memory_space<vmem>>, vector<1x384xf32>
    %5 = vector.broadcast %4 : vector<1x384xf32> to vector<512x384xf32>
    %6 = arith.addf %3, %5 : vector<512x384xf32>
    %cst_5 = arith.constant 0.000000e+00 : f32
    %7 = vector.broadcast %cst_5 : f32 to vector<512x384xf32>
    %8 = arith.maximumf %6, %7 : vector<512x384xf32>
    %9 = arith.truncf %8 : vector<512x384xf32> to vector<512x384xbf16>
    %c0_6 = arith.constant 0 : index
    %c0_7 = arith.constant 0 : index
    %10 = vector.load %arg4[%c0_6, %c0_7] : memref<384x384xbf16, #tpu.memory_space<vmem>>, vector<384x384xbf16>
    %cst_8 = arith.constant dense<0.000000e+00> : vector<512x384xf32>
    %11 = tpu.matmul %9, %10, %cst_8 {dimension_numbers = #tpu.dot_dimension_numbers<[1], [0], [0], [1], [0, 0, 1, 1], [], []>} : vector<512x384xbf16>, vector<384x384xbf16>, vector<512x384xf32> -> vector<512x384xf32>
    %c0_9 = arith.constant 0 : index
    %c0_10 = arith.constant 0 : index
    %12 = vector.load %arg5[%c0_9, %c0_10] : memref<1x384xf32, #tpu.memory_space<vmem>>, vector<1x384xf32>
    %13 = vector.broadcast %12 : vector<1x384xf32> to vector<512x384xf32>
    %14 = arith.addf %11, %13 : vector<512x384xf32>
    %cst_11 = arith.constant 0.000000e+00 : f32
    %15 = vector.broadcast %cst_11 : f32 to vector<512x384xf32>
    %16 = arith.maximumf %14, %15 : vector<512x384xf32>
    %17 = arith.truncf %16 : vector<512x384xf32> to vector<512x384xbf16>
    %c0_12 = arith.constant 0 : index
    %c0_13 = arith.constant 0 : index
    %18 = vector.load %arg6[%c0_12, %c0_13] : memref<384x256xbf16, #tpu.memory_space<vmem>>, vector<384x256xbf16>
    %cst_14 = arith.constant dense<0.000000e+00> : vector<512x256xf32>
    %19 = tpu.matmul %17, %18, %cst_14 {dimension_numbers = #tpu.dot_dimension_numbers<[1], [0], [0], [1], [0, 0, 1, 1], [], []>} : vector<512x384xbf16>, vector<384x256xbf16>, vector<512x256xf32> -> vector<512x256xf32>
    %c0_15 = arith.constant 0 : index
    %c0_16 = arith.constant 0 : index
    %20 = vector.load %arg7[%c0_15, %c0_16] : memref<1x256xf32, #tpu.memory_space<vmem>>, vector<1x256xf32>
    %21 = vector.broadcast %20 : vector<1x256xf32> to vector<512x256xf32>
    %22 = arith.addf %19, %21 : vector<512x256xf32>
    %cst_17 = arith.constant 0.000000e+00 : f32
    %23 = vector.broadcast %cst_17 : f32 to vector<512x256xf32>
    %24 = arith.maximumf %22, %23 : vector<512x256xf32>
    %25 = arith.truncf %24 : vector<512x256xf32> to vector<512x256xbf16>
    %c0_18 = arith.constant 0 : index
    %c0_19 = arith.constant 0 : index
    %26 = vector.load %arg8[%c0_18, %c0_19] : memref<16x256xbf16, #tpu.memory_space<vmem>>, vector<16x256xbf16>
    %cst_20 = arith.constant dense<0.000000e+00> : vector<16x512xf32>
    %27 = tpu.matmul %26, %25, %cst_20 {dimension_numbers = #tpu.dot_dimension_numbers<[1], [1], [0], [0], [0, 0, 1, 0], [], []>} : vector<16x256xbf16>, vector<512x256xbf16>, vector<16x512xf32> -> vector<16x512xf32>
    %c0_21 = arith.constant 0 : index
    %c0_22 = arith.constant 0 : index
    %28 = vector.load %arg9[%c0_21, %c0_22] : memref<16x1xf32, #tpu.memory_space<vmem>>, vector<16x1xf32>
    %29 = vector.broadcast %28 : vector<16x1xf32> to vector<16x512xf32>
    %30 = arith.addf %27, %29 : vector<16x512xf32>
    %31 = vector.extract_strided_slice %30 {offsets = [0, 0], sizes = [1, 512], strides = [1, 1]} : vector<16x512xf32> to vector<1x512xf32>
    %32 = arith.negf %31 : vector<1x512xf32>
    %33 = math.exp %32 : vector<1x512xf32>
    %cst_23 = arith.constant 1.000000e+00 : f32
    %34 = vector.broadcast %cst_23 : f32 to vector<1x512xf32>
    %35 = arith.addf %34, %33 : vector<1x512xf32>
    %36 = arith.divf %34, %35 : vector<1x512xf32>
    %c0_24 = arith.constant 0 : index
    %c0_25 = arith.constant 0 : index
    %37 = vector.load %arg10[%c0_24, %c0_25] : memref<1x512xf32, #tpu.memory_space<vmem>>, vector<1x512xf32>
    tpu.vector_store %arg10[%c0_24, %c0_25], %36 {strides = array<i32>} : memref<1x512xf32, #tpu.memory_space<vmem>>, vector<1x512xf32>,
    return
  }
  func.func @transform_0(%arg0: i32) -> (i32, i32) {
    %c0_i32 = arith.constant 0 : i32
    %c0_i32_0 = arith.constant 0 : i32
    return %arg0, %c0_i32 : i32, i32
  }
  func.func @transform_1(%arg0: i32) -> (i32, i32) {
    %c0_i32 = arith.constant 0 : i32
    %c0_i32_0 = arith.constant 0 : i32
    %c0_i32_1 = arith.constant 0 : i32
    return %c0_i32, %c0_i32_0 : i32, i32
  }
  func.func @transform_2(%arg0: i32) -> (i32, i32) {
    %c0_i32 = arith.constant 0 : i32
    %c0_i32_0 = arith.constant 0 : i32
    %c0_i32_1 = arith.constant 0 : i32
    return %c0_i32, %c0_i32_0 : i32, i32
  }
  func.func @transform_3(%arg0: i32) -> (i32, i32) {
    %c0_i32 = arith.constant 0 : i32
    %c0_i32_0 = arith.constant 0 : i32
    %c0_i32_1 = arith.constant 0 : i32
    return %c0_i32, %c0_i32_0 : i32, i32
  }
  func.func @transform_4(%arg0: i32) -> (i32, i32) {
    %c0_i32 = arith.constant 0 : i32
    %c0_i32_0 = arith.constant 0 : i32
    %c0_i32_1 = arith.constant 0 : i32
    return %c0_i32, %c0_i32_0 : i32, i32
  }
  func.func @transform_5(%arg0: i32) -> (i32, i32) {
    %c0_i32 = arith.constant 0 : i32
    %c0_i32_0 = arith.constant 0 : i32
    %c0_i32_1 = arith.constant 0 : i32
    return %c0_i32, %c0_i32_0 : i32, i32
  }
  func.func @transform_6(%arg0: i32) -> (i32, i32) {
    %c0_i32 = arith.constant 0 : i32
    %c0_i32_0 = arith.constant 0 : i32
    %c0_i32_1 = arith.constant 0 : i32
    return %c0_i32, %c0_i32_0 : i32, i32
  }
  func.func @transform_7(%arg0: i32) -> (i32, i32) {
    %c0_i32 = arith.constant 0 : i32
    %c0_i32_0 = arith.constant 0 : i32
    %c0_i32_1 = arith.constant 0 : i32
    return %c0_i32, %c0_i32_0 : i32, i32
  }
  func.func @transform_8(%arg0: i32) -> (i32, i32) {
    %c0_i32 = arith.constant 0 : i32
    %c0_i32_0 = arith.constant 0 : i32
    %c0_i32_1 = arith.constant 0 : i32
    return %c0_i32, %c0_i32_0 : i32, i32
  }
  func.func @transform_9(%arg0: i32) -> (i32, i32) {
    %c0_i32 = arith.constant 0 : i32
    %c0_i32_0 = arith.constant 0 : i32
    return %c0_i32, %arg0 : i32, i32
  }
}

</mosaic_0001>

<llo_original>
// kernel: discriminator_forward.1
$region0: #{discriminator_forward.1}
  #allocation0 [shape = 'u32[]', space=smem, size = 0x4, offset = 0x4, fixed_abs, tag = 'smem constant byte address 0x4 - core index']
  #allocation1 [shape = 'u32[144,128]{1,0:T(1,128)}', space=vmem, size = 0x12000, scoped, tag = 'internal scratch']
  %s0 = inlined_call_operand.vmem [shape: f32[500,784], index: 0, kind: input, shape index: {}]
  %s1 = inlined_call_operand.vmem [shape: bf16[784,384], index: 1, kind: input, shape index: {}]
  %s2 = inlined_call_operand.vmem [shape: f32[1,384], index: 2, kind: input, shape index: {}]
  %s3 = inlined_call_operand.vmem [shape: bf16[384,384], index: 3, kind: input, shape index: {}]
  %s4 = inlined_call_operand.vmem [shape: f32[1,384], index: 4, kind: input, shape index: {}]
  %s5 = inlined_call_operand.vmem [shape: bf16[384,256], index: 5, kind: input, shape index: {}]
  %s6 = inlined_call_operand.vmem [shape: f32[1,256], index: 6, kind: input, shape index: {}]
  %s7 = inlined_call_operand.vmem [shape: bf16[16,256], index: 7, kind: input, shape index: {}]
  %s8 = inlined_call_operand.vmem [shape: f32[16,1], index: 8, kind: input, shape index: {}]
  %s9 = inlined_call_operand.hbm [shape: f32[1,500], index: 9, kind: output, shape index: {}]
  %s10 = sld [smem:[#allocation0]]
  $region46: #{discriminator_forward.1} parent=0
    _
  %s12 = ssub.s32 1, %s10
  %s13 = scalar_select 0, %s12, %s10
  $region1: #{discriminator_forward.1} parent=0
    #allocation2 [shape = 'u8[2048]{0}', space=vmem, size = 0x800, scoped, tag = 'output window, operand 0, single buffered']
    #allocation3 [shape = 's32[1]{0}', space=sflag, size = 0x4, scoped, tag = 'scoped memory for discriminator_forward.1']
    %14 = vsyncpa [#allocation3], 0
    // Predicated region
    $region2: #{discriminator_forward.1} parent=1 // pred_check
      _
    $region3: #{discriminator_forward.1} parent=1 // pred_check_branch
      %16 = sbr.rel (0) target = $region5
    $region4: #{discriminator_forward.1} parent=1 // pred_region
      _
    $region5: #{discriminator_forward.1} parent=1 // pred_fallthru
      _
    // Predicated region
    $region6: #{discriminator_forward.1} parent=1 // pred_check
      _
    $region7: #{discriminator_forward.1} parent=1 // pred_check_branch
      %18 = sbr.rel (0) target = $region9
    $region8: #{discriminator_forward.1} parent=1 // pred_region
      _
    $region9: #{discriminator_forward.1} parent=1 // pred_fallthru
      _
    // Predicated region
    $region10: #{discriminator_forward.1} parent=1 // pred_check
      _
    $region11: #{discriminator_forward.1} parent=1 // pred_check_branch
      %20 = sbr.rel (0) target = $region13
    $region12: #{discriminator_forward.1} parent=1 // pred_region
      _
    $region13: #{discriminator_forward.1} parent=1 // pred_fallthru
      _
    // Predicated region
    $region14: #{discriminator_forward.1} parent=1 // pred_check
      _
    $region15: #{discriminator_forward.1} parent=1 // pred_check_branch
      %22 = sbr.rel (0) target = $region17
    $region16: #{discriminator_forward.1} parent=1 // pred_region
      _
    $region17: #{discriminator_forward.1} parent=1 // pred_fallthru
      _
    // Predicated region
    $region18: #{discriminator_forward.1} parent=1 // pred_check
      _
    $region19: #{discriminator_forward.1} parent=1 // pred_check_branch
      %24 = sbr.rel (0) target = $region21
    $region20: #{discriminator_forward.1} parent=1 // pred_region
      _
    $region21: #{discriminator_forward.1} parent=1 // pred_fallthru
      _
    // Predicated region
    $region22: #{discriminator_forward.1} parent=1 // pred_check
      _
    $region23: #{discriminator_forward.1} parent=1 // pred_check_branch
      %26 = sbr.rel (0) target = $region25
    $region24: #{discriminator_forward.1} parent=1 // pred_region
      _
    $region25: #{discriminator_forward.1} parent=1 // pred_fallthru
      _
    // Predicated region
    $region26: #{discriminator_forward.1} parent=1 // pred_check
      _
    $region27: #{discriminator_forward.1} parent=1 // pred_check_branch
      %28 = sbr.rel (0) target = $region29
    $region28: #{discriminator_forward.1} parent=1 // pred_region
      _
    $region29: #{discriminator_forward.1} parent=1 // pred_fallthru
      _
    // Predicated region
    $region30: #{discriminator_forward.1} parent=1 // pred_check
      _
    $region31: #{discriminator_forward.1} parent=1 // pred_check_branch
      %30 = sbr.rel (0) target = $region33
    $region32: #{discriminator_forward.1} parent=1 // pred_region
      _
    $region33: #{discriminator_forward.1} parent=1 // pred_fallthru
      _
    // Predicated region
    $region34: #{discriminator_forward.1} parent=1 // pred_check
      _
    $region35: #{discriminator_forward.1} parent=1 // pred_check_branch
      %32 = sbr.rel (0) target = $region37
    $region36: #{discriminator_forward.1} parent=1 // pred_region
      _
    $region37: #{discriminator_forward.1} parent=1 // pred_fallthru
      _
    %v34 = vld [vmem:[%s0] sm:$0xff]
    %v35 = vld [vmem:[%s0 + $0x8] sm:$0xff]
    %v36 = vld [vmem:[%s0 + $0x10] sm:$0xff]
    %v37 = vld [vmem:[%s0 + $0x18] sm:$0xff]
    %v38 = vld [vmem:[%s0 + $0x20] sm:$0xff]
    %v39 = vld [vmem:[%s0 + $0x28] sm:$0xff]
    %v40 = vld [vmem:[%s0 + $0x30] sm:$0xff]
    %v41 = vld [vmem:[%s0 + $0x38] sm:$0xff]
    %v42 = vld [vmem:[%s0 + $0x40] sm:$0xff]
    %v43 = vld [vmem:[%s0 + $0x48] sm:$0xff]
    %v44 = vld [vmem:[%s0 + $0x50] sm:$0xff]
    %v45 = vld [vmem:[%s0 + $0x58] sm:$0xff]
    %v46 = vld [vmem:[%s0 + $0x60] sm:$0xff]
    %v47 = vld [vmem:[%s0 + $0x68] sm:$0xff]
    %v48 = vld [vmem:[%s0 + $0x70] sm:$0xff]
    %v49 = vld [vmem:[%s0 + $0x78] sm:$0xff]
    %v50 = vld [vmem:[%s0 + $0x80] sm:$0xff]
    %v51 = vld [vmem:[%s0 + $0x88] sm:$0xff]
    %v52 = vld [vmem:[%s0 + $0x90] sm:$0xff]
    %v53 = vld [vmem:[%s0 + $0x98] sm:$0xff]
    %v54 = vld [vmem:[%s0 + $0xa0] sm:$0xff]
    %v55 = vld [vmem:[%s0 + $0xa8] sm:$0xff]
    %v56 = vld [vmem:[%s0 + $0xb0] sm:$0xff]
    %v57 = vld [vmem:[%s0 + $0xb8] sm:$0xff]
    %v58 = vld [vmem:[%s0 + $0xc0] sm:$0xff]
    %v59 = vld [vmem:[%s0 + $0xc8] sm:$0xff]
    %v60 = vld [vmem:[%s0 + $0xd0] sm:$0xff]
    %v61 = vld [vmem:[%s0 + $0xd8] sm:$0xff]
    %v62 = vld [vmem:[%s0 + $0xe0] sm:$0xff]
    %v63 = vld [vmem:[%s0 + $0xe8] sm:$0xff]
    %v64 = vld [vmem:[%s0 + $0xf0] sm:$0xff]
    %v65 = vld [vmem:[%s0 + $0xf8] sm:$0xff]
    %v66 = vld [vmem:[%s0 + $0x100] sm:$0xff]
    %v67 = vld [vmem:[%s0 + $0x108] sm:$0xff]
    %v68 = vld [vmem:[%s0 + $0x110] sm:$0xff]
    %v69 = vld [vmem:[%s0 + $0x118] sm:$0xff]
    %v70 = vld [vmem:[%s0 + $0x120] sm:$0xff]
    %v71 = vld [vmem:[%s0 + $0x128] sm:$0xff]
    %v72 = vld [vmem:[%s0 + $0x130] sm:$0xff]
    %v73 = vld [vmem:[%s0 + $0x138] sm:$0xff]
    %v74 = vld [vmem:[%s0 + $0x140] sm:$0xff]
    %v75 = vld [vmem:[%s0 + $0x148] sm:$0xff]
    %v76 = vld [vmem:[%s0 + $0x150] sm:$0xff]
    %v77 = vld [vmem:[%s0 + $0x158] sm:$0xff]
    %v78 = vld [vmem:[%s0 + $0x160] sm:$0xff]
    %v79 = vld [vmem:[%s0 + $0x168] sm:$0xff]
    %v80 = vld [vmem:[%s0 + $0x170] sm:$0xff]
    %v81 = vld [vmem:[%s0 + $0x178] sm:$0xff]
    %v82 = vld [vmem:[%s0 + $0x180] sm:$0xff]
    %v83 = vld [vmem:[%s0 + $0x188] sm:$0xff]
    %v84 = vld [vmem:[%s0 + $0x190] sm:$0xff]
    %v85 = vld [vmem:[%s0 + $0x198] sm:$0xff]
    %v86 = vld [vmem:[%s0 + $0x1a0] sm:$0xff]
    %v87 = vld [vmem:[%s0 + $0x1a8] sm:$0xff]
    %v88 = vld [vmem:[%s0 + $0x1b0] sm:$0xff]
    %v89 = vld [vmem:[%s0 + $0x1b8] sm:$0xff]
    %v90 = vld [vmem:[%s0 + $0x1c0] sm:$0xff]
    %v91 = vld [vmem:[%s0 + $0x1c8] sm:$0xff]
    %v92 = vld [vmem:[%s0 + $0x1d0] sm:$0xff]
    %v93 = vld [vmem:[%s0 + $0x1d8] sm:$0xff]
    %v94 = vld [vmem:[%s0 + $0x1e0] sm:$0xff]
    %v95 = vld [vmem:[%s0 + $0x1e8] sm:$0xff]
    %v96 = vld [vmem:[%s0 + $0x1f0] sm:$0xff]
    %v97 = vld [vmem:[%s0 + $0x1f8] sm:$0xff]
    %v98 = vld [vmem:[%s0 + $0x200] sm:$0xff]
    %v99 = vld [vmem:[%s0 + $0x208] sm:$0xff]
    %v100 = vld [vmem:[%s0 + $0x210] sm:$0xff]
    %v101 = vld [vmem:[%s0 + $0x218] sm:$0xff]
    %v102 = vld [vmem:[%s0 + $0x220] sm:$0xff]
    %v103 = vld [vmem:[%s0 + $0x228] sm:$0xff]
    %v104 = vld [vmem:[%s0 + $0x230] sm:$0xff]
    %v105 = vld [vmem:[%s0 + $0x238] sm:$0xff]
    %v106 = vld [vmem:[%s0 + $0x240] sm:$0xff]
    %v107 = vld [vmem:[%s0 + $0x248] sm:$0xff]
    %v108 = vld [vmem:[%s0 + $0x250] sm:$0xff]
    %v109 = vld [vmem:[%s0 + $0x258] sm:$0xff]
    %v110 = vld [vmem:[%s0 + $0x260] sm:$0xff]
    %v111 = vld [vmem:[%s0 + $0x268] sm:$0xff]
    %v112 = vld [vmem:[%s0 + $0x270] sm:$0xff]
    %v113 = vld [vmem:[%s0 + $0x278] sm:$0xff]
    %v114 = vld [vmem:[%s0 + $0x280] sm:$0xff]
    %v115 = vld [vmem:[%s0 + $0x288] sm:$0xff]
    %v116 = vld [vmem:[%s0 + $0x290] sm:$0xff]
    %v117 = vld [vmem:[%s0 + $0x298] sm:$0xff]
    %v118 = vld [vmem:[%s0 + $0x2a0] sm:$0xff]
    %v119 = vld [vmem:[%s0 + $0x2a8] sm:$0xff]
    %v120 = vld [vmem:[%s0 + $0x2b0] sm:$0xff]
    %v121 = vld [vmem:[%s0 + $0x2b8] sm:$0xff]
    %v122 = vld [vmem:[%s0 + $0x2c0] sm:$0xff]
    %v123 = vld [vmem:[%s0 + $0x2c8] sm:$0xff]
    %v124 = vld [vmem:[%s0 + $0x2d0] sm:$0xff]
    %v125 = vld [vmem:[%s0 + $0x2d8] sm:$0xff]
    %v126 = vld [vmem:[%s0 + $0x2e0] sm:$0xff]
    %v127 = vld [vmem:[%s0 + $0x2e8] sm:$0xff]
    %v128 = vld [vmem:[%s0 + $0x2f0] sm:$0xff]
    %v129 = vld [vmem:[%s0 + $0x2f8] sm:$0xff]
    %v130 = vld [vmem:[%s0 + $0x300] sm:$0xff]
    %v131 = vld [vmem:[%s0 + $0x308] sm:$0xff]
    %v132 = vld [vmem:[%s0 + $0x310] sm:$0xff]
    %v133 = vld [vmem:[%s0 + $0x318] sm:$0xff]
    %v134 = vld [vmem:[%s0 + $0x320] sm:$0xff]
    %v135 = vld [vmem:[%s0 + $0x328] sm:$0xff]
    %v136 = vld [vmem:[%s0 + $0x330] sm:$0xff]
    %v137 = vld [vmem:[%s0 + $0x338] sm:$0xff]
    %v138 = vld [vmem:[%s0 + $0x340] sm:$0xff]
    %v139 = vld [vmem:[%s0 + $0x348] sm:$0xff]
    %v140 = vld [vmem:[%s0 + $0x350] sm:$0xff]
    %v141 = vld [vmem:[%s0 + $0x358] sm:$0xff]
    %v142 = vld [vmem:[%s0 + $0x360] sm:$0xff]
    %v143 = vld [vmem:[%s0 + $0x368] sm:$0xff]
    %v144 = vld [vmem:[%s0 + $0x370] sm:$0xff]
    %v145 = vld [vmem:[%s0 + $0x378] sm:$0xff]
    %v146 = vld [vmem:[%s0 + $0x380] sm:$0xff]
    %v147 = vld [vmem:[%s0 + $0x388] sm:$0xff]
    %v148 = vld [vmem:[%s0 + $0x390] sm:$0xff]
    %v149 = vld [vmem:[%s0 + $0x398] sm:$0xff]
    %v150 = vld [vmem:[%s0 + $0x3a0] sm:$0xff]
    %v151 = vld [vmem:[%s0 + $0x3a8] sm:$0xff]
    %v152 = vld [vmem:[%s0 + $0x3b0] sm:$0xff]
    %v153 = vld [vmem:[%s0 + $0x3b8] sm:$0xff]
    %v154 = vld [vmem:[%s0 + $0x3c0] sm:$0xff]
    %v155 = vld [vmem:[%s0 + $0x3c8] sm:$0xff]
    %v156 = vld [vmem:[%s0 + $0x3d0] sm:$0xff]
    %v157 = vld [vmem:[%s0 + $0x3d8] sm:$0xff]
    %v158 = vld [vmem:[%s0 + $0x3e0] sm:$0xff]
    %v159 = vld [vmem:[%s0 + $0x3e8] sm:$0xff]
    %v160 = vld [vmem:[%s0 + $0x3f0] sm:$0xff]
    %v161 = vld [vmem:[%s0 + $0x3f8] sm:$0xff]
    %v162 = vld [vmem:[%s0 + $0x400] sm:$0xff]
    %v163 = vld [vmem:[%s0 + $0x408] sm:$0xff]
    %v164 = vld [vmem:[%s0 + $0x410] sm:$0xff]
    %v165 = vld [vmem:[%s0 + $0x418] sm:$0xff]
    %v166 = vld [vmem:[%s0 + $0x420] sm:$0xff]
    %v167 = vld [vmem:[%s0 + $0x428] sm:$0xff]
    %v168 = vld [vmem:[%s0 + $0x430] sm:$0xff]
    %v169 = vld [vmem:[%s0 + $0x438] sm:$0xff]
    %v170 = vld [vmem:[%s0 + $0x440] sm:$0xff]
    %v171 = vld [vmem:[%s0 + $0x448] sm:$0xff]
    %v172 = vld [vmem:[%s0 + $0x450] sm:$0xff]
    %v173 = vld [vmem:[%s0 + $0x458] sm:$0xff]
    %v174 = vld [vmem:[%s0 + $0x460] sm:$0xff]
    %v175 = vld [vmem:[%s0 + $0x468] sm:$0xff]
    %v176 = vld [vmem:[%s0 + $0x470] sm:$0xff]
    %v177 = vld [vmem:[%s0 + $0x478] sm:$0xff]
    %v178 = vld [vmem:[%s0 + $0x480] sm:$0xff]
    %v179 = vld [vmem:[%s0 + $0x488] sm:$0xff]
    %v180 = vld [vmem:[%s0 + $0x490] sm:$0xff]
    %v181 = vld [vmem:[%s0 + $0x498] sm:$0xff]
    %v182 = vld [vmem:[%s0 + $0x4a0] sm:$0xff]
    %v183 = vld [vmem:[%s0 + $0x4a8] sm:$0xff]
    %v184 = vld [vmem:[%s0 + $0x4b0] sm:$0xff]
    %v185 = vld [vmem:[%s0 + $0x4b8] sm:$0xff]
    %v186 = vld [vmem:[%s0 + $0x4c0] sm:$0xff]
    %v187 = vld [vmem:[%s0 + $0x4c8] sm:$0xff]
    %v188 = vld [vmem:[%s0 + $0x4d0] sm:$0xff]
    %v189 = vld [vmem:[%s0 + $0x4d8] sm:$0xff]
    %v190 = vld [vmem:[%s0 + $0x4e0] sm:$0xff]
    %v191 = vld [vmem:[%s0 + $0x4e8] sm:$0xff]
    %v192 = vld [vmem:[%s0 + $0x4f0] sm:$0xff]
    %v193 = vld [vmem:[%s0 + $0x4f8] sm:$0xff]
    %v194 = vld [vmem:[%s0 + $0x500] sm:$0xff]
    %v195 = vld [vmem:[%s0 + $0x508] sm:$0xff]
    %v196 = vld [vmem:[%s0 + $0x510] sm:$0xff]
    %v197 = vld [vmem:[%s0 + $0x518] sm:$0xff]
    %v198 = vld [vmem:[%s0 + $0x520] sm:$0xff]
    %v199 = vld [vmem:[%s0 + $0x528] sm:$0xff]
    %v200 = vld [vmem:[%s0 + $0x530] sm:$0xff]
    %v201 = vld [vmem:[%s0 + $0x538] sm:$0xff]
    %v202 = vld [vmem:[%s0 + $0x540] sm:$0xff]
    %v203 = vld [vmem:[%s0 + $0x548] sm:$0xff]
    %v204 = vld [vmem:[%s0 + $0x550] sm:$0xff]
    %v205 = vld [vmem:[%s0 + $0x558] sm:$0xff]
    %v206 = vld [vmem:[%s0 + $0x560] sm:$0xff]
    %v207 = vld [vmem:[%s0 + $0x568] sm:$0xff]
    %v208 = vld [vmem:[%s0 + $0x570] sm:$0xff]
    %v209 = vld [vmem:[%s0 + $0x578] sm:$0xff]
    %v210 = vld [vmem:[%s0 + $0x580] sm:$0xff]
    %v211 = vld [vmem:[%s0 + $0x588] sm:$0xff]
    %v212 = vld [vmem:[%s0 + $0x590] sm:$0xff]
    %v213 = vld [vmem:[%s0 + $0x598] sm:$0xff]
    %v214 = vld [vmem:[%s0 + $0x5a0] sm:$0xff]
    %v215 = vld [vmem:[%s0 + $0x5a8] sm:$0xff]
    %v216 = vld [vmem:[%s0 + $0x5b0] sm:$0xff]
    %v217 = vld [vmem:[%s0 + $0x5b8] sm:$0xff]
    %v218 = vld [vmem:[%s0 + $0x5c0] sm:$0xff]
    %v219 = vld [vmem:[%s0 + $0x5c8] sm:$0xff]
    %v220 = vld [vmem:[%s0 + $0x5d0] sm:$0xff]
    %v221 = vld [vmem:[%s0 + $0x5d8] sm:$0xff]
    %v222 = vld [vmem:[%s0 + $0x5e0] sm:$0xff]
    %v223 = vld [vmem:[%s0 + $0x5e8] sm:$0xff]
    %v224 = vld [vmem:[%s0 + $0x5f0] sm:$0xff]
    %v225 = vld [vmem:[%s0 + $0x5f8] sm:$0xff]
    %v226 = vld [vmem:[%s0 + $0x600] sm:$0xff]
    %v227 = vld [vmem:[%s0 + $0x608] sm:$0xff]
    %v228 = vld [vmem:[%s0 + $0x610] sm:$0xff]
    %v229 = vld [vmem:[%s0 + $0x618] sm:$0xff]
    %v230 = vld [vmem:[%s0 + $0x620] sm:$0xff]
    %v231 = vld [vmem:[%s0 + $0x628] sm:$0xff]
    %v232 = vld [vmem:[%s0 + $0x630] sm:$0xff]
    %v233 = vld [vmem:[%s0 + $0x638] sm:$0xff]
    %v234 = vld [vmem:[%s0 + $0x640] sm:$0xff]
    %v235 = vld [vmem:[%s0 + $0x648] sm:$0xff]
    %v236 = vld [vmem:[%s0 + $0x650] sm:$0xff]
    %v237 = vld [vmem:[%s0 + $0x658] sm:$0xff]
    %v238 = vld [vmem:[%s0 + $0x660] sm:$0xff]
    %v239 = vld [vmem:[%s0 + $0x668] sm:$0xff]
    %v240 = vld [vmem:[%s0 + $0x670] sm:$0xff]
    %v241 = vld [vmem:[%s0 + $0x678] sm:$0xff]
    %v242 = vld [vmem:[%s0 + $0x680] sm:$0xff]
    %v243 = vld [vmem:[%s0 + $0x688] sm:$0xff]
    %v244 = vld [vmem:[%s0 + $0x690] sm:$0xff]
    %v245 = vld [vmem:[%s0 + $0x698] sm:$0xff]
    %v246 = vld [vmem:[%s0 + $0x6a0] sm:$0xff]
    %v247 = vld [vmem:[%s0 + $0x6a8] sm:$0xff]
    %v248 = vld [vmem:[%s0 + $0x6b0] sm:$0xff]
    %v249 = vld [vmem:[%s0 + $0x6b8] sm:$0xff]
    %v250 = vld [vmem:[%s0 + $0x6c0] sm:$0xff]
    %v251 = vld [vmem:[%s0 + $0x6c8] sm:$0xff]
    %v252 = vld [vmem:[%s0 + $0x6d0] sm:$0xff]
    %v253 = vld [vmem:[%s0 + $0x6d8] sm:$0xff]
    %v254 = vld [vmem:[%s0 + $0x6e0] sm:$0xff]
    %v255 = vld [vmem:[%s0 + $0x6e8] sm:$0xff]
    %v256 = vld [vmem:[%s0 + $0x6f0] sm:$0xff]
    %v257 = vld [vmem:[%s0 + $0x6f8] sm:$0xff]
    %v258 = vld [vmem:[%s0 + $0x700] sm:$0xff]
    %v259 = vld [vmem:[%s0 + $0x708] sm:$0xff]
    %v260 = vld [vmem:[%s0 + $0x710] sm:$0xff]
    %v261 = vld [vmem:[%s0 + $0x718] sm:$0xff]
    %v262 = vld [vmem:[%s0 + $0x720] sm:$0xff]
    %v263 = vld [vmem:[%s0 + $0x728] sm:$0xff]
    %v264 = vld [vmem:[%s0 + $0x730] sm:$0xff]
    %v265 = vld [vmem:[%s0 + $0x738] sm:$0xff]
    %v266 = vld [vmem:[%s0 + $0x740] sm:$0xff]
    %v267 = vld [vmem:[%s0 + $0x748] sm:$0xff]
    %v268 = vld [vmem:[%s0 + $0x750] sm:$0xff]
    %v269 = vld [vmem:[%s0 + $0x758] sm:$0xff]
    %v270 = vld [vmem:[%s0 + $0x760] sm:$0xff]
    %v271 = vld [vmem:[%s0 + $0x768] sm:$0xff]
    %v272 = vld [vmem:[%s0 + $0x770] sm:$0xff]
    %v273 = vld [vmem:[%s0 + $0x778] sm:$0xff]
    %v274 = vld [vmem:[%s0 + $0x780] sm:$0xff]
    %v275 = vld [vmem:[%s0 + $0x788] sm:$0xff]
    %v276 = vld [vmem:[%s0 + $0x790] sm:$0xff]
    %v277 = vld [vmem:[%s0 + $0x798] sm:$0xff]
    %v278 = vld [vmem:[%s0 + $0x7a0] sm:$0xff]
    %v279 = vld [vmem:[%s0 + $0x7a8] sm:$0xff]
    %v280 = vld [vmem:[%s0 + $0x7b0] sm:$0xff]
    %v281 = vld [vmem:[%s0 + $0x7b8] sm:$0xff]
    %v282 = vld [vmem:[%s0 + $0x7c0] sm:$0xff]
    %v283 = vld [vmem:[%s0 + $0x7c8] sm:$0xff]
    %v284 = vld [vmem:[%s0 + $0x7d0] sm:$0xff]
    %v285 = vld [vmem:[%s0 + $0x7d8] sm:$0xff]
    %v286 = vld [vmem:[%s0 + $0x7e0] sm:$0xff]
    %v287 = vld [vmem:[%s0 + $0x7e8] sm:$0xff]
    %v288 = vld [vmem:[%s0 + $0x7f0] sm:$0xff]
    %v289 = vld [vmem:[%s0 + $0x7f8] sm:$0xff]
    %v290 = vld [vmem:[%s0 + $0x800] sm:$0xff]
    %v291 = vld [vmem:[%s0 + $0x808] sm:$0xff]
    %v292 = vld [vmem:[%s0 + $0x810] sm:$0xff]
    %v293 = vld [vmem:[%s0 + $0x818] sm:$0xff]
    %v294 = vld [vmem:[%s0 + $0x820] sm:$0xff]
    %v295 = vld [vmem:[%s0 + $0x828] sm:$0xff]
    %v296 = vld [vmem:[%s0 + $0x830] sm:$0xff]
    %v297 = vld [vmem:[%s0 + $0x838] sm:$0xff]
    %v298 = vld [vmem:[%s0 + $0x840] sm:$0xff]
    %v299 = vld [vmem:[%s0 + $0x848] sm:$0xff]
    %v300 = vld [vmem:[%s0 + $0x850] sm:$0xff]
    %v301 = vld [vmem:[%s0 + $0x858] sm:$0xff]
    %v302 = vld [vmem:[%s0 + $0x860] sm:$0xff]
    %v303 = vld [vmem:[%s0 + $0x868] sm:$0xff]
    %v304 = vld [vmem:[%s0 + $0x870] sm:$0xff]
    %v305 = vld [vmem:[%s0 + $0x878] sm:$0xff]
    %v306 = vld [vmem:[%s0 + $0x880] sm:$0xff]
    %v307 = vld [vmem:[%s0 + $0x888] sm:$0xff]
    %v308 = vld [vmem:[%s0 + $0x890] sm:$0xff]
    %v309 = vld [vmem:[%s0 + $0x898] sm:$0xff]
    %v310 = vld [vmem:[%s0 + $0x8a0] sm:$0xff]
    %v311 = vld [vmem:[%s0 + $0x8a8] sm:$0xff]
    %v312 = vld [vmem:[%s0 + $0x8b0] sm:$0xff]
    %v313 = vld [vmem:[%s0 + $0x8b8] sm:$0xff]
    %v314 = vld [vmem:[%s0 + $0x8c0] sm:$0xff]
    %v315 = vld [vmem:[%s0 + $0x8c8] sm:$0xff]
    %v316 = vld [vmem:[%s0 + $0x8d0] sm:$0xff]
    %v317 = vld [vmem:[%s0 + $0x8d8] sm:$0xff]
    %v318 = vld [vmem:[%s0 + $0x8e0] sm:$0xff]
    %v319 = vld [vmem:[%s0 + $0x8e8] sm:$0xff]
    %v320 = vld [vmem:[%s0 + $0x8f0] sm:$0xff]
    %v321 = vld [vmem:[%s0 + $0x8f8] sm:$0xff]
    %v322 = vld [vmem:[%s0 + $0x900] sm:$0xff]
    %v323 = vld [vmem:[%s0 + $0x908] sm:$0xff]
    %v324 = vld [vmem:[%s0 + $0x910] sm:$0xff]
    %v325 = vld [vmem:[%s0 + $0x918] sm:$0xff]
    %v326 = vld [vmem:[%s0 + $0x920] sm:$0xff]
    %v327 = vld [vmem:[%s0 + $0x928] sm:$0xff]
    %v328 = vld [vmem:[%s0 + $0x930] sm:$0xff]
    %v329 = vld [vmem:[%s0 + $0x938] sm:$0xff]
    %v330 = vld [vmem:[%s0 + $0x940] sm:$0xff]
    %v331 = vld [vmem:[%s0 + $0x948] sm:$0xff]
    %v332 = vld [vmem:[%s0 + $0x950] sm:$0xff]
    %v333 = vld [vmem:[%s0 + $0x958] sm:$0xff]
    %v334 = vld [vmem:[%s0 + $0x960] sm:$0xff]
    %v335 = vld [vmem:[%s0 + $0x968] sm:$0xff]
    %v336 = vld [vmem:[%s0 + $0x970] sm:$0xff]
    %v337 = vld [vmem:[%s0 + $0x978] sm:$0xff]
    %v338 = vld [vmem:[%s0 + $0x980] sm:$0xff]
    %v339 = vld [vmem:[%s0 + $0x988] sm:$0xff]
    %v340 = vld [vmem:[%s0 + $0x990] sm:$0xff]
    %v341 = vld [vmem:[%s0 + $0x998] sm:$0xff]
    %v342 = vld [vmem:[%s0 + $0x9a0] sm:$0xff]
    %v343 = vld [vmem:[%s0 + $0x9a8] sm:$0xff]
    %v344 = vld [vmem:[%s0 + $0x9b0] sm:$0xff]
    %v345 = vld [vmem:[%s0 + $0x9b8] sm:$0xff]
    %v346 = vld [vmem:[%s0 + $0x9c0] sm:$0xff]
    %v347 = vld [vmem:[%s0 + $0x9c8] sm:$0xff]
    %v348 = vld [vmem:[%s0 + $0x9d0] sm:$0xff]
    %v349 = vld [vmem:[%s0 + $0x9d8] sm:$0xff]
    %v350 = vld [vmem:[%s0 + $0x9e0] sm:$0xff]
    %v351 = vld [vmem:[%s0 + $0x9e8] sm:$0xff]
    %v352 = vld [vmem:[%s0 + $0x9f0] sm:$0xff]
    %v353 = vld [vmem:[%s0 + $0x9f8] sm:$0xff]
    %v354 = vld [vmem:[%s0 + $0xa00] sm:$0xff]
    %v355 = vld [vmem:[%s0 + $0xa08] sm:$0xff]
    %v356 = vld [vmem:[%s0 + $0xa10] sm:$0xff]
    %v357 = vld [vmem:[%s0 + $0xa18] sm:$0xff]
    %v358 = vld [vmem:[%s0 + $0xa20] sm:$0xff]
    %v359 = vld [vmem:[%s0 + $0xa28] sm:$0xff]
    %v360 = vld [vmem:[%s0 + $0xa30] sm:$0xff]
    %v361 = vld [vmem:[%s0 + $0xa38] sm:$0xff]
    %v362 = vld [vmem:[%s0 + $0xa40] sm:$0xff]
    %v363 = vld [vmem:[%s0 + $0xa48] sm:$0xff]
    %v364 = vld [vmem:[%s0 + $0xa50] sm:$0xff]
    %v365 = vld [vmem:[%s0 + $0xa58] sm:$0xff]
    %v366 = vld [vmem:[%s0 + $0xa60] sm:$0xff]
    %v367 = vld [vmem:[%s0 + $0xa68] sm:$0xff]
    %v368 = vld [vmem:[%s0 + $0xa70] sm:$0xff]
    %v369 = vld [vmem:[%s0 + $0xa78] sm:$0xff]
    %v370 = vld [vmem:[%s0 + $0xa80] sm:$0xff]
    %v371 = vld [vmem:[%s0 + $0xa88] sm:$0xff]
    %v372 = vld [vmem:[%s0 + $0xa90] sm:$0xff]
    %v373 = vld [vmem:[%s0 + $0xa98] sm:$0xff]
    %v374 = vld [vmem:[%s0 + $0xaa0] sm:$0xff]
    %v375 = vld [vmem:[%s0 + $0xaa8] sm:$0xff]
    %v376 = vld [vmem:[%s0 + $0xab0] sm:$0xff]
    %v377 = vld [vmem:[%s0 + $0xab8] sm:$0xff]
    %v378 = vld [vmem:[%s0 + $0xac0] sm:$0xff]
    %v379 = vld [vmem:[%s0 + $0xac8] sm:$0xff]
    %v380 = vld [vmem:[%s0 + $0xad0] sm:$0xff]
    %v381 = vld [vmem:[%s0 + $0xad8] sm:$0xff]
    %v382 = vld [vmem:[%s0 + $0xae0] sm:$0xff]
    %v383 = vld [vmem:[%s0 + $0xae8] sm:$0xff]
    %v384 = vld [vmem:[%s0 + $0xaf0] sm:$0xff]
    %v385 = vld [vmem:[%s0 + $0xaf8] sm:$0xff]
    %v386 = vld [vmem:[%s0 + $0xb00] sm:$0xff]
    %v387 = vld [vmem:[%s0 + $0xb08] sm:$0xff]
    %v388 = vld [vmem:[%s0 + $0xb10] sm:$0xff]
    %v389 = vld [vmem:[%s0 + $0xb18] sm:$0xff]
    %v390 = vld [vmem:[%s0 + $0xb20] sm:$0xff]
    %v391 = vld [vmem:[%s0 + $0xb28] sm:$0xff]
    %v392 = vld [vmem:[%s0 + $0xb30] sm:$0xff]
    %v393 = vld [vmem:[%s0 + $0xb38] sm:$0xff]
    %v394 = vld [vmem:[%s0 + $0xb40] sm:$0xff]
    %v395 = vld [vmem:[%s0 + $0xb48] sm:$0xff]
    %v396 = vld [vmem:[%s0 + $0xb50] sm:$0xff]
    %v397 = vld [vmem:[%s0 + $0xb58] sm:$0xff]
    %v398 = vld [vmem:[%s0 + $0xb60] sm:$0xff]
    %v399 = vld [vmem:[%s0 + $0xb68] sm:$0xff]
    %v400 = vld [vmem:[%s0 + $0xb70] sm:$0xff]
    %v401 = vld [vmem:[%s0 + $0xb78] sm:$0xff]
    %v402 = vld [vmem:[%s0 + $0xb80] sm:$0xff]
    %v403 = vld [vmem:[%s0 + $0xb88] sm:$0xff]
    %v404 = vld [vmem:[%s0 + $0xb90] sm:$0xff]
    %v405 = vld [vmem:[%s0 + $0xb98] sm:$0xff]
    %v406 = vld [vmem:[%s0 + $0xba0] sm:$0xff]
    %v407 = vld [vmem:[%s0 + $0xba8] sm:$0xff]
    %v408 = vld [vmem:[%s0 + $0xbb0] sm:$0xff]
    %v409 = vld [vmem:[%s0 + $0xbb8] sm:$0xff]
    %v410 = vld [vmem:[%s0 + $0xbc0] sm:$0xff]
    %v411 = vld [vmem:[%s0 + $0xbc8] sm:$0xff]
    %v412 = vld [vmem:[%s0 + $0xbd0] sm:$0xff]
    %v413 = vld [vmem:[%s0 + $0xbd8] sm:$0xff]
    %v414 = vld [vmem:[%s0 + $0xbe0] sm:$0xff]
    %v415 = vld [vmem:[%s0 + $0xbe8] sm:$0xff]
    %v416 = vld [vmem:[%s0 + $0xbf0] sm:$0xff]
    %v417 = vld [vmem:[%s0 + $0xbf8] sm:$0xff]
    %v418 = vld [vmem:[%s0 + $0xc00] sm:$0xff]
    %v419 = vld [vmem:[%s0 + $0xc08] sm:$0xff]
    %v420 = vld [vmem:[%s0 + $0xc10] sm:$0xff]
    %v421 = vld [vmem:[%s0 + $0xc18] sm:$0xff]
    %v422 = vld [vmem:[%s0 + $0xc20] sm:$0xff]
    %v423 = vld [vmem:[%s0 + $0xc28] sm:$0xff]
    %v424 = vld [vmem:[%s0 + $0xc30] sm:$0xff]
    %v425 = vld [vmem:[%s0 + $0xc38] sm:$0xff]
    %v426 = vld [vmem:[%s0 + $0xc40] sm:$0xff]
    %v427 = vld [vmem:[%s0 + $0xc48] sm:$0xff]
    %v428 = vld [vmem:[%s0 + $0xc50] sm:$0xff]
    %v429 = vld [vmem:[%s0 + $0xc58] sm:$0xff]
    %v430 = vld [vmem:[%s0 + $0xc60] sm:$0xff]
    %v431 = vld [vmem:[%s0 + $0xc68] sm:$0xff]
    %v432 = vld [vmem:[%s0 + $0xc70] sm:$0xff]
    %v433 = vld [vmem:[%s0 + $0xc78] sm:$0xff]
    %v434 = vld [vmem:[%s0 + $0xc80] sm:$0xff]
    %v435 = vld [vmem:[%s0 + $0xc88] sm:$0xff]
    %v436 = vld [vmem:[%s0 + $0xc90] sm:$0xff]
    %v437 = vld [vmem:[%s0 + $0xc98] sm:$0xff]
    %v438 = vld [vmem:[%s0 + $0xca0] sm:$0xff]
    %v439 = vld [vmem:[%s0 + $0xca8] sm:$0xff]
    %v440 = vld [vmem:[%s0 + $0xcb0] sm:$0xff]
    %v441 = vld [vmem:[%s0 + $0xcb8] sm:$0xff]
    %v442 = vld [vmem:[%s0 + $0xcc0] sm:$0xff]
    %v443 = vld [vmem:[%s0 + $0xcc8] sm:$0xff]
    %v444 = vld [vmem:[%s0 + $0xcd0] sm:$0xff]
    %v445 = vld [vmem:[%s0 + $0xcd8] sm:$0xff]
    %v446 = vld [vmem:[%s0 + $0xce0] sm:$0xff]
    %v447 = vld [vmem:[%s0 + $0xce8] sm:$0xff]
    %v448 = vld [vmem:[%s0 + $0xcf0] sm:$0xff]
    %v449 = vld [vmem:[%s0 + $0xcf8] sm:$0xff]
    %v450 = vld [vmem:[%s0 + $0xd00] sm:$0xff]
    %v451 = vld [vmem:[%s0 + $0xd08] sm:$0xff]
    %v452 = vld [vmem:[%s0 + $0xd10] sm:$0xff]
    %v453 = vld [vmem:[%s0 + $0xd18] sm:$0xff]
    %v454 = vld [vmem:[%s0 + $0xd20] sm:$0xff]
    %v455 = vld [vmem:[%s0 + $0xd28] sm:$0xff]
    %v456 = vld [vmem:[%s0 + $0xd30] sm:$0xff]
    %v457 = vld [vmem:[%s0 + $0xd38] sm:$0xff]
    %v458 = vld [vmem:[%s0 + $0xd40] sm:$0xff]
    %v459 = vld [vmem:[%s0 + $0xd48] sm:$0xff]
    %v460 = vld [vmem:[%s0 + $0xd50] sm:$0xff]
    %v461 = vld [vmem:[%s0 + $0xd58] sm:$0xff]
    %v462 = vld [vmem:[%s0 + $0xd60] sm:$0xff]
    %v463 = vld [vmem:[%s0 + $0xd68] sm:$0xff]
    %v464 = vld [vmem:[%s0 + $0xd70] sm:$0xff]
    %v465 = vld [vmem:[%s0 + $0xd78] sm:$0xff]
    %v466 = vld [vmem:[%s0 + $0xd80] sm:$0xff]
    %v467 = vld [vmem:[%s0 + $0xd88] sm:$0xff]
    %v468 = vld [vmem:[%s0 + $0xd90] sm:$0xff]
    %v469 = vld [vmem:[%s0 + $0xd98] sm:$0xff]
    %v470 = vld [vmem:[%s0 + $0xda0] sm:$0xff]
    %v471 = vld [vmem:[%s0 + $0xda8] sm:$0xff]
    %v472 = vld [vmem:[%s0 + $0xdb0] sm:$0xff]
    %v473 = vld [vmem:[%s0 + $0xdb8] sm:$0xff]
    %v474 = vld [vmem:[%s0 + $0xdc0] sm:$0xff]
    %v475 = vld [vmem:[%s0 + $0xdc8] sm:$0xff]
    %v476 = vld [vmem:[%s0 + $0xdd0] sm:$0xff]
    %v477 = vld [vmem:[%s0 + $0xdd8] sm:$0xff]
    %v478 = vld [vmem:[%s0 + $0xde0] sm:$0xff]
    %v479 = vld [vmem:[%s0 + $0xde8] sm:$0xff]
    %v480 = vld [vmem:[%s0 + $0xdf0] sm:$0xff]
    %v481 = vld [vmem:[%s0 + $0xdf8] sm:$0xff]
    %v482 = vpack.c.bf16 %v41, %v34
    %v483 = vpack.c.bf16 %v42, %v35
    %v484 = vpack.c.bf16 %v43, %v36
    %v485 = vpack.c.bf16 %v44, %v37
    %v486 = vpack.c.bf16 %v45, %v38
    %v487 = vpack.c.bf16 %v46, %v39
    %v488 = vpack.c.bf16 %v47, %v40
    %v489 = vpack.c.bf16 %v55, %v48
    %v490 = vpack.c.bf16 %v56, %v49
    %v491 = vpack.c.bf16 %v57, %v50
    %v492 = vpack.c.bf16 %v58, %v51
    %v493 = vpack.c.bf16 %v59, %v52
    %v494 = vpack.c.bf16 %v60, %v53
    %v495 = vpack.c.bf16 %v61, %v54
    %v496 = vpack.c.bf16 %v69, %v62
    %v497 = vpack.c.bf16 %v70, %v63
    %v498 = vpack.c.bf16 %v71, %v64
    %v499 = vpack.c.bf16 %v72, %v65
    %v500 = vpack.c.bf16 %v73, %v66
    %v501 = vpack.c.bf16 %v74, %v67
    %v502 = vpack.c.bf16 %v75, %v68
    %v503 = vpack.c.bf16 %v83, %v76
    %v504 = vpack.c.bf16 %v84, %v77
    %v505 = vpack.c.bf16 %v85, %v78
    %v506 = vpack.c.bf16 %v86, %v79
    %v507 = vpack.c.bf16 %v87, %v80
    %v508 = vpack.c.bf16 %v88, %v81
    %v509 = vpack.c.bf16 %v89, %v82
    %v510 = vpack.c.bf16 %v97, %v90
    %v511 = vpack.c.bf16 %v98, %v91
    %v512 = vpack.c.bf16 %v99, %v92
    %v513 = vpack.c.bf16 %v100, %v93
    %v514 = vpack.c.bf16 %v101, %v94
    %v515 = vpack.c.bf16 %v102, %v95
    %v516 = vpack.c.bf16 %v103, %v96
    %v517 = vpack.c.bf16 %v111, %v104
    %v518 = vpack.c.bf16 %v112, %v105
    %v519 = vpack.c.bf16 %v113, %v106
    %v520 = vpack.c.bf16 %v114, %v107
    %v521 = vpack.c.bf16 %v115, %v108
    %v522 = vpack.c.bf16 %v116, %v109
    %v523 = vpack.c.bf16 %v117, %v110
    %v524 = vpack.c.bf16 %v125, %v118
    %v525 = vpack.c.bf16 %v126, %v119
    %v526 = vpack.c.bf16 %v127, %v120
    %v527 = vpack.c.bf16 %v128, %v121
    %v528 = vpack.c.bf16 %v129, %v122
    %v529 = vpack.c.bf16 %v130, %v123
    %v530 = vpack.c.bf16 %v131, %v124
    %v531 = vpack.c.bf16 %v139, %v132
    %v532 = vpack.c.bf16 %v140, %v133
    %v533 = vpack.c.bf16 %v141, %v134
    %v534 = vpack.c.bf16 %v142, %v135
    %v535 = vpack.c.bf16 %v143, %v136
    %v536 = vpack.c.bf16 %v144, %v137
    %v537 = vpack.c.bf16 %v145, %v138
    %v538 = vpack.c.bf16 %v153, %v146
    %v539 = vpack.c.bf16 %v154, %v147
    %v540 = vpack.c.bf16 %v155, %v148
    %v541 = vpack.c.bf16 %v156, %v149
    %v542 = vpack.c.bf16 %v157, %v150
    %v543 = vpack.c.bf16 %v158, %v151
    %v544 = vpack.c.bf16 %v159, %v152
    %v545 = vpack.c.bf16 %v167, %v160
    %v546 = vpack.c.bf16 %v168, %v161
    %v547 = vpack.c.bf16 %v169, %v162
    %v548 = vpack.c.bf16 %v170, %v163
    %v549 = vpack.c.bf16 %v171, %v164
    %v550 = vpack.c.bf16 %v172, %v165
    %v551 = vpack.c.bf16 %v173, %v166
    %v552 = vpack.c.bf16 %v181, %v174
    %v553 = vpack.c.bf16 %v182, %v175
    %v554 = vpack.c.bf16 %v183, %v176
    %v555 = vpack.c.bf16 %v184, %v177
    %v556 = vpack.c.bf16 %v185, %v178
    %v557 = vpack.c.bf16 %v186, %v179
    %v558 = vpack.c.bf16 %v187, %v180
    %v559 = vpack.c.bf16 %v195, %v188
    %v560 = vpack.c.bf16 %v196, %v189
    %v561 = vpack.c.bf16 %v197, %v190
    %v562 = vpack.c.bf16 %v198, %v191
    %v563 = vpack.c.bf16 %v199, %v192
    %v564 = vpack.c.bf16 %v200, %v193
    %v565 = vpack.c.bf16 %v201, %v194
    %v566 = vpack.c.bf16 %v209, %v202
    %v567 = vpack.c.bf16 %v210, %v203
    %v568 = vpack.c.bf16 %v211, %v204
    %v569 = vpack.c.bf16 %v212, %v205
    %v570 = vpack.c.bf16 %v213, %v206
    %v571 = vpack.c.bf16 %v214, %v207
    %v572 = vpack.c.bf16 %v215, %v208
    %v573 = vpack.c.bf16 %v223, %v216
    %v574 = vpack.c.bf16 %v224, %v217
    %v575 = vpack.c.bf16 %v225, %v218
    %v576 = vpack.c.bf16 %v226, %v219
    %v577 = vpack.c.bf16 %v227, %v220
    %v578 = vpack.c.bf16 %v228, %v221
    %v579 = vpack.c.bf16 %v229, %v222
    %v580 = vpack.c.bf16 %v237, %v230
    %v581 = vpack.c.bf16 %v238, %v231
    %v582 = vpack.c.bf16 %v239, %v232
    %v583 = vpack.c.bf16 %v240, %v233
    %v584 = vpack.c.bf16 %v241, %v234
    %v585 = vpack.c.bf16 %v242, %v235
    %v586 = vpack.c.bf16 %v243, %v236
    %v587 = vpack.c.bf16 %v251, %v244
    %v588 = vpack.c.bf16 %v252, %v245
    %v589 = vpack.c.bf16 %v253, %v246
    %v590 = vpack.c.bf16 %v254, %v247
    %v591 = vpack.c.bf16 %v255, %v248
    %v592 = vpack.c.bf16 %v256, %v249
    %v593 = vpack.c.bf16 %v257, %v250
    %v594 = vpack.c.bf16 %v265, %v258
    %v595 = vpack.c.bf16 %v266, %v259
    %v596 = vpack.c.bf16 %v267, %v260
    %v597 = vpack.c.bf16 %v268, %v261
    %v598 = vpack.c.bf16 %v269, %v262
    %v599 = vpack.c.bf16 %v270, %v263
    %v600 = vpack.c.bf16 %v271, %v264
    %v601 = vpack.c.bf16 %v279, %v272
    %v602 = vpack.c.bf16 %v280, %v273
    %v603 = vpack.c.bf16 %v281, %v274
    %v604 = vpack.c.bf16 %v282, %v275
    %v605 = vpack.c.bf16 %v283, %v276
    %v606 = vpack.c.bf16 %v284, %v277
    %v607 = vpack.c.bf16 %v285, %v278
    %v608 = vpack.c.bf16 %v293, %v286
    %v609 = vpack.c.bf16 %v294, %v287
    %v610 = vpack.c.bf16 %v295, %v288
    %v611 = vpack.c.bf16 %v296, %v289
    %v612 = vpack.c.bf16 %v297, %v290
    %v613 = vpack.c.bf16 %v298, %v291
    %v614 = vpack.c.bf16 %v299, %v292
    %v615 = vpack.c.bf16 %v307, %v300
    %v616 = vpack.c.bf16 %v308, %v301
    %v617 = vpack.c.bf16 %v309, %v302
    %v618 = vpack.c.bf16 %v310, %v303
    %v619 = vpack.c.bf16 %v311, %v304
    %v620 = vpack.c.bf16 %v312, %v305
    %v621 = vpack.c.bf16 %v313, %v306
    %v622 = vpack.c.bf16 %v321, %v314
    %v623 = vpack.c.bf16 %v322, %v315
    %v624 = vpack.c.bf16 %v323, %v316
    %v625 = vpack.c.bf16 %v324, %v317
    %v626 = vpack.c.bf16 %v325, %v318
    %v627 = vpack.c.bf16 %v326, %v319
    %v628 = vpack.c.bf16 %v327, %v320
    %v629 = vpack.c.bf16 %v335, %v328
    %v630 = vpack.c.bf16 %v336, %v329
    %v631 = vpack.c.bf16 %v337, %v330
    %v632 = vpack.c.bf16 %v338, %v331
    %v633 = vpack.c.bf16 %v339, %v332
    %v634 = vpack.c.bf16 %v340, %v333
    %v635 = vpack.c.bf16 %v341, %v334
    %v636 = vpack.c.bf16 %v349, %v342
    %v637 = vpack.c.bf16 %v350, %v343
    %v638 = vpack.c.bf16 %v351, %v344
    %v639 = vpack.c.bf16 %v352, %v345
    %v640 = vpack.c.bf16 %v353, %v346
    %v641 = vpack.c.bf16 %v354, %v347
    %v642 = vpack.c.bf16 %v355, %v348
    %v643 = vpack.c.bf16 %v363, %v356
    %v644 = vpack.c.bf16 %v364, %v357
    %v645 = vpack.c.bf16 %v365, %v358
    %v646 = vpack.c.bf16 %v366, %v359
    %v647 = vpack.c.bf16 %v367, %v360
    %v648 = vpack.c.bf16 %v368, %v361
    %v649 = vpack.c.bf16 %v369, %v362
    %v650 = vpack.c.bf16 %v377, %v370
    %v651 = vpack.c.bf16 %v378, %v371
    %v652 = vpack.c.bf16 %v379, %v372
    %v653 = vpack.c.bf16 %v380, %v373
    %v654 = vpack.c.bf16 %v381, %v374
    %v655 = vpack.c.bf16 %v382, %v375
    %v656 = vpack.c.bf16 %v383, %v376
    %v657 = vpack.c.bf16 %v391, %v384
    %v658 = vpack.c.bf16 %v392, %v385
    %v659 = vpack.c.bf16 %v393, %v386
    %v660 = vpack.c.bf16 %v394, %v387
    %v661 = vpack.c.bf16 %v395, %v388
    %v662 = vpack.c.bf16 %v396, %v389
    %v663 = vpack.c.bf16 %v397, %v390
    %v664 = vpack.c.bf16 %v405, %v398
    %v665 = vpack.c.bf16 %v406, %v399
    %v666 = vpack.c.bf16 %v407, %v400
    %v667 = vpack.c.bf16 %v408, %v401
    %v668 = vpack.c.bf16 %v409, %v402
    %v669 = vpack.c.bf16 %v410, %v403
    %v670 = vpack.c.bf16 %v411, %v404
    %v671 = vpack.c.bf16 %v419, %v412
    %v672 = vpack.c.bf16 %v420, %v413
    %v673 = vpack.c.bf16 %v421, %v414
    %v674 = vpack.c.bf16 %v422, %v415
    %v675 = vpack.c.bf16 %v423, %v416
    %v676 = vpack.c.bf16 %v424, %v417
    %v677 = vpack.c.bf16 %v425, %v418
    %v678 = vpack.c.bf16 %v433, %v426
    %v679 = vpack.c.bf16 %v434, %v427
    %v680 = vpack.c.bf16 %v435, %v428
    %v681 = vpack.c.bf16 %v436, %v429
    %v682 = vpack.c.bf16 %v437, %v430
    %v683 = vpack.c.bf16 %v438, %v431
    %v684 = vpack.c.bf16 %v439, %v432
    %v685 = vpack.c.bf16 %v447, %v440
    %v686 = vpack.c.bf16 %v448, %v441
    %v687 = vpack.c.bf16 %v449, %v442
    %v688 = vpack.c.bf16 %v450, %v443
    %v689 = vpack.c.bf16 %v451, %v444
    %v690 = vpack.c.bf16 %v452, %v445
    %v691 = vpack.c.bf16 %v453, %v446
    %v692 = vpack.c.bf16 %v461, %v454
    %v693 = vpack.c.bf16 %v462, %v455
    %v694 = vpack.c.bf16 %v463, %v456
    %v695 = vpack.c.bf16 %v464, %v457
    %v696 = vpack.c.bf16 %v465, %v458
    %v697 = vpack.c.bf16 %v466, %v459
    %v698 = vpack.c.bf16 %v467, %v460
    %v699 = vpack.c.bf16 %v475, %v468
    %v700 = vpack.c.bf16 %v476, %v469
    %v701 = vpack.c.bf16 %v477, %v470
    %v702 = vpack.c.bf16 %v478, %v471
    %v703 = vpack.c.bf16 %v479, %v472
    %v704 = vpack.c.bf16 %v480, %v473
    %v705 = vpack.c.bf16 %v481, %v474
    %v706 = vld [vmem:[%s1] sm:$0xff]
    %v707 = vld [vmem:[%s1 + $0x8] sm:$0xf]
    %v708 = vld [vmem:[%s1 + $0xc] sm:$0xff]
    %v709 = vld [vmem:[%s1 + $0x14] sm:$0xf]
    %v710 = vld [vmem:[%s1 + $0x18] sm:$0xff]
    %v711 = vld [vmem:[%s1 + $0x20] sm:$0xf]
    %v712 = vld [vmem:[%s1 + $0x24] sm:$0xff]
    %v713 = vld [vmem:[%s1 + $0x2c] sm:$0xf]
    %v714 = vld [vmem:[%s1 + $0x30] sm:$0xff]
    %v715 = vld [vmem:[%s1 + $0x38] sm:$0xf]
    %v716 = vld [vmem:[%s1 + $0x3c] sm:$0xff]
    %v717 = vld [vmem:[%s1 + $0x44] sm:$0xf]
    %v718 = vld [vmem:[%s1 + $0x48] sm:$0xff]
    %v719 = vld [vmem:[%s1 + $0x50] sm:$0xf]
    %v720 = vld [vmem:[%s1 + $0x54] sm:$0xff]
    %v721 = vld [vmem:[%s1 + $0x5c] sm:$0xf]
    %v722 = vld [vmem:[%s1 + $0x60] sm:$0xff]
    %v723 = vld [vmem:[%s1 + $0x68] sm:$0xf]
    %v724 = vld [vmem:[%s1 + $0x6c] sm:$0xff]
    %v725 = vld [vmem:[%s1 + $0x74] sm:$0xf]
    %v726 = vld [vmem:[%s1 + $0x78] sm:$0xff]
    %v727 = vld [vmem:[%s1 + $0x80] sm:$0xf]
    %v728 = vld [vmem:[%s1 + $0x84] sm:$0xff]
    %v729 = vld [vmem:[%s1 + $0x8c] sm:$0xf]
    %v730 = vld [vmem:[%s1 + $0x90] sm:$0xff]
    %v731 = vld [vmem:[%s1 + $0x98] sm:$0xf]
    %v732 = vld [vmem:[%s1 + $0x9c] sm:$0xff]
    %v733 = vld [vmem:[%s1 + $0xa4] sm:$0xf]
    %v734 = vld [vmem:[%s1 + $0xa8] sm:$0xff]
    %v735 = vld [vmem:[%s1 + $0xb0] sm:$0xf]
    %v736 = vld [vmem:[%s1 + $0xb4] sm:$0xff]
    %v737 = vld [vmem:[%s1 + $0xbc] sm:$0xf]
    %v738 = vld [vmem:[%s1 + $0xc0] sm:$0xff]
    %v739 = vld [vmem:[%s1 + $0xc8] sm:$0xf]
    %v740 = vld [vmem:[%s1 + $0xcc] sm:$0xff]
    %v741 = vld [vmem:[%s1 + $0xd4] sm:$0xf]
    %v742 = vld [vmem:[%s1 + $0xd8] sm:$0xff]
    %v743 = vld [vmem:[%s1 + $0xe0] sm:$0xf]
    %v744 = vld [vmem:[%s1 + $0xe4] sm:$0xff]
    %v745 = vld [vmem:[%s1 + $0xec] sm:$0xf]
    %v746 = vld [vmem:[%s1 + $0xf0] sm:$0xff]
    %v747 = vld [vmem:[%s1 + $0xf8] sm:$0xf]
    %v748 = vld [vmem:[%s1 + $0xfc] sm:$0xff]
    %v749 = vld [vmem:[%s1 + $0x104] sm:$0xf]
    %v750 = vld [vmem:[%s1 + $0x108] sm:$0xff]
    %v751 = vld [vmem:[%s1 + $0x110] sm:$0xf]
    %v752 = vld [vmem:[%s1 + $0x114] sm:$0xff]
    %v753 = vld [vmem:[%s1 + $0x11c] sm:$0xf]
    %v754 = vld [vmem:[%s1 + $0x120] sm:$0xff]
    %v755 = vld [vmem:[%s1 + $0x128] sm:$0xf]
    %v756 = vld [vmem:[%s1 + $0x12c] sm:$0xff]
    %v757 = vld [vmem:[%s1 + $0x134] sm:$0xf]
    %v758 = vld [vmem:[%s1 + $0x138] sm:$0xff]
    %v759 = vld [vmem:[%s1 + $0x140] sm:$0xf]
    %v760 = vld [vmem:[%s1 + $0x144] sm:$0xff]
    %v761 = vld [vmem:[%s1 + $0x14c] sm:$0xf]
    %v762 = vld [vmem:[%s1 + $0x150] sm:$0xff]
    %v763 = vld [vmem:[%s1 + $0x158] sm:$0xf]
    %v764 = vld [vmem:[%s1 + $0x15c] sm:$0xff]
    %v765 = vld [vmem:[%s1 + $0x164] sm:$0xf]
    %v766 = vld [vmem:[%s1 + $0x168] sm:$0xff]
    %v767 = vld [vmem:[%s1 + $0x170] sm:$0xf]
    %v768 = vld [vmem:[%s1 + $0x174] sm:$0xff]
    %v769 = vld [vmem:[%s1 + $0x17c] sm:$0xf]
    %v770 = vld [vmem:[%s1 + $0x180] sm:$0xff]
    %v771 = vld [vmem:[%s1 + $0x188] sm:$0xf]
    %v772 = vld [vmem:[%s1 + $0x18c] sm:$0xff]
    %v773 = vld [vmem:[%s1 + $0x194] sm:$0xf]
    %v774 = vld [vmem:[%s1 + $0x198] sm:$0xff]
    %v775 = vld [vmem:[%s1 + $0x1a0] sm:$0xf]
    %v776 = vld [vmem:[%s1 + $0x1a4] sm:$0xff]
    %v777 = vld [vmem:[%s1 + $0x1ac] sm:$0xf]
    %v778 = vld [vmem:[%s1 + $0x1b0] sm:$0xff]
    %v779 = vld [vmem:[%s1 + $0x1b8] sm:$0xf]
    %v780 = vld [vmem:[%s1 + $0x1bc] sm:$0xff]
    %v781 = vld [vmem:[%s1 + $0x1c4] sm:$0xf]
    %v782 = vld [vmem:[%s1 + $0x1c8] sm:$0xff]
    %v783 = vld [vmem:[%s1 + $0x1d0] sm:$0xf]
    %v784 = vld [vmem:[%s1 + $0x1d4] sm:$0xff]
    %v785 = vld [vmem:[%s1 + $0x1dc] sm:$0xf]
    %v786 = vld [vmem:[%s1 + $0x1e0] sm:$0xff]
    %v787 = vld [vmem:[%s1 + $0x1e8] sm:$0xf]
    %v788 = vld [vmem:[%s1 + $0x1ec] sm:$0xff]
    %v789 = vld [vmem:[%s1 + $0x1f4] sm:$0xf]
    %v790 = vld [vmem:[%s1 + $0x1f8] sm:$0xff]
    %v791 = vld [vmem:[%s1 + $0x200] sm:$0xf]
    %v792 = vld [vmem:[%s1 + $0x204] sm:$0xff]
    %v793 = vld [vmem:[%s1 + $0x20c] sm:$0xf]
    %v794 = vld [vmem:[%s1 + $0x210] sm:$0xff]
    %v795 = vld [vmem:[%s1 + $0x218] sm:$0xf]
    %v796 = vld [vmem:[%s1 + $0x21c] sm:$0xff]
    %v797 = vld [vmem:[%s1 + $0x224] sm:$0xf]
    %v798 = vld [vmem:[%s1 + $0x228] sm:$0xff]
    %v799 = vld [vmem:[%s1 + $0x230] sm:$0xf]
    %v800 = vld [vmem:[%s1 + $0x234] sm:$0xff]
    %v801 = vld [vmem:[%s1 + $0x23c] sm:$0xf]
    %v802 = vld [vmem:[%s1 + $0x240] sm:$0xff]
    %v803 = vld [vmem:[%s1 + $0x248] sm:$0xf]
    %v804 = vld [vmem:[%s1 + $0x24c] sm:$0xff]
    %v805 = vld [vmem:[%s1 + $0x254] sm:$0xf]
    %v806 = vld [vmem:[%s1 + $0x258] sm:$0xff]
    %v807 = vld [vmem:[%s1 + $0x260] sm:$0xf]
    %v808 = vld [vmem:[%s1 + $0x264] sm:$0xff]
    %v809 = vld [vmem:[%s1 + $0x26c] sm:$0xf]
    %v810 = vld [vmem:[%s1 + $0x270] sm:$0xff]
    %v811 = vld [vmem:[%s1 + $0x278] sm:$0xf]
    %v812 = vld [vmem:[%s1 + $0x27c] sm:$0xff]
    %v813 = vld [vmem:[%s1 + $0x284] sm:$0xf]
    %v814 = vld [vmem:[%s1 + $0x288] sm:$0xff]
    %v815 = vld [vmem:[%s1 + $0x290] sm:$0xf]
    %v816 = vld [vmem:[%s1 + $0x294] sm:$0xff]
    %v817 = vld [vmem:[%s1 + $0x29c] sm:$0xf]
    %v818 = vld [vmem:[%s1 + $0x2a0] sm:$0xff]
    %v819 = vld [vmem:[%s1 + $0x2a8] sm:$0xf]
    %v820 = vld [vmem:[%s1 + $0x2ac] sm:$0xff]
    %v821 = vld [vmem:[%s1 + $0x2b4] sm:$0xf]
    %v822 = vld [vmem:[%s1 + $0x2b8] sm:$0xff]
    %v823 = vld [vmem:[%s1 + $0x2c0] sm:$0xf]
    %v824 = vld [vmem:[%s1 + $0x2c4] sm:$0xff]
    %v825 = vld [vmem:[%s1 + $0x2cc] sm:$0xf]
    %v826 = vld [vmem:[%s1 + $0x2d0] sm:$0xff]
    %v827 = vld [vmem:[%s1 + $0x2d8] sm:$0xf]
    %v828 = vld [vmem:[%s1 + $0x2dc] sm:$0xff]
    %v829 = vld [vmem:[%s1 + $0x2e4] sm:$0xf]
    %v830 = vld [vmem:[%s1 + $0x2e8] sm:$0xff]
    %v831 = vld [vmem:[%s1 + $0x2f0] sm:$0xf]
    %v832 = vld [vmem:[%s1 + $0x2f4] sm:$0xff]
    %v833 = vld [vmem:[%s1 + $0x2fc] sm:$0xf]
    %v834 = vld [vmem:[%s1 + $0x300] sm:$0xff]
    %v835 = vld [vmem:[%s1 + $0x308] sm:$0xf]
    %v836 = vld [vmem:[%s1 + $0x30c] sm:$0xff]
    %v837 = vld [vmem:[%s1 + $0x314] sm:$0xf]
    %v838 = vld [vmem:[%s1 + $0x318] sm:$0xff]
    %v839 = vld [vmem:[%s1 + $0x320] sm:$0xf]
    %v840 = vld [vmem:[%s1 + $0x324] sm:$0xff]
    %v841 = vld [vmem:[%s1 + $0x32c] sm:$0xf]
    %v842 = vld [vmem:[%s1 + $0x330] sm:$0xff]
    %v843 = vld [vmem:[%s1 + $0x338] sm:$0xf]
    %v844 = vld [vmem:[%s1 + $0x33c] sm:$0xff]
    %v845 = vld [vmem:[%s1 + $0x344] sm:$0xf]
    %v846 = vld [vmem:[%s1 + $0x348] sm:$0xff]
    %v847 = vld [vmem:[%s1 + $0x350] sm:$0xf]
    %v848 = vld [vmem:[%s1 + $0x354] sm:$0xff]
    %v849 = vld [vmem:[%s1 + $0x35c] sm:$0xf]
    %v850 = vld [vmem:[%s1 + $0x360] sm:$0xff]
    %v851 = vld [vmem:[%s1 + $0x368] sm:$0xf]
    %v852 = vld [vmem:[%s1 + $0x36c] sm:$0xff]
    %v853 = vld [vmem:[%s1 + $0x374] sm:$0xf]
    %v854 = vld [vmem:[%s1 + $0x378] sm:$0xff]
    %v855 = vld [vmem:[%s1 + $0x380] sm:$0xf]
    %v856 = vld [vmem:[%s1 + $0x384] sm:$0xff]
    %v857 = vld [vmem:[%s1 + $0x38c] sm:$0xf]
    %v858 = vld [vmem:[%s1 + $0x390] sm:$0xff]
    %v859 = vld [vmem:[%s1 + $0x398] sm:$0xf]
    %v860 = vld [vmem:[%s1 + $0x39c] sm:$0xff]
    %v861 = vld [vmem:[%s1 + $0x3a4] sm:$0xf]
    %v862 = vld [vmem:[%s1 + $0x3a8] sm:$0xff]
    %v863 = vld [vmem:[%s1 + $0x3b0] sm:$0xf]
    %v864 = vld [vmem:[%s1 + $0x3b4] sm:$0xff]
    %v865 = vld [vmem:[%s1 + $0x3bc] sm:$0xf]
    %v866 = vld [vmem:[%s1 + $0x3c0] sm:$0xff]
    %v867 = vld [vmem:[%s1 + $0x3c8] sm:$0xf]
    %v868 = vld [vmem:[%s1 + $0x3cc] sm:$0xff]
    %v869 = vld [vmem:[%s1 + $0x3d4] sm:$0xf]
    %v870 = vld [vmem:[%s1 + $0x3d8] sm:$0xff]
    %v871 = vld [vmem:[%s1 + $0x3e0] sm:$0xf]
    %v872 = vld [vmem:[%s1 + $0x3e4] sm:$0xff]
    %v873 = vld [vmem:[%s1 + $0x3ec] sm:$0xf]
    %v874 = vld [vmem:[%s1 + $0x3f0] sm:$0xff]
    %v875 = vld [vmem:[%s1 + $0x3f8] sm:$0xf]
    %v876 = vld [vmem:[%s1 + $0x3fc] sm:$0xff]
    %v877 = vld [vmem:[%s1 + $0x404] sm:$0xf]
    %v878 = vld [vmem:[%s1 + $0x408] sm:$0xff]
    %v879 = vld [vmem:[%s1 + $0x410] sm:$0xf]
    %v880 = vld [vmem:[%s1 + $0x414] sm:$0xff]
    %v881 = vld [vmem:[%s1 + $0x41c] sm:$0xf]
    %v882 = vld [vmem:[%s1 + $0x420] sm:$0xff]
    %v883 = vld [vmem:[%s1 + $0x428] sm:$0xf]
    %v884 = vld [vmem:[%s1 + $0x42c] sm:$0xff]
    %v885 = vld [vmem:[%s1 + $0x434] sm:$0xf]
    %v886 = vld [vmem:[%s1 + $0x438] sm:$0xff]
    %v887 = vld [vmem:[%s1 + $0x440] sm:$0xf]
    %v888 = vld [vmem:[%s1 + $0x444] sm:$0xff]
    %v889 = vld [vmem:[%s1 + $0x44c] sm:$0xf]
    %v890 = vld [vmem:[%s1 + $0x450] sm:$0xff]
    %v891 = vld [vmem:[%s1 + $0x458] sm:$0xf]
    %v892 = vld [vmem:[%s1 + $0x45c] sm:$0xff]
    %v893 = vld [vmem:[%s1 + $0x464] sm:$0xf]
    %v894 = vld [vmem:[%s1 + $0x468] sm:$0xff]
    %v895 = vld [vmem:[%s1 + $0x470] sm:$0xf]
    %v896 = vld [vmem:[%s1 + $0x474] sm:$0xff]
    %v897 = vld [vmem:[%s1 + $0x47c] sm:$0xf]
    %v898 = vld [vmem:[%s1 + $0x480] sm:$0xff]
    %v899 = vld [vmem:[%s1 + $0x488] sm:$0xf]
    %v900 = vld [vmem:[%s1 + $0x48c] sm:$0xff]
    %v901 = vld [vmem:[%s1 + $0x494] sm:$0xf]
    %v902 = vld [vmem:[%s2] sm:$0x7]
    %v904 = vlaneseq
    %v905 = vshrl.u32 %v904, 7
    %v906 = vsub.s32 0, %v905
    %v907 = vrot.slane %v902, %v906
    %v908 = vlaneseq
    %v909 = vshrl.u32 %v908, 7
    %v910 = vsub.s32 1, %v909
    %v911 = vrot.slane %v902, %v910
    %v912 = vlaneseq
    %v913 = vshrl.u32 %v912, 7
    %v914 = vsub.s32 2, %v913
    %v915 = vrot.slane %v902, %v914
    %v1115 = vunpack.c.l.b16 %v706
    %v1116 = vunpack.c.h.b16 %v706
    %v1117 = vunpack.c.l.b16 %v707
    %v1118 = vunpack.c.l.b16 %v708
    %v1119 = vunpack.c.h.b16 %v708
    %v1120 = vunpack.c.l.b16 %v709
    %v1121 = vunpack.c.l.b16 %v710
    %v1122 = vunpack.c.h.b16 %v710
    %v1123 = vunpack.c.l.b16 %v711
    %v1124 = vunpack.c.l.b16 %v712
    %v1125 = vunpack.c.h.b16 %v712
    %v1126 = vunpack.c.l.b16 %v713
    %v1127 = vunpack.c.l.b16 %v714
    %v1128 = vunpack.c.h.b16 %v714
    %v1129 = vunpack.c.l.b16 %v715
    %v1130 = vunpack.c.l.b16 %v716
    %v1131 = vunpack.c.h.b16 %v716
    %v1132 = vunpack.c.l.b16 %v717
    %v1133 = vunpack.c.l.b16 %v718
    %v1134 = vunpack.c.h.b16 %v718
    %v1135 = vunpack.c.l.b16 %v719
    %v1136 = vunpack.c.l.b16 %v720
    %v1137 = vunpack.c.h.b16 %v720
    %v1138 = vunpack.c.l.b16 %v721
    %v1139 = vunpack.c.l.b16 %v722
    %v1140 = vunpack.c.h.b16 %v722
    %v1141 = vunpack.c.l.b16 %v723
    %v1142 = vunpack.c.l.b16 %v724
    %v1143 = vunpack.c.h.b16 %v724
    %v1144 = vunpack.c.l.b16 %v725
    %v1145 = vunpack.c.l.b16 %v726
    %v1146 = vunpack.c.h.b16 %v726
    %v1147 = vunpack.c.l.b16 %v727
    %v1148 = vunpack.c.l.b16 %v728
    %v1149 = vunpack.c.h.b16 %v728
    %v1150 = vunpack.c.l.b16 %v729
    %v1151 = vunpack.c.l.b16 %v730
    %v1152 = vunpack.c.h.b16 %v730
    %v1153 = vunpack.c.l.b16 %v731
    %v1154 = vunpack.c.l.b16 %v732
    %v1155 = vunpack.c.h.b16 %v732
    %v1156 = vunpack.c.l.b16 %v733
    %v1157 = vunpack.c.l.b16 %v734
    %v1158 = vunpack.c.h.b16 %v734
    %v1159 = vunpack.c.l.b16 %v735
    %v1160 = vunpack.c.l.b16 %v736
    %v1161 = vunpack.c.h.b16 %v736
    %v1162 = vunpack.c.l.b16 %v737
    %v1163 = vunpack.c.l.b16 %v738
    %v1164 = vunpack.c.h.b16 %v738
    %v1165 = vunpack.c.l.b16 %v739
    %v1166 = vunpack.c.l.b16 %v740
    %v1167 = vunpack.c.h.b16 %v740
    %v1168 = vunpack.c.l.b16 %v741
    %v1169 = vunpack.c.l.b16 %v742
    %v1170 = vunpack.c.h.b16 %v742
    %v1171 = vunpack.c.l.b16 %v743
    %v1172 = vunpack.c.l.b16 %v744
    %v1173 = vunpack.c.h.b16 %v744
    %v1174 = vunpack.c.l.b16 %v745
    %v1175 = vunpack.c.l.b16 %v746
    %v1176 = vunpack.c.h.b16 %v746
    %v1177 = vunpack.c.l.b16 %v747
    %v1178 = vunpack.c.l.b16 %v748
    %v1179 = vunpack.c.h.b16 %v748
    %v1180 = vunpack.c.l.b16 %v749
    %v1181 = vunpack.c.l.b16 %v750
    %v1182 = vunpack.c.h.b16 %v750
    %v1183 = vunpack.c.l.b16 %v751
    %v1184 = vunpack.c.l.b16 %v752
    %v1185 = vunpack.c.h.b16 %v752
    %v1186 = vunpack.c.l.b16 %v753
    %v1187 = vunpack.c.l.b16 %v754
    %v1188 = vunpack.c.h.b16 %v754
    %v1189 = vunpack.c.l.b16 %v755
    %v1190 = vunpack.c.l.b16 %v756
    %v1191 = vunpack.c.h.b16 %v756
    %v1192 = vunpack.c.l.b16 %v757
    %v1193 = vunpack.c.l.b16 %v758
    %v1194 = vunpack.c.h.b16 %v758
    %v1195 = vunpack.c.l.b16 %v759
    %v1196 = vunpack.c.l.b16 %v760
    %v1197 = vunpack.c.h.b16 %v760
    %v1198 = vunpack.c.l.b16 %v761
    %v1199 = vunpack.c.l.b16 %v762
    %v1200 = vunpack.c.h.b16 %v762
    %v1201 = vunpack.c.l.b16 %v763
    %v1202 = vunpack.c.l.b16 %v764
    %v1203 = vunpack.c.h.b16 %v764
    %v1204 = vunpack.c.l.b16 %v765
    %v1205 = vunpack.c.l.b16 %v766
    %v1206 = vunpack.c.h.b16 %v766
    %v1207 = vunpack.c.l.b16 %v767
    %v1208 = vunpack.c.l.b16 %v768
    %v1209 = vunpack.c.h.b16 %v768
    %v1210 = vunpack.c.l.b16 %v769
    %v1211 = vunpack.c.l.b16 %v770
    %v1212 = vunpack.c.h.b16 %v770
    %v1213 = vunpack.c.l.b16 %v771
    %v1214 = vunpack.c.l.b16 %v772
    %v1215 = vunpack.c.h.b16 %v772
    %v1216 = vunpack.c.l.b16 %v773
    %v1217 = vunpack.c.l.b16 %v774
    %v1218 = vunpack.c.h.b16 %v774
    %v1219 = vunpack.c.l.b16 %v775
    %v1220 = vunpack.c.l.b16 %v776
    %v1221 = vunpack.c.h.b16 %v776
    %v1222 = vunpack.c.l.b16 %v777
    %v1223 = vunpack.c.l.b16 %v778
    %v1224 = vunpack.c.h.b16 %v778
    %v1225 = vunpack.c.l.b16 %v779
    %v1226 = vunpack.c.l.b16 %v780
    %v1227 = vunpack.c.h.b16 %v780
    %v1228 = vunpack.c.l.b16 %v781
    %v1229 = vunpack.c.l.b16 %v782
    %v1230 = vunpack.c.h.b16 %v782
    %v1231 = vunpack.c.l.b16 %v783
    %v1232 = vunpack.c.l.b16 %v784
    %v1233 = vunpack.c.h.b16 %v784
    %v1234 = vunpack.c.l.b16 %v785
    %v1235 = vunpack.c.l.b16 %v786
    %v1236 = vunpack.c.h.b16 %v786
    %v1237 = vunpack.c.l.b16 %v787
    %v1238 = vunpack.c.l.b16 %v788
    %v1239 = vunpack.c.h.b16 %v788
    %v1240 = vunpack.c.l.b16 %v789
    %v1241 = vunpack.c.l.b16 %v790
    %v1242 = vunpack.c.h.b16 %v790
    %v1243 = vunpack.c.l.b16 %v791
    %v1244 = vunpack.c.l.b16 %v792
    %v1245 = vunpack.c.h.b16 %v792
    %v1246 = vunpack.c.l.b16 %v793
    %v1247 = vunpack.c.l.b16 %v794
    %v1248 = vunpack.c.h.b16 %v794
    %v1249 = vunpack.c.l.b16 %v795
    %v1250 = vunpack.c.l.b16 %v796
    %v1251 = vunpack.c.h.b16 %v796
    %v1252 = vunpack.c.l.b16 %v797
    %v1253 = vunpack.c.l.b16 %v798
    %v1254 = vunpack.c.h.b16 %v798
    %v1255 = vunpack.c.l.b16 %v799
    %v1256 = vunpack.c.l.b16 %v800
    %v1257 = vunpack.c.h.b16 %v800
    %v1258 = vunpack.c.l.b16 %v801
    %v1259 = vunpack.c.l.b16 %v802
    %v1260 = vunpack.c.h.b16 %v802
    %v1261 = vunpack.c.l.b16 %v803
    %v1262 = vunpack.c.l.b16 %v804
    %v1263 = vunpack.c.h.b16 %v804
    %v1264 = vunpack.c.l.b16 %v805
    %v1265 = vunpack.c.l.b16 %v806
    %v1266 = vunpack.c.h.b16 %v806
    %v1267 = vunpack.c.l.b16 %v807
    %v1268 = vunpack.c.l.b16 %v808
    %v1269 = vunpack.c.h.b16 %v808
    %v1270 = vunpack.c.l.b16 %v809
    %v1271 = vunpack.c.l.b16 %v810
    %v1272 = vunpack.c.h.b16 %v810
    %v1273 = vunpack.c.l.b16 %v811
    %v1274 = vunpack.c.l.b16 %v812
    %v1275 = vunpack.c.h.b16 %v812
    %v1276 = vunpack.c.l.b16 %v813
    %v1277 = vunpack.c.l.b16 %v814
    %v1278 = vunpack.c.h.b16 %v814
    %v1279 = vunpack.c.l.b16 %v815
    %v1280 = vunpack.c.l.b16 %v816
    %v1281 = vunpack.c.h.b16 %v816
    %v1282 = vunpack.c.l.b16 %v817
    %v1283 = vunpack.c.l.b16 %v818
    %v1284 = vunpack.c.h.b16 %v818
    %v1285 = vunpack.c.l.b16 %v819
    %v1286 = vunpack.c.l.b16 %v820
    %v1287 = vunpack.c.h.b16 %v820
    %v1288 = vunpack.c.l.b16 %v821
    %v1289 = vunpack.c.l.b16 %v822
    %v1290 = vunpack.c.h.b16 %v822
    %v1291 = vunpack.c.l.b16 %v823
    %v1292 = vunpack.c.l.b16 %v824
    %v1293 = vunpack.c.h.b16 %v824
    %v1294 = vunpack.c.l.b16 %v825
    %v1295 = vunpack.c.l.b16 %v826
    %v1296 = vunpack.c.h.b16 %v826
    %v1297 = vunpack.c.l.b16 %v827
    %v1298 = vunpack.c.l.b16 %v828
    %v1299 = vunpack.c.h.b16 %v828
    %v1300 = vunpack.c.l.b16 %v829
    %v1301 = vunpack.c.l.b16 %v830
    %v1302 = vunpack.c.h.b16 %v830
    %v1303 = vunpack.c.l.b16 %v831
    %v1304 = vunpack.c.l.b16 %v832
    %v1305 = vunpack.c.h.b16 %v832
    %v1306 = vunpack.c.l.b16 %v833
    %v1307 = vunpack.c.l.b16 %v834
    %v1308 = vunpack.c.h.b16 %v834
    %v1309 = vunpack.c.l.b16 %v835
    %v1310 = vunpack.c.l.b16 %v836
    %v1311 = vunpack.c.h.b16 %v836
    %v1312 = vunpack.c.l.b16 %v837
    %v1313 = vunpack.c.l.b16 %v838
    %v1314 = vunpack.c.h.b16 %v838
    %v1315 = vunpack.c.l.b16 %v839
    %v1316 = vunpack.c.l.b16 %v840
    %v1317 = vunpack.c.h.b16 %v840
    %v1318 = vunpack.c.l.b16 %v841
    %v1319 = vunpack.c.l.b16 %v842
    %v1320 = vunpack.c.h.b16 %v842
    %v1321 = vunpack.c.l.b16 %v843
    %v1322 = vunpack.c.l.b16 %v844
    %v1323 = vunpack.c.h.b16 %v844
    %v1324 = vunpack.c.l.b16 %v845
    %v1325 = vunpack.c.l.b16 %v846
    %v1326 = vunpack.c.h.b16 %v846
    %v1327 = vunpack.c.l.b16 %v847
    %v1328 = vunpack.c.l.b16 %v848
    %v1329 = vunpack.c.h.b16 %v848
    %v1330 = vunpack.c.l.b16 %v849
    %v1331 = vunpack.c.l.b16 %v850
    %v1332 = vunpack.c.h.b16 %v850
    %v1333 = vunpack.c.l.b16 %v851
    %v1334 = vunpack.c.l.b16 %v852
    %v1335 = vunpack.c.h.b16 %v852
    %v1336 = vunpack.c.l.b16 %v853
    %v1337 = vunpack.c.l.b16 %v854
    %v1338 = vunpack.c.h.b16 %v854
    %v1339 = vunpack.c.l.b16 %v855
    %v1340 = vunpack.c.l.b16 %v856
    %v1341 = vunpack.c.h.b16 %v856
    %v1342 = vunpack.c.l.b16 %v857
    %v1343 = vunpack.c.l.b16 %v858
    %v1344 = vunpack.c.h.b16 %v858
    %v1345 = vunpack.c.l.b16 %v859
    %v1346 = vunpack.c.l.b16 %v860
    %v1347 = vunpack.c.h.b16 %v860
    %v1348 = vunpack.c.l.b16 %v861
    %v1349 = vunpack.c.l.b16 %v862
    %v1350 = vunpack.c.h.b16 %v862
    %v1351 = vunpack.c.l.b16 %v863
    %v1352 = vunpack.c.l.b16 %v864
    %v1353 = vunpack.c.h.b16 %v864
    %v1354 = vunpack.c.l.b16 %v865
    %v1355 = vunpack.c.l.b16 %v866
    %v1356 = vunpack.c.h.b16 %v866
    %v1357 = vunpack.c.l.b16 %v867
    %v1358 = vunpack.c.l.b16 %v868
    %v1359 = vunpack.c.h.b16 %v868
    %v1360 = vunpack.c.l.b16 %v869
    %v1361 = vunpack.c.l.b16 %v870
    %v1362 = vunpack.c.h.b16 %v870
    %v1363 = vunpack.c.l.b16 %v871
    %v1364 = vunpack.c.l.b16 %v872
    %v1365 = vunpack.c.h.b16 %v872
    %v1366 = vunpack.c.l.b16 %v873
    %v1367 = vunpack.c.l.b16 %v874
    %v1368 = vunpack.c.h.b16 %v874
    %v1369 = vunpack.c.l.b16 %v875
    %v1370 = vunpack.c.l.b16 %v876
    %v1371 = vunpack.c.h.b16 %v876
    %v1372 = vunpack.c.l.b16 %v877
    %v1373 = vunpack.c.l.b16 %v878
    %v1374 = vunpack.c.h.b16 %v878
    %v1375 = vunpack.c.l.b16 %v879
    %v1376 = vunpack.c.l.b16 %v880
    %v1377 = vunpack.c.h.b16 %v880
    %v1378 = vunpack.c.l.b16 %v881
    %v1379 = vunpack.c.l.b16 %v882
    %v1380 = vunpack.c.h.b16 %v882
    %v1381 = vunpack.c.l.b16 %v883
    %v1382 = vunpack.c.l.b16 %v884
    %v1383 = vunpack.c.h.b16 %v884
    %v1384 = vunpack.c.l.b16 %v885
    %v1385 = vunpack.c.l.b16 %v886
    %v1386 = vunpack.c.h.b16 %v886
    %v1387 = vunpack.c.l.b16 %v887
    %v1388 = vunpack.c.l.b16 %v888
    %v1389 = vunpack.c.h.b16 %v888
    %v1390 = vunpack.c.l.b16 %v889
    %v1391 = vunpack.c.l.b16 %v890
    %v1392 = vunpack.c.h.b16 %v890
    %v1393 = vunpack.c.l.b16 %v891
    %v1394 = vunpack.c.l.b16 %v892
    %v1395 = vunpack.c.h.b16 %v892
    %v1396 = vunpack.c.l.b16 %v893
    %v1397 = vunpack.c.l.b16 %v894
    %v1398 = vunpack.c.h.b16 %v894
    %v1399 = vunpack.c.l.b16 %v895
    %v1400 = vunpack.c.l.b16 %v896
    %v1401 = vunpack.c.h.b16 %v896
    %v1402 = vunpack.c.l.b16 %v897
    %v1403 = vunpack.c.l.b16 %v898
    %v1404 = vunpack.c.h.b16 %v898
    %v1405 = vunpack.c.l.b16 %v899
    %v1406 = vunpack.c.l.b16 %v900
    %v1407 = vunpack.c.h.b16 %v900
    %v1408 = vunpack.c.l.b16 %v901
    %v1409 = vpack.c.b16 %v1118, %v1115
    %v1410 = vpack.c.b16 %v1119, %v1116
    %v1411 = vpack.c.b16 %v1120, %v1117
    %v1412 = vpack.c.b16 %v1124, %v1121
    %v1413 = vpack.c.b16 %v1125, %v1122
    %v1414 = vpack.c.b16 %v1126, %v1123
    %v1415 = vpack.c.b16 %v1130, %v1127
    %v1416 = vpack.c.b16 %v1131, %v1128
    %v1417 = vpack.c.b16 %v1132, %v1129
    %v1418 = vpack.c.b16 %v1136, %v1133
    %v1419 = vpack.c.b16 %v1137, %v1134
    %v1420 = vpack.c.b16 %v1138, %v1135
    %v1421 = vpack.c.b16 %v1142, %v1139
    %v1422 = vpack.c.b16 %v1143, %v1140
    %v1423 = vpack.c.b16 %v1144, %v1141
    %v1424 = vpack.c.b16 %v1148, %v1145
    %v1425 = vpack.c.b16 %v1149, %v1146
    %v1426 = vpack.c.b16 %v1150, %v1147
    %v1427 = vpack.c.b16 %v1154, %v1151
    %v1428 = vpack.c.b16 %v1155, %v1152
    %v1429 = vpack.c.b16 %v1156, %v1153
    %v1430 = vpack.c.b16 %v1160, %v1157
    %v1431 = vpack.c.b16 %v1161, %v1158
    %v1432 = vpack.c.b16 %v1162, %v1159
    %v1433 = vpack.c.b16 %v1166, %v1163
    %v1434 = vpack.c.b16 %v1167, %v1164
    %v1435 = vpack.c.b16 %v1168, %v1165
    %v1436 = vpack.c.b16 %v1172, %v1169
    %v1437 = vpack.c.b16 %v1173, %v1170
    %v1438 = vpack.c.b16 %v1174, %v1171
    %v1439 = vpack.c.b16 %v1178, %v1175
    %v1440 = vpack.c.b16 %v1179, %v1176
    %v1441 = vpack.c.b16 %v1180, %v1177
    %v1442 = vpack.c.b16 %v1184, %v1181
    %v1443 = vpack.c.b16 %v1185, %v1182
    %v1444 = vpack.c.b16 %v1186, %v1183
    %v1445 = vpack.c.b16 %v1190, %v1187
    %v1446 = vpack.c.b16 %v1191, %v1188
    %v1447 = vpack.c.b16 %v1192, %v1189
    %v1448 = vpack.c.b16 %v1196, %v1193
    %v1449 = vpack.c.b16 %v1197, %v1194
    %v1450 = vpack.c.b16 %v1198, %v1195
    %v1451 = vpack.c.b16 %v1202, %v1199
    %v1452 = vpack.c.b16 %v1203, %v1200
    %v1453 = vpack.c.b16 %v1204, %v1201
    %v1454 = vpack.c.b16 %v1208, %v1205
    %v1455 = vpack.c.b16 %v1209, %v1206
    %v1456 = vpack.c.b16 %v1210, %v1207
    %v1457 = vpack.c.b16 %v1214, %v1211
    %v1458 = vpack.c.b16 %v1215, %v1212
    %v1459 = vpack.c.b16 %v1216, %v1213
    %v1460 = vpack.c.b16 %v1220, %v1217
    %v1461 = vpack.c.b16 %v1221, %v1218
    %v1462 = vpack.c.b16 %v1222, %v1219
    %v1463 = vpack.c.b16 %v1226, %v1223
    %v1464 = vpack.c.b16 %v1227, %v1224
    %v1465 = vpack.c.b16 %v1228, %v1225
    %v1466 = vpack.c.b16 %v1232, %v1229
    %v1467 = vpack.c.b16 %v1233, %v1230
    %v1468 = vpack.c.b16 %v1234, %v1231
    %v1469 = vpack.c.b16 %v1238, %v1235
    %v1470 = vpack.c.b16 %v1239, %v1236
    %v1471 = vpack.c.b16 %v1240, %v1237
    %v1472 = vpack.c.b16 %v1244, %v1241
    %v1473 = vpack.c.b16 %v1245, %v1242
    %v1474 = vpack.c.b16 %v1246, %v1243
    %v1475 = vpack.c.b16 %v1250, %v1247
    %v1476 = vpack.c.b16 %v1251, %v1248
    %v1477 = vpack.c.b16 %v1252, %v1249
    %v1478 = vpack.c.b16 %v1256, %v1253
    %v1479 = vpack.c.b16 %v1257, %v1254
    %v1480 = vpack.c.b16 %v1258, %v1255
    %v1481 = vpack.c.b16 %v1262, %v1259
    %v1482 = vpack.c.b16 %v1263, %v1260
    %v1483 = vpack.c.b16 %v1264, %v1261
    %v1484 = vpack.c.b16 %v1268, %v1265
    %v1485 = vpack.c.b16 %v1269, %v1266
    %v1486 = vpack.c.b16 %v1270, %v1267
    %v1487 = vpack.c.b16 %v1274, %v1271
    %v1488 = vpack.c.b16 %v1275, %v1272
    %v1489 = vpack.c.b16 %v1276, %v1273
    %v1490 = vpack.c.b16 %v1280, %v1277
    %v1491 = vpack.c.b16 %v1281, %v1278
    %v1492 = vpack.c.b16 %v1282, %v1279
    %v1493 = vpack.c.b16 %v1286, %v1283
    %v1494 = vpack.c.b16 %v1287, %v1284
    %v1495 = vpack.c.b16 %v1288, %v1285
    %v1496 = vpack.c.b16 %v1292, %v1289
    %v1497 = vpack.c.b16 %v1293, %v1290
    %v1498 = vpack.c.b16 %v1294, %v1291
    %v1499 = vpack.c.b16 %v1298, %v1295
    %v1500 = vpack.c.b16 %v1299, %v1296
    %v1501 = vpack.c.b16 %v1300, %v1297
    %v1502 = vpack.c.b16 %v1304, %v1301
    %v1503 = vpack.c.b16 %v1305, %v1302
    %v1504 = vpack.c.b16 %v1306, %v1303
    %v1505 = vpack.c.b16 %v1310, %v1307
    %v1506 = vpack.c.b16 %v1311, %v1308
    %v1507 = vpack.c.b16 %v1312, %v1309
    %v1508 = vpack.c.b16 %v1316, %v1313
    %v1509 = vpack.c.b16 %v1317, %v1314
    %v1510 = vpack.c.b16 %v1318, %v1315
    %v1511 = vpack.c.b16 %v1322, %v1319
    %v1512 = vpack.c.b16 %v1323, %v1320
    %v1513 = vpack.c.b16 %v1324, %v1321
    %v1514 = vpack.c.b16 %v1328, %v1325
    %v1515 = vpack.c.b16 %v1329, %v1326
    %v1516 = vpack.c.b16 %v1330, %v1327
    %v1517 = vpack.c.b16 %v1334, %v1331
    %v1518 = vpack.c.b16 %v1335, %v1332
    %v1519 = vpack.c.b16 %v1336, %v1333
    %v1520 = vpack.c.b16 %v1340, %v1337
    %v1521 = vpack.c.b16 %v1341, %v1338
    %v1522 = vpack.c.b16 %v1342, %v1339
    %v1523 = vpack.c.b16 %v1346, %v1343
    %v1524 = vpack.c.b16 %v1347, %v1344
    %v1525 = vpack.c.b16 %v1348, %v1345
    %v1526 = vpack.c.b16 %v1352, %v1349
    %v1527 = vpack.c.b16 %v1353, %v1350
    %v1528 = vpack.c.b16 %v1354, %v1351
    %v1529 = vpack.c.b16 %v1358, %v1355
    %v1530 = vpack.c.b16 %v1359, %v1356
    %v1531 = vpack.c.b16 %v1360, %v1357
    %v1532 = vpack.c.b16 %v1364, %v1361
    %v1533 = vpack.c.b16 %v1365, %v1362
    %v1534 = vpack.c.b16 %v1366, %v1363
    %v1535 = vpack.c.b16 %v1370, %v1367
    %v1536 = vpack.c.b16 %v1371, %v1368
    %v1537 = vpack.c.b16 %v1372, %v1369
    %v1538 = vpack.c.b16 %v1376, %v1373
    %v1539 = vpack.c.b16 %v1377, %v1374
    %v1540 = vpack.c.b16 %v1378, %v1375
    %v1541 = vpack.c.b16 %v1382, %v1379
    %v1542 = vpack.c.b16 %v1383, %v1380
    %v1543 = vpack.c.b16 %v1384, %v1381
    %v1544 = vpack.c.b16 %v1388, %v1385
    %v1545 = vpack.c.b16 %v1389, %v1386
    %v1546 = vpack.c.b16 %v1390, %v1387
    %v1547 = vpack.c.b16 %v1394, %v1391
    %v1548 = vpack.c.b16 %v1395, %v1392
    %v1549 = vpack.c.b16 %v1396, %v1393
    %v1550 = vpack.c.b16 %v1400, %v1397
    %v1551 = vpack.c.b16 %v1401, %v1398
    %v1552 = vpack.c.b16 %v1402, %v1399
    %v1553 = vpack.c.b16 %v1406, %v1403
    %v1554 = vpack.c.b16 %v1407, %v1404
    %v1555 = vpack.c.b16 %v1408, %v1405
    %vm1703 = vcmask 130048
    %v1705 = vsel %vm1703, %v488, 0
    %v1708 = vsel %vm1703, %v495, 0
    %v1711 = vsel %vm1703, %v502, 0
    %v1714 = vsel %vm1703, %v509, 0
    %v1717 = vsel %vm1703, %v516, 0
    %v1720 = vsel %vm1703, %v523, 0
    %v1723 = vsel %vm1703, %v530, 0
    %v1726 = vsel %vm1703, %v537, 0
    %v1729 = vsel %vm1703, %v544, 0
    %v1732 = vsel %vm1703, %v551, 0
    %v1735 = vsel %vm1703, %v558, 0
    %v1738 = vsel %vm1703, %v565, 0
    %v1741 = vsel %vm1703, %v572, 0
    %v1744 = vsel %vm1703, %v579, 0
    %v1747 = vsel %vm1703, %v586, 0
    %v1750 = vsel %vm1703, %v593, 0
    %v1753 = vsel %vm1703, %v600, 0
    %v1756 = vsel %vm1703, %v607, 0
    %v1759 = vsel %vm1703, %v614, 0
    %v1762 = vsel %vm1703, %v621, 0
    %v1765 = vsel %vm1703, %v628, 0
    %v1768 = vsel %vm1703, %v635, 0
    %v1771 = vsel %vm1703, %v642, 0
    %v1774 = vsel %vm1703, %v649, 0
    %v1777 = vsel %vm1703, %v656, 0
    %v1780 = vsel %vm1703, %v663, 0
    %v1783 = vsel %vm1703, %v670, 0
    %v1786 = vsel %vm1703, %v677, 0
    %v1789 = vsel %vm1703, %v684, 0
    %v1792 = vsel %vm1703, %v691, 0
    %v1795 = vsel %vm1703, %v698, 0
    %v1798 = vsel %vm1703, %v705, 0
    %1800 = vmatprep.subr.bf16.mxu0 %v1431
    %1801 = vmatpush1.bf16.msra.mxu0 %v1430
    %1802 = vmatprep.subr.bf16.mxu0 %v1428
    %1803 = vmatpush1.bf16.msra.mxu0 %v1427
    %1804 = vmatprep.subr.bf16.mxu0 %v1425
    %1805 = vmatpush1.bf16.msra.mxu0 %v1424
    %1806 = vmatprep.subr.bf16.mxu0 %v1422
    %1807 = vmatpush1.bf16.msra.mxu0 %v1421
    %1808 = vmatprep.subr.bf16.mxu0 %v1419
    %1809 = vmatpush1.bf16.msra.mxu0 %v1418
    %1810 = vmatprep.subr.bf16.mxu0 %v1416
    %1811 = vmatpush1.bf16.msra.mxu0 %v1415
    %1812 = vmatprep.subr.bf16.mxu0 %v1413
    %1813 = vmatpush1.bf16.msra.mxu0 %v1412
    %1814 = vmatprep.subr.bf16.mxu0 %v1410
    %1815 = vmatpush1.bf16.msra.mxu0 %v1409
    %1816 = vmatprep.subr.bf16.mxu0 %v1455
    %1817 = vmatpush2.bf16.msra.mxu0 %v1454
    %1818 = vmatprep.subr.bf16.mxu0 %v1452
    %1819 = vmatpush2.bf16.msra.mxu0 %v1451
    %1820 = vmatprep.subr.bf16.mxu0 %v1449
    %1821 = vmatpush2.bf16.msra.mxu0 %v1448
    %1822 = vmatprep.subr.bf16.mxu0 %v1446
    %1823 = vmatpush2.bf16.msra.mxu0 %v1445
    %1824 = vmatprep.subr.bf16.mxu0 %v1443
    %1825 = vmatpush2.bf16.msra.mxu0 %v1442
    %1826 = vmatprep.subr.bf16.mxu0 %v1440
    %1827 = vmatpush2.bf16.msra.mxu0 %v1439
    %1828 = vmatprep.subr.bf16.mxu0 %v1437
    %1829 = vmatpush2.bf16.msra.mxu0 %v1436
    %1830 = vmatprep.subr.bf16.mxu0 %v1434
    %1831 = vmatpush2.bf16.msra.mxu0 %v1433
    %1832 = vmatprep.mubr.bf16.mxu0 %v483
    %1833 = vmatmul.mubr.bf16.gmra.mxu0 %v482
    %v1834 = vpop.f32.mrf.mxu0
    %v1835 = vadd.f32 %v907, %v1834
    %v1836 = vpop.f32.mrf.mxu0
    %v1837 = vadd.f32 %v911, %v1836
    %v1838 = vpop.f32.mrf.mxu0
    %v1839 = vadd.f32 %v907, %v1838
    %v1840 = vpop.f32.mrf.mxu0
    %v1841 = vadd.f32 %v911, %v1840
    %1842 = vmatprep.mubr.bf16.mxu0 %v490
    %1843 = vmatmul.mubr.bf16.gmra.mxu0 %v489
    %v1844 = vpop.f32.mrf.mxu0
    %v1845 = vadd.f32 %v907, %v1844
    %v1846 = vpop.f32.mrf.mxu0
    %v1847 = vadd.f32 %v911, %v1846
    %v1848 = vpop.f32.mrf.mxu0
    %v1849 = vadd.f32 %v907, %v1848
    %v1850 = vpop.f32.mrf.mxu0
    %v1851 = vadd.f32 %v911, %v1850
    %1852 = vmatprep.mubr.bf16.mxu0 %v497
    %1853 = vmatmul.mubr.bf16.gmra.mxu0 %v496
    %v1854 = vpop.f32.mrf.mxu0
    %v1855 = vadd.f32 %v907, %v1854
    %v1856 = vpop.f32.mrf.mxu0
    %v1857 = vadd.f32 %v911, %v1856
    %v1858 = vpop.f32.mrf.mxu0
    %v1859 = vadd.f32 %v907, %v1858
    %v1860 = vpop.f32.mrf.mxu0
    %v1861 = vadd.f32 %v911, %v1860
    %1862 = vmatprep.mubr.bf16.mxu0 %v504
    %1863 = vmatmul.mubr.bf16.gmra.mxu0 %v503
    %v1864 = vpop.f32.mrf.mxu0
    %v1865 = vadd.f32 %v907, %v1864
    %v1866 = vpop.f32.mrf.mxu0
    %v1867 = vadd.f32 %v911, %v1866
    %v1868 = vpop.f32.mrf.mxu0
    %v1869 = vadd.f32 %v907, %v1868
    %v1870 = vpop.f32.mrf.mxu0
    %v1871 = vadd.f32 %v911, %v1870
    %1872 = vmatprep.mubr.bf16.mxu0 %v511
    %1873 = vmatmul.mubr.bf16.gmra.mxu0 %v510
    %v1874 = vpop.f32.mrf.mxu0
    %v1875 = vadd.f32 %v907, %v1874
    %v1876 = vpop.f32.mrf.mxu0
    %v1877 = vadd.f32 %v911, %v1876
    %v1878 = vpop.f32.mrf.mxu0
    %v1879 = vadd.f32 %v907, %v1878
    %v1880 = vpop.f32.mrf.mxu0
    %v1881 = vadd.f32 %v911, %v1880
    %1882 = vmatprep.mubr.bf16.mxu0 %v518
    %1883 = vmatmul.mubr.bf16.gmra.mxu0 %v517
    %v1884 = vpop.f32.mrf.mxu0
    %v1885 = vadd.f32 %v907, %v1884
    %v1886 = vpop.f32.mrf.mxu0
    %v1887 = vadd.f32 %v911, %v1886
    %v1888 = vpop.f32.mrf.mxu0
    %v1889 = vadd.f32 %v907, %v1888
    %v1890 = vpop.f32.mrf.mxu0
    %v1891 = vadd.f32 %v911, %v1890
    %1892 = vmatprep.mubr.bf16.mxu0 %v525
    %1893 = vmatmul.mubr.bf16.gmra.mxu0 %v524
    %v1894 = vpop.f32.mrf.mxu0
    %v1895 = vadd.f32 %v907, %v1894
    %v1896 = vpop.f32.mrf.mxu0
    %v1897 = vadd.f32 %v911, %v1896
    %v1898 = vpop.f32.mrf.mxu0
    %v1899 = vadd.f32 %v907, %v1898
    %v1900 = vpop.f32.mrf.mxu0
    %v1901 = vadd.f32 %v911, %v1900
    %1902 = vmatprep.mubr.bf16.mxu0 %v532
    %1903 = vmatmul.mubr.bf16.gmra.mxu0 %v531
    %v1904 = vpop.f32.mrf.mxu0
    %v1905 = vadd.f32 %v907, %v1904
    %v1906 = vpop.f32.mrf.mxu0
    %v1907 = vadd.f32 %v911, %v1906
    %v1908 = vpop.f32.mrf.mxu0
    %v1909 = vadd.f32 %v907, %v1908
    %v1910 = vpop.f32.mrf.mxu0
    %v1911 = vadd.f32 %v911, %v1910
    %1912 = vmatprep.mubr.bf16.mxu0 %v539
    %1913 = vmatmul.mubr.bf16.gmra.mxu0 %v538
    %v1914 = vpop.f32.mrf.mxu0
    %v1915 = vadd.f32 %v907, %v1914
    %v1916 = vpop.f32.mrf.mxu0
    %v1917 = vadd.f32 %v911, %v1916
    %v1918 = vpop.f32.mrf.mxu0
    %v1919 = vadd.f32 %v907, %v1918
    %v1920 = vpop.f32.mrf.mxu0
    %v1921 = vadd.f32 %v911, %v1920
    %1922 = vmatprep.mubr.bf16.mxu0 %v546
    %1923 = vmatmul.mubr.bf16.gmra.mxu0 %v545
    %v1924 = vpop.f32.mrf.mxu0
    %v1925 = vadd.f32 %v907, %v1924
    %v1926 = vpop.f32.mrf.mxu0
    %v1927 = vadd.f32 %v911, %v1926
    %v1928 = vpop.f32.mrf.mxu0
    %v1929 = vadd.f32 %v907, %v1928
    %v1930 = vpop.f32.mrf.mxu0
    %v1931 = vadd.f32 %v911, %v1930
    %1932 = vmatprep.mubr.bf16.mxu0 %v553
    %1933 = vmatmul.mubr.bf16.gmra.mxu0 %v552
    %v1934 = vpop.f32.mrf.mxu0
    %v1935 = vadd.f32 %v907, %v1934
    %v1936 = vpop.f32.mrf.mxu0
    %v1937 = vadd.f32 %v911, %v1936
    %v1938 = vpop.f32.mrf.mxu0
    %v1939 = vadd.f32 %v907, %v1938
    %v1940 = vpop.f32.mrf.mxu0
    %v1941 = vadd.f32 %v911, %v1940
    %1942 = vmatprep.mubr.bf16.mxu0 %v560
    %1943 = vmatmul.mubr.bf16.gmra.mxu0 %v559
    %v1944 = vpop.f32.mrf.mxu0
    %v1945 = vadd.f32 %v907, %v1944
    %v1946 = vpop.f32.mrf.mxu0
    %v1947 = vadd.f32 %v911, %v1946
    %v1948 = vpop.f32.mrf.mxu0
    %v1949 = vadd.f32 %v907, %v1948
    %v1950 = vpop.f32.mrf.mxu0
    %v1951 = vadd.f32 %v911, %v1950
    %1952 = vmatprep.mubr.bf16.mxu0 %v567
    %1953 = vmatmul.mubr.bf16.gmra.mxu0 %v566
    %v1954 = vpop.f32.mrf.mxu0
    %v1955 = vadd.f32 %v907, %v1954
    %v1956 = vpop.f32.mrf.mxu0
    %v1957 = vadd.f32 %v911, %v1956
    %v1958 = vpop.f32.mrf.mxu0
    %v1959 = vadd.f32 %v907, %v1958
    %v1960 = vpop.f32.mrf.mxu0
    %v1961 = vadd.f32 %v911, %v1960
    %1962 = vmatprep.mubr.bf16.mxu0 %v574
    %1963 = vmatmul.mubr.bf16.gmra.mxu0 %v573
    %v1964 = vpop.f32.mrf.mxu0
    %v1965 = vadd.f32 %v907, %v1964
    %v1966 = vpop.f32.mrf.mxu0
    %v1967 = vadd.f32 %v911, %v1966
    %v1968 = vpop.f32.mrf.mxu0
    %v1969 = vadd.f32 %v907, %v1968
    %v1970 = vpop.f32.mrf.mxu0
    %v1971 = vadd.f32 %v911, %v1970
    %1972 = vmatprep.mubr.bf16.mxu0 %v581
    %1973 = vmatmul.mubr.bf16.gmra.mxu0 %v580
    %v1974 = vpop.f32.mrf.mxu0
    %v1975 = vadd.f32 %v907, %v1974
    %v1976 = vpop.f32.mrf.mxu0
    %v1977 = vadd.f32 %v911, %v1976
    %v1978 = vpop.f32.mrf.mxu0
    %v1979 = vadd.f32 %v907, %v1978
    %v1980 = vpop.f32.mrf.mxu0
    %v1981 = vadd.f32 %v911, %v1980
    %1982 = vmatprep.mubr.bf16.mxu0 %v588
    %1983 = vmatmul.mubr.bf16.gmra.mxu0 %v587
    %v1984 = vpop.f32.mrf.mxu0
    %v1985 = vadd.f32 %v907, %v1984
    %v1986 = vpop.f32.mrf.mxu0
    %v1987 = vadd.f32 %v911, %v1986
    %v1988 = vpop.f32.mrf.mxu0
    %v1989 = vadd.f32 %v907, %v1988
    %v1990 = vpop.f32.mrf.mxu0
    %v1991 = vadd.f32 %v911, %v1990
    %1992 = vmatprep.mubr.bf16.mxu0 %v595
    %1993 = vmatmul.mubr.bf16.gmra.mxu0 %v594
    %v1994 = vpop.f32.mrf.mxu0
    %v1995 = vadd.f32 %v907, %v1994
    %v1996 = vpop.f32.mrf.mxu0
    %v1997 = vadd.f32 %v911, %v1996
    %v1998 = vpop.f32.mrf.mxu0
    %v1999 = vadd.f32 %v907, %v1998
    %v2000 = vpop.f32.mrf.mxu0
    %v2001 = vadd.f32 %v911, %v2000
    %2002 = vmatprep.mubr.bf16.mxu0 %v602
    %2003 = vmatmul.mubr.bf16.gmra.mxu0 %v601
    %v2004 = vpop.f32.mrf.mxu0
    %v2005 = vadd.f32 %v907, %v2004
    %v2006 = vpop.f32.mrf.mxu0
    %v2007 = vadd.f32 %v911, %v2006
    %v2008 = vpop.f32.mrf.mxu0
    %v2009 = vadd.f32 %v907, %v2008
    %v2010 = vpop.f32.mrf.mxu0
    %v2011 = vadd.f32 %v911, %v2010
    %2012 = vmatprep.mubr.bf16.mxu0 %v609
    %2013 = vmatmul.mubr.bf16.gmra.mxu0 %v608
    %v2014 = vpop.f32.mrf.mxu0
    %v2015 = vadd.f32 %v907, %v2014
    %v2016 = vpop.f32.mrf.mxu0
    %v2017 = vadd.f32 %v911, %v2016
    %v2018 = vpop.f32.mrf.mxu0
    %v2019 = vadd.f32 %v907, %v2018
    %v2020 = vpop.f32.mrf.mxu0
    %v2021 = vadd.f32 %v911, %v2020
    %2022 = vmatprep.mubr.bf16.mxu0 %v616
    %2023 = vmatmul.mubr.bf16.gmra.mxu0 %v615
    %v2024 = vpop.f32.mrf.mxu0
    %v2025 = vadd.f32 %v907, %v2024
    %v2026 = vpop.f32.mrf.mxu0
    %v2027 = vadd.f32 %v911, %v2026
    %v2028 = vpop.f32.mrf.mxu0
    %v2029 = vadd.f32 %v907, %v2028
    %v2030 = vpop.f32.mrf.mxu0
    %v2031 = vadd.f32 %v911, %v2030
    %2032 = vmatprep.mubr.bf16.mxu0 %v623
    %2033 = vmatmul.mubr.bf16.gmra.mxu0 %v622
    %v2034 = vpop.f32.mrf.mxu0
    %v2035 = vadd.f32 %v907, %v2034
    %v2036 = vpop.f32.mrf.mxu0
    %v2037 = vadd.f32 %v911, %v2036
    %v2038 = vpop.f32.mrf.mxu0
    %v2039 = vadd.f32 %v907, %v2038
    %v2040 = vpop.f32.mrf.mxu0
    %v2041 = vadd.f32 %v911, %v2040
    %2042 = vmatprep.mubr.bf16.mxu0 %v630
    %2043 = vmatmul.mubr.bf16.gmra.mxu0 %v629
    %v2044 = vpop.f32.mrf.mxu0
    %v2045 = vadd.f32 %v907, %v2044
    %v2046 = vpop.f32.mrf.mxu0
    %v2047 = vadd.f32 %v911, %v2046
    %v2048 = vpop.f32.mrf.mxu0
    %v2049 = vadd.f32 %v907, %v2048
    %v2050 = vpop.f32.mrf.mxu0
    %v2051 = vadd.f32 %v911, %v2050
    %2052 = vmatprep.mubr.bf16.mxu0 %v637
    %2053 = vmatmul.mubr.bf16.gmra.mxu0 %v636
    %v2054 = vpop.f32.mrf.mxu0
    %v2055 = vadd.f32 %v907, %v2054
    %v2056 = vpop.f32.mrf.mxu0
    %v2057 = vadd.f32 %v911, %v2056
    %v2058 = vpop.f32.mrf.mxu0
    %v2059 = vadd.f32 %v907, %v2058
    %v2060 = vpop.f32.mrf.mxu0
    %v2061 = vadd.f32 %v911, %v2060
    %2062 = vmatprep.mubr.bf16.mxu0 %v644
    %2063 = vmatmul.mubr.bf16.gmra.mxu0 %v643
    %v2064 = vpop.f32.mrf.mxu0
    %v2065 = vadd.f32 %v907, %v2064
    %v2066 = vpop.f32.mrf.mxu0
    %v2067 = vadd.f32 %v911, %v2066
    %v2068 = vpop.f32.mrf.mxu0
    %v2069 = vadd.f32 %v907, %v2068
    %v2070 = vpop.f32.mrf.mxu0
    %v2071 = vadd.f32 %v911, %v2070
    %2072 = vmatprep.mubr.bf16.mxu0 %v651
    %2073 = vmatmul.mubr.bf16.gmra.mxu0 %v650
    %v2074 = vpop.f32.mrf.mxu0
    %v2075 = vadd.f32 %v907, %v2074
    %v2076 = vpop.f32.mrf.mxu0
    %v2077 = vadd.f32 %v911, %v2076
    %v2078 = vpop.f32.mrf.mxu0
    %v2079 = vadd.f32 %v907, %v2078
    %v2080 = vpop.f32.mrf.mxu0
    %v2081 = vadd.f32 %v911, %v2080
    %2082 = vmatprep.mubr.bf16.mxu0 %v658
    %2083 = vmatmul.mubr.bf16.gmra.mxu0 %v657
    %v2084 = vpop.f32.mrf.mxu0
    %v2085 = vadd.f32 %v907, %v2084
    %v2086 = vpop.f32.mrf.mxu0
    %v2087 = vadd.f32 %v911, %v2086
    %v2088 = vpop.f32.mrf.mxu0
    %v2089 = vadd.f32 %v907, %v2088
    %v2090 = vpop.f32.mrf.mxu0
    %v2091 = vadd.f32 %v911, %v2090
    %2092 = vmatprep.mubr.bf16.mxu0 %v665
    %2093 = vmatmul.mubr.bf16.gmra.mxu0 %v664
    %v2094 = vpop.f32.mrf.mxu0
    %v2095 = vadd.f32 %v907, %v2094
    %v2096 = vpop.f32.mrf.mxu0
    %v2097 = vadd.f32 %v911, %v2096
    %v2098 = vpop.f32.mrf.mxu0
    %v2099 = vadd.f32 %v907, %v2098
    %v2100 = vpop.f32.mrf.mxu0
    %v2101 = vadd.f32 %v911, %v2100
    %2102 = vmatprep.mubr.bf16.mxu0 %v672
    %2103 = vmatmul.mubr.bf16.gmra.mxu0 %v671
    %v2104 = vpop.f32.mrf.mxu0
    %v2105 = vadd.f32 %v907, %v2104
    %v2106 = vpop.f32.mrf.mxu0
    %v2107 = vadd.f32 %v911, %v2106
    %v2108 = vpop.f32.mrf.mxu0
    %v2109 = vadd.f32 %v907, %v2108
    %v2110 = vpop.f32.mrf.mxu0
    %v2111 = vadd.f32 %v911, %v2110
    %2112 = vmatprep.mubr.bf16.mxu0 %v679
    %2113 = vmatmul.mubr.bf16.gmra.mxu0 %v678
    %v2114 = vpop.f32.mrf.mxu0
    %v2115 = vadd.f32 %v907, %v2114
    %v2116 = vpop.f32.mrf.mxu0
    %v2117 = vadd.f32 %v911, %v2116
    %v2118 = vpop.f32.mrf.mxu0
    %v2119 = vadd.f32 %v907, %v2118
    %v2120 = vpop.f32.mrf.mxu0
    %v2121 = vadd.f32 %v911, %v2120
    %2122 = vmatprep.mubr.bf16.mxu0 %v686
    %2123 = vmatmul.mubr.bf16.gmra.mxu0 %v685
    %v2124 = vpop.f32.mrf.mxu0
    %v2125 = vadd.f32 %v907, %v2124
    %v2126 = vpop.f32.mrf.mxu0
    %v2127 = vadd.f32 %v911, %v2126
    %v2128 = vpop.f32.mrf.mxu0
    %v2129 = vadd.f32 %v907, %v2128
    %v2130 = vpop.f32.mrf.mxu0
    %v2131 = vadd.f32 %v911, %v2130
    %2132 = vmatprep.mubr.bf16.mxu0 %v693
    %2133 = vmatmul.mubr.bf16.gmra.mxu0 %v692
    %v2134 = vpop.f32.mrf.mxu0
    %v2135 = vadd.f32 %v907, %v2134
    %v2136 = vpop.f32.mrf.mxu0
    %v2137 = vadd.f32 %v911, %v2136
    %v2138 = vpop.f32.mrf.mxu0
    %v2139 = vadd.f32 %v907, %v2138
    %v2140 = vpop.f32.mrf.mxu0
    %v2141 = vadd.f32 %v911, %v2140
    %2142 = vmatprep.mubr.bf16.mxu0 %v700
    %2143 = vmatmul.mubr.bf16.gmra.mxu0 %v699
    %v2144 = vpop.f32.mrf.mxu0
    %v2145 = vadd.f32 %v907, %v2144
    %v2146 = vpop.f32.mrf.mxu0
    %v2147 = vadd.f32 %v911, %v2146
    %v2148 = vpop.f32.mrf.mxu0
    %v2149 = vadd.f32 %v907, %v2148
    %v2150 = vpop.f32.mrf.mxu0
    %v2151 = vadd.f32 %v911, %v2150
    %2152 = vdwg.mxu0
    %2153 = vmatprep.subr.bf16.mxu0 %v1479
    %2154 = vmatpush1.bf16.msra.mxu0 %v1478
    %2155 = vmatprep.subr.bf16.mxu0 %v1476
    %2156 = vmatpush1.bf16.msra.mxu0 %v1475
    %2157 = vmatprep.subr.bf16.mxu0 %v1473
    %2158 = vmatpush1.bf16.msra.mxu0 %v1472
    %2159 = vmatprep.subr.bf16.mxu0 %v1470
    %2160 = vmatpush1.bf16.msra.mxu0 %v1469
    %2161 = vmatprep.subr.bf16.mxu0 %v1467
    %2162 = vmatpush1.bf16.msra.mxu0 %v1466
    %2163 = vmatprep.subr.bf16.mxu0 %v1464
    %2164 = vmatpush1.bf16.msra.mxu0 %v1463
    %2165 = vmatprep.subr.bf16.mxu0 %v1461
    %2166 = vmatpush1.bf16.msra.mxu0 %v1460
    %2167 = vmatprep.subr.bf16.mxu0 %v1458
    %2168 = vmatpush1.bf16.msra.mxu0 %v1457
    %2169 = vmatprep.subr.bf16.mxu0 %v1503
    %2170 = vmatpush2.bf16.msra.mxu0 %v1502
    %2171 = vmatprep.subr.bf16.mxu0 %v1500
    %2172 = vmatpush2.bf16.msra.mxu0 %v1499
    %2173 = vmatprep.subr.bf16.mxu0 %v1497
    %2174 = vmatpush2.bf16.msra.mxu0 %v1496
    %2175 = vmatprep.subr.bf16.mxu0 %v1494
    %2176 = vmatpush2.bf16.msra.mxu0 %v1493
    %2177 = vmatprep.subr.bf16.mxu0 %v1491
    %2178 = vmatpush2.bf16.msra.mxu0 %v1490
    %2179 = vmatprep.subr.bf16.mxu0 %v1488
    %2180 = vmatpush2.bf16.msra.mxu0 %v1487
    %2181 = vmatprep.subr.bf16.mxu0 %v1485
    %2182 = vmatpush2.bf16.msra.mxu0 %v1484
    %2183 = vmatprep.subr.bf16.mxu0 %v1482
    %2184 = vmatpush2.bf16.msra.mxu0 %v1481
    %2185 = vmatprep.mubr.bf16.mxu0 %v485
    %2186 = vmatmul.mubr.bf16.gmra.mxu0 %v484
    %v2187 = vpop.f32.mrf.mxu0
    %v2188 = vadd.f32 %v1835, %v2187
    %v2189 = vpop.f32.mrf.mxu0
    %v2190 = vadd.f32 %v1837, %v2189
    %v2191 = vpop.f32.mrf.mxu0
    %v2192 = vadd.f32 %v1839, %v2191
    %v2193 = vpop.f32.mrf.mxu0
    %v2194 = vadd.f32 %v1841, %v2193
    %2195 = vmatprep.mubr.bf16.mxu0 %v492
    %2196 = vmatmul.mubr.bf16.gmra.mxu0 %v491
    %v2197 = vpop.f32.mrf.mxu0
    %v2198 = vadd.f32 %v1845, %v2197
    %v2199 = vpop.f32.mrf.mxu0
    %v2200 = vadd.f32 %v1847, %v2199
    %v2201 = vpop.f32.mrf.mxu0
    %v2202 = vadd.f32 %v1849, %v2201
    %v2203 = vpop.f32.mrf.mxu0
    %v2204 = vadd.f32 %v1851, %v2203
    %2205 = vmatprep.mubr.bf16.mxu0 %v499
    %2206 = vmatmul.mubr.bf16.gmra.mxu0 %v498
    %v2207 = vpop.f32.mrf.mxu0
    %v2208 = vadd.f32 %v1855, %v2207
    %v2209 = vpop.f32.mrf.mxu0
    %v2210 = vadd.f32 %v1857, %v2209
    %v2211 = vpop.f32.mrf.mxu0
    %v2212 = vadd.f32 %v1859, %v2211
    %v2213 = vpop.f32.mrf.mxu0
    %v2214 = vadd.f32 %v1861, %v2213
    %2215 = vmatprep.mubr.bf16.mxu0 %v506
    %2216 = vmatmul.mubr.bf16.gmra.mxu0 %v505
    %v2217 = vpop.f32.mrf.mxu0
    %v2218 = vadd.f32 %v1865, %v2217
    %v2219 = vpop.f32.mrf.mxu0
    %v2220 = vadd.f32 %v1867, %v2219
    %v2221 = vpop.f32.mrf.mxu0
    %v2222 = vadd.f32 %v1869, %v2221
    %v2223 = vpop.f32.mrf.mxu0
    %v2224 = vadd.f32 %v1871, %v2223
    %2225 = vmatprep.mubr.bf16.mxu0 %v513
    %2226 = vmatmul.mubr.bf16.gmra.mxu0 %v512
    %v2227 = vpop.f32.mrf.mxu0
    %v2228 = vadd.f32 %v1875, %v2227
    %v2229 = vpop.f32.mrf.mxu0
    %v2230 = vadd.f32 %v1877, %v2229
    %v2231 = vpop.f32.mrf.mxu0
    %v2232 = vadd.f32 %v1879, %v2231
    %v2233 = vpop.f32.mrf.mxu0
    %v2234 = vadd.f32 %v1881, %v2233
    %2235 = vmatprep.mubr.bf16.mxu0 %v520
    %2236 = vmatmul.mubr.bf16.gmra.mxu0 %v519
    %v2237 = vpop.f32.mrf.mxu0
    %v2238 = vadd.f32 %v1885, %v2237
    %v2239 = vpop.f32.mrf.mxu0
    %v2240 = vadd.f32 %v1887, %v2239
    %v2241 = vpop.f32.mrf.mxu0
    %v2242 = vadd.f32 %v1889, %v2241
    %v2243 = vpop.f32.mrf.mxu0
    %v2244 = vadd.f32 %v1891, %v2243
    %2245 = vmatprep.mubr.bf16.mxu0 %v527
    %2246 = vmatmul.mubr.bf16.gmra.mxu0 %v526
    %v2247 = vpop.f32.mrf.mxu0
    %v2248 = vadd.f32 %v1895, %v2247
    %v2249 = vpop.f32.mrf.mxu0
    %v2250 = vadd.f32 %v1897, %v2249
    %v2251 = vpop.f32.mrf.mxu0
    %v2252 = vadd.f32 %v1899, %v2251
    %v2253 = vpop.f32.mrf.mxu0
    %v2254 = vadd.f32 %v1901, %v2253
    %2255 = vmatprep.mubr.bf16.mxu0 %v534
    %2256 = vmatmul.mubr.bf16.gmra.mxu0 %v533
    %v2257 = vpop.f32.mrf.mxu0
    %v2258 = vadd.f32 %v1905, %v2257
    %v2259 = vpop.f32.mrf.mxu0
    %v2260 = vadd.f32 %v1907, %v2259
    %v2261 = vpop.f32.mrf.mxu0
    %v2262 = vadd.f32 %v1909, %v2261
    %v2263 = vpop.f32.mrf.mxu0
    %v2264 = vadd.f32 %v1911, %v2263
    %2265 = vmatprep.mubr.bf16.mxu0 %v541
    %2266 = vmatmul.mubr.bf16.gmra.mxu0 %v540
    %v2267 = vpop.f32.mrf.mxu0
    %v2268 = vadd.f32 %v1915, %v2267
    %v2269 = vpop.f32.mrf.mxu0
    %v2270 = vadd.f32 %v1917, %v2269
    %v2271 = vpop.f32.mrf.mxu0
    %v2272 = vadd.f32 %v1919, %v2271
    %v2273 = vpop.f32.mrf.mxu0
    %v2274 = vadd.f32 %v1921, %v2273
    %2275 = vmatprep.mubr.bf16.mxu0 %v548
    %2276 = vmatmul.mubr.bf16.gmra.mxu0 %v547
    %v2277 = vpop.f32.mrf.mxu0
    %v2278 = vadd.f32 %v1925, %v2277
    %v2279 = vpop.f32.mrf.mxu0
    %v2280 = vadd.f32 %v1927, %v2279
    %v2281 = vpop.f32.mrf.mxu0
    %v2282 = vadd.f32 %v1929, %v2281
    %v2283 = vpop.f32.mrf.mxu0
    %v2284 = vadd.f32 %v1931, %v2283
    %2285 = vmatprep.mubr.bf16.mxu0 %v555
    %2286 = vmatmul.mubr.bf16.gmra.mxu0 %v554
    %v2287 = vpop.f32.mrf.mxu0
    %v2288 = vadd.f32 %v1935, %v2287
    %v2289 = vpop.f32.mrf.mxu0
    %v2290 = vadd.f32 %v1937, %v2289
    %v2291 = vpop.f32.mrf.mxu0
    %v2292 = vadd.f32 %v1939, %v2291
    %v2293 = vpop.f32.mrf.mxu0
    %v2294 = vadd.f32 %v1941, %v2293
    %2295 = vmatprep.mubr.bf16.mxu0 %v562
    %2296 = vmatmul.mubr.bf16.gmra.mxu0 %v561
    %v2297 = vpop.f32.mrf.mxu0
    %v2298 = vadd.f32 %v1945, %v2297
    %v2299 = vpop.f32.mrf.mxu0
    %v2300 = vadd.f32 %v1947, %v2299
    %v2301 = vpop.f32.mrf.mxu0
    %v2302 = vadd.f32 %v1949, %v2301
    %v2303 = vpop.f32.mrf.mxu0
    %v2304 = vadd.f32 %v1951, %v2303
    %2305 = vmatprep.mubr.bf16.mxu0 %v569
    %2306 = vmatmul.mubr.bf16.gmra.mxu0 %v568
    %v2307 = vpop.f32.mrf.mxu0
    %v2308 = vadd.f32 %v1955, %v2307
    %v2309 = vpop.f32.mrf.mxu0
    %v2310 = vadd.f32 %v1957, %v2309
    %v2311 = vpop.f32.mrf.mxu0
    %v2312 = vadd.f32 %v1959, %v2311
    %v2313 = vpop.f32.mrf.mxu0
    %v2314 = vadd.f32 %v1961, %v2313
    %2315 = vmatprep.mubr.bf16.mxu0 %v576
    %2316 = vmatmul.mubr.bf16.gmra.mxu0 %v575
    %v2317 = vpop.f32.mrf.mxu0
    %v2318 = vadd.f32 %v1965, %v2317
    %v2319 = vpop.f32.mrf.mxu0
    %v2320 = vadd.f32 %v1967, %v2319
    %v2321 = vpop.f32.mrf.mxu0
    %v2322 = vadd.f32 %v1969, %v2321
    %v2323 = vpop.f32.mrf.mxu0
    %v2324 = vadd.f32 %v1971, %v2323
    %2325 = vmatprep.mubr.bf16.mxu0 %v583
    %2326 = vmatmul.mubr.bf16.gmra.mxu0 %v582
    %v2327 = vpop.f32.mrf.mxu0
    %v2328 = vadd.f32 %v1975, %v2327
    %v2329 = vpop.f32.mrf.mxu0
    %v2330 = vadd.f32 %v1977, %v2329
    %v2331 = vpop.f32.mrf.mxu0
    %v2332 = vadd.f32 %v1979, %v2331
    %v2333 = vpop.f32.mrf.mxu0
    %v2334 = vadd.f32 %v1981, %v2333
    %2335 = vmatprep.mubr.bf16.mxu0 %v590
    %2336 = vmatmul.mubr.bf16.gmra.mxu0 %v589
    %v2337 = vpop.f32.mrf.mxu0
    %v2338 = vadd.f32 %v1985, %v2337
    %v2339 = vpop.f32.mrf.mxu0
    %v2340 = vadd.f32 %v1987, %v2339
    %v2341 = vpop.f32.mrf.mxu0
    %v2342 = vadd.f32 %v1989, %v2341
    %v2343 = vpop.f32.mrf.mxu0
    %v2344 = vadd.f32 %v1991, %v2343
    %2345 = vmatprep.mubr.bf16.mxu0 %v597
    %2346 = vmatmul.mubr.bf16.gmra.mxu0 %v596
    %v2347 = vpop.f32.mrf.mxu0
    %v2348 = vadd.f32 %v1995, %v2347
    %v2349 = vpop.f32.mrf.mxu0
    %v2350 = vadd.f32 %v1997, %v2349
    %v2351 = vpop.f32.mrf.mxu0
    %v2352 = vadd.f32 %v1999, %v2351
    %v2353 = vpop.f32.mrf.mxu0
    %v2354 = vadd.f32 %v2001, %v2353
    %2355 = vmatprep.mubr.bf16.mxu0 %v604
    %2356 = vmatmul.mubr.bf16.gmra.mxu0 %v603
    %v2357 = vpop.f32.mrf.mxu0
    %v2358 = vadd.f32 %v2005, %v2357
    %v2359 = vpop.f32.mrf.mxu0
    %v2360 = vadd.f32 %v2007, %v2359
    %v2361 = vpop.f32.mrf.mxu0
    %v2362 = vadd.f32 %v2009, %v2361
    %v2363 = vpop.f32.mrf.mxu0
    %v2364 = vadd.f32 %v2011, %v2363
    %2365 = vmatprep.mubr.bf16.mxu0 %v611
    %2366 = vmatmul.mubr.bf16.gmra.mxu0 %v610
    %v2367 = vpop.f32.mrf.mxu0
    %v2368 = vadd.f32 %v2015, %v2367
    %v2369 = vpop.f32.mrf.mxu0
    %v2370 = vadd.f32 %v2017, %v2369
    %v2371 = vpop.f32.mrf.mxu0
    %v2372 = vadd.f32 %v2019, %v2371
    %v2373 = vpop.f32.mrf.mxu0
    %v2374 = vadd.f32 %v2021, %v2373
    %2375 = vmatprep.mubr.bf16.mxu0 %v618
    %2376 = vmatmul.mubr.bf16.gmra.mxu0 %v617
    %v2377 = vpop.f32.mrf.mxu0
    %v2378 = vadd.f32 %v2025, %v2377
    %v2379 = vpop.f32.mrf.mxu0
    %v2380 = vadd.f32 %v2027, %v2379
    %v2381 = vpop.f32.mrf.mxu0
    %v2382 = vadd.f32 %v2029, %v2381
    %v2383 = vpop.f32.mrf.mxu0
    %v2384 = vadd.f32 %v2031, %v2383
    %2385 = vmatprep.mubr.bf16.mxu0 %v625
    %2386 = vmatmul.mubr.bf16.gmra.mxu0 %v624
    %v2387 = vpop.f32.mrf.mxu0
    %v2388 = vadd.f32 %v2035, %v2387
    %v2389 = vpop.f32.mrf.mxu0
    %v2390 = vadd.f32 %v2037, %v2389
    %v2391 = vpop.f32.mrf.mxu0
    %v2392 = vadd.f32 %v2039, %v2391
    %v2393 = vpop.f32.mrf.mxu0
    %v2394 = vadd.f32 %v2041, %v2393
    %2395 = vmatprep.mubr.bf16.mxu0 %v632
    %2396 = vmatmul.mubr.bf16.gmra.mxu0 %v631
    %v2397 = vpop.f32.mrf.mxu0
    %v2398 = vadd.f32 %v2045, %v2397
    %v2399 = vpop.f32.mrf.mxu0
    %v2400 = vadd.f32 %v2047, %v2399
    %v2401 = vpop.f32.mrf.mxu0
    %v2402 = vadd.f32 %v2049, %v2401
    %v2403 = vpop.f32.mrf.mxu0
    %v2404 = vadd.f32 %v2051, %v2403
    %2405 = vmatprep.mubr.bf16.mxu0 %v639
    %2406 = vmatmul.mubr.bf16.gmra.mxu0 %v638
    %v2407 = vpop.f32.mrf.mxu0
    %v2408 = vadd.f32 %v2055, %v2407
    %v2409 = vpop.f32.mrf.mxu0
    %v2410 = vadd.f32 %v2057, %v2409
    %v2411 = vpop.f32.mrf.mxu0
    %v2412 = vadd.f32 %v2059, %v2411
    %v2413 = vpop.f32.mrf.mxu0
    %v2414 = vadd.f32 %v2061, %v2413
    %2415 = vmatprep.mubr.bf16.mxu0 %v646
    %2416 = vmatmul.mubr.bf16.gmra.mxu0 %v645
    %v2417 = vpop.f32.mrf.mxu0
    %v2418 = vadd.f32 %v2065, %v2417
    %v2419 = vpop.f32.mrf.mxu0
    %v2420 = vadd.f32 %v2067, %v2419
    %v2421 = vpop.f32.mrf.mxu0
    %v2422 = vadd.f32 %v2069, %v2421
    %v2423 = vpop.f32.mrf.mxu0
    %v2424 = vadd.f32 %v2071, %v2423
    %2425 = vmatprep.mubr.bf16.mxu0 %v653
    %2426 = vmatmul.mubr.bf16.gmra.mxu0 %v652
    %v2427 = vpop.f32.mrf.mxu0
    %v2428 = vadd.f32 %v2075, %v2427
    %v2429 = vpop.f32.mrf.mxu0
    %v2430 = vadd.f32 %v2077, %v2429
    %v2431 = vpop.f32.mrf.mxu0
    %v2432 = vadd.f32 %v2079, %v2431
    %v2433 = vpop.f32.mrf.mxu0
    %v2434 = vadd.f32 %v2081, %v2433
    %2435 = vmatprep.mubr.bf16.mxu0 %v660
    %2436 = vmatmul.mubr.bf16.gmra.mxu0 %v659
    %v2437 = vpop.f32.mrf.mxu0
    %v2438 = vadd.f32 %v2085, %v2437
    %v2439 = vpop.f32.mrf.mxu0
    %v2440 = vadd.f32 %v2087, %v2439
    %v2441 = vpop.f32.mrf.mxu0
    %v2442 = vadd.f32 %v2089, %v2441
    %v2443 = vpop.f32.mrf.mxu0
    %v2444 = vadd.f32 %v2091, %v2443
    %2445 = vmatprep.mubr.bf16.mxu0 %v667
    %2446 = vmatmul.mubr.bf16.gmra.mxu0 %v666
    %v2447 = vpop.f32.mrf.mxu0
    %v2448 = vadd.f32 %v2095, %v2447
    %v2449 = vpop.f32.mrf.mxu0
    %v2450 = vadd.f32 %v2097, %v2449
    %v2451 = vpop.f32.mrf.mxu0
    %v2452 = vadd.f32 %v2099, %v2451
    %v2453 = vpop.f32.mrf.mxu0
    %v2454 = vadd.f32 %v2101, %v2453
    %2455 = vmatprep.mubr.bf16.mxu0 %v674
    %2456 = vmatmul.mubr.bf16.gmra.mxu0 %v673
    %v2457 = vpop.f32.mrf.mxu0
    %v2458 = vadd.f32 %v2105, %v2457
    %v2459 = vpop.f32.mrf.mxu0
    %v2460 = vadd.f32 %v2107, %v2459
    %v2461 = vpop.f32.mrf.mxu0
    %v2462 = vadd.f32 %v2109, %v2461
    %v2463 = vpop.f32.mrf.mxu0
    %v2464 = vadd.f32 %v2111, %v2463
    %2465 = vmatprep.mubr.bf16.mxu0 %v681
    %2466 = vmatmul.mubr.bf16.gmra.mxu0 %v680
    %v2467 = vpop.f32.mrf.mxu0
    %v2468 = vadd.f32 %v2115, %v2467
    %v2469 = vpop.f32.mrf.mxu0
    %v2470 = vadd.f32 %v2117, %v2469
    %v2471 = vpop.f32.mrf.mxu0
    %v2472 = vadd.f32 %v2119, %v2471
    %v2473 = vpop.f32.mrf.mxu0
    %v2474 = vadd.f32 %v2121, %v2473
    %2475 = vmatprep.mubr.bf16.mxu0 %v688
    %2476 = vmatmul.mubr.bf16.gmra.mxu0 %v687
    %v2477 = vpop.f32.mrf.mxu0
    %v2478 = vadd.f32 %v2125, %v2477
    %v2479 = vpop.f32.mrf.mxu0
    %v2480 = vadd.f32 %v2127, %v2479
    %v2481 = vpop.f32.mrf.mxu0
    %v2482 = vadd.f32 %v2129, %v2481
    %v2483 = vpop.f32.mrf.mxu0
    %v2484 = vadd.f32 %v2131, %v2483
    %2485 = vmatprep.mubr.bf16.mxu0 %v695
    %2486 = vmatmul.mubr.bf16.gmra.mxu0 %v694
    %v2487 = vpop.f32.mrf.mxu0
    %v2488 = vadd.f32 %v2135, %v2487
    %v2489 = vpop.f32.mrf.mxu0
    %v2490 = vadd.f32 %v2137, %v2489
    %v2491 = vpop.f32.mrf.mxu0
    %v2492 = vadd.f32 %v2139, %v2491
    %v2493 = vpop.f32.mrf.mxu0
    %v2494 = vadd.f32 %v2141, %v2493
    %2495 = vmatprep.mubr.bf16.mxu0 %v702
    %2496 = vmatmul.mubr.bf16.gmra.mxu0 %v701
    %v2497 = vpop.f32.mrf.mxu0
    %v2498 = vadd.f32 %v2145, %v2497
    %v2499 = vpop.f32.mrf.mxu0
    %v2500 = vadd.f32 %v2147, %v2499
    %v2501 = vpop.f32.mrf.mxu0
    %v2502 = vadd.f32 %v2149, %v2501
    %v2503 = vpop.f32.mrf.mxu0
    %v2504 = vadd.f32 %v2151, %v2503
    %2505 = vdwg.mxu0
    %2506 = vmatprep.subr.bf16.mxu0 %v1527
    %2507 = vmatpush1.bf16.msra.mxu0 %v1526
    %2508 = vmatprep.subr.bf16.mxu0 %v1524
    %2509 = vmatpush1.bf16.msra.mxu0 %v1523
    %2510 = vmatprep.subr.bf16.mxu0 %v1521
    %2511 = vmatpush1.bf16.msra.mxu0 %v1520
    %2512 = vmatprep.subr.bf16.mxu0 %v1518
    %2513 = vmatpush1.bf16.msra.mxu0 %v1517
    %2514 = vmatprep.subr.bf16.mxu0 %v1515
    %2515 = vmatpush1.bf16.msra.mxu0 %v1514
    %2516 = vmatprep.subr.bf16.mxu0 %v1512
    %2517 = vmatpush1.bf16.msra.mxu0 %v1511
    %2518 = vmatprep.subr.bf16.mxu0 %v1509
    %2519 = vmatpush1.bf16.msra.mxu0 %v1508
    %2520 = vmatprep.subr.bf16.mxu0 %v1506
    %2521 = vmatpush1.bf16.msra.mxu0 %v1505
    %2522 = vmatprep.subr.bf16.mxu0 %v1551
    %2523 = vmatpush2.bf16.msra.mxu0 %v1550
    %2524 = vmatprep.subr.bf16.mxu0 %v1548
    %2525 = vmatpush2.bf16.msra.mxu0 %v1547
    %2526 = vmatprep.subr.bf16.mxu0 %v1545
    %2527 = vmatpush2.bf16.msra.mxu0 %v1544
    %2528 = vmatprep.subr.bf16.mxu0 %v1542
    %2529 = vmatpush2.bf16.msra.mxu0 %v1541
    %2530 = vmatprep.subr.bf16.mxu0 %v1539
    %2531 = vmatpush2.bf16.msra.mxu0 %v1538
    %2532 = vmatprep.subr.bf16.mxu0 %v1536
    %2533 = vmatpush2.bf16.msra.mxu0 %v1535
    %2534 = vmatprep.subr.bf16.mxu0 %v1533
    %2535 = vmatpush2.bf16.msra.mxu0 %v1532
    %2536 = vmatprep.subr.bf16.mxu0 %v1530
    %2537 = vmatpush2.bf16.msra.mxu0 %v1529
    %2538 = vmatprep.mubr.bf16.mxu0 %v487
    %2539 = vmatmul.mubr.bf16.gmra.mxu0 %v486
    %v2540 = vpop.f32.mrf.mxu0
    %v2541 = vadd.f32 %v2188, %v2540
    %v2542 = vpop.f32.mrf.mxu0
    %v2543 = vadd.f32 %v2190, %v2542
    %v2544 = vpop.f32.mrf.mxu0
    %v2545 = vadd.f32 %v2192, %v2544
    %v2546 = vpop.f32.mrf.mxu0
    %v2547 = vadd.f32 %v2194, %v2546
    %2548 = vmatprep.mubr.bf16.mxu0 %v494
    %2549 = vmatmul.mubr.bf16.gmra.mxu0 %v493
    %v2550 = vpop.f32.mrf.mxu0
    %v2551 = vadd.f32 %v2198, %v2550
    %v2552 = vpop.f32.mrf.mxu0
    %v2553 = vadd.f32 %v2200, %v2552
    %v2554 = vpop.f32.mrf.mxu0
    %v2555 = vadd.f32 %v2202, %v2554
    %v2556 = vpop.f32.mrf.mxu0
    %v2557 = vadd.f32 %v2204, %v2556
    %2558 = vmatprep.mubr.bf16.mxu0 %v501
    %2559 = vmatmul.mubr.bf16.gmra.mxu0 %v500
    %v2560 = vpop.f32.mrf.mxu0
    %v2561 = vadd.f32 %v2208, %v2560
    %v2562 = vpop.f32.mrf.mxu0
    %v2563 = vadd.f32 %v2210, %v2562
    %v2564 = vpop.f32.mrf.mxu0
    %v2565 = vadd.f32 %v2212, %v2564
    %v2566 = vpop.f32.mrf.mxu0
    %v2567 = vadd.f32 %v2214, %v2566
    %2568 = vmatprep.mubr.bf16.mxu0 %v508
    %2569 = vmatmul.mubr.bf16.gmra.mxu0 %v507
    %v2570 = vpop.f32.mrf.mxu0
    %v2571 = vadd.f32 %v2218, %v2570
    %v2572 = vpop.f32.mrf.mxu0
    %v2573 = vadd.f32 %v2220, %v2572
    %v2574 = vpop.f32.mrf.mxu0
    %v2575 = vadd.f32 %v2222, %v2574
    %v2576 = vpop.f32.mrf.mxu0
    %v2577 = vadd.f32 %v2224, %v2576
    %2578 = vmatprep.mubr.bf16.mxu0 %v515
    %2579 = vmatmul.mubr.bf16.gmra.mxu0 %v514
    %v2580 = vpop.f32.mrf.mxu0
    %v2581 = vadd.f32 %v2228, %v2580
    %v2582 = vpop.f32.mrf.mxu0
    %v2583 = vadd.f32 %v2230, %v2582
    %v2584 = vpop.f32.mrf.mxu0
    %v2585 = vadd.f32 %v2232, %v2584
    %v2586 = vpop.f32.mrf.mxu0
    %v2587 = vadd.f32 %v2234, %v2586
    %2588 = vmatprep.mubr.bf16.mxu0 %v522
    %2589 = vmatmul.mubr.bf16.gmra.mxu0 %v521
    %v2590 = vpop.f32.mrf.mxu0
    %v2591 = vadd.f32 %v2238, %v2590
    %v2592 = vpop.f32.mrf.mxu0
    %v2593 = vadd.f32 %v2240, %v2592
    %v2594 = vpop.f32.mrf.mxu0
    %v2595 = vadd.f32 %v2242, %v2594
    %v2596 = vpop.f32.mrf.mxu0
    %v2597 = vadd.f32 %v2244, %v2596
    %2598 = vmatprep.mubr.bf16.mxu0 %v529
    %2599 = vmatmul.mubr.bf16.gmra.mxu0 %v528
    %v2600 = vpop.f32.mrf.mxu0
    %v2601 = vadd.f32 %v2248, %v2600
    %v2602 = vpop.f32.mrf.mxu0
    %v2603 = vadd.f32 %v2250, %v2602
    %v2604 = vpop.f32.mrf.mxu0
    %v2605 = vadd.f32 %v2252, %v2604
    %v2606 = vpop.f32.mrf.mxu0
    %v2607 = vadd.f32 %v2254, %v2606
    %2608 = vmatprep.mubr.bf16.mxu0 %v536
    %2609 = vmatmul.mubr.bf16.gmra.mxu0 %v535
    %v2610 = vpop.f32.mrf.mxu0
    %v2611 = vadd.f32 %v2258, %v2610
    %v2612 = vpop.f32.mrf.mxu0
    %v2613 = vadd.f32 %v2260, %v2612
    %v2614 = vpop.f32.mrf.mxu0
    %v2615 = vadd.f32 %v2262, %v2614
    %v2616 = vpop.f32.mrf.mxu0
    %v2617 = vadd.f32 %v2264, %v2616
    %2618 = vmatprep.mubr.bf16.mxu0 %v543
    %2619 = vmatmul.mubr.bf16.gmra.mxu0 %v542
    %v2620 = vpop.f32.mrf.mxu0
    %v2621 = vadd.f32 %v2268, %v2620
    %v2622 = vpop.f32.mrf.mxu0
    %v2623 = vadd.f32 %v2270, %v2622
    %v2624 = vpop.f32.mrf.mxu0
    %v2625 = vadd.f32 %v2272, %v2624
    %v2626 = vpop.f32.mrf.mxu0
    %v2627 = vadd.f32 %v2274, %v2626
    %2628 = vmatprep.mubr.bf16.mxu0 %v550
    %2629 = vmatmul.mubr.bf16.gmra.mxu0 %v549
    %v2630 = vpop.f32.mrf.mxu0
    %v2631 = vadd.f32 %v2278, %v2630
    %v2632 = vpop.f32.mrf.mxu0
    %v2633 = vadd.f32 %v2280, %v2632
    %v2634 = vpop.f32.mrf.mxu0
    %v2635 = vadd.f32 %v2282, %v2634
    %v2636 = vpop.f32.mrf.mxu0
    %v2637 = vadd.f32 %v2284, %v2636
    %2638 = vmatprep.mubr.bf16.mxu0 %v557
    %2639 = vmatmul.mubr.bf16.gmra.mxu0 %v556
    %v2640 = vpop.f32.mrf.mxu0
    %v2641 = vadd.f32 %v2288, %v2640
    %v2642 = vpop.f32.mrf.mxu0
    %v2643 = vadd.f32 %v2290, %v2642
    %v2644 = vpop.f32.mrf.mxu0
    %v2645 = vadd.f32 %v2292, %v2644
    %v2646 = vpop.f32.mrf.mxu0
    %v2647 = vadd.f32 %v2294, %v2646
    %2648 = vmatprep.mubr.bf16.mxu0 %v564
    %2649 = vmatmul.mubr.bf16.gmra.mxu0 %v563
    %v2650 = vpop.f32.mrf.mxu0
    %v2651 = vadd.f32 %v2298, %v2650
    %v2652 = vpop.f32.mrf.mxu0
    %v2653 = vadd.f32 %v2300, %v2652
    %v2654 = vpop.f32.mrf.mxu0
    %v2655 = vadd.f32 %v2302, %v2654
    %v2656 = vpop.f32.mrf.mxu0
    %v2657 = vadd.f32 %v2304, %v2656
    %2658 = vmatprep.mubr.bf16.mxu0 %v571
    %2659 = vmatmul.mubr.bf16.gmra.mxu0 %v570
    %v2660 = vpop.f32.mrf.mxu0
    %v2661 = vadd.f32 %v2308, %v2660
    %v2662 = vpop.f32.mrf.mxu0
    %v2663 = vadd.f32 %v2310, %v2662
    %v2664 = vpop.f32.mrf.mxu0
    %v2665 = vadd.f32 %v2312, %v2664
    %v2666 = vpop.f32.mrf.mxu0
    %v2667 = vadd.f32 %v2314, %v2666
    %2668 = vmatprep.mubr.bf16.mxu0 %v578
    %2669 = vmatmul.mubr.bf16.gmra.mxu0 %v577
    %v2670 = vpop.f32.mrf.mxu0
    %v2671 = vadd.f32 %v2318, %v2670
    %v2672 = vpop.f32.mrf.mxu0
    %v2673 = vadd.f32 %v2320, %v2672
    %v2674 = vpop.f32.mrf.mxu0
    %v2675 = vadd.f32 %v2322, %v2674
    %v2676 = vpop.f32.mrf.mxu0
    %v2677 = vadd.f32 %v2324, %v2676
    %2678 = vmatprep.mubr.bf16.mxu0 %v585
    %2679 = vmatmul.mubr.bf16.gmra.mxu0 %v584
    %v2680 = vpop.f32.mrf.mxu0
    %v2681 = vadd.f32 %v2328, %v2680
    %v2682 = vpop.f32.mrf.mxu0
    %v2683 = vadd.f32 %v2330, %v2682
    %v2684 = vpop.f32.mrf.mxu0
    %v2685 = vadd.f32 %v2332, %v2684
    %v2686 = vpop.f32.mrf.mxu0
    %v2687 = vadd.f32 %v2334, %v2686
    %2688 = vmatprep.mubr.bf16.mxu0 %v592
    %2689 = vmatmul.mubr.bf16.gmra.mxu0 %v591
    %v2690 = vpop.f32.mrf.mxu0
    %v2691 = vadd.f32 %v2338, %v2690
    %v2692 = vpop.f32.mrf.mxu0
    %v2693 = vadd.f32 %v2340, %v2692
    %v2694 = vpop.f32.mrf.mxu0
    %v2695 = vadd.f32 %v2342, %v2694
    %v2696 = vpop.f32.mrf.mxu0
    %v2697 = vadd.f32 %v2344, %v2696
    %2698 = vmatprep.mubr.bf16.mxu0 %v599
    %2699 = vmatmul.mubr.bf16.gmra.mxu0 %v598
    %v2700 = vpop.f32.mrf.mxu0
    %v2701 = vadd.f32 %v2348, %v2700
    %v2702 = vpop.f32.mrf.mxu0
    %v2703 = vadd.f32 %v2350, %v2702
    %v2704 = vpop.f32.mrf.mxu0
    %v2705 = vadd.f32 %v2352, %v2704
    %v2706 = vpop.f32.mrf.mxu0
    %v2707 = vadd.f32 %v2354, %v2706
    %2708 = vmatprep.mubr.bf16.mxu0 %v606
    %2709 = vmatmul.mubr.bf16.gmra.mxu0 %v605
    %v2710 = vpop.f32.mrf.mxu0
    %v2711 = vadd.f32 %v2358, %v2710
    %v2712 = vpop.f32.mrf.mxu0
    %v2713 = vadd.f32 %v2360, %v2712
    %v2714 = vpop.f32.mrf.mxu0
    %v2715 = vadd.f32 %v2362, %v2714
    %v2716 = vpop.f32.mrf.mxu0
    %v2717 = vadd.f32 %v2364, %v2716
    %2718 = vmatprep.mubr.bf16.mxu0 %v613
    %2719 = vmatmul.mubr.bf16.gmra.mxu0 %v612
    %v2720 = vpop.f32.mrf.mxu0
    %v2721 = vadd.f32 %v2368, %v2720
    %v2722 = vpop.f32.mrf.mxu0
    %v2723 = vadd.f32 %v2370, %v2722
    %v2724 = vpop.f32.mrf.mxu0
    %v2725 = vadd.f32 %v2372, %v2724
    %v2726 = vpop.f32.mrf.mxu0
    %v2727 = vadd.f32 %v2374, %v2726
    %2728 = vmatprep.mubr.bf16.mxu0 %v620
    %2729 = vmatmul.mubr.bf16.gmra.mxu0 %v619
    %v2730 = vpop.f32.mrf.mxu0
    %v2731 = vadd.f32 %v2378, %v2730
    %v2732 = vpop.f32.mrf.mxu0
    %v2733 = vadd.f32 %v2380, %v2732
    %v2734 = vpop.f32.mrf.mxu0
    %v2735 = vadd.f32 %v2382, %v2734
    %v2736 = vpop.f32.mrf.mxu0
    %v2737 = vadd.f32 %v2384, %v2736
    %2738 = vmatprep.mubr.bf16.mxu0 %v627
    %2739 = vmatmul.mubr.bf16.gmra.mxu0 %v626
    %v2740 = vpop.f32.mrf.mxu0
    %v2741 = vadd.f32 %v2388, %v2740
    %v2742 = vpop.f32.mrf.mxu0
    %v2743 = vadd.f32 %v2390, %v2742
    %v2744 = vpop.f32.mrf.mxu0
    %v2745 = vadd.f32 %v2392, %v2744
    %v2746 = vpop.f32.mrf.mxu0
    %v2747 = vadd.f32 %v2394, %v2746
    %2748 = vmatprep.mubr.bf16.mxu0 %v634
    %2749 = vmatmul.mubr.bf16.gmra.mxu0 %v633
    %v2750 = vpop.f32.mrf.mxu0
    %v2751 = vadd.f32 %v2398, %v2750
    %v2752 = vpop.f32.mrf.mxu0
    %v2753 = vadd.f32 %v2400, %v2752
    %v2754 = vpop.f32.mrf.mxu0
    %v2755 = vadd.f32 %v2402, %v2754
    %v2756 = vpop.f32.mrf.mxu0
    %v2757 = vadd.f32 %v2404, %v2756
    %2758 = vmatprep.mubr.bf16.mxu0 %v641
    %2759 = vmatmul.mubr.bf16.gmra.mxu0 %v640
    %v2760 = vpop.f32.mrf.mxu0
    %v2761 = vadd.f32 %v2408, %v2760
    %v2762 = vpop.f32.mrf.mxu0
    %v2763 = vadd.f32 %v2410, %v2762
    %v2764 = vpop.f32.mrf.mxu0
    %v2765 = vadd.f32 %v2412, %v2764
    %v2766 = vpop.f32.mrf.mxu0
    %v2767 = vadd.f32 %v2414, %v2766
    %2768 = vmatprep.mubr.bf16.mxu0 %v648
    %2769 = vmatmul.mubr.bf16.gmra.mxu0 %v647
    %v2770 = vpop.f32.mrf.mxu0
    %v2771 = vadd.f32 %v2418, %v2770
    %v2772 = vpop.f32.mrf.mxu0
    %v2773 = vadd.f32 %v2420, %v2772
    %v2774 = vpop.f32.mrf.mxu0
    %v2775 = vadd.f32 %v2422, %v2774
    %v2776 = vpop.f32.mrf.mxu0
    %v2777 = vadd.f32 %v2424, %v2776
    %2778 = vmatprep.mubr.bf16.mxu0 %v655
    %2779 = vmatmul.mubr.bf16.gmra.mxu0 %v654
    %v2780 = vpop.f32.mrf.mxu0
    %v2781 = vadd.f32 %v2428, %v2780
    %v2782 = vpop.f32.mrf.mxu0
    %v2783 = vadd.f32 %v2430, %v2782
    %v2784 = vpop.f32.mrf.mxu0
    %v2785 = vadd.f32 %v2432, %v2784
    %v2786 = vpop.f32.mrf.mxu0
    %v2787 = vadd.f32 %v2434, %v2786
    %2788 = vmatprep.mubr.bf16.mxu0 %v662
    %2789 = vmatmul.mubr.bf16.gmra.mxu0 %v661
    %v2790 = vpop.f32.mrf.mxu0
    %v2791 = vadd.f32 %v2438, %v2790
    %v2792 = vpop.f32.mrf.mxu0
    %v2793 = vadd.f32 %v2440, %v2792
    %v2794 = vpop.f32.mrf.mxu0
    %v2795 = vadd.f32 %v2442, %v2794
    %v2796 = vpop.f32.mrf.mxu0
    %v2797 = vadd.f32 %v2444, %v2796
    %2798 = vmatprep.mubr.bf16.mxu0 %v669
    %2799 = vmatmul.mubr.bf16.gmra.mxu0 %v668
    %v2800 = vpop.f32.mrf.mxu0
    %v2801 = vadd.f32 %v2448, %v2800
    %v2802 = vpop.f32.mrf.mxu0
    %v2803 = vadd.f32 %v2450, %v2802
    %v2804 = vpop.f32.mrf.mxu0
    %v2805 = vadd.f32 %v2452, %v2804
    %v2806 = vpop.f32.mrf.mxu0
    %v2807 = vadd.f32 %v2454, %v2806
    %2808 = vmatprep.mubr.bf16.mxu0 %v676
    %2809 = vmatmul.mubr.bf16.gmra.mxu0 %v675
    %v2810 = vpop.f32.mrf.mxu0
    %v2811 = vadd.f32 %v2458, %v2810
    %v2812 = vpop.f32.mrf.mxu0
    %v2813 = vadd.f32 %v2460, %v2812
    %v2814 = vpop.f32.mrf.mxu0
    %v2815 = vadd.f32 %v2462, %v2814
    %v2816 = vpop.f32.mrf.mxu0
    %v2817 = vadd.f32 %v2464, %v2816
    %2818 = vmatprep.mubr.bf16.mxu0 %v683
    %2819 = vmatmul.mubr.bf16.gmra.mxu0 %v682
    %v2820 = vpop.f32.mrf.mxu0
    %v2821 = vadd.f32 %v2468, %v2820
    %v2822 = vpop.f32.mrf.mxu0
    %v2823 = vadd.f32 %v2470, %v2822
    %v2824 = vpop.f32.mrf.mxu0
    %v2825 = vadd.f32 %v2472, %v2824
    %v2826 = vpop.f32.mrf.mxu0
    %v2827 = vadd.f32 %v2474, %v2826
    %2828 = vmatprep.mubr.bf16.mxu0 %v690
    %2829 = vmatmul.mubr.bf16.gmra.mxu0 %v689
    %v2830 = vpop.f32.mrf.mxu0
    %v2831 = vadd.f32 %v2478, %v2830
    %v2832 = vpop.f32.mrf.mxu0
    %v2833 = vadd.f32 %v2480, %v2832
    %v2834 = vpop.f32.mrf.mxu0
    %v2835 = vadd.f32 %v2482, %v2834
    %v2836 = vpop.f32.mrf.mxu0
    %v2837 = vadd.f32 %v2484, %v2836
    %2838 = vmatprep.mubr.bf16.mxu0 %v697
    %2839 = vmatmul.mubr.bf16.gmra.mxu0 %v696
    %v2840 = vpop.f32.mrf.mxu0
    %v2841 = vadd.f32 %v2488, %v2840
    %v2842 = vpop.f32.mrf.mxu0
    %v2843 = vadd.f32 %v2490, %v2842
    %v2844 = vpop.f32.mrf.mxu0
    %v2845 = vadd.f32 %v2492, %v2844
    %v2846 = vpop.f32.mrf.mxu0
    %v2847 = vadd.f32 %v2494, %v2846
    %2848 = vmatprep.mubr.bf16.mxu0 %v704
    %2849 = vmatmul.mubr.bf16.gmra.mxu0 %v703
    %v2850 = vpop.f32.mrf.mxu0
    %v2851 = vadd.f32 %v2498, %v2850
    %v2852 = vpop.f32.mrf.mxu0
    %v2853 = vadd.f32 %v2500, %v2852
    %v2854 = vpop.f32.mrf.mxu0
    %v2855 = vadd.f32 %v2502, %v2854
    %v2856 = vpop.f32.mrf.mxu0
    %v2857 = vadd.f32 %v2504, %v2856
    %2858 = vdwg.mxu0
    %2859 = vmatprep.subr.bf16.mxu0 0
    %2860 = vmatpush1.bf16.msra.mxu0 0
    %2861 = vmatprep.subr.bf16.mxu0 0
    %2862 = vmatpush1.bf16.msra.mxu0 0
    %2863 = vmatprep.subr.bf16.mxu0 0
    %2864 = vmatpush1.bf16.msra.mxu0 0
    %2865 = vmatprep.subr.bf16.mxu0 0
    %2866 = vmatpush1.bf16.msra.mxu0 0
    %2867 = vmatprep.subr.bf16.mxu0 0
    %2868 = vmatpush1.bf16.msra.mxu0 0
    %2869 = vmatprep.subr.bf16.mxu0 0
    %2870 = vmatpush1.bf16.msra.mxu0 0
    %2871 = vmatprep.subr.bf16.mxu0 0
    %2872 = vmatpush1.bf16.msra.mxu0 0
    %2873 = vmatprep.subr.bf16.mxu0 %v1554
    %2874 = vmatpush1.bf16.msra.mxu0 %v1553
    %2875 = vmatprep.subr.bf16.mxu0 0
    %2876 = vmatpush2.bf16.msra.mxu0 0
    %2877 = vmatprep.subr.bf16.mxu0 0
    %2878 = vmatpush2.bf16.msra.mxu0 0
    %2879 = vmatprep.subr.bf16.mxu0 0
    %2880 = vmatpush2.bf16.msra.mxu0 0
    %2881 = vmatprep.subr.bf16.mxu0 0
    %2882 = vmatpush2.bf16.msra.mxu0 0
    %2883 = vmatprep.subr.bf16.mxu0 0
    %2884 = vmatpush2.bf16.msra.mxu0 0
    %2885 = vmatprep.subr.bf16.mxu0 0
    %2886 = vmatpush2.bf16.msra.mxu0 0
    %2887 = vmatprep.subr.bf16.mxu0 0
    %2888 = vmatpush2.bf16.msra.mxu0 0
    %2889 = vmatprep.subr.bf16.mxu0 0
    %2890 = vmatpush2.bf16.msra.mxu0 0
    %2891 = vmatprep.mubr.bf16.mxu0 0
    %2892 = vmatmul.mubr.bf16.gmra.mxu0 %v1705
    %v2893 = vpop.f32.mrf.mxu0
    %v2894 = vadd.f32 %v2541, %v2893
    %v2895 = vpop.f32.mrf.mxu0
    %v2896 = vadd.f32 %v2543, %v2895
    %v2897 = vpop.f32.mrf.mxu0
    %v2898 = vadd.f32 %v2545, %v2897
    %v2899 = vpop.f32.mrf.mxu0
    %v2900 = vadd.f32 %v2547, %v2899
    %2901 = vmatprep.mubr.bf16.mxu0 0
    %2902 = vmatmul.mubr.bf16.gmra.mxu0 %v1708
    %v2903 = vpop.f32.mrf.mxu0
    %v2904 = vadd.f32 %v2551, %v2903
    %v2905 = vpop.f32.mrf.mxu0
    %v2906 = vadd.f32 %v2553, %v2905
    %v2907 = vpop.f32.mrf.mxu0
    %v2908 = vadd.f32 %v2555, %v2907
    %v2909 = vpop.f32.mrf.mxu0
    %v2910 = vadd.f32 %v2557, %v2909
    %2911 = vmatprep.mubr.bf16.mxu0 0
    %2912 = vmatmul.mubr.bf16.gmra.mxu0 %v1711
    %v2913 = vpop.f32.mrf.mxu0
    %v2914 = vadd.f32 %v2561, %v2913
    %v2915 = vpop.f32.mrf.mxu0
    %v2916 = vadd.f32 %v2563, %v2915
    %v2917 = vpop.f32.mrf.mxu0
    %v2918 = vadd.f32 %v2565, %v2917
    %v2919 = vpop.f32.mrf.mxu0
    %v2920 = vadd.f32 %v2567, %v2919
    %2921 = vmatprep.mubr.bf16.mxu0 0
    %2922 = vmatmul.mubr.bf16.gmra.mxu0 %v1714
    %v2923 = vpop.f32.mrf.mxu0
    %v2924 = vadd.f32 %v2571, %v2923
    %v2925 = vpop.f32.mrf.mxu0
    %v2926 = vadd.f32 %v2573, %v2925
    %v2927 = vpop.f32.mrf.mxu0
    %v2928 = vadd.f32 %v2575, %v2927
    %v2929 = vpop.f32.mrf.mxu0
    %v2930 = vadd.f32 %v2577, %v2929
    %2931 = vmatprep.mubr.bf16.mxu0 0
    %2932 = vmatmul.mubr.bf16.gmra.mxu0 %v1717
    %v2933 = vpop.f32.mrf.mxu0
    %v2934 = vadd.f32 %v2581, %v2933
    %v2935 = vpop.f32.mrf.mxu0
    %v2936 = vadd.f32 %v2583, %v2935
    %v2937 = vpop.f32.mrf.mxu0
    %v2938 = vadd.f32 %v2585, %v2937
    %v2939 = vpop.f32.mrf.mxu0
    %v2940 = vadd.f32 %v2587, %v2939
    %2941 = vmatprep.mubr.bf16.mxu0 0
    %2942 = vmatmul.mubr.bf16.gmra.mxu0 %v1720
    %v2943 = vpop.f32.mrf.mxu0
    %v2944 = vadd.f32 %v2591, %v2943
    %v2945 = vpop.f32.mrf.mxu0
    %v2946 = vadd.f32 %v2593, %v2945
    %v2947 = vpop.f32.mrf.mxu0
    %v2948 = vadd.f32 %v2595, %v2947
    %v2949 = vpop.f32.mrf.mxu0
    %v2950 = vadd.f32 %v2597, %v2949
    %2951 = vmatprep.mubr.bf16.mxu0 0
    %2952 = vmatmul.mubr.bf16.gmra.mxu0 %v1723
    %v2953 = vpop.f32.mrf.mxu0
    %v2954 = vadd.f32 %v2601, %v2953
    %v2955 = vpop.f32.mrf.mxu0
    %v2956 = vadd.f32 %v2603, %v2955
    %v2957 = vpop.f32.mrf.mxu0
    %v2958 = vadd.f32 %v2605, %v2957
    %v2959 = vpop.f32.mrf.mxu0
    %v2960 = vadd.f32 %v2607, %v2959
    %2961 = vmatprep.mubr.bf16.mxu0 0
    %2962 = vmatmul.mubr.bf16.gmra.mxu0 %v1726
    %v2963 = vpop.f32.mrf.mxu0
    %v2964 = vadd.f32 %v2611, %v2963
    %v2965 = vpop.f32.mrf.mxu0
    %v2966 = vadd.f32 %v2613, %v2965
    %v2967 = vpop.f32.mrf.mxu0
    %v2968 = vadd.f32 %v2615, %v2967
    %v2969 = vpop.f32.mrf.mxu0
    %v2970 = vadd.f32 %v2617, %v2969
    %2971 = vmatprep.mubr.bf16.mxu0 0
    %2972 = vmatmul.mubr.bf16.gmra.mxu0 %v1729
    %v2973 = vpop.f32.mrf.mxu0
    %v2974 = vadd.f32 %v2621, %v2973
    %v2975 = vpop.f32.mrf.mxu0
    %v2976 = vadd.f32 %v2623, %v2975
    %v2977 = vpop.f32.mrf.mxu0
    %v2978 = vadd.f32 %v2625, %v2977
    %v2979 = vpop.f32.mrf.mxu0
    %v2980 = vadd.f32 %v2627, %v2979
    %2981 = vmatprep.mubr.bf16.mxu0 0
    %2982 = vmatmul.mubr.bf16.gmra.mxu0 %v1732
    %v2983 = vpop.f32.mrf.mxu0
    %v2984 = vadd.f32 %v2631, %v2983
    %v2985 = vpop.f32.mrf.mxu0
    %v2986 = vadd.f32 %v2633, %v2985
    %v2987 = vpop.f32.mrf.mxu0
    %v2988 = vadd.f32 %v2635, %v2987
    %v2989 = vpop.f32.mrf.mxu0
    %v2990 = vadd.f32 %v2637, %v2989
    %2991 = vmatprep.mubr.bf16.mxu0 0
    %2992 = vmatmul.mubr.bf16.gmra.mxu0 %v1735
    %v2993 = vpop.f32.mrf.mxu0
    %v2994 = vadd.f32 %v2641, %v2993
    %v2995 = vpop.f32.mrf.mxu0
    %v2996 = vadd.f32 %v2643, %v2995
    %v2997 = vpop.f32.mrf.mxu0
    %v2998 = vadd.f32 %v2645, %v2997
    %v2999 = vpop.f32.mrf.mxu0
    %v3000 = vadd.f32 %v2647, %v2999
    %3001 = vmatprep.mubr.bf16.mxu0 0
    %3002 = vmatmul.mubr.bf16.gmra.mxu0 %v1738
    %v3003 = vpop.f32.mrf.mxu0
    %v3004 = vadd.f32 %v2651, %v3003
    %v3005 = vpop.f32.mrf.mxu0
    %v3006 = vadd.f32 %v2653, %v3005
    %v3007 = vpop.f32.mrf.mxu0
    %v3008 = vadd.f32 %v2655, %v3007
    %v3009 = vpop.f32.mrf.mxu0
    %v3010 = vadd.f32 %v2657, %v3009
    %3011 = vmatprep.mubr.bf16.mxu0 0
    %3012 = vmatmul.mubr.bf16.gmra.mxu0 %v1741
    %v3013 = vpop.f32.mrf.mxu0
    %v3014 = vadd.f32 %v2661, %v3013
    %v3015 = vpop.f32.mrf.mxu0
    %v3016 = vadd.f32 %v2663, %v3015
    %v3017 = vpop.f32.mrf.mxu0
    %v3018 = vadd.f32 %v2665, %v3017
    %v3019 = vpop.f32.mrf.mxu0
    %v3020 = vadd.f32 %v2667, %v3019
    %3021 = vmatprep.mubr.bf16.mxu0 0
    %3022 = vmatmul.mubr.bf16.gmra.mxu0 %v1744
    %v3023 = vpop.f32.mrf.mxu0
    %v3024 = vadd.f32 %v2671, %v3023
    %v3025 = vpop.f32.mrf.mxu0
    %v3026 = vadd.f32 %v2673, %v3025
    %v3027 = vpop.f32.mrf.mxu0
    %v3028 = vadd.f32 %v2675, %v3027
    %v3029 = vpop.f32.mrf.mxu0
    %v3030 = vadd.f32 %v2677, %v3029
    %3031 = vmatprep.mubr.bf16.mxu0 0
    %3032 = vmatmul.mubr.bf16.gmra.mxu0 %v1747
    %v3033 = vpop.f32.mrf.mxu0
    %v3034 = vadd.f32 %v2681, %v3033
    %v3035 = vpop.f32.mrf.mxu0
    %v3036 = vadd.f32 %v2683, %v3035
    %v3037 = vpop.f32.mrf.mxu0
    %v3038 = vadd.f32 %v2685, %v3037
    %v3039 = vpop.f32.mrf.mxu0
    %v3040 = vadd.f32 %v2687, %v3039
    %3041 = vmatprep.mubr.bf16.mxu0 0
    %3042 = vmatmul.mubr.bf16.gmra.mxu0 %v1750
    %v3043 = vpop.f32.mrf.mxu0
    %v3044 = vadd.f32 %v2691, %v3043
    %v3045 = vpop.f32.mrf.mxu0
    %v3046 = vadd.f32 %v2693, %v3045
    %v3047 = vpop.f32.mrf.mxu0
    %v3048 = vadd.f32 %v2695, %v3047
    %v3049 = vpop.f32.mrf.mxu0
    %v3050 = vadd.f32 %v2697, %v3049
    %3051 = vmatprep.mubr.bf16.mxu0 0
    %3052 = vmatmul.mubr.bf16.gmra.mxu0 %v1753
    %v3053 = vpop.f32.mrf.mxu0
    %v3054 = vadd.f32 %v2701, %v3053
    %v3055 = vpop.f32.mrf.mxu0
    %v3056 = vadd.f32 %v2703, %v3055
    %v3057 = vpop.f32.mrf.mxu0
    %v3058 = vadd.f32 %v2705, %v3057
    %v3059 = vpop.f32.mrf.mxu0
    %v3060 = vadd.f32 %v2707, %v3059
    %3061 = vmatprep.mubr.bf16.mxu0 0
    %3062 = vmatmul.mubr.bf16.gmra.mxu0 %v1756
    %v3063 = vpop.f32.mrf.mxu0
    %v3064 = vadd.f32 %v2711, %v3063
    %v3065 = vpop.f32.mrf.mxu0
    %v3066 = vadd.f32 %v2713, %v3065
    %v3067 = vpop.f32.mrf.mxu0
    %v3068 = vadd.f32 %v2715, %v3067
    %v3069 = vpop.f32.mrf.mxu0
    %v3070 = vadd.f32 %v2717, %v3069
    %3071 = vmatprep.mubr.bf16.mxu0 0
    %3072 = vmatmul.mubr.bf16.gmra.mxu0 %v1759
    %v3073 = vpop.f32.mrf.mxu0
    %v3074 = vadd.f32 %v2721, %v3073
    %v3075 = vpop.f32.mrf.mxu0
    %v3076 = vadd.f32 %v2723, %v3075
    %v3077 = vpop.f32.mrf.mxu0
    %v3078 = vadd.f32 %v2725, %v3077
    %v3079 = vpop.f32.mrf.mxu0
    %v3080 = vadd.f32 %v2727, %v3079
    %3081 = vmatprep.mubr.bf16.mxu0 0
    %3082 = vmatmul.mubr.bf16.gmra.mxu0 %v1762
    %v3083 = vpop.f32.mrf.mxu0
    %v3084 = vadd.f32 %v2731, %v3083
    %v3085 = vpop.f32.mrf.mxu0
    %v3086 = vadd.f32 %v2733, %v3085
    %v3087 = vpop.f32.mrf.mxu0
    %v3088 = vadd.f32 %v2735, %v3087
    %v3089 = vpop.f32.mrf.mxu0
    %v3090 = vadd.f32 %v2737, %v3089
    %3091 = vmatprep.mubr.bf16.mxu0 0
    %3092 = vmatmul.mubr.bf16.gmra.mxu0 %v1765
    %v3093 = vpop.f32.mrf.mxu0
    %v3094 = vadd.f32 %v2741, %v3093
    %v3095 = vpop.f32.mrf.mxu0
    %v3096 = vadd.f32 %v2743, %v3095
    %v3097 = vpop.f32.mrf.mxu0
    %v3098 = vadd.f32 %v2745, %v3097
    %v3099 = vpop.f32.mrf.mxu0
    %v3100 = vadd.f32 %v2747, %v3099
    %3101 = vmatprep.mubr.bf16.mxu0 0
    %3102 = vmatmul.mubr.bf16.gmra.mxu0 %v1768
    %v3103 = vpop.f32.mrf.mxu0
    %v3104 = vadd.f32 %v2751, %v3103
    %v3105 = vpop.f32.mrf.mxu0
    %v3106 = vadd.f32 %v2753, %v3105
    %v3107 = vpop.f32.mrf.mxu0
    %v3108 = vadd.f32 %v2755, %v3107
    %v3109 = vpop.f32.mrf.mxu0
    %v3110 = vadd.f32 %v2757, %v3109
    %3111 = vmatprep.mubr.bf16.mxu0 0
    %3112 = vmatmul.mubr.bf16.gmra.mxu0 %v1771
    %v3113 = vpop.f32.mrf.mxu0
    %v3114 = vadd.f32 %v2761, %v3113
    %v3115 = vpop.f32.mrf.mxu0
    %v3116 = vadd.f32 %v2763, %v3115
    %v3117 = vpop.f32.mrf.mxu0
    %v3118 = vadd.f32 %v2765, %v3117
    %v3119 = vpop.f32.mrf.mxu0
    %v3120 = vadd.f32 %v2767, %v3119
    %3121 = vmatprep.mubr.bf16.mxu0 0
    %3122 = vmatmul.mubr.bf16.gmra.mxu0 %v1774
    %v3123 = vpop.f32.mrf.mxu0
    %v3124 = vadd.f32 %v2771, %v3123
    %v3125 = vpop.f32.mrf.mxu0
    %v3126 = vadd.f32 %v2773, %v3125
    %v3127 = vpop.f32.mrf.mxu0
    %v3128 = vadd.f32 %v2775, %v3127
    %v3129 = vpop.f32.mrf.mxu0
    %v3130 = vadd.f32 %v2777, %v3129
    %3131 = vmatprep.mubr.bf16.mxu0 0
    %3132 = vmatmul.mubr.bf16.gmra.mxu0 %v1777
    %v3133 = vpop.f32.mrf.mxu0
    %v3134 = vadd.f32 %v2781, %v3133
    %v3135 = vpop.f32.mrf.mxu0
    %v3136 = vadd.f32 %v2783, %v3135
    %v3137 = vpop.f32.mrf.mxu0
    %v3138 = vadd.f32 %v2785, %v3137
    %v3139 = vpop.f32.mrf.mxu0
    %v3140 = vadd.f32 %v2787, %v3139
    %3141 = vmatprep.mubr.bf16.mxu0 0
    %3142 = vmatmul.mubr.bf16.gmra.mxu0 %v1780
    %v3143 = vpop.f32.mrf.mxu0
    %v3144 = vadd.f32 %v2791, %v3143
    %v3145 = vpop.f32.mrf.mxu0
    %v3146 = vadd.f32 %v2793, %v3145
    %v3147 = vpop.f32.mrf.mxu0
    %v3148 = vadd.f32 %v2795, %v3147
    %v3149 = vpop.f32.mrf.mxu0
    %v3150 = vadd.f32 %v2797, %v3149
    %3151 = vmatprep.mubr.bf16.mxu0 0
    %3152 = vmatmul.mubr.bf16.gmra.mxu0 %v1783
    %v3153 = vpop.f32.mrf.mxu0
    %v3154 = vadd.f32 %v2801, %v3153
    %v3155 = vpop.f32.mrf.mxu0
    %v3156 = vadd.f32 %v2803, %v3155
    %v3157 = vpop.f32.mrf.mxu0
    %v3158 = vadd.f32 %v2805, %v3157
    %v3159 = vpop.f32.mrf.mxu0
    %v3160 = vadd.f32 %v2807, %v3159
    %3161 = vmatprep.mubr.bf16.mxu0 0
    %3162 = vmatmul.mubr.bf16.gmra.mxu0 %v1786
    %v3163 = vpop.f32.mrf.mxu0
    %v3164 = vadd.f32 %v2811, %v3163
    %v3165 = vpop.f32.mrf.mxu0
    %v3166 = vadd.f32 %v2813, %v3165
    %v3167 = vpop.f32.mrf.mxu0
    %v3168 = vadd.f32 %v2815, %v3167
    %v3169 = vpop.f32.mrf.mxu0
    %v3170 = vadd.f32 %v2817, %v3169
    %3171 = vmatprep.mubr.bf16.mxu0 0
    %3172 = vmatmul.mubr.bf16.gmra.mxu0 %v1789
    %v3173 = vpop.f32.mrf.mxu0
    %v3174 = vadd.f32 %v2821, %v3173
    %v3175 = vpop.f32.mrf.mxu0
    %v3176 = vadd.f32 %v2823, %v3175
    %v3177 = vpop.f32.mrf.mxu0
    %v3178 = vadd.f32 %v2825, %v3177
    %v3179 = vpop.f32.mrf.mxu0
    %v3180 = vadd.f32 %v2827, %v3179
    %3181 = vmatprep.mubr.bf16.mxu0 0
    %3182 = vmatmul.mubr.bf16.gmra.mxu0 %v1792
    %v3183 = vpop.f32.mrf.mxu0
    %v3184 = vadd.f32 %v2831, %v3183
    %v3185 = vpop.f32.mrf.mxu0
    %v3186 = vadd.f32 %v2833, %v3185
    %v3187 = vpop.f32.mrf.mxu0
    %v3188 = vadd.f32 %v2835, %v3187
    %v3189 = vpop.f32.mrf.mxu0
    %v3190 = vadd.f32 %v2837, %v3189
    %3191 = vmatprep.mubr.bf16.mxu0 0
    %3192 = vmatmul.mubr.bf16.gmra.mxu0 %v1795
    %v3193 = vpop.f32.mrf.mxu0
    %v3194 = vadd.f32 %v2841, %v3193
    %v3195 = vpop.f32.mrf.mxu0
    %v3196 = vadd.f32 %v2843, %v3195
    %v3197 = vpop.f32.mrf.mxu0
    %v3198 = vadd.f32 %v2845, %v3197
    %v3199 = vpop.f32.mrf.mxu0
    %v3200 = vadd.f32 %v2847, %v3199
    %3201 = vmatprep.mubr.bf16.mxu0 0
    %3202 = vmatmul.mubr.bf16.gmra.mxu0 %v1798
    %v3203 = vpop.f32.mrf.mxu0
    %v3204 = vadd.f32 %v2851, %v3203
    %v3205 = vpop.f32.mrf.mxu0
    %v3206 = vadd.f32 %v2853, %v3205
    %v3207 = vpop.f32.mrf.mxu0
    %v3208 = vadd.f32 %v2855, %v3207
    %v3209 = vpop.f32.mrf.mxu0
    %v3210 = vadd.f32 %v2857, %v3209
    %3211 = vdwg.mxu0
    %3212 = vmatprep.subr.bf16.mxu0 0
    %3213 = vmatpush1.bf16.msra.mxu0 %v1432
    %3214 = vmatprep.subr.bf16.mxu0 0
    %3215 = vmatpush1.bf16.msra.mxu0 %v1429
    %3216 = vmatprep.subr.bf16.mxu0 0
    %3217 = vmatpush1.bf16.msra.mxu0 %v1426
    %3218 = vmatprep.subr.bf16.mxu0 0
    %3219 = vmatpush1.bf16.msra.mxu0 %v1423
    %3220 = vmatprep.subr.bf16.mxu0 0
    %3221 = vmatpush1.bf16.msra.mxu0 %v1420
    %3222 = vmatprep.subr.bf16.mxu0 0
    %3223 = vmatpush1.bf16.msra.mxu0 %v1417
    %3224 = vmatprep.subr.bf16.mxu0 0
    %3225 = vmatpush1.bf16.msra.mxu0 %v1414
    %3226 = vmatprep.subr.bf16.mxu0 0
    %3227 = vmatpush1.bf16.msra.mxu0 %v1411
    %3228 = vmatprep.subr.bf16.mxu0 0
    %3229 = vmatpush2.bf16.msra.mxu0 %v1456
    %3230 = vmatprep.subr.bf16.mxu0 0
    %3231 = vmatpush2.bf16.msra.mxu0 %v1453
    %3232 = vmatprep.subr.bf16.mxu0 0
    %3233 = vmatpush2.bf16.msra.mxu0 %v1450
    %3234 = vmatprep.subr.bf16.mxu0 0
    %3235 = vmatpush2.bf16.msra.mxu0 %v1447
    %3236 = vmatprep.subr.bf16.mxu0 0
    %3237 = vmatpush2.bf16.msra.mxu0 %v1444
    %3238 = vmatprep.subr.bf16.mxu0 0
    %3239 = vmatpush2.bf16.msra.mxu0 %v1441
    %3240 = vmatprep.subr.bf16.mxu0 0
    %3241 = vmatpush2.bf16.msra.mxu0 %v1438
    %3242 = vmatprep.subr.bf16.mxu0 0
    %3243 = vmatpush2.bf16.msra.mxu0 %v1435
    %3244 = vmatprep.mubr.bf16.mxu0 %v483
    %3245 = vmatmul.mubr.bf16.gmra.mxu0 %v482
    %v3246 = vpop.f32.mrf.mxu0
    %v3247 = vadd.f32 %v915, %v3246
    %v3248 = vpop.f32.mrf.mxu0
    %v3249 = vpop.f32.mrf.mxu0
    %v3250 = vadd.f32 %v915, %v3249
    %v3251 = vpop.f32.mrf.mxu0
    %3252 = vmatprep.mubr.bf16.mxu0 %v490
    %3253 = vmatmul.mubr.bf16.gmra.mxu0 %v489
    %v3254 = vpop.f32.mrf.mxu0
    %v3255 = vadd.f32 %v915, %v3254
    %v3256 = vpop.f32.mrf.mxu0
    %v3257 = vpop.f32.mrf.mxu0
    %v3258 = vadd.f32 %v915, %v3257
    %v3259 = vpop.f32.mrf.mxu0
    %3260 = vmatprep.mubr.bf16.mxu0 %v497
    %3261 = vmatmul.mubr.bf16.gmra.mxu0 %v496
    %v3262 = vpop.f32.mrf.mxu0
    %v3263 = vadd.f32 %v915, %v3262
    %v3264 = vpop.f32.mrf.mxu0
    %v3265 = vpop.f32.mrf.mxu0
    %v3266 = vadd.f32 %v915, %v3265
    %v3267 = vpop.f32.mrf.mxu0
    %3268 = vmatprep.mubr.bf16.mxu0 %v504
    %3269 = vmatmul.mubr.bf16.gmra.mxu0 %v503
    %v3270 = vpop.f32.mrf.mxu0
    %v3271 = vadd.f32 %v915, %v3270
    %v3272 = vpop.f32.mrf.mxu0
    %v3273 = vpop.f32.mrf.mxu0
    %v3274 = vadd.f32 %v915, %v3273
    %v3275 = vpop.f32.mrf.mxu0
    %3276 = vmatprep.mubr.bf16.mxu0 %v511
    %3277 = vmatmul.mubr.bf16.gmra.mxu0 %v510
    %v3278 = vpop.f32.mrf.mxu0
    %v3279 = vadd.f32 %v915, %v3278
    %v3280 = vpop.f32.mrf.mxu0
    %v3281 = vpop.f32.mrf.mxu0
    %v3282 = vadd.f32 %v915, %v3281
    %v3283 = vpop.f32.mrf.mxu0
    %3284 = vmatprep.mubr.bf16.mxu0 %v518
    %3285 = vmatmul.mubr.bf16.gmra.mxu0 %v517
    %v3286 = vpop.f32.mrf.mxu0
    %v3287 = vadd.f32 %v915, %v3286
    %v3288 = vpop.f32.mrf.mxu0
    %v3289 = vpop.f32.mrf.mxu0
    %v3290 = vadd.f32 %v915, %v3289
    %v3291 = vpop.f32.mrf.mxu0
    %3292 = vmatprep.mubr.bf16.mxu0 %v525
    %3293 = vmatmul.mubr.bf16.gmra.mxu0 %v524
    %v3294 = vpop.f32.mrf.mxu0
    %v3295 = vadd.f32 %v915, %v3294
    %v3296 = vpop.f32.mrf.mxu0
    %v3297 = vpop.f32.mrf.mxu0
    %v3298 = vadd.f32 %v915, %v3297
    %v3299 = vpop.f32.mrf.mxu0
    %3300 = vmatprep.mubr.bf16.mxu0 %v532
    %3301 = vmatmul.mubr.bf16.gmra.mxu0 %v531
    %v3302 = vpop.f32.mrf.mxu0
    %v3303 = vadd.f32 %v915, %v3302
    %v3304 = vpop.f32.mrf.mxu0
    %v3305 = vpop.f32.mrf.mxu0
    %v3306 = vadd.f32 %v915, %v3305
    %v3307 = vpop.f32.mrf.mxu0
    %3308 = vmatprep.mubr.bf16.mxu0 %v539
    %3309 = vmatmul.mubr.bf16.gmra.mxu0 %v538
    %v3310 = vpop.f32.mrf.mxu0
    %v3311 = vadd.f32 %v915, %v3310
    %v3312 = vpop.f32.mrf.mxu0
    %v3313 = vpop.f32.mrf.mxu0
    %v3314 = vadd.f32 %v915, %v3313
    %v3315 = vpop.f32.mrf.mxu0
    %3316 = vmatprep.mubr.bf16.mxu0 %v546
    %3317 = vmatmul.mubr.bf16.gmra.mxu0 %v545
    %v3318 = vpop.f32.mrf.mxu0
    %v3319 = vadd.f32 %v915, %v3318
    %v3320 = vpop.f32.mrf.mxu0
    %v3321 = vpop.f32.mrf.mxu0
    %v3322 = vadd.f32 %v915, %v3321
    %v3323 = vpop.f32.mrf.mxu0
    %3324 = vmatprep.mubr.bf16.mxu0 %v553
    %3325 = vmatmul.mubr.bf16.gmra.mxu0 %v552
    %v3326 = vpop.f32.mrf.mxu0
    %v3327 = vadd.f32 %v915, %v3326
    %v3328 = vpop.f32.mrf.mxu0
    %v3329 = vpop.f32.mrf.mxu0
    %v3330 = vadd.f32 %v915, %v3329
    %v3331 = vpop.f32.mrf.mxu0
    %3332 = vmatprep.mubr.bf16.mxu0 %v560
    %3333 = vmatmul.mubr.bf16.gmra.mxu0 %v559
    %v3334 = vpop.f32.mrf.mxu0
    %v3335 = vadd.f32 %v915, %v3334
    %v3336 = vpop.f32.mrf.mxu0
    %v3337 = vpop.f32.mrf.mxu0
    %v3338 = vadd.f32 %v915, %v3337
    %v3339 = vpop.f32.mrf.mxu0
    %3340 = vmatprep.mubr.bf16.mxu0 %v567
    %3341 = vmatmul.mubr.bf16.gmra.mxu0 %v566
    %v3342 = vpop.f32.mrf.mxu0
    %v3343 = vadd.f32 %v915, %v3342
    %v3344 = vpop.f32.mrf.mxu0
    %v3345 = vpop.f32.mrf.mxu0
    %v3346 = vadd.f32 %v915, %v3345
    %v3347 = vpop.f32.mrf.mxu0
    %3348 = vmatprep.mubr.bf16.mxu0 %v574
    %3349 = vmatmul.mubr.bf16.gmra.mxu0 %v573
    %v3350 = vpop.f32.mrf.mxu0
    %v3351 = vadd.f32 %v915, %v3350
    %v3352 = vpop.f32.mrf.mxu0
    %v3353 = vpop.f32.mrf.mxu0
    %v3354 = vadd.f32 %v915, %v3353
    %v3355 = vpop.f32.mrf.mxu0
    %3356 = vmatprep.mubr.bf16.mxu0 %v581
    %3357 = vmatmul.mubr.bf16.gmra.mxu0 %v580
    %v3358 = vpop.f32.mrf.mxu0
    %v3359 = vadd.f32 %v915, %v3358
    %v3360 = vpop.f32.mrf.mxu0
    %v3361 = vpop.f32.mrf.mxu0
    %v3362 = vadd.f32 %v915, %v3361
    %v3363 = vpop.f32.mrf.mxu0
    %3364 = vmatprep.mubr.bf16.mxu0 %v588
    %3365 = vmatmul.mubr.bf16.gmra.mxu0 %v587
    %v3366 = vpop.f32.mrf.mxu0
    %v3367 = vadd.f32 %v915, %v3366
    %v3368 = vpop.f32.mrf.mxu0
    %v3369 = vpop.f32.mrf.mxu0
    %v3370 = vadd.f32 %v915, %v3369
    %v3371 = vpop.f32.mrf.mxu0
    %3372 = vmatprep.mubr.bf16.mxu0 %v595
    %3373 = vmatmul.mubr.bf16.gmra.mxu0 %v594
    %v3374 = vpop.f32.mrf.mxu0
    %v3375 = vadd.f32 %v915, %v3374
    %v3376 = vpop.f32.mrf.mxu0
    %v3377 = vpop.f32.mrf.mxu0
    %v3378 = vadd.f32 %v915, %v3377
    %v3379 = vpop.f32.mrf.mxu0
    %3380 = vmatprep.mubr.bf16.mxu0 %v602
    %3381 = vmatmul.mubr.bf16.gmra.mxu0 %v601
    %v3382 = vpop.f32.mrf.mxu0
    %v3383 = vadd.f32 %v915, %v3382
    %v3384 = vpop.f32.mrf.mxu0
    %v3385 = vpop.f32.mrf.mxu0
    %v3386 = vadd.f32 %v915, %v3385
    %v3387 = vpop.f32.mrf.mxu0
    %3388 = vmatprep.mubr.bf16.mxu0 %v609
    %3389 = vmatmul.mubr.bf16.gmra.mxu0 %v608
    %v3390 = vpop.f32.mrf.mxu0
    %v3391 = vadd.f32 %v915, %v3390
    %v3392 = vpop.f32.mrf.mxu0
    %v3393 = vpop.f32.mrf.mxu0
    %v3394 = vadd.f32 %v915, %v3393
    %v3395 = vpop.f32.mrf.mxu0
    %3396 = vmatprep.mubr.bf16.mxu0 %v616
    %3397 = vmatmul.mubr.bf16.gmra.mxu0 %v615
    %v3398 = vpop.f32.mrf.mxu0
    %v3399 = vadd.f32 %v915, %v3398
    %v3400 = vpop.f32.mrf.mxu0
    %v3401 = vpop.f32.mrf.mxu0
    %v3402 = vadd.f32 %v915, %v3401
    %v3403 = vpop.f32.mrf.mxu0
    %3404 = vmatprep.mubr.bf16.mxu0 %v623
    %3405 = vmatmul.mubr.bf16.gmra.mxu0 %v622
    %v3406 = vpop.f32.mrf.mxu0
    %v3407 = vadd.f32 %v915, %v3406
    %v3408 = vpop.f32.mrf.mxu0
    %v3409 = vpop.f32.mrf.mxu0
    %v3410 = vadd.f32 %v915, %v3409
    %v3411 = vpop.f32.mrf.mxu0
    %3412 = vmatprep.mubr.bf16.mxu0 %v630
    %3413 = vmatmul.mubr.bf16.gmra.mxu0 %v629
    %v3414 = vpop.f32.mrf.mxu0
    %v3415 = vadd.f32 %v915, %v3414
    %v3416 = vpop.f32.mrf.mxu0
    %v3417 = vpop.f32.mrf.mxu0
    %v3418 = vadd.f32 %v915, %v3417
    %v3419 = vpop.f32.mrf.mxu0
    %3420 = vmatprep.mubr.bf16.mxu0 %v637
    %3421 = vmatmul.mubr.bf16.gmra.mxu0 %v636
    %v3422 = vpop.f32.mrf.mxu0
    %v3423 = vadd.f32 %v915, %v3422
    %v3424 = vpop.f32.mrf.mxu0
    %v3425 = vpop.f32.mrf.mxu0
    %v3426 = vadd.f32 %v915, %v3425
    %v3427 = vpop.f32.mrf.mxu0
    %3428 = vmatprep.mubr.bf16.mxu0 %v644
    %3429 = vmatmul.mubr.bf16.gmra.mxu0 %v643
    %v3430 = vpop.f32.mrf.mxu0
    %v3431 = vadd.f32 %v915, %v3430
    %v3432 = vpop.f32.mrf.mxu0
    %v3433 = vpop.f32.mrf.mxu0
    %v3434 = vadd.f32 %v915, %v3433
    %v3435 = vpop.f32.mrf.mxu0
    %3436 = vmatprep.mubr.bf16.mxu0 %v651
    %3437 = vmatmul.mubr.bf16.gmra.mxu0 %v650
    %v3438 = vpop.f32.mrf.mxu0
    %v3439 = vadd.f32 %v915, %v3438
    %v3440 = vpop.f32.mrf.mxu0
    %v3441 = vpop.f32.mrf.mxu0
    %v3442 = vadd.f32 %v915, %v3441
    %v3443 = vpop.f32.mrf.mxu0
    %3444 = vmatprep.mubr.bf16.mxu0 %v658
    %3445 = vmatmul.mubr.bf16.gmra.mxu0 %v657
    %v3446 = vpop.f32.mrf.mxu0
    %v3447 = vadd.f32 %v915, %v3446
    %v3448 = vpop.f32.mrf.mxu0
    %v3449 = vpop.f32.mrf.mxu0
    %v3450 = vadd.f32 %v915, %v3449
    %v3451 = vpop.f32.mrf.mxu0
    %3452 = vmatprep.mubr.bf16.mxu0 %v665
    %3453 = vmatmul.mubr.bf16.gmra.mxu0 %v664
    %v3454 = vpop.f32.mrf.mxu0
    %v3455 = vadd.f32 %v915, %v3454
    %v3456 = vpop.f32.mrf.mxu0
    %v3457 = vpop.f32.mrf.mxu0
    %v3458 = vadd.f32 %v915, %v3457
    %v3459 = vpop.f32.mrf.mxu0
    %3460 = vmatprep.mubr.bf16.mxu0 %v672
    %3461 = vmatmul.mubr.bf16.gmra.mxu0 %v671
    %v3462 = vpop.f32.mrf.mxu0
    %v3463 = vadd.f32 %v915, %v3462
    %v3464 = vpop.f32.mrf.mxu0
    %v3465 = vpop.f32.mrf.mxu0
    %v3466 = vadd.f32 %v915, %v3465
    %v3467 = vpop.f32.mrf.mxu0
    %3468 = vmatprep.mubr.bf16.mxu0 %v679
    %3469 = vmatmul.mubr.bf16.gmra.mxu0 %v678
    %v3470 = vpop.f32.mrf.mxu0
    %v3471 = vadd.f32 %v915, %v3470
    %v3472 = vpop.f32.mrf.mxu0
    %v3473 = vpop.f32.mrf.mxu0
    %v3474 = vadd.f32 %v915, %v3473
    %v3475 = vpop.f32.mrf.mxu0
    %3476 = vmatprep.mubr.bf16.mxu0 %v686
    %3477 = vmatmul.mubr.bf16.gmra.mxu0 %v685
    %v3478 = vpop.f32.mrf.mxu0
    %v3479 = vadd.f32 %v915, %v3478
    %v3480 = vpop.f32.mrf.mxu0
    %v3481 = vpop.f32.mrf.mxu0
    %v3482 = vadd.f32 %v915, %v3481
    %v3483 = vpop.f32.mrf.mxu0
    %3484 = vmatprep.mubr.bf16.mxu0 %v693
    %3485 = vmatmul.mubr.bf16.gmra.mxu0 %v692
    %v3486 = vpop.f32.mrf.mxu0
    %v3487 = vadd.f32 %v915, %v3486
    %v3488 = vpop.f32.mrf.mxu0
    %v3489 = vpop.f32.mrf.mxu0
    %v3490 = vadd.f32 %v915, %v3489
    %v3491 = vpop.f32.mrf.mxu0
    %3492 = vmatprep.mubr.bf16.mxu0 %v700
    %3493 = vmatmul.mubr.bf16.gmra.mxu0 %v699
    %v3494 = vpop.f32.mrf.mxu0
    %v3495 = vadd.f32 %v915, %v3494
    %v3496 = vpop.f32.mrf.mxu0
    %v3497 = vpop.f32.mrf.mxu0
    %v3498 = vadd.f32 %v915, %v3497
    %v3499 = vpop.f32.mrf.mxu0
    %3500 = vdwg.mxu0
    %3501 = vmatprep.subr.bf16.mxu0 0
    %3502 = vmatpush1.bf16.msra.mxu0 %v1480
    %3503 = vmatprep.subr.bf16.mxu0 0
    %3504 = vmatpush1.bf16.msra.mxu0 %v1477
    %3505 = vmatprep.subr.bf16.mxu0 0
    %3506 = vmatpush1.bf16.msra.mxu0 %v1474
    %3507 = vmatprep.subr.bf16.mxu0 0
    %3508 = vmatpush1.bf16.msra.mxu0 %v1471
    %3509 = vmatprep.subr.bf16.mxu0 0
    %3510 = vmatpush1.bf16.msra.mxu0 %v1468
    %3511 = vmatprep.subr.bf16.mxu0 0
    %3512 = vmatpush1.bf16.msra.mxu0 %v1465
    %3513 = vmatprep.subr.bf16.mxu0 0
    %3514 = vmatpush1.bf16.msra.mxu0 %v1462
    %3515 = vmatprep.subr.bf16.mxu0 0
    %3516 = vmatpush1.bf16.msra.mxu0 %v1459
    %3517 = vmatprep.subr.bf16.mxu0 0
    %3518 = vmatpush2.bf16.msra.mxu0 %v1504
    %3519 = vmatprep.subr.bf16.mxu0 0
    %3520 = vmatpush2.bf16.msra.mxu0 %v1501
    %3521 = vmatprep.subr.bf16.mxu0 0
    %3522 = vmatpush2.bf16.msra.mxu0 %v1498
    %3523 = vmatprep.subr.bf16.mxu0 0
    %3524 = vmatpush2.bf16.msra.mxu0 %v1495
    %3525 = vmatprep.subr.bf16.mxu0 0
    %3526 = vmatpush2.bf16.msra.mxu0 %v1492
    %3527 = vmatprep.subr.bf16.mxu0 0
    %3528 = vmatpush2.bf16.msra.mxu0 %v1489
    %3529 = vmatprep.subr.bf16.mxu0 0
    %3530 = vmatpush2.bf16.msra.mxu0 %v1486
    %3531 = vmatprep.subr.bf16.mxu0 0
    %3532 = vmatpush2.bf16.msra.mxu0 %v1483
    %3533 = vmatprep.mubr.bf16.mxu0 %v485
    %3534 = vmatmul.mubr.bf16.gmra.mxu0 %v484
    %v3535 = vpop.f32.mrf.mxu0
    %v3536 = vadd.f32 %v3247, %v3535
    %v3537 = vpop.f32.mrf.mxu0
    %v3538 = vpop.f32.mrf.mxu0
    %v3539 = vadd.f32 %v3250, %v3538
    %v3540 = vpop.f32.mrf.mxu0
    %3541 = vmatprep.mubr.bf16.mxu0 %v492
    %3542 = vmatmul.mubr.bf16.gmra.mxu0 %v491
    %v3543 = vpop.f32.mrf.mxu0
    %v3544 = vadd.f32 %v3255, %v3543
    %v3545 = vpop.f32.mrf.mxu0
    %v3546 = vpop.f32.mrf.mxu0
    %v3547 = vadd.f32 %v3258, %v3546
    %v3548 = vpop.f32.mrf.mxu0
    %3549 = vmatprep.mubr.bf16.mxu0 %v499
    %3550 = vmatmul.mubr.bf16.gmra.mxu0 %v498
    %v3551 = vpop.f32.mrf.mxu0
    %v3552 = vadd.f32 %v3263, %v3551
    %v3553 = vpop.f32.mrf.mxu0
    %v3554 = vpop.f32.mrf.mxu0
    %v3555 = vadd.f32 %v3266, %v3554
    %v3556 = vpop.f32.mrf.mxu0
    %3557 = vmatprep.mubr.bf16.mxu0 %v506
    %3558 = vmatmul.mubr.bf16.gmra.mxu0 %v505
    %v3559 = vpop.f32.mrf.mxu0
    %v3560 = vadd.f32 %v3271, %v3559
    %v3561 = vpop.f32.mrf.mxu0
    %v3562 = vpop.f32.mrf.mxu0
    %v3563 = vadd.f32 %v3274, %v3562
    %v3564 = vpop.f32.mrf.mxu0
    %3565 = vmatprep.mubr.bf16.mxu0 %v513
    %3566 = vmatmul.mubr.bf16.gmra.mxu0 %v512
    %v3567 = vpop.f32.mrf.mxu0
    %v3568 = vadd.f32 %v3279, %v3567
    %v3569 = vpop.f32.mrf.mxu0
    %v3570 = vpop.f32.mrf.mxu0
    %v3571 = vadd.f32 %v3282, %v3570
    %v3572 = vpop.f32.mrf.mxu0
    %3573 = vmatprep.mubr.bf16.mxu0 %v520
    %3574 = vmatmul.mubr.bf16.gmra.mxu0 %v519
    %v3575 = vpop.f32.mrf.mxu0
    %v3576 = vadd.f32 %v3287, %v3575
    %v3577 = vpop.f32.mrf.mxu0
    %v3578 = vpop.f32.mrf.mxu0
    %v3579 = vadd.f32 %v3290, %v3578
    %v3580 = vpop.f32.mrf.mxu0
    %3581 = vmatprep.mubr.bf16.mxu0 %v527
    %3582 = vmatmul.mubr.bf16.gmra.mxu0 %v526
    %v3583 = vpop.f32.mrf.mxu0
    %v3584 = vadd.f32 %v3295, %v3583
    %v3585 = vpop.f32.mrf.mxu0
    %v3586 = vpop.f32.mrf.mxu0
    %v3587 = vadd.f32 %v3298, %v3586
    %v3588 = vpop.f32.mrf.mxu0
    %3589 = vmatprep.mubr.bf16.mxu0 %v534
    %3590 = vmatmul.mubr.bf16.gmra.mxu0 %v533
    %v3591 = vpop.f32.mrf.mxu0
    %v3592 = vadd.f32 %v3303, %v3591
    %v3593 = vpop.f32.mrf.mxu0
    %v3594 = vpop.f32.mrf.mxu0
    %v3595 = vadd.f32 %v3306, %v3594
    %v3596 = vpop.f32.mrf.mxu0
    %3597 = vmatprep.mubr.bf16.mxu0 %v541
    %3598 = vmatmul.mubr.bf16.gmra.mxu0 %v540
    %v3599 = vpop.f32.mrf.mxu0
    %v3600 = vadd.f32 %v3311, %v3599
    %v3601 = vpop.f32.mrf.mxu0
    %v3602 = vpop.f32.mrf.mxu0
    %v3603 = vadd.f32 %v3314, %v3602
    %v3604 = vpop.f32.mrf.mxu0
    %3605 = vmatprep.mubr.bf16.mxu0 %v548
    %3606 = vmatmul.mubr.bf16.gmra.mxu0 %v547
    %v3607 = vpop.f32.mrf.mxu0
    %v3608 = vadd.f32 %v3319, %v3607
    %v3609 = vpop.f32.mrf.mxu0
    %v3610 = vpop.f32.mrf.mxu0
    %v3611 = vadd.f32 %v3322, %v3610
    %v3612 = vpop.f32.mrf.mxu0
    %3613 = vmatprep.mubr.bf16.mxu0 %v555
    %3614 = vmatmul.mubr.bf16.gmra.mxu0 %v554
    %v3615 = vpop.f32.mrf.mxu0
    %v3616 = vadd.f32 %v3327, %v3615
    %v3617 = vpop.f32.mrf.mxu0
    %v3618 = vpop.f32.mrf.mxu0
    %v3619 = vadd.f32 %v3330, %v3618
    %v3620 = vpop.f32.mrf.mxu0
    %3621 = vmatprep.mubr.bf16.mxu0 %v562
    %3622 = vmatmul.mubr.bf16.gmra.mxu0 %v561
    %v3623 = vpop.f32.mrf.mxu0
    %v3624 = vadd.f32 %v3335, %v3623
    %v3625 = vpop.f32.mrf.mxu0
    %v3626 = vpop.f32.mrf.mxu0
    %v3627 = vadd.f32 %v3338, %v3626
    %v3628 = vpop.f32.mrf.mxu0
    %3629 = vmatprep.mubr.bf16.mxu0 %v569
    %3630 = vmatmul.mubr.bf16.gmra.mxu0 %v568
    %v3631 = vpop.f32.mrf.mxu0
    %v3632 = vadd.f32 %v3343, %v3631
    %v3633 = vpop.f32.mrf.mxu0
    %v3634 = vpop.f32.mrf.mxu0
    %v3635 = vadd.f32 %v3346, %v3634
    %v3636 = vpop.f32.mrf.mxu0
    %3637 = vmatprep.mubr.bf16.mxu0 %v576
    %3638 = vmatmul.mubr.bf16.gmra.mxu0 %v575
    %v3639 = vpop.f32.mrf.mxu0
    %v3640 = vadd.f32 %v3351, %v3639
    %v3641 = vpop.f32.mrf.mxu0
    %v3642 = vpop.f32.mrf.mxu0
    %v3643 = vadd.f32 %v3354, %v3642
    %v3644 = vpop.f32.mrf.mxu0
    %3645 = vmatprep.mubr.bf16.mxu0 %v583
    %3646 = vmatmul.mubr.bf16.gmra.mxu0 %v582
    %v3647 = vpop.f32.mrf.mxu0
    %v3648 = vadd.f32 %v3359, %v3647
    %v3649 = vpop.f32.mrf.mxu0
    %v3650 = vpop.f32.mrf.mxu0
    %v3651 = vadd.f32 %v3362, %v3650
    %v3652 = vpop.f32.mrf.mxu0
    %3653 = vmatprep.mubr.bf16.mxu0 %v590
    %3654 = vmatmul.mubr.bf16.gmra.mxu0 %v589
    %v3655 = vpop.f32.mrf.mxu0
    %v3656 = vadd.f32 %v3367, %v3655
    %v3657 = vpop.f32.mrf.mxu0
    %v3658 = vpop.f32.mrf.mxu0
    %v3659 = vadd.f32 %v3370, %v3658
    %v3660 = vpop.f32.mrf.mxu0
    %3661 = vmatprep.mubr.bf16.mxu0 %v597
    %3662 = vmatmul.mubr.bf16.gmra.mxu0 %v596
    %v3663 = vpop.f32.mrf.mxu0
    %v3664 = vadd.f32 %v3375, %v3663
    %v3665 = vpop.f32.mrf.mxu0
    %v3666 = vpop.f32.mrf.mxu0
    %v3667 = vadd.f32 %v3378, %v3666
    %v3668 = vpop.f32.mrf.mxu0
    %3669 = vmatprep.mubr.bf16.mxu0 %v604
    %3670 = vmatmul.mubr.bf16.gmra.mxu0 %v603
    %v3671 = vpop.f32.mrf.mxu0
    %v3672 = vadd.f32 %v3383, %v3671
    %v3673 = vpop.f32.mrf.mxu0
    %v3674 = vpop.f32.mrf.mxu0
    %v3675 = vadd.f32 %v3386, %v3674
    %v3676 = vpop.f32.mrf.mxu0
    %3677 = vmatprep.mubr.bf16.mxu0 %v611
    %3678 = vmatmul.mubr.bf16.gmra.mxu0 %v610
    %v3679 = vpop.f32.mrf.mxu0
    %v3680 = vadd.f32 %v3391, %v3679
    %v3681 = vpop.f32.mrf.mxu0
    %v3682 = vpop.f32.mrf.mxu0
    %v3683 = vadd.f32 %v3394, %v3682
    %v3684 = vpop.f32.mrf.mxu0
    %3685 = vmatprep.mubr.bf16.mxu0 %v618
    %3686 = vmatmul.mubr.bf16.gmra.mxu0 %v617
    %v3687 = vpop.f32.mrf.mxu0
    %v3688 = vadd.f32 %v3399, %v3687
    %v3689 = vpop.f32.mrf.mxu0
    %v3690 = vpop.f32.mrf.mxu0
    %v3691 = vadd.f32 %v3402, %v3690
    %v3692 = vpop.f32.mrf.mxu0
    %3693 = vmatprep.mubr.bf16.mxu0 %v625
    %3694 = vmatmul.mubr.bf16.gmra.mxu0 %v624
    %v3695 = vpop.f32.mrf.mxu0
    %v3696 = vadd.f32 %v3407, %v3695
    %v3697 = vpop.f32.mrf.mxu0
    %v3698 = vpop.f32.mrf.mxu0
    %v3699 = vadd.f32 %v3410, %v3698
    %v3700 = vpop.f32.mrf.mxu0
    %3701 = vmatprep.mubr.bf16.mxu0 %v632
    %3702 = vmatmul.mubr.bf16.gmra.mxu0 %v631
    %v3703 = vpop.f32.mrf.mxu0
    %v3704 = vadd.f32 %v3415, %v3703
    %v3705 = vpop.f32.mrf.mxu0
    %v3706 = vpop.f32.mrf.mxu0
    %v3707 = vadd.f32 %v3418, %v3706
    %v3708 = vpop.f32.mrf.mxu0
    %3709 = vmatprep.mubr.bf16.mxu0 %v639
    %3710 = vmatmul.mubr.bf16.gmra.mxu0 %v638
    %v3711 = vpop.f32.mrf.mxu0
    %v3712 = vadd.f32 %v3423, %v3711
    %v3713 = vpop.f32.mrf.mxu0
    %v3714 = vpop.f32.mrf.mxu0
    %v3715 = vadd.f32 %v3426, %v3714
    %v3716 = vpop.f32.mrf.mxu0
    %3717 = vmatprep.mubr.bf16.mxu0 %v646
    %3718 = vmatmul.mubr.bf16.gmra.mxu0 %v645
    %v3719 = vpop.f32.mrf.mxu0
    %v3720 = vadd.f32 %v3431, %v3719
    %v3721 = vpop.f32.mrf.mxu0
    %v3722 = vpop.f32.mrf.mxu0
    %v3723 = vadd.f32 %v3434, %v3722
    %v3724 = vpop.f32.mrf.mxu0
    %3725 = vmatprep.mubr.bf16.mxu0 %v653
    %3726 = vmatmul.mubr.bf16.gmra.mxu0 %v652
    %v3727 = vpop.f32.mrf.mxu0
    %v3728 = vadd.f32 %v3439, %v3727
    %v3729 = vpop.f32.mrf.mxu0
    %v3730 = vpop.f32.mrf.mxu0
    %v3731 = vadd.f32 %v3442, %v3730
    %v3732 = vpop.f32.mrf.mxu0
    %3733 = vmatprep.mubr.bf16.mxu0 %v660
    %3734 = vmatmul.mubr.bf16.gmra.mxu0 %v659
    %v3735 = vpop.f32.mrf.mxu0
    %v3736 = vadd.f32 %v3447, %v3735
    %v3737 = vpop.f32.mrf.mxu0
    %v3738 = vpop.f32.mrf.mxu0
    %v3739 = vadd.f32 %v3450, %v3738
    %v3740 = vpop.f32.mrf.mxu0
    %3741 = vmatprep.mubr.bf16.mxu0 %v667
    %3742 = vmatmul.mubr.bf16.gmra.mxu0 %v666
    %v3743 = vpop.f32.mrf.mxu0
    %v3744 = vadd.f32 %v3455, %v3743
    %v3745 = vpop.f32.mrf.mxu0
    %v3746 = vpop.f32.mrf.mxu0
    %v3747 = vadd.f32 %v3458, %v3746
    %v3748 = vpop.f32.mrf.mxu0
    %3749 = vmatprep.mubr.bf16.mxu0 %v674
    %3750 = vmatmul.mubr.bf16.gmra.mxu0 %v673
    %v3751 = vpop.f32.mrf.mxu0
    %v3752 = vadd.f32 %v3463, %v3751
    %v3753 = vpop.f32.mrf.mxu0
    %v3754 = vpop.f32.mrf.mxu0
    %v3755 = vadd.f32 %v3466, %v3754
    %v3756 = vpop.f32.mrf.mxu0
    %3757 = vmatprep.mubr.bf16.mxu0 %v681
    %3758 = vmatmul.mubr.bf16.gmra.mxu0 %v680
    %v3759 = vpop.f32.mrf.mxu0
    %v3760 = vadd.f32 %v3471, %v3759
    %v3761 = vpop.f32.mrf.mxu0
    %v3762 = vpop.f32.mrf.mxu0
    %v3763 = vadd.f32 %v3474, %v3762
    %v3764 = vpop.f32.mrf.mxu0
    %3765 = vmatprep.mubr.bf16.mxu0 %v688
    %3766 = vmatmul.mubr.bf16.gmra.mxu0 %v687
    %v3767 = vpop.f32.mrf.mxu0
    %v3768 = vadd.f32 %v3479, %v3767
    %v3769 = vpop.f32.mrf.mxu0
    %v3770 = vpop.f32.mrf.mxu0
    %v3771 = vadd.f32 %v3482, %v3770
    %v3772 = vpop.f32.mrf.mxu0
    %3773 = vmatprep.mubr.bf16.mxu0 %v695
    %3774 = vmatmul.mubr.bf16.gmra.mxu0 %v694
    %v3775 = vpop.f32.mrf.mxu0
    %v3776 = vadd.f32 %v3487, %v3775
    %v3777 = vpop.f32.mrf.mxu0
    %v3778 = vpop.f32.mrf.mxu0
    %v3779 = vadd.f32 %v3490, %v3778
    %v3780 = vpop.f32.mrf.mxu0
    %3781 = vmatprep.mubr.bf16.mxu0 %v702
    %3782 = vmatmul.mubr.bf16.gmra.mxu0 %v701
    %v3783 = vpop.f32.mrf.mxu0
    %v3784 = vadd.f32 %v3495, %v3783
    %v3785 = vpop.f32.mrf.mxu0
    %v3786 = vpop.f32.mrf.mxu0
    %v3787 = vadd.f32 %v3498, %v3786
    %v3788 = vpop.f32.mrf.mxu0
    %3789 = vdwg.mxu0
    %3790 = vmatprep.subr.bf16.mxu0 0
    %3791 = vmatpush1.bf16.msra.mxu0 %v1528
    %3792 = vmatprep.subr.bf16.mxu0 0
    %3793 = vmatpush1.bf16.msra.mxu0 %v1525
    %3794 = vmatprep.subr.bf16.mxu0 0
    %3795 = vmatpush1.bf16.msra.mxu0 %v1522
    %3796 = vmatprep.subr.bf16.mxu0 0
    %3797 = vmatpush1.bf16.msra.mxu0 %v1519
    %3798 = vmatprep.subr.bf16.mxu0 0
    %3799 = vmatpush1.bf16.msra.mxu0 %v1516
    %3800 = vmatprep.subr.bf16.mxu0 0
    %3801 = vmatpush1.bf16.msra.mxu0 %v1513
    %3802 = vmatprep.subr.bf16.mxu0 0
    %3803 = vmatpush1.bf16.msra.mxu0 %v1510
    %3804 = vmatprep.subr.bf16.mxu0 0
    %3805 = vmatpush1.bf16.msra.mxu0 %v1507
    %3806 = vmatprep.subr.bf16.mxu0 0
    %3807 = vmatpush2.bf16.msra.mxu0 %v1552
    %3808 = vmatprep.subr.bf16.mxu0 0
    %3809 = vmatpush2.bf16.msra.mxu0 %v1549
    %3810 = vmatprep.subr.bf16.mxu0 0
    %3811 = vmatpush2.bf16.msra.mxu0 %v1546
    %3812 = vmatprep.subr.bf16.mxu0 0
    %3813 = vmatpush2.bf16.msra.mxu0 %v1543
    %3814 = vmatprep.subr.bf16.mxu0 0
    %3815 = vmatpush2.bf16.msra.mxu0 %v1540
    %3816 = vmatprep.subr.bf16.mxu0 0
    %3817 = vmatpush2.bf16.msra.mxu0 %v1537
    %3818 = vmatprep.subr.bf16.mxu0 0
    %3819 = vmatpush2.bf16.msra.mxu0 %v1534
    %3820 = vmatprep.subr.bf16.mxu0 0
    %3821 = vmatpush2.bf16.msra.mxu0 %v1531
    %3822 = vmatprep.mubr.bf16.mxu0 %v487
    %3823 = vmatmul.mubr.bf16.gmra.mxu0 %v486
    %v3824 = vpop.f32.mrf.mxu0
    %v3825 = vadd.f32 %v3536, %v3824
    %v3826 = vpop.f32.mrf.mxu0
    %v3827 = vpop.f32.mrf.mxu0
    %v3828 = vadd.f32 %v3539, %v3827
    %v3829 = vpop.f32.mrf.mxu0
    %3830 = vmatprep.mubr.bf16.mxu0 %v494
    %3831 = vmatmul.mubr.bf16.gmra.mxu0 %v493
    %v3832 = vpop.f32.mrf.mxu0
    %v3833 = vadd.f32 %v3544, %v3832
    %v3834 = vpop.f32.mrf.mxu0
    %v3835 = vpop.f32.mrf.mxu0
    %v3836 = vadd.f32 %v3547, %v3835
    %v3837 = vpop.f32.mrf.mxu0
    %3838 = vmatprep.mubr.bf16.mxu0 %v501
    %3839 = vmatmul.mubr.bf16.gmra.mxu0 %v500
    %v3840 = vpop.f32.mrf.mxu0
    %v3841 = vadd.f32 %v3552, %v3840
    %v3842 = vpop.f32.mrf.mxu0
    %v3843 = vpop.f32.mrf.mxu0
    %v3844 = vadd.f32 %v3555, %v3843
    %v3845 = vpop.f32.mrf.mxu0
    %3846 = vmatprep.mubr.bf16.mxu0 %v508
    %3847 = vmatmul.mubr.bf16.gmra.mxu0 %v507
    %v3848 = vpop.f32.mrf.mxu0
    %v3849 = vadd.f32 %v3560, %v3848
    %v3850 = vpop.f32.mrf.mxu0
    %v3851 = vpop.f32.mrf.mxu0
    %v3852 = vadd.f32 %v3563, %v3851
    %v3853 = vpop.f32.mrf.mxu0
    %3854 = vmatprep.mubr.bf16.mxu0 %v515
    %3855 = vmatmul.mubr.bf16.gmra.mxu0 %v514
    %v3856 = vpop.f32.mrf.mxu0
    %v3857 = vadd.f32 %v3568, %v3856
    %v3858 = vpop.f32.mrf.mxu0
    %v3859 = vpop.f32.mrf.mxu0
    %v3860 = vadd.f32 %v3571, %v3859
    %v3861 = vpop.f32.mrf.mxu0
    %3862 = vmatprep.mubr.bf16.mxu0 %v522
    %3863 = vmatmul.mubr.bf16.gmra.mxu0 %v521
    %v3864 = vpop.f32.mrf.mxu0
    %v3865 = vadd.f32 %v3576, %v3864
    %v3866 = vpop.f32.mrf.mxu0
    %v3867 = vpop.f32.mrf.mxu0
    %v3868 = vadd.f32 %v3579, %v3867
    %v3869 = vpop.f32.mrf.mxu0
    %3870 = vmatprep.mubr.bf16.mxu0 %v529
    %3871 = vmatmul.mubr.bf16.gmra.mxu0 %v528
    %v3872 = vpop.f32.mrf.mxu0
    %v3873 = vadd.f32 %v3584, %v3872
    %v3874 = vpop.f32.mrf.mxu0
    %v3875 = vpop.f32.mrf.mxu0
    %v3876 = vadd.f32 %v3587, %v3875
    %v3877 = vpop.f32.mrf.mxu0
    %3878 = vmatprep.mubr.bf16.mxu0 %v536
    %3879 = vmatmul.mubr.bf16.gmra.mxu0 %v535
    %v3880 = vpop.f32.mrf.mxu0
    %v3881 = vadd.f32 %v3592, %v3880
    %v3882 = vpop.f32.mrf.mxu0
    %v3883 = vpop.f32.mrf.mxu0
    %v3884 = vadd.f32 %v3595, %v3883
    %v3885 = vpop.f32.mrf.mxu0
    %3886 = vmatprep.mubr.bf16.mxu0 %v543
    %3887 = vmatmul.mubr.bf16.gmra.mxu0 %v542
    %v3888 = vpop.f32.mrf.mxu0
    %v3889 = vadd.f32 %v3600, %v3888
    %v3890 = vpop.f32.mrf.mxu0
    %v3891 = vpop.f32.mrf.mxu0
    %v3892 = vadd.f32 %v3603, %v3891
    %v3893 = vpop.f32.mrf.mxu0
    %3894 = vmatprep.mubr.bf16.mxu0 %v550
    %3895 = vmatmul.mubr.bf16.gmra.mxu0 %v549
    %v3896 = vpop.f32.mrf.mxu0
    %v3897 = vadd.f32 %v3608, %v3896
    %v3898 = vpop.f32.mrf.mxu0
    %v3899 = vpop.f32.mrf.mxu0
    %v3900 = vadd.f32 %v3611, %v3899
    %v3901 = vpop.f32.mrf.mxu0
    %3902 = vmatprep.mubr.bf16.mxu0 %v557
    %3903 = vmatmul.mubr.bf16.gmra.mxu0 %v556
    %v3904 = vpop.f32.mrf.mxu0
    %v3905 = vadd.f32 %v3616, %v3904
    %v3906 = vpop.f32.mrf.mxu0
    %v3907 = vpop.f32.mrf.mxu0
    %v3908 = vadd.f32 %v3619, %v3907
    %v3909 = vpop.f32.mrf.mxu0
    %3910 = vmatprep.mubr.bf16.mxu0 %v564
    %3911 = vmatmul.mubr.bf16.gmra.mxu0 %v563
    %v3912 = vpop.f32.mrf.mxu0
    %v3913 = vadd.f32 %v3624, %v3912
    %v3914 = vpop.f32.mrf.mxu0
    %v3915 = vpop.f32.mrf.mxu0
    %v3916 = vadd.f32 %v3627, %v3915
    %v3917 = vpop.f32.mrf.mxu0
    %3918 = vmatprep.mubr.bf16.mxu0 %v571
    %3919 = vmatmul.mubr.bf16.gmra.mxu0 %v570
    %v3920 = vpop.f32.mrf.mxu0
    %v3921 = vadd.f32 %v3632, %v3920
    %v3922 = vpop.f32.mrf.mxu0
    %v3923 = vpop.f32.mrf.mxu0
    %v3924 = vadd.f32 %v3635, %v3923
    %v3925 = vpop.f32.mrf.mxu0
    %3926 = vmatprep.mubr.bf16.mxu0 %v578
    %3927 = vmatmul.mubr.bf16.gmra.mxu0 %v577
    %v3928 = vpop.f32.mrf.mxu0
    %v3929 = vadd.f32 %v3640, %v3928
    %v3930 = vpop.f32.mrf.mxu0
    %v3931 = vpop.f32.mrf.mxu0
    %v3932 = vadd.f32 %v3643, %v3931
    %v3933 = vpop.f32.mrf.mxu0
    %3934 = vmatprep.mubr.bf16.mxu0 %v585
    %3935 = vmatmul.mubr.bf16.gmra.mxu0 %v584
    %v3936 = vpop.f32.mrf.mxu0
    %v3937 = vadd.f32 %v3648, %v3936
    %v3938 = vpop.f32.mrf.mxu0
    %v3939 = vpop.f32.mrf.mxu0
    %v3940 = vadd.f32 %v3651, %v3939
    %v3941 = vpop.f32.mrf.mxu0
    %3942 = vmatprep.mubr.bf16.mxu0 %v592
    %3943 = vmatmul.mubr.bf16.gmra.mxu0 %v591
    %v3944 = vpop.f32.mrf.mxu0
    %v3945 = vadd.f32 %v3656, %v3944
    %v3946 = vpop.f32.mrf.mxu0
    %v3947 = vpop.f32.mrf.mxu0
    %v3948 = vadd.f32 %v3659, %v3947
    %v3949 = vpop.f32.mrf.mxu0
    %3950 = vmatprep.mubr.bf16.mxu0 %v599
    %3951 = vmatmul.mubr.bf16.gmra.mxu0 %v598
    %v3952 = vpop.f32.mrf.mxu0
    %v3953 = vadd.f32 %v3664, %v3952
    %v3954 = vpop.f32.mrf.mxu0
    %v3955 = vpop.f32.mrf.mxu0
    %v3956 = vadd.f32 %v3667, %v3955
    %v3957 = vpop.f32.mrf.mxu0
    %3958 = vmatprep.mubr.bf16.mxu0 %v606
    %3959 = vmatmul.mubr.bf16.gmra.mxu0 %v605
    %v3960 = vpop.f32.mrf.mxu0
    %v3961 = vadd.f32 %v3672, %v3960
    %v3962 = vpop.f32.mrf.mxu0
    %v3963 = vpop.f32.mrf.mxu0
    %v3964 = vadd.f32 %v3675, %v3963
    %v3965 = vpop.f32.mrf.mxu0
    %3966 = vmatprep.mubr.bf16.mxu0 %v613
    %3967 = vmatmul.mubr.bf16.gmra.mxu0 %v612
    %v3968 = vpop.f32.mrf.mxu0
    %v3969 = vadd.f32 %v3680, %v3968
    %v3970 = vpop.f32.mrf.mxu0
    %v3971 = vpop.f32.mrf.mxu0
    %v3972 = vadd.f32 %v3683, %v3971
    %v3973 = vpop.f32.mrf.mxu0
    %3974 = vmatprep.mubr.bf16.mxu0 %v620
    %3975 = vmatmul.mubr.bf16.gmra.mxu0 %v619
    %v3976 = vpop.f32.mrf.mxu0
    %v3977 = vadd.f32 %v3688, %v3976
    %v3978 = vpop.f32.mrf.mxu0
    %v3979 = vpop.f32.mrf.mxu0
    %v3980 = vadd.f32 %v3691, %v3979
    %v3981 = vpop.f32.mrf.mxu0
    %3982 = vmatprep.mubr.bf16.mxu0 %v627
    %3983 = vmatmul.mubr.bf16.gmra.mxu0 %v626
    %v3984 = vpop.f32.mrf.mxu0
    %v3985 = vadd.f32 %v3696, %v3984
    %v3986 = vpop.f32.mrf.mxu0
    %v3987 = vpop.f32.mrf.mxu0
    %v3988 = vadd.f32 %v3699, %v3987
    %v3989 = vpop.f32.mrf.mxu0
    %3990 = vmatprep.mubr.bf16.mxu0 %v634
    %3991 = vmatmul.mubr.bf16.gmra.mxu0 %v633
    %v3992 = vpop.f32.mrf.mxu0
    %v3993 = vadd.f32 %v3704, %v3992
    %v3994 = vpop.f32.mrf.mxu0
    %v3995 = vpop.f32.mrf.mxu0
    %v3996 = vadd.f32 %v3707, %v3995
    %v3997 = vpop.f32.mrf.mxu0
    %3998 = vmatprep.mubr.bf16.mxu0 %v641
    %3999 = vmatmul.mubr.bf16.gmra.mxu0 %v640
    %v4000 = vpop.f32.mrf.mxu0
    %v4001 = vadd.f32 %v3712, %v4000
    %v4002 = vpop.f32.mrf.mxu0
    %v4003 = vpop.f32.mrf.mxu0
    %v4004 = vadd.f32 %v3715, %v4003
    %v4005 = vpop.f32.mrf.mxu0
    %4006 = vmatprep.mubr.bf16.mxu0 %v648
    %4007 = vmatmul.mubr.bf16.gmra.mxu0 %v647
    %v4008 = vpop.f32.mrf.mxu0
    %v4009 = vadd.f32 %v3720, %v4008
    %v4010 = vpop.f32.mrf.mxu0
    %v4011 = vpop.f32.mrf.mxu0
    %v4012 = vadd.f32 %v3723, %v4011
    %v4013 = vpop.f32.mrf.mxu0
    %4014 = vmatprep.mubr.bf16.mxu0 %v655
    %4015 = vmatmul.mubr.bf16.gmra.mxu0 %v654
    %v4016 = vpop.f32.mrf.mxu0
    %v4017 = vadd.f32 %v3728, %v4016
    %v4018 = vpop.f32.mrf.mxu0
    %v4019 = vpop.f32.mrf.mxu0
    %v4020 = vadd.f32 %v3731, %v4019
    %v4021 = vpop.f32.mrf.mxu0
    %4022 = vmatprep.mubr.bf16.mxu0 %v662
    %4023 = vmatmul.mubr.bf16.gmra.mxu0 %v661
    %v4024 = vpop.f32.mrf.mxu0
    %v4025 = vadd.f32 %v3736, %v4024
    %v4026 = vpop.f32.mrf.mxu0
    %v4027 = vpop.f32.mrf.mxu0
    %v4028 = vadd.f32 %v3739, %v4027
    %v4029 = vpop.f32.mrf.mxu0
    %4030 = vmatprep.mubr.bf16.mxu0 %v669
    %4031 = vmatmul.mubr.bf16.gmra.mxu0 %v668
    %v4032 = vpop.f32.mrf.mxu0
    %v4033 = vadd.f32 %v3744, %v4032
    %v4034 = vpop.f32.mrf.mxu0
    %v4035 = vpop.f32.mrf.mxu0
    %v4036 = vadd.f32 %v3747, %v4035
    %v4037 = vpop.f32.mrf.mxu0
    %4038 = vmatprep.mubr.bf16.mxu0 %v676
    %4039 = vmatmul.mubr.bf16.gmra.mxu0 %v675
    %v4040 = vpop.f32.mrf.mxu0
    %v4041 = vadd.f32 %v3752, %v4040
    %v4042 = vpop.f32.mrf.mxu0
    %v4043 = vpop.f32.mrf.mxu0
    %v4044 = vadd.f32 %v3755, %v4043
    %v4045 = vpop.f32.mrf.mxu0
    %4046 = vmatprep.mubr.bf16.mxu0 %v683
    %4047 = vmatmul.mubr.bf16.gmra.mxu0 %v682
    %v4048 = vpop.f32.mrf.mxu0
    %v4049 = vadd.f32 %v3760, %v4048
    %v4050 = vpop.f32.mrf.mxu0
    %v4051 = vpop.f32.mrf.mxu0
    %v4052 = vadd.f32 %v3763, %v4051
    %v4053 = vpop.f32.mrf.mxu0
    %4054 = vmatprep.mubr.bf16.mxu0 %v690
    %4055 = vmatmul.mubr.bf16.gmra.mxu0 %v689
    %v4056 = vpop.f32.mrf.mxu0
    %v4057 = vadd.f32 %v3768, %v4056
    %v4058 = vpop.f32.mrf.mxu0
    %v4059 = vpop.f32.mrf.mxu0
    %v4060 = vadd.f32 %v3771, %v4059
    %v4061 = vpop.f32.mrf.mxu0
    %4062 = vmatprep.mubr.bf16.mxu0 %v697
    %4063 = vmatmul.mubr.bf16.gmra.mxu0 %v696
    %v4064 = vpop.f32.mrf.mxu0
    %v4065 = vadd.f32 %v3776, %v4064
    %v4066 = vpop.f32.mrf.mxu0
    %v4067 = vpop.f32.mrf.mxu0
    %v4068 = vadd.f32 %v3779, %v4067
    %v4069 = vpop.f32.mrf.mxu0
    %4070 = vmatprep.mubr.bf16.mxu0 %v704
    %4071 = vmatmul.mubr.bf16.gmra.mxu0 %v703
    %v4072 = vpop.f32.mrf.mxu0
    %v4073 = vadd.f32 %v3784, %v4072
    %v4074 = vpop.f32.mrf.mxu0
    %v4075 = vpop.f32.mrf.mxu0
    %v4076 = vadd.f32 %v3787, %v4075
    %v4077 = vpop.f32.mrf.mxu0
    %4078 = vdwg.mxu0
    %4079 = vmatprep.subr.bf16.mxu0 0
    %4080 = vmatpush1.bf16.msra.mxu0 0
    %4081 = vmatprep.subr.bf16.mxu0 0
    %4082 = vmatpush1.bf16.msra.mxu0 0
    %4083 = vmatprep.subr.bf16.mxu0 0
    %4084 = vmatpush1.bf16.msra.mxu0 0
    %4085 = vmatprep.subr.bf16.mxu0 0
    %4086 = vmatpush1.bf16.msra.mxu0 0
    %4087 = vmatprep.subr.bf16.mxu0 0
    %4088 = vmatpush1.bf16.msra.mxu0 0
    %4089 = vmatprep.subr.bf16.mxu0 0
    %4090 = vmatpush1.bf16.msra.mxu0 0
    %4091 = vmatprep.subr.bf16.mxu0 0
    %4092 = vmatpush1.bf16.msra.mxu0 0
    %4093 = vmatprep.subr.bf16.mxu0 0
    %4094 = vmatpush1.bf16.msra.mxu0 %v1555
    %4095 = vmatprep.subr.bf16.mxu0 0
    %4096 = vmatpush2.bf16.msra.mxu0 0
    %4097 = vmatprep.subr.bf16.mxu0 0
    %4098 = vmatpush2.bf16.msra.mxu0 0
    %4099 = vmatprep.subr.bf16.mxu0 0
    %4100 = vmatpush2.bf16.msra.mxu0 0
    %4101 = vmatprep.subr.bf16.mxu0 0
    %4102 = vmatpush2.bf16.msra.mxu0 0
    %4103 = vmatprep.subr.bf16.mxu0 0
    %4104 = vmatpush2.bf16.msra.mxu0 0
    %4105 = vmatprep.subr.bf16.mxu0 0
    %4106 = vmatpush2.bf16.msra.mxu0 0
    %4107 = vmatprep.subr.bf16.mxu0 0
    %4108 = vmatpush2.bf16.msra.mxu0 0
    %4109 = vmatprep.subr.bf16.mxu0 0
    %4110 = vmatpush2.bf16.msra.mxu0 0
    %4111 = vmatprep.mubr.bf16.mxu0 0
    %4112 = vmatmul.mubr.bf16.gmra.mxu0 %v1705
    %v4113 = vpop.f32.mrf.mxu0
    %v4114 = vadd.f32 %v3825, %v4113
    %v4115 = vpop.f32.mrf.mxu0
    %v4116 = vpop.f32.mrf.mxu0
    %v4117 = vadd.f32 %v3828, %v4116
    %v4118 = vpop.f32.mrf.mxu0
    %4119 = vmatprep.mubr.bf16.mxu0 0
    %4120 = vmatmul.mubr.bf16.gmra.mxu0 %v1708
    %v4121 = vpop.f32.mrf.mxu0
    %v4122 = vadd.f32 %v3833, %v4121
    %v4123 = vpop.f32.mrf.mxu0
    %v4124 = vpop.f32.mrf.mxu0
    %v4125 = vadd.f32 %v3836, %v4124
    %v4126 = vpop.f32.mrf.mxu0
    %4127 = vmatprep.mubr.bf16.mxu0 0
    %4128 = vmatmul.mubr.bf16.gmra.mxu0 %v1711
    %v4129 = vpop.f32.mrf.mxu0
    %v4130 = vadd.f32 %v3841, %v4129
    %v4131 = vpop.f32.mrf.mxu0
    %v4132 = vpop.f32.mrf.mxu0
    %v4133 = vadd.f32 %v3844, %v4132
    %v4134 = vpop.f32.mrf.mxu0
    %4135 = vmatprep.mubr.bf16.mxu0 0
    %4136 = vmatmul.mubr.bf16.gmra.mxu0 %v1714
    %v4137 = vpop.f32.mrf.mxu0
    %v4138 = vadd.f32 %v3849, %v4137
    %v4139 = vpop.f32.mrf.mxu0
    %v4140 = vpop.f32.mrf.mxu0
    %v4141 = vadd.f32 %v3852, %v4140
    %v4142 = vpop.f32.mrf.mxu0
    %4143 = vmatprep.mubr.bf16.mxu0 0
    %4144 = vmatmul.mubr.bf16.gmra.mxu0 %v1717
    %v4145 = vpop.f32.mrf.mxu0
    %v4146 = vadd.f32 %v3857, %v4145
    %v4147 = vpop.f32.mrf.mxu0
    %v4148 = vpop.f32.mrf.mxu0
    %v4149 = vadd.f32 %v3860, %v4148
    %v4150 = vpop.f32.mrf.mxu0
    %4151 = vmatprep.mubr.bf16.mxu0 0
    %4152 = vmatmul.mubr.bf16.gmra.mxu0 %v1720
    %v4153 = vpop.f32.mrf.mxu0
    %v4154 = vadd.f32 %v3865, %v4153
    %v4155 = vpop.f32.mrf.mxu0
    %v4156 = vpop.f32.mrf.mxu0
    %v4157 = vadd.f32 %v3868, %v4156
    %v4158 = vpop.f32.mrf.mxu0
    %4159 = vmatprep.mubr.bf16.mxu0 0
    %4160 = vmatmul.mubr.bf16.gmra.mxu0 %v1723
    %v4161 = vpop.f32.mrf.mxu0
    %v4162 = vadd.f32 %v3873, %v4161
    %v4163 = vpop.f32.mrf.mxu0
    %v4164 = vpop.f32.mrf.mxu0
    %v4165 = vadd.f32 %v3876, %v4164
    %v4166 = vpop.f32.mrf.mxu0
    %4167 = vmatprep.mubr.bf16.mxu0 0
    %4168 = vmatmul.mubr.bf16.gmra.mxu0 %v1726
    %v4169 = vpop.f32.mrf.mxu0
    %v4170 = vadd.f32 %v3881, %v4169
    %v4171 = vpop.f32.mrf.mxu0
    %v4172 = vpop.f32.mrf.mxu0
    %v4173 = vadd.f32 %v3884, %v4172
    %v4174 = vpop.f32.mrf.mxu0
    %4175 = vmatprep.mubr.bf16.mxu0 0
    %4176 = vmatmul.mubr.bf16.gmra.mxu0 %v1729
    %v4177 = vpop.f32.mrf.mxu0
    %v4178 = vadd.f32 %v3889, %v4177
    %v4179 = vpop.f32.mrf.mxu0
    %v4180 = vpop.f32.mrf.mxu0
    %v4181 = vadd.f32 %v3892, %v4180
    %v4182 = vpop.f32.mrf.mxu0
    %4183 = vmatprep.mubr.bf16.mxu0 0
    %4184 = vmatmul.mubr.bf16.gmra.mxu0 %v1732
    %v4185 = vpop.f32.mrf.mxu0
    %v4186 = vadd.f32 %v3897, %v4185
    %v4187 = vpop.f32.mrf.mxu0
    %v4188 = vpop.f32.mrf.mxu0
    %v4189 = vadd.f32 %v3900, %v4188
    %v4190 = vpop.f32.mrf.mxu0
    %4191 = vmatprep.mubr.bf16.mxu0 0
    %4192 = vmatmul.mubr.bf16.gmra.mxu0 %v1735
    %v4193 = vpop.f32.mrf.mxu0
    %v4194 = vadd.f32 %v3905, %v4193
    %v4195 = vpop.f32.mrf.mxu0
    %v4196 = vpop.f32.mrf.mxu0
    %v4197 = vadd.f32 %v3908, %v4196
    %v4198 = vpop.f32.mrf.mxu0
    %4199 = vmatprep.mubr.bf16.mxu0 0
    %4200 = vmatmul.mubr.bf16.gmra.mxu0 %v1738
    %v4201 = vpop.f32.mrf.mxu0
    %v4202 = vadd.f32 %v3913, %v4201
    %v4203 = vpop.f32.mrf.mxu0
    %v4204 = vpop.f32.mrf.mxu0
    %v4205 = vadd.f32 %v3916, %v4204
    %v4206 = vpop.f32.mrf.mxu0
    %4207 = vmatprep.mubr.bf16.mxu0 0
    %4208 = vmatmul.mubr.bf16.gmra.mxu0 %v1741
    %v4209 = vpop.f32.mrf.mxu0
    %v4210 = vadd.f32 %v3921, %v4209
    %v4211 = vpop.f32.mrf.mxu0
    %v4212 = vpop.f32.mrf.mxu0
    %v4213 = vadd.f32 %v3924, %v4212
    %v4214 = vpop.f32.mrf.mxu0
    %4215 = vmatprep.mubr.bf16.mxu0 0
    %4216 = vmatmul.mubr.bf16.gmra.mxu0 %v1744
    %v4217 = vpop.f32.mrf.mxu0
    %v4218 = vadd.f32 %v3929, %v4217
    %v4219 = vpop.f32.mrf.mxu0
    %v4220 = vpop.f32.mrf.mxu0
    %v4221 = vadd.f32 %v3932, %v4220
    %v4222 = vpop.f32.mrf.mxu0
    %4223 = vmatprep.mubr.bf16.mxu0 0
    %4224 = vmatmul.mubr.bf16.gmra.mxu0 %v1747
    %v4225 = vpop.f32.mrf.mxu0
    %v4226 = vadd.f32 %v3937, %v4225
    %v4227 = vpop.f32.mrf.mxu0
    %v4228 = vpop.f32.mrf.mxu0
    %v4229 = vadd.f32 %v3940, %v4228
    %v4230 = vpop.f32.mrf.mxu0
    %4231 = vmatprep.mubr.bf16.mxu0 0
    %4232 = vmatmul.mubr.bf16.gmra.mxu0 %v1750
    %v4233 = vpop.f32.mrf.mxu0
    %v4234 = vadd.f32 %v3945, %v4233
    %v4235 = vpop.f32.mrf.mxu0
    %v4236 = vpop.f32.mrf.mxu0
    %v4237 = vadd.f32 %v3948, %v4236
    %v4238 = vpop.f32.mrf.mxu0
    %4239 = vmatprep.mubr.bf16.mxu0 0
    %4240 = vmatmul.mubr.bf16.gmra.mxu0 %v1753
    %v4241 = vpop.f32.mrf.mxu0
    %v4242 = vadd.f32 %v3953, %v4241
    %v4243 = vpop.f32.mrf.mxu0
    %v4244 = vpop.f32.mrf.mxu0
    %v4245 = vadd.f32 %v3956, %v4244
    %v4246 = vpop.f32.mrf.mxu0
    %4247 = vmatprep.mubr.bf16.mxu0 0
    %4248 = vmatmul.mubr.bf16.gmra.mxu0 %v1756
    %v4249 = vpop.f32.mrf.mxu0
    %v4250 = vadd.f32 %v3961, %v4249
    %v4251 = vpop.f32.mrf.mxu0
    %v4252 = vpop.f32.mrf.mxu0
    %v4253 = vadd.f32 %v3964, %v4252
    %v4254 = vpop.f32.mrf.mxu0
    %4255 = vmatprep.mubr.bf16.mxu0 0
    %4256 = vmatmul.mubr.bf16.gmra.mxu0 %v1759
    %v4257 = vpop.f32.mrf.mxu0
    %v4258 = vadd.f32 %v3969, %v4257
    %v4259 = vpop.f32.mrf.mxu0
    %v4260 = vpop.f32.mrf.mxu0
    %v4261 = vadd.f32 %v3972, %v4260
    %v4262 = vpop.f32.mrf.mxu0
    %4263 = vmatprep.mubr.bf16.mxu0 0
    %4264 = vmatmul.mubr.bf16.gmra.mxu0 %v1762
    %v4265 = vpop.f32.mrf.mxu0
    %v4266 = vadd.f32 %v3977, %v4265
    %v4267 = vpop.f32.mrf.mxu0
    %v4268 = vpop.f32.mrf.mxu0
    %v4269 = vadd.f32 %v3980, %v4268
    %v4270 = vpop.f32.mrf.mxu0
    %4271 = vmatprep.mubr.bf16.mxu0 0
    %4272 = vmatmul.mubr.bf16.gmra.mxu0 %v1765
    %v4273 = vpop.f32.mrf.mxu0
    %v4274 = vadd.f32 %v3985, %v4273
    %v4275 = vpop.f32.mrf.mxu0
    %v4276 = vpop.f32.mrf.mxu0
    %v4277 = vadd.f32 %v3988, %v4276
    %v4278 = vpop.f32.mrf.mxu0
    %4279 = vmatprep.mubr.bf16.mxu0 0
    %4280 = vmatmul.mubr.bf16.gmra.mxu0 %v1768
    %v4281 = vpop.f32.mrf.mxu0
    %v4282 = vadd.f32 %v3993, %v4281
    %v4283 = vpop.f32.mrf.mxu0
    %v4284 = vpop.f32.mrf.mxu0
    %v4285 = vadd.f32 %v3996, %v4284
    %v4286 = vpop.f32.mrf.mxu0
    %4287 = vmatprep.mubr.bf16.mxu0 0
    %4288 = vmatmul.mubr.bf16.gmra.mxu0 %v1771
    %v4289 = vpop.f32.mrf.mxu0
    %v4290 = vadd.f32 %v4001, %v4289
    %v4291 = vpop.f32.mrf.mxu0
    %v4292 = vpop.f32.mrf.mxu0
    %v4293 = vadd.f32 %v4004, %v4292
    %v4294 = vpop.f32.mrf.mxu0
    %4295 = vmatprep.mubr.bf16.mxu0 0
    %4296 = vmatmul.mubr.bf16.gmra.mxu0 %v1774
    %v4297 = vpop.f32.mrf.mxu0
    %v4298 = vadd.f32 %v4009, %v4297
    %v4299 = vpop.f32.mrf.mxu0
    %v4300 = vpop.f32.mrf.mxu0
    %v4301 = vadd.f32 %v4012, %v4300
    %v4302 = vpop.f32.mrf.mxu0
    %4303 = vmatprep.mubr.bf16.mxu0 0
    %4304 = vmatmul.mubr.bf16.gmra.mxu0 %v1777
    %v4305 = vpop.f32.mrf.mxu0
    %v4306 = vadd.f32 %v4017, %v4305
    %v4307 = vpop.f32.mrf.mxu0
    %v4308 = vpop.f32.mrf.mxu0
    %v4309 = vadd.f32 %v4020, %v4308
    %v4310 = vpop.f32.mrf.mxu0
    %4311 = vmatprep.mubr.bf16.mxu0 0
    %4312 = vmatmul.mubr.bf16.gmra.mxu0 %v1780
    %v4313 = vpop.f32.mrf.mxu0
    %v4314 = vadd.f32 %v4025, %v4313
    %v4315 = vpop.f32.mrf.mxu0
    %v4316 = vpop.f32.mrf.mxu0
    %v4317 = vadd.f32 %v4028, %v4316
    %v4318 = vpop.f32.mrf.mxu0
    %4319 = vmatprep.mubr.bf16.mxu0 0
    %4320 = vmatmul.mubr.bf16.gmra.mxu0 %v1783
    %v4321 = vpop.f32.mrf.mxu0
    %v4322 = vadd.f32 %v4033, %v4321
    %v4323 = vpop.f32.mrf.mxu0
    %v4324 = vpop.f32.mrf.mxu0
    %v4325 = vadd.f32 %v4036, %v4324
    %v4326 = vpop.f32.mrf.mxu0
    %4327 = vmatprep.mubr.bf16.mxu0 0
    %4328 = vmatmul.mubr.bf16.gmra.mxu0 %v1786
    %v4329 = vpop.f32.mrf.mxu0
    %v4330 = vadd.f32 %v4041, %v4329
    %v4331 = vpop.f32.mrf.mxu0
    %v4332 = vpop.f32.mrf.mxu0
    %v4333 = vadd.f32 %v4044, %v4332
    %v4334 = vpop.f32.mrf.mxu0
    %4335 = vmatprep.mubr.bf16.mxu0 0
    %4336 = vmatmul.mubr.bf16.gmra.mxu0 %v1789
    %v4337 = vpop.f32.mrf.mxu0
    %v4338 = vadd.f32 %v4049, %v4337
    %v4339 = vpop.f32.mrf.mxu0
    %v4340 = vpop.f32.mrf.mxu0
    %v4341 = vadd.f32 %v4052, %v4340
    %v4342 = vpop.f32.mrf.mxu0
    %4343 = vmatprep.mubr.bf16.mxu0 0
    %4344 = vmatmul.mubr.bf16.gmra.mxu0 %v1792
    %v4345 = vpop.f32.mrf.mxu0
    %v4346 = vadd.f32 %v4057, %v4345
    %v4347 = vpop.f32.mrf.mxu0
    %v4348 = vpop.f32.mrf.mxu0
    %v4349 = vadd.f32 %v4060, %v4348
    %v4350 = vpop.f32.mrf.mxu0
    %4351 = vmatprep.mubr.bf16.mxu0 0
    %4352 = vmatmul.mubr.bf16.gmra.mxu0 %v1795
    %v4353 = vpop.f32.mrf.mxu0
    %v4354 = vadd.f32 %v4065, %v4353
    %v4355 = vpop.f32.mrf.mxu0
    %v4356 = vpop.f32.mrf.mxu0
    %v4357 = vadd.f32 %v4068, %v4356
    %v4358 = vpop.f32.mrf.mxu0
    %4359 = vmatprep.mubr.bf16.mxu0 0
    %4360 = vmatmul.mubr.bf16.gmra.mxu0 %v1798
    %v4361 = vpop.f32.mrf.mxu0
    %v4362 = vadd.f32 %v4073, %v4361
    %v4363 = vpop.f32.mrf.mxu0
    %v4364 = vpop.f32.mrf.mxu0
    %v4365 = vadd.f32 %v4076, %v4364
    %v4366 = vpop.f32.mrf.mxu0
    %4367 = vdwg.mxu0
    %v4368 = vmax.f32 %v2894, 0.0
    %v4369 = vmax.f32 %v2896, 0.0
    %v4370 = vmax.f32 %v4114, 0.0
    %v4371 = vmax.f32 %v2898, 0.0
    %v4372 = vmax.f32 %v2900, 0.0
    %v4373 = vmax.f32 %v4117, 0.0
    %v4374 = vmax.f32 %v2904, 0.0
    %v4375 = vmax.f32 %v2906, 0.0
    %v4376 = vmax.f32 %v4122, 0.0
    %v4377 = vmax.f32 %v2908, 0.0
    %v4378 = vmax.f32 %v2910, 0.0
    %v4379 = vmax.f32 %v4125, 0.0
    %v4380 = vmax.f32 %v2914, 0.0
    %v4381 = vmax.f32 %v2916, 0.0
    %v4382 = vmax.f32 %v4130, 0.0
    %v4383 = vmax.f32 %v2918, 0.0
    %v4384 = vmax.f32 %v2920, 0.0
    %v4385 = vmax.f32 %v4133, 0.0
    %v4386 = vmax.f32 %v2924, 0.0
    %v4387 = vmax.f32 %v2926, 0.0
    %v4388 = vmax.f32 %v4138, 0.0
    %v4389 = vmax.f32 %v2928, 0.0
    %v4390 = vmax.f32 %v2930, 0.0
    %v4391 = vmax.f32 %v4141, 0.0
    %v4392 = vmax.f32 %v2934, 0.0
    %v4393 = vmax.f32 %v2936, 0.0
    %v4394 = vmax.f32 %v4146, 0.0
    %v4395 = vmax.f32 %v2938, 0.0
    %v4396 = vmax.f32 %v2940, 0.0
    %v4397 = vmax.f32 %v4149, 0.0
    %v4398 = vmax.f32 %v2944, 0.0
    %v4399 = vmax.f32 %v2946, 0.0
    %v4400 = vmax.f32 %v4154, 0.0
    %v4401 = vmax.f32 %v2948, 0.0
    %v4402 = vmax.f32 %v2950, 0.0
    %v4403 = vmax.f32 %v4157, 0.0
    %v4404 = vmax.f32 %v2954, 0.0
    %v4405 = vmax.f32 %v2956, 0.0
    %v4406 = vmax.f32 %v4162, 0.0
    %v4407 = vmax.f32 %v2958, 0.0
    %v4408 = vmax.f32 %v2960, 0.0
    %v4409 = vmax.f32 %v4165, 0.0
    %v4410 = vmax.f32 %v2964, 0.0
    %v4411 = vmax.f32 %v2966, 0.0
    %v4412 = vmax.f32 %v4170, 0.0
    %v4413 = vmax.f32 %v2968, 0.0
    %v4414 = vmax.f32 %v2970, 0.0
    %v4415 = vmax.f32 %v4173, 0.0
    %v4416 = vmax.f32 %v2974, 0.0
    %v4417 = vmax.f32 %v2976, 0.0
    %v4418 = vmax.f32 %v4178, 0.0
    %v4419 = vmax.f32 %v2978, 0.0
    %v4420 = vmax.f32 %v2980, 0.0
    %v4421 = vmax.f32 %v4181, 0.0
    %v4422 = vmax.f32 %v2984, 0.0
    %v4423 = vmax.f32 %v2986, 0.0
    %v4424 = vmax.f32 %v4186, 0.0
    %v4425 = vmax.f32 %v2988, 0.0
    %v4426 = vmax.f32 %v2990, 0.0
    %v4427 = vmax.f32 %v4189, 0.0
    %v4428 = vmax.f32 %v2994, 0.0
    %v4429 = vmax.f32 %v2996, 0.0
    %v4430 = vmax.f32 %v4194, 0.0
    %v4431 = vmax.f32 %v2998, 0.0
    %v4432 = vmax.f32 %v3000, 0.0
    %v4433 = vmax.f32 %v4197, 0.0
    %v4434 = vmax.f32 %v3004, 0.0
    %v4435 = vmax.f32 %v3006, 0.0
    %v4436 = vmax.f32 %v4202, 0.0
    %v4437 = vmax.f32 %v3008, 0.0
    %v4438 = vmax.f32 %v3010, 0.0
    %v4439 = vmax.f32 %v4205, 0.0
    %v4440 = vmax.f32 %v3014, 0.0
    %v4441 = vmax.f32 %v3016, 0.0
    %v4442 = vmax.f32 %v4210, 0.0
    %v4443 = vmax.f32 %v3018, 0.0
    %v4444 = vmax.f32 %v3020, 0.0
    %v4445 = vmax.f32 %v4213, 0.0
    %v4446 = vmax.f32 %v3024, 0.0
    %v4447 = vmax.f32 %v3026, 0.0
    %v4448 = vmax.f32 %v4218, 0.0
    %v4449 = vmax.f32 %v3028, 0.0
    %v4450 = vmax.f32 %v3030, 0.0
    %v4451 = vmax.f32 %v4221, 0.0
    %v4452 = vmax.f32 %v3034, 0.0
    %v4453 = vmax.f32 %v3036, 0.0
    %v4454 = vmax.f32 %v4226, 0.0
    %v4455 = vmax.f32 %v3038, 0.0
    %v4456 = vmax.f32 %v3040, 0.0
    %v4457 = vmax.f32 %v4229, 0.0
    %v4458 = vmax.f32 %v3044, 0.0
    %v4459 = vmax.f32 %v3046, 0.0
    %v4460 = vmax.f32 %v4234, 0.0
    %v4461 = vmax.f32 %v3048, 0.0
    %v4462 = vmax.f32 %v3050, 0.0
    %v4463 = vmax.f32 %v4237, 0.0
    %v4464 = vmax.f32 %v3054, 0.0
    %v4465 = vmax.f32 %v3056, 0.0
    %v4466 = vmax.f32 %v4242, 0.0
    %v4467 = vmax.f32 %v3058, 0.0
    %v4468 = vmax.f32 %v3060, 0.0
    %v4469 = vmax.f32 %v4245, 0.0
    %v4470 = vmax.f32 %v3064, 0.0
    %v4471 = vmax.f32 %v3066, 0.0
    %v4472 = vmax.f32 %v4250, 0.0
    %v4473 = vmax.f32 %v3068, 0.0
    %v4474 = vmax.f32 %v3070, 0.0
    %v4475 = vmax.f32 %v4253, 0.0
    %v4476 = vmax.f32 %v3074, 0.0
    %v4477 = vmax.f32 %v3076, 0.0
    %v4478 = vmax.f32 %v4258, 0.0
    %v4479 = vmax.f32 %v3078, 0.0
    %v4480 = vmax.f32 %v3080, 0.0
    %v4481 = vmax.f32 %v4261, 0.0
    %v4482 = vmax.f32 %v3084, 0.0
    %v4483 = vmax.f32 %v3086, 0.0
    %v4484 = vmax.f32 %v4266, 0.0
    %v4485 = vmax.f32 %v3088, 0.0
    %v4486 = vmax.f32 %v3090, 0.0
    %v4487 = vmax.f32 %v4269, 0.0
    %v4488 = vmax.f32 %v3094, 0.0
    %v4489 = vmax.f32 %v3096, 0.0
    %v4490 = vmax.f32 %v4274, 0.0
    %v4491 = vmax.f32 %v3098, 0.0
    %v4492 = vmax.f32 %v3100, 0.0
    %v4493 = vmax.f32 %v4277, 0.0
    %v4494 = vmax.f32 %v3104, 0.0
    %v4495 = vmax.f32 %v3106, 0.0
    %v4496 = vmax.f32 %v4282, 0.0
    %v4497 = vmax.f32 %v3108, 0.0
    %v4498 = vmax.f32 %v3110, 0.0
    %v4499 = vmax.f32 %v4285, 0.0
    %v4500 = vmax.f32 %v3114, 0.0
    %v4501 = vmax.f32 %v3116, 0.0
    %v4502 = vmax.f32 %v4290, 0.0
    %v4503 = vmax.f32 %v3118, 0.0
    %v4504 = vmax.f32 %v3120, 0.0
    %v4505 = vmax.f32 %v4293, 0.0
    %v4506 = vmax.f32 %v3124, 0.0
    %v4507 = vmax.f32 %v3126, 0.0
    %v4508 = vmax.f32 %v4298, 0.0
    %v4509 = vmax.f32 %v3128, 0.0
    %v4510 = vmax.f32 %v3130, 0.0
    %v4511 = vmax.f32 %v4301, 0.0
    %v4512 = vmax.f32 %v3134, 0.0
    %v4513 = vmax.f32 %v3136, 0.0
    %v4514 = vmax.f32 %v4306, 0.0
    %v4515 = vmax.f32 %v3138, 0.0
    %v4516 = vmax.f32 %v3140, 0.0
    %v4517 = vmax.f32 %v4309, 0.0
    %v4518 = vmax.f32 %v3144, 0.0
    %v4519 = vmax.f32 %v3146, 0.0
    %v4520 = vmax.f32 %v4314, 0.0
    %v4521 = vmax.f32 %v3148, 0.0
    %v4522 = vmax.f32 %v3150, 0.0
    %v4523 = vmax.f32 %v4317, 0.0
    %v4524 = vmax.f32 %v3154, 0.0
    %v4525 = vmax.f32 %v3156, 0.0
    %v4526 = vmax.f32 %v4322, 0.0
    %v4527 = vmax.f32 %v3158, 0.0
    %v4528 = vmax.f32 %v3160, 0.0
    %v4529 = vmax.f32 %v4325, 0.0
    %v4530 = vmax.f32 %v3164, 0.0
    %v4531 = vmax.f32 %v3166, 0.0
    %v4532 = vmax.f32 %v4330, 0.0
    %v4533 = vmax.f32 %v3168, 0.0
    %v4534 = vmax.f32 %v3170, 0.0
    %v4535 = vmax.f32 %v4333, 0.0
    %v4536 = vmax.f32 %v3174, 0.0
    %v4537 = vmax.f32 %v3176, 0.0
    %v4538 = vmax.f32 %v4338, 0.0
    %v4539 = vmax.f32 %v3178, 0.0
    %v4540 = vmax.f32 %v3180, 0.0
    %v4541 = vmax.f32 %v4341, 0.0
    %v4542 = vmax.f32 %v3184, 0.0
    %v4543 = vmax.f32 %v3186, 0.0
    %v4544 = vmax.f32 %v4346, 0.0
    %v4545 = vmax.f32 %v3188, 0.0
    %v4546 = vmax.f32 %v3190, 0.0
    %v4547 = vmax.f32 %v4349, 0.0
    %v4548 = vmax.f32 %v3194, 0.0
    %v4549 = vmax.f32 %v3196, 0.0
    %v4550 = vmax.f32 %v4354, 0.0
    %v4551 = vmax.f32 %v3198, 0.0
    %v4552 = vmax.f32 %v3200, 0.0
    %v4553 = vmax.f32 %v4357, 0.0
    %v4554 = vmax.f32 %v3204, 0.0
    %v4555 = vmax.f32 %v3206, 0.0
    %v4556 = vmax.f32 %v4362, 0.0
    %v4557 = vmax.f32 %v3208, 0.0
    %v4558 = vmax.f32 %v3210, 0.0
    %v4559 = vmax.f32 %v4365, 0.0
    %v4560 = vpack.c.bf16 %v4371, %v4368
    %v4561 = vpack.c.bf16 %v4372, %v4369
    %v4562 = vpack.c.bf16 %v4373, %v4370
    %v4563 = vpack.c.bf16 %v4377, %v4374
    %v4564 = vpack.c.bf16 %v4378, %v4375
    %v4565 = vpack.c.bf16 %v4379, %v4376
    %v4566 = vpack.c.bf16 %v4383, %v4380
    %v4567 = vpack.c.bf16 %v4384, %v4381
    %v4568 = vpack.c.bf16 %v4385, %v4382
    %v4569 = vpack.c.bf16 %v4389, %v4386
    %v4570 = vpack.c.bf16 %v4390, %v4387
    %v4571 = vpack.c.bf16 %v4391, %v4388
    %v4572 = vpack.c.bf16 %v4395, %v4392
    %v4573 = vpack.c.bf16 %v4396, %v4393
    %v4574 = vpack.c.bf16 %v4397, %v4394
    %v4575 = vpack.c.bf16 %v4401, %v4398
    %v4576 = vpack.c.bf16 %v4402, %v4399
    %v4577 = vpack.c.bf16 %v4403, %v4400
    %v4578 = vpack.c.bf16 %v4407, %v4404
    %v4579 = vpack.c.bf16 %v4408, %v4405
    %v4580 = vpack.c.bf16 %v4409, %v4406
    %v4581 = vpack.c.bf16 %v4413, %v4410
    %v4582 = vpack.c.bf16 %v4414, %v4411
    %v4583 = vpack.c.bf16 %v4415, %v4412
    %v4584 = vpack.c.bf16 %v4419, %v4416
    %v4585 = vpack.c.bf16 %v4420, %v4417
    %v4586 = vpack.c.bf16 %v4421, %v4418
    %v4587 = vpack.c.bf16 %v4425, %v4422
    %v4588 = vpack.c.bf16 %v4426, %v4423
    %v4589 = vpack.c.bf16 %v4427, %v4424
    %v4590 = vpack.c.bf16 %v4431, %v4428
    %v4591 = vpack.c.bf16 %v4432, %v4429
    %v4592 = vpack.c.bf16 %v4433, %v4430
    %v4593 = vpack.c.bf16 %v4437, %v4434
    %v4594 = vpack.c.bf16 %v4438, %v4435
    %v4595 = vpack.c.bf16 %v4439, %v4436
    %v4596 = vpack.c.bf16 %v4443, %v4440
    %v4597 = vpack.c.bf16 %v4444, %v4441
    %v4598 = vpack.c.bf16 %v4445, %v4442
    %v4599 = vpack.c.bf16 %v4449, %v4446
    %v4600 = vpack.c.bf16 %v4450, %v4447
    %v4601 = vpack.c.bf16 %v4451, %v4448
    %v4602 = vpack.c.bf16 %v4455, %v4452
    %v4603 = vpack.c.bf16 %v4456, %v4453
    %v4604 = vpack.c.bf16 %v4457, %v4454
    %v4605 = vpack.c.bf16 %v4461, %v4458
    %v4606 = vpack.c.bf16 %v4462, %v4459
    %v4607 = vpack.c.bf16 %v4463, %v4460
    %v4608 = vpack.c.bf16 %v4467, %v4464
    %v4609 = vpack.c.bf16 %v4468, %v4465
    %v4610 = vpack.c.bf16 %v4469, %v4466
    %v4611 = vpack.c.bf16 %v4473, %v4470
    %v4612 = vpack.c.bf16 %v4474, %v4471
    %v4613 = vpack.c.bf16 %v4475, %v4472
    %v4614 = vpack.c.bf16 %v4479, %v4476
    %v4615 = vpack.c.bf16 %v4480, %v4477
    %v4616 = vpack.c.bf16 %v4481, %v4478
    %v4617 = vpack.c.bf16 %v4485, %v4482
    %v4618 = vpack.c.bf16 %v4486, %v4483
    %v4619 = vpack.c.bf16 %v4487, %v4484
    %v4620 = vpack.c.bf16 %v4491, %v4488
    %v4621 = vpack.c.bf16 %v4492, %v4489
    %v4622 = vpack.c.bf16 %v4493, %v4490
    %v4623 = vpack.c.bf16 %v4497, %v4494
    %v4624 = vpack.c.bf16 %v4498, %v4495
    %v4625 = vpack.c.bf16 %v4499, %v4496
    %v4626 = vpack.c.bf16 %v4503, %v4500
    %v4627 = vpack.c.bf16 %v4504, %v4501
    %v4628 = vpack.c.bf16 %v4505, %v4502
    %v4629 = vpack.c.bf16 %v4509, %v4506
    %v4630 = vpack.c.bf16 %v4510, %v4507
    %v4631 = vpack.c.bf16 %v4511, %v4508
    %v4632 = vpack.c.bf16 %v4515, %v4512
    %v4633 = vpack.c.bf16 %v4516, %v4513
    %v4634 = vpack.c.bf16 %v4517, %v4514
    %v4635 = vpack.c.bf16 %v4521, %v4518
    %v4636 = vpack.c.bf16 %v4522, %v4519
    %v4637 = vpack.c.bf16 %v4523, %v4520
    %v4638 = vpack.c.bf16 %v4527, %v4524
    %v4639 = vpack.c.bf16 %v4528, %v4525
    %v4640 = vpack.c.bf16 %v4529, %v4526
    %v4641 = vpack.c.bf16 %v4533, %v4530
    %v4642 = vpack.c.bf16 %v4534, %v4531
    %v4643 = vpack.c.bf16 %v4535, %v4532
    %v4644 = vpack.c.bf16 %v4539, %v4536
    %v4645 = vpack.c.bf16 %v4540, %v4537
    %v4646 = vpack.c.bf16 %v4541, %v4538
    %v4647 = vpack.c.bf16 %v4545, %v4542
    %v4648 = vpack.c.bf16 %v4546, %v4543
    %v4649 = vpack.c.bf16 %v4547, %v4544
    %v4650 = vpack.c.bf16 %v4551, %v4548
    %v4651 = vpack.c.bf16 %v4552, %v4549
    %v4652 = vpack.c.bf16 %v4553, %v4550
    %v4653 = vpack.c.bf16 %v4557, %v4554
    %v4654 = vpack.c.bf16 %v4558, %v4555
    %v4655 = vpack.c.bf16 %v4559, %v4556
    %v4656 = vld [vmem:[%s3] sm:$0xff]
    %v4657 = vld [vmem:[%s3 + $0x8] sm:$0xf]
    %v4658 = vld [vmem:[%s3 + $0xc] sm:$0xff]
    %v4659 = vld [vmem:[%s3 + $0x14] sm:$0xf]
    %v4660 = vld [vmem:[%s3 + $0x18] sm:$0xff]
    %v4661 = vld [vmem:[%s3 + $0x20] sm:$0xf]
    %v4662 = vld [vmem:[%s3 + $0x24] sm:$0xff]
    %v4663 = vld [vmem:[%s3 + $0x2c] sm:$0xf]
    %v4664 = vld [vmem:[%s3 + $0x30] sm:$0xff]
    %v4665 = vld [vmem:[%s3 + $0x38] sm:$0xf]
    %v4666 = vld [vmem:[%s3 + $0x3c] sm:$0xff]
    %v4667 = vld [vmem:[%s3 + $0x44] sm:$0xf]
    %v4668 = vld [vmem:[%s3 + $0x48] sm:$0xff]
    %v4669 = vld [vmem:[%s3 + $0x50] sm:$0xf]
    %v4670 = vld [vmem:[%s3 + $0x54] sm:$0xff]
    %v4671 = vld [vmem:[%s3 + $0x5c] sm:$0xf]
    %v4672 = vld [vmem:[%s3 + $0x60] sm:$0xff]
    %v4673 = vld [vmem:[%s3 + $0x68] sm:$0xf]
    %v4674 = vld [vmem:[%s3 + $0x6c] sm:$0xff]
    %v4675 = vld [vmem:[%s3 + $0x74] sm:$0xf]
    %v4676 = vld [vmem:[%s3 + $0x78] sm:$0xff]
    %v4677 = vld [vmem:[%s3 + $0x80] sm:$0xf]
    %v4678 = vld [vmem:[%s3 + $0x84] sm:$0xff]
    %v4679 = vld [vmem:[%s3 + $0x8c] sm:$0xf]
    %v4680 = vld [vmem:[%s3 + $0x90] sm:$0xff]
    %v4681 = vld [vmem:[%s3 + $0x98] sm:$0xf]
    %v4682 = vld [vmem:[%s3 + $0x9c] sm:$0xff]
    %v4683 = vld [vmem:[%s3 + $0xa4] sm:$0xf]
    %v4684 = vld [vmem:[%s3 + $0xa8] sm:$0xff]
    %v4685 = vld [vmem:[%s3 + $0xb0] sm:$0xf]
    %v4686 = vld [vmem:[%s3 + $0xb4] sm:$0xff]
    %v4687 = vld [vmem:[%s3 + $0xbc] sm:$0xf]
    %v4688 = vld [vmem:[%s3 + $0xc0] sm:$0xff]
    %v4689 = vld [vmem:[%s3 + $0xc8] sm:$0xf]
    %v4690 = vld [vmem:[%s3 + $0xcc] sm:$0xff]
    %v4691 = vld [vmem:[%s3 + $0xd4] sm:$0xf]
    %v4692 = vld [vmem:[%s3 + $0xd8] sm:$0xff]
    %v4693 = vld [vmem:[%s3 + $0xe0] sm:$0xf]
    %v4694 = vld [vmem:[%s3 + $0xe4] sm:$0xff]
    %v4695 = vld [vmem:[%s3 + $0xec] sm:$0xf]
    %v4696 = vld [vmem:[%s3 + $0xf0] sm:$0xff]
    %v4697 = vld [vmem:[%s3 + $0xf8] sm:$0xf]
    %v4698 = vld [vmem:[%s3 + $0xfc] sm:$0xff]
    %v4699 = vld [vmem:[%s3 + $0x104] sm:$0xf]
    %v4700 = vld [vmem:[%s3 + $0x108] sm:$0xff]
    %v4701 = vld [vmem:[%s3 + $0x110] sm:$0xf]
    %v4702 = vld [vmem:[%s3 + $0x114] sm:$0xff]
    %v4703 = vld [vmem:[%s3 + $0x11c] sm:$0xf]
    %v4704 = vld [vmem:[%s3 + $0x120] sm:$0xff]
    %v4705 = vld [vmem:[%s3 + $0x128] sm:$0xf]
    %v4706 = vld [vmem:[%s3 + $0x12c] sm:$0xff]
    %v4707 = vld [vmem:[%s3 + $0x134] sm:$0xf]
    %v4708 = vld [vmem:[%s3 + $0x138] sm:$0xff]
    %v4709 = vld [vmem:[%s3 + $0x140] sm:$0xf]
    %v4710 = vld [vmem:[%s3 + $0x144] sm:$0xff]
    %v4711 = vld [vmem:[%s3 + $0x14c] sm:$0xf]
    %v4712 = vld [vmem:[%s3 + $0x150] sm:$0xff]
    %v4713 = vld [vmem:[%s3 + $0x158] sm:$0xf]
    %v4714 = vld [vmem:[%s3 + $0x15c] sm:$0xff]
    %v4715 = vld [vmem:[%s3 + $0x164] sm:$0xf]
    %v4716 = vld [vmem:[%s3 + $0x168] sm:$0xff]
    %v4717 = vld [vmem:[%s3 + $0x170] sm:$0xf]
    %v4718 = vld [vmem:[%s3 + $0x174] sm:$0xff]
    %v4719 = vld [vmem:[%s3 + $0x17c] sm:$0xf]
    %v4720 = vld [vmem:[%s3 + $0x180] sm:$0xff]
    %v4721 = vld [vmem:[%s3 + $0x188] sm:$0xf]
    %v4722 = vld [vmem:[%s3 + $0x18c] sm:$0xff]
    %v4723 = vld [vmem:[%s3 + $0x194] sm:$0xf]
    %v4724 = vld [vmem:[%s3 + $0x198] sm:$0xff]
    %v4725 = vld [vmem:[%s3 + $0x1a0] sm:$0xf]
    %v4726 = vld [vmem:[%s3 + $0x1a4] sm:$0xff]
    %v4727 = vld [vmem:[%s3 + $0x1ac] sm:$0xf]
    %v4728 = vld [vmem:[%s3 + $0x1b0] sm:$0xff]
    %v4729 = vld [vmem:[%s3 + $0x1b8] sm:$0xf]
    %v4730 = vld [vmem:[%s3 + $0x1bc] sm:$0xff]
    %v4731 = vld [vmem:[%s3 + $0x1c4] sm:$0xf]
    %v4732 = vld [vmem:[%s3 + $0x1c8] sm:$0xff]
    %v4733 = vld [vmem:[%s3 + $0x1d0] sm:$0xf]
    %v4734 = vld [vmem:[%s3 + $0x1d4] sm:$0xff]
    %v4735 = vld [vmem:[%s3 + $0x1dc] sm:$0xf]
    %v4736 = vld [vmem:[%s3 + $0x1e0] sm:$0xff]
    %v4737 = vld [vmem:[%s3 + $0x1e8] sm:$0xf]
    %v4738 = vld [vmem:[%s3 + $0x1ec] sm:$0xff]
    %v4739 = vld [vmem:[%s3 + $0x1f4] sm:$0xf]
    %v4740 = vld [vmem:[%s3 + $0x1f8] sm:$0xff]
    %v4741 = vld [vmem:[%s3 + $0x200] sm:$0xf]
    %v4742 = vld [vmem:[%s3 + $0x204] sm:$0xff]
    %v4743 = vld [vmem:[%s3 + $0x20c] sm:$0xf]
    %v4744 = vld [vmem:[%s3 + $0x210] sm:$0xff]
    %v4745 = vld [vmem:[%s3 + $0x218] sm:$0xf]
    %v4746 = vld [vmem:[%s3 + $0x21c] sm:$0xff]
    %v4747 = vld [vmem:[%s3 + $0x224] sm:$0xf]
    %v4748 = vld [vmem:[%s3 + $0x228] sm:$0xff]
    %v4749 = vld [vmem:[%s3 + $0x230] sm:$0xf]
    %v4750 = vld [vmem:[%s3 + $0x234] sm:$0xff]
    %v4751 = vld [vmem:[%s3 + $0x23c] sm:$0xf]
    %v4752 = vld [vmem:[%s4] sm:$0x7]
    %v4754 = vlaneseq
    %v4755 = vshrl.u32 %v4754, 7
    %v4756 = vsub.s32 0, %v4755
    %v4757 = vrot.slane %v4752, %v4756
    %v4758 = vlaneseq
    %v4759 = vshrl.u32 %v4758, 7
    %v4760 = vsub.s32 1, %v4759
    %v4761 = vrot.slane %v4752, %v4760
    %v4762 = vlaneseq
    %v4763 = vshrl.u32 %v4762, 7
    %v4764 = vsub.s32 2, %v4763
    %v4765 = vrot.slane %v4752, %v4764
    %v4865 = vunpack.c.l.b16 %v4656
    %v4866 = vunpack.c.h.b16 %v4656
    %v4867 = vunpack.c.l.b16 %v4657
    %v4868 = vunpack.c.l.b16 %v4658
    %v4869 = vunpack.c.h.b16 %v4658
    %v4870 = vunpack.c.l.b16 %v4659
    %v4871 = vunpack.c.l.b16 %v4660
    %v4872 = vunpack.c.h.b16 %v4660
    %v4873 = vunpack.c.l.b16 %v4661
    %v4874 = vunpack.c.l.b16 %v4662
    %v4875 = vunpack.c.h.b16 %v4662
    %v4876 = vunpack.c.l.b16 %v4663
    %v4877 = vunpack.c.l.b16 %v4664
    %v4878 = vunpack.c.h.b16 %v4664
    %v4879 = vunpack.c.l.b16 %v4665
    %v4880 = vunpack.c.l.b16 %v4666
    %v4881 = vunpack.c.h.b16 %v4666
    %v4882 = vunpack.c.l.b16 %v4667
    %v4883 = vunpack.c.l.b16 %v4668
    %v4884 = vunpack.c.h.b16 %v4668
    %v4885 = vunpack.c.l.b16 %v4669
    %v4886 = vunpack.c.l.b16 %v4670
    %v4887 = vunpack.c.h.b16 %v4670
    %v4888 = vunpack.c.l.b16 %v4671
    %v4889 = vunpack.c.l.b16 %v4672
    %v4890 = vunpack.c.h.b16 %v4672
    %v4891 = vunpack.c.l.b16 %v4673
    %v4892 = vunpack.c.l.b16 %v4674
    %v4893 = vunpack.c.h.b16 %v4674
    %v4894 = vunpack.c.l.b16 %v4675
    %v4895 = vunpack.c.l.b16 %v4676
    %v4896 = vunpack.c.h.b16 %v4676
    %v4897 = vunpack.c.l.b16 %v4677
    %v4898 = vunpack.c.l.b16 %v4678
    %v4899 = vunpack.c.h.b16 %v4678
    %v4900 = vunpack.c.l.b16 %v4679
    %v4901 = vunpack.c.l.b16 %v4680
    %v4902 = vunpack.c.h.b16 %v4680
    %v4903 = vunpack.c.l.b16 %v4681
    %v4904 = vunpack.c.l.b16 %v4682
    %v4905 = vunpack.c.h.b16 %v4682
    %v4906 = vunpack.c.l.b16 %v4683
    %v4907 = vunpack.c.l.b16 %v4684
    %v4908 = vunpack.c.h.b16 %v4684
    %v4909 = vunpack.c.l.b16 %v4685
    %v4910 = vunpack.c.l.b16 %v4686
    %v4911 = vunpack.c.h.b16 %v4686
    %v4912 = vunpack.c.l.b16 %v4687
    %v4913 = vunpack.c.l.b16 %v4688
    %v4914 = vunpack.c.h.b16 %v4688
    %v4915 = vunpack.c.l.b16 %v4689
    %v4916 = vunpack.c.l.b16 %v4690
    %v4917 = vunpack.c.h.b16 %v4690
    %v4918 = vunpack.c.l.b16 %v4691
    %v4919 = vunpack.c.l.b16 %v4692
    %v4920 = vunpack.c.h.b16 %v4692
    %v4921 = vunpack.c.l.b16 %v4693
    %v4922 = vunpack.c.l.b16 %v4694
    %v4923 = vunpack.c.h.b16 %v4694
    %v4924 = vunpack.c.l.b16 %v4695
    %v4925 = vunpack.c.l.b16 %v4696
    %v4926 = vunpack.c.h.b16 %v4696
    %v4927 = vunpack.c.l.b16 %v4697
    %v4928 = vunpack.c.l.b16 %v4698
    %v4929 = vunpack.c.h.b16 %v4698
    %v4930 = vunpack.c.l.b16 %v4699
    %v4931 = vunpack.c.l.b16 %v4700
    %v4932 = vunpack.c.h.b16 %v4700
    %v4933 = vunpack.c.l.b16 %v4701
    %v4934 = vunpack.c.l.b16 %v4702
    %v4935 = vunpack.c.h.b16 %v4702
    %v4936 = vunpack.c.l.b16 %v4703
    %v4937 = vunpack.c.l.b16 %v4704
    %v4938 = vunpack.c.h.b16 %v4704
    %v4939 = vunpack.c.l.b16 %v4705
    %v4940 = vunpack.c.l.b16 %v4706
    %v4941 = vunpack.c.h.b16 %v4706
    %v4942 = vunpack.c.l.b16 %v4707
    %v4943 = vunpack.c.l.b16 %v4708
    %v4944 = vunpack.c.h.b16 %v4708
    %v4945 = vunpack.c.l.b16 %v4709
    %v4946 = vunpack.c.l.b16 %v4710
    %v4947 = vunpack.c.h.b16 %v4710
    %v4948 = vunpack.c.l.b16 %v4711
    %v4949 = vunpack.c.l.b16 %v4712
    %v4950 = vunpack.c.h.b16 %v4712
    %v4951 = vunpack.c.l.b16 %v4713
    %v4952 = vunpack.c.l.b16 %v4714
    %v4953 = vunpack.c.h.b16 %v4714
    %v4954 = vunpack.c.l.b16 %v4715
    %v4955 = vunpack.c.l.b16 %v4716
    %v4956 = vunpack.c.h.b16 %v4716
    %v4957 = vunpack.c.l.b16 %v4717
    %v4958 = vunpack.c.l.b16 %v4718
    %v4959 = vunpack.c.h.b16 %v4718
    %v4960 = vunpack.c.l.b16 %v4719
    %v4961 = vunpack.c.l.b16 %v4720
    %v4962 = vunpack.c.h.b16 %v4720
    %v4963 = vunpack.c.l.b16 %v4721
    %v4964 = vunpack.c.l.b16 %v4722
    %v4965 = vunpack.c.h.b16 %v4722
    %v4966 = vunpack.c.l.b16 %v4723
    %v4967 = vunpack.c.l.b16 %v4724
    %v4968 = vunpack.c.h.b16 %v4724
    %v4969 = vunpack.c.l.b16 %v4725
    %v4970 = vunpack.c.l.b16 %v4726
    %v4971 = vunpack.c.h.b16 %v4726
    %v4972 = vunpack.c.l.b16 %v4727
    %v4973 = vunpack.c.l.b16 %v4728
    %v4974 = vunpack.c.h.b16 %v4728
    %v4975 = vunpack.c.l.b16 %v4729
    %v4976 = vunpack.c.l.b16 %v4730
    %v4977 = vunpack.c.h.b16 %v4730
    %v4978 = vunpack.c.l.b16 %v4731
    %v4979 = vunpack.c.l.b16 %v4732
    %v4980 = vunpack.c.h.b16 %v4732
    %v4981 = vunpack.c.l.b16 %v4733
    %v4982 = vunpack.c.l.b16 %v4734
    %v4983 = vunpack.c.h.b16 %v4734
    %v4984 = vunpack.c.l.b16 %v4735
    %v4985 = vunpack.c.l.b16 %v4736
    %v4986 = vunpack.c.h.b16 %v4736
    %v4987 = vunpack.c.l.b16 %v4737
    %v4988 = vunpack.c.l.b16 %v4738
    %v4989 = vunpack.c.h.b16 %v4738
    %v4990 = vunpack.c.l.b16 %v4739
    %v4991 = vunpack.c.l.b16 %v4740
    %v4992 = vunpack.c.h.b16 %v4740
    %v4993 = vunpack.c.l.b16 %v4741
    %v4994 = vunpack.c.l.b16 %v4742
    %v4995 = vunpack.c.h.b16 %v4742
    %v4996 = vunpack.c.l.b16 %v4743
    %v4997 = vunpack.c.l.b16 %v4744
    %v4998 = vunpack.c.h.b16 %v4744
    %v4999 = vunpack.c.l.b16 %v4745
    %v5000 = vunpack.c.l.b16 %v4746
    %v5001 = vunpack.c.h.b16 %v4746
    %v5002 = vunpack.c.l.b16 %v4747
    %v5003 = vunpack.c.l.b16 %v4748
    %v5004 = vunpack.c.h.b16 %v4748
    %v5005 = vunpack.c.l.b16 %v4749
    %v5006 = vunpack.c.l.b16 %v4750
    %v5007 = vunpack.c.h.b16 %v4750
    %v5008 = vunpack.c.l.b16 %v4751
    %v5009 = vpack.c.b16 %v4868, %v4865
    %v5010 = vpack.c.b16 %v4869, %v4866
    %v5011 = vpack.c.b16 %v4870, %v4867
    %v5012 = vpack.c.b16 %v4874, %v4871
    %v5013 = vpack.c.b16 %v4875, %v4872
    %v5014 = vpack.c.b16 %v4876, %v4873
    %v5015 = vpack.c.b16 %v4880, %v4877
    %v5016 = vpack.c.b16 %v4881, %v4878
    %v5017 = vpack.c.b16 %v4882, %v4879
    %v5018 = vpack.c.b16 %v4886, %v4883
    %v5019 = vpack.c.b16 %v4887, %v4884
    %v5020 = vpack.c.b16 %v4888, %v4885
    %v5021 = vpack.c.b16 %v4892, %v4889
    %v5022 = vpack.c.b16 %v4893, %v4890
    %v5023 = vpack.c.b16 %v4894, %v4891
    %v5024 = vpack.c.b16 %v4898, %v4895
    %v5025 = vpack.c.b16 %v4899, %v4896
    %v5026 = vpack.c.b16 %v4900, %v4897
    %v5027 = vpack.c.b16 %v4904, %v4901
    %v5028 = vpack.c.b16 %v4905, %v4902
    %v5029 = vpack.c.b16 %v4906, %v4903
    %v5030 = vpack.c.b16 %v4910, %v4907
    %v5031 = vpack.c.b16 %v4911, %v4908
    %v5032 = vpack.c.b16 %v4912, %v4909
    %v5033 = vpack.c.b16 %v4916, %v4913
    %v5034 = vpack.c.b16 %v4917, %v4914
    %v5035 = vpack.c.b16 %v4918, %v4915
    %v5036 = vpack.c.b16 %v4922, %v4919
    %v5037 = vpack.c.b16 %v4923, %v4920
    %v5038 = vpack.c.b16 %v4924, %v4921
    %v5039 = vpack.c.b16 %v4928, %v4925
    %v5040 = vpack.c.b16 %v4929, %v4926
    %v5041 = vpack.c.b16 %v4930, %v4927
    %v5042 = vpack.c.b16 %v4934, %v4931
    %v5043 = vpack.c.b16 %v4935, %v4932
    %v5044 = vpack.c.b16 %v4936, %v4933
    %v5045 = vpack.c.b16 %v4940, %v4937
    %v5046 = vpack.c.b16 %v4941, %v4938
    %v5047 = vpack.c.b16 %v4942, %v4939
    %v5048 = vpack.c.b16 %v4946, %v4943
    %v5049 = vpack.c.b16 %v4947, %v4944
    %v5050 = vpack.c.b16 %v4948, %v4945
    %v5051 = vpack.c.b16 %v4952, %v4949
    %v5052 = vpack.c.b16 %v4953, %v4950
    %v5053 = vpack.c.b16 %v4954, %v4951
    %v5054 = vpack.c.b16 %v4958, %v4955
    %v5055 = vpack.c.b16 %v4959, %v4956
    %v5056 = vpack.c.b16 %v4960, %v4957
    %v5057 = vpack.c.b16 %v4964, %v4961
    %v5058 = vpack.c.b16 %v4965, %v4962
    %v5059 = vpack.c.b16 %v4966, %v4963
    %v5060 = vpack.c.b16 %v4970, %v4967
    %v5061 = vpack.c.b16 %v4971, %v4968
    %v5062 = vpack.c.b16 %v4972, %v4969
    %v5063 = vpack.c.b16 %v4976, %v4973
    %v5064 = vpack.c.b16 %v4977, %v4974
    %v5065 = vpack.c.b16 %v4978, %v4975
    %v5066 = vpack.c.b16 %v4982, %v4979
    %v5067 = vpack.c.b16 %v4983, %v4980
    %v5068 = vpack.c.b16 %v4984, %v4981
    %v5069 = vpack.c.b16 %v4988, %v4985
    %v5070 = vpack.c.b16 %v4989, %v4986
    %v5071 = vpack.c.b16 %v4990, %v4987
    %v5072 = vpack.c.b16 %v4994, %v4991
    %v5073 = vpack.c.b16 %v4995, %v4992
    %v5074 = vpack.c.b16 %v4996, %v4993
    %v5075 = vpack.c.b16 %v5000, %v4997
    %v5076 = vpack.c.b16 %v5001, %v4998
    %v5077 = vpack.c.b16 %v5002, %v4999
    %v5078 = vpack.c.b16 %v5006, %v5003
    %v5079 = vpack.c.b16 %v5007, %v5004
    %v5080 = vpack.c.b16 %v5008, %v5005
    %5153 = vmatprep.subr.bf16.mxu0 %v5031
    %5154 = vmatpush1.bf16.msra.mxu0 %v5030
    %5155 = vmatprep.subr.bf16.mxu0 %v5028
    %5156 = vmatpush1.bf16.msra.mxu0 %v5027
    %5157 = vmatprep.subr.bf16.mxu0 %v5025
    %5158 = vmatpush1.bf16.msra.mxu0 %v5024
    %5159 = vmatprep.subr.bf16.mxu0 %v5022
    %5160 = vmatpush1.bf16.msra.mxu0 %v5021
    %5161 = vmatprep.subr.bf16.mxu0 %v5019
    %5162 = vmatpush1.bf16.msra.mxu0 %v5018
    %5163 = vmatprep.subr.bf16.mxu0 %v5016
    %5164 = vmatpush1.bf16.msra.mxu0 %v5015
    %5165 = vmatprep.subr.bf16.mxu0 %v5013
    %5166 = vmatpush1.bf16.msra.mxu0 %v5012
    %5167 = vmatprep.subr.bf16.mxu0 %v5010
    %5168 = vmatpush1.bf16.msra.mxu0 %v5009
    %5169 = vmatprep.subr.bf16.mxu0 %v5055
    %5170 = vmatpush2.bf16.msra.mxu0 %v5054
    %5171 = vmatprep.subr.bf16.mxu0 %v5052
    %5172 = vmatpush2.bf16.msra.mxu0 %v5051
    %5173 = vmatprep.subr.bf16.mxu0 %v5049
    %5174 = vmatpush2.bf16.msra.mxu0 %v5048
    %5175 = vmatprep.subr.bf16.mxu0 %v5046
    %5176 = vmatpush2.bf16.msra.mxu0 %v5045
    %5177 = vmatprep.subr.bf16.mxu0 %v5043
    %5178 = vmatpush2.bf16.msra.mxu0 %v5042
    %5179 = vmatprep.subr.bf16.mxu0 %v5040
    %5180 = vmatpush2.bf16.msra.mxu0 %v5039
    %5181 = vmatprep.subr.bf16.mxu0 %v5037
    %5182 = vmatpush2.bf16.msra.mxu0 %v5036
    %5183 = vmatprep.subr.bf16.mxu0 %v5034
    %5184 = vmatpush2.bf16.msra.mxu0 %v5033
    %5185 = vmatprep.mubr.bf16.mxu0 %v4561
    %5186 = vmatmul.mubr.bf16.gmra.mxu0 %v4560
    %v5187 = vpop.f32.mrf.mxu0
    %v5188 = vadd.f32 %v4757, %v5187
    %v5189 = vpop.f32.mrf.mxu0
    %v5190 = vadd.f32 %v4761, %v5189
    %v5191 = vpop.f32.mrf.mxu0
    %v5192 = vadd.f32 %v4757, %v5191
    %v5193 = vpop.f32.mrf.mxu0
    %v5194 = vadd.f32 %v4761, %v5193
    %5195 = vmatprep.mubr.bf16.mxu0 %v4564
    %5196 = vmatmul.mubr.bf16.gmra.mxu0 %v4563
    %v5197 = vpop.f32.mrf.mxu0
    %v5198 = vadd.f32 %v4757, %v5197
    %v5199 = vpop.f32.mrf.mxu0
    %v5200 = vadd.f32 %v4761, %v5199
    %v5201 = vpop.f32.mrf.mxu0
    %v5202 = vadd.f32 %v4757, %v5201
    %v5203 = vpop.f32.mrf.mxu0
    %v5204 = vadd.f32 %v4761, %v5203
    %5205 = vmatprep.mubr.bf16.mxu0 %v4567
    %5206 = vmatmul.mubr.bf16.gmra.mxu0 %v4566
    %v5207 = vpop.f32.mrf.mxu0
    %v5208 = vadd.f32 %v4757, %v5207
    %v5209 = vpop.f32.mrf.mxu0
    %v5210 = vadd.f32 %v4761, %v5209
    %v5211 = vpop.f32.mrf.mxu0
    %v5212 = vadd.f32 %v4757, %v5211
    %v5213 = vpop.f32.mrf.mxu0
    %v5214 = vadd.f32 %v4761, %v5213
    %5215 = vmatprep.mubr.bf16.mxu0 %v4570
    %5216 = vmatmul.mubr.bf16.gmra.mxu0 %v4569
    %v5217 = vpop.f32.mrf.mxu0
    %v5218 = vadd.f32 %v4757, %v5217
    %v5219 = vpop.f32.mrf.mxu0
    %v5220 = vadd.f32 %v4761, %v5219
    %v5221 = vpop.f32.mrf.mxu0
    %v5222 = vadd.f32 %v4757, %v5221
    %v5223 = vpop.f32.mrf.mxu0
    %v5224 = vadd.f32 %v4761, %v5223
    %5225 = vmatprep.mubr.bf16.mxu0 %v4573
    %5226 = vmatmul.mubr.bf16.gmra.mxu0 %v4572
    %v5227 = vpop.f32.mrf.mxu0
    %v5228 = vadd.f32 %v4757, %v5227
    %v5229 = vpop.f32.mrf.mxu0
    %v5230 = vadd.f32 %v4761, %v5229
    %v5231 = vpop.f32.mrf.mxu0
    %v5232 = vadd.f32 %v4757, %v5231
    %v5233 = vpop.f32.mrf.mxu0
    %v5234 = vadd.f32 %v4761, %v5233
    %5235 = vmatprep.mubr.bf16.mxu0 %v4576
    %5236 = vmatmul.mubr.bf16.gmra.mxu0 %v4575
    %v5237 = vpop.f32.mrf.mxu0
    %v5238 = vadd.f32 %v4757, %v5237
    %v5239 = vpop.f32.mrf.mxu0
    %v5240 = vadd.f32 %v4761, %v5239
    %v5241 = vpop.f32.mrf.mxu0
    %v5242 = vadd.f32 %v4757, %v5241
    %v5243 = vpop.f32.mrf.mxu0
    %v5244 = vadd.f32 %v4761, %v5243
    %5245 = vmatprep.mubr.bf16.mxu0 %v4579
    %5246 = vmatmul.mubr.bf16.gmra.mxu0 %v4578
    %v5247 = vpop.f32.mrf.mxu0
    %v5248 = vadd.f32 %v4757, %v5247
    %v5249 = vpop.f32.mrf.mxu0
    %v5250 = vadd.f32 %v4761, %v5249
    %v5251 = vpop.f32.mrf.mxu0
    %v5252 = vadd.f32 %v4757, %v5251
    %v5253 = vpop.f32.mrf.mxu0
    %v5254 = vadd.f32 %v4761, %v5253
    %5255 = vmatprep.mubr.bf16.mxu0 %v4582
    %5256 = vmatmul.mubr.bf16.gmra.mxu0 %v4581
    %v5257 = vpop.f32.mrf.mxu0
    %v5258 = vadd.f32 %v4757, %v5257
    %v5259 = vpop.f32.mrf.mxu0
    %v5260 = vadd.f32 %v4761, %v5259
    %v5261 = vpop.f32.mrf.mxu0
    %v5262 = vadd.f32 %v4757, %v5261
    %v5263 = vpop.f32.mrf.mxu0
    %v5264 = vadd.f32 %v4761, %v5263
    %5265 = vmatprep.mubr.bf16.mxu0 %v4585
    %5266 = vmatmul.mubr.bf16.gmra.mxu0 %v4584
    %v5267 = vpop.f32.mrf.mxu0
    %v5268 = vadd.f32 %v4757, %v5267
    %v5269 = vpop.f32.mrf.mxu0
    %v5270 = vadd.f32 %v4761, %v5269
    %v5271 = vpop.f32.mrf.mxu0
    %v5272 = vadd.f32 %v4757, %v5271
    %v5273 = vpop.f32.mrf.mxu0
    %v5274 = vadd.f32 %v4761, %v5273
    %5275 = vmatprep.mubr.bf16.mxu0 %v4588
    %5276 = vmatmul.mubr.bf16.gmra.mxu0 %v4587
    %v5277 = vpop.f32.mrf.mxu0
    %v5278 = vadd.f32 %v4757, %v5277
    %v5279 = vpop.f32.mrf.mxu0
    %v5280 = vadd.f32 %v4761, %v5279
    %v5281 = vpop.f32.mrf.mxu0
    %v5282 = vadd.f32 %v4757, %v5281
    %v5283 = vpop.f32.mrf.mxu0
    %v5284 = vadd.f32 %v4761, %v5283
    %5285 = vmatprep.mubr.bf16.mxu0 %v4591
    %5286 = vmatmul.mubr.bf16.gmra.mxu0 %v4590
    %v5287 = vpop.f32.mrf.mxu0
    %v5288 = vadd.f32 %v4757, %v5287
    %v5289 = vpop.f32.mrf.mxu0
    %v5290 = vadd.f32 %v4761, %v5289
    %v5291 = vpop.f32.mrf.mxu0
    %v5292 = vadd.f32 %v4757, %v5291
    %v5293 = vpop.f32.mrf.mxu0
    %v5294 = vadd.f32 %v4761, %v5293
    %5295 = vmatprep.mubr.bf16.mxu0 %v4594
    %5296 = vmatmul.mubr.bf16.gmra.mxu0 %v4593
    %v5297 = vpop.f32.mrf.mxu0
    %v5298 = vadd.f32 %v4757, %v5297
    %v5299 = vpop.f32.mrf.mxu0
    %v5300 = vadd.f32 %v4761, %v5299
    %v5301 = vpop.f32.mrf.mxu0
    %v5302 = vadd.f32 %v4757, %v5301
    %v5303 = vpop.f32.mrf.mxu0
    %v5304 = vadd.f32 %v4761, %v5303
    %5305 = vmatprep.mubr.bf16.mxu0 %v4597
    %5306 = vmatmul.mubr.bf16.gmra.mxu0 %v4596
    %v5307 = vpop.f32.mrf.mxu0
    %v5308 = vadd.f32 %v4757, %v5307
    %v5309 = vpop.f32.mrf.mxu0
    %v5310 = vadd.f32 %v4761, %v5309
    %v5311 = vpop.f32.mrf.mxu0
    %v5312 = vadd.f32 %v4757, %v5311
    %v5313 = vpop.f32.mrf.mxu0
    %v5314 = vadd.f32 %v4761, %v5313
    %5315 = vmatprep.mubr.bf16.mxu0 %v4600
    %5316 = vmatmul.mubr.bf16.gmra.mxu0 %v4599
    %v5317 = vpop.f32.mrf.mxu0
    %v5318 = vadd.f32 %v4757, %v5317
    %v5319 = vpop.f32.mrf.mxu0
    %v5320 = vadd.f32 %v4761, %v5319
    %v5321 = vpop.f32.mrf.mxu0
    %v5322 = vadd.f32 %v4757, %v5321
    %v5323 = vpop.f32.mrf.mxu0
    %v5324 = vadd.f32 %v4761, %v5323
    %5325 = vmatprep.mubr.bf16.mxu0 %v4603
    %5326 = vmatmul.mubr.bf16.gmra.mxu0 %v4602
    %v5327 = vpop.f32.mrf.mxu0
    %v5328 = vadd.f32 %v4757, %v5327
    %v5329 = vpop.f32.mrf.mxu0
    %v5330 = vadd.f32 %v4761, %v5329
    %v5331 = vpop.f32.mrf.mxu0
    %v5332 = vadd.f32 %v4757, %v5331
    %v5333 = vpop.f32.mrf.mxu0
    %v5334 = vadd.f32 %v4761, %v5333
    %5335 = vmatprep.mubr.bf16.mxu0 %v4606
    %5336 = vmatmul.mubr.bf16.gmra.mxu0 %v4605
    %v5337 = vpop.f32.mrf.mxu0
    %v5338 = vadd.f32 %v4757, %v5337
    %v5339 = vpop.f32.mrf.mxu0
    %v5340 = vadd.f32 %v4761, %v5339
    %v5341 = vpop.f32.mrf.mxu0
    %v5342 = vadd.f32 %v4757, %v5341
    %v5343 = vpop.f32.mrf.mxu0
    %v5344 = vadd.f32 %v4761, %v5343
    %5345 = vmatprep.mubr.bf16.mxu0 %v4609
    %5346 = vmatmul.mubr.bf16.gmra.mxu0 %v4608
    %v5347 = vpop.f32.mrf.mxu0
    %v5348 = vadd.f32 %v4757, %v5347
    %v5349 = vpop.f32.mrf.mxu0
    %v5350 = vadd.f32 %v4761, %v5349
    %v5351 = vpop.f32.mrf.mxu0
    %v5352 = vadd.f32 %v4757, %v5351
    %v5353 = vpop.f32.mrf.mxu0
    %v5354 = vadd.f32 %v4761, %v5353
    %5355 = vmatprep.mubr.bf16.mxu0 %v4612
    %5356 = vmatmul.mubr.bf16.gmra.mxu0 %v4611
    %v5357 = vpop.f32.mrf.mxu0
    %v5358 = vadd.f32 %v4757, %v5357
    %v5359 = vpop.f32.mrf.mxu0
    %v5360 = vadd.f32 %v4761, %v5359
    %v5361 = vpop.f32.mrf.mxu0
    %v5362 = vadd.f32 %v4757, %v5361
    %v5363 = vpop.f32.mrf.mxu0
    %v5364 = vadd.f32 %v4761, %v5363
    %5365 = vmatprep.mubr.bf16.mxu0 %v4615
    %5366 = vmatmul.mubr.bf16.gmra.mxu0 %v4614
    %v5367 = vpop.f32.mrf.mxu0
    %v5368 = vadd.f32 %v4757, %v5367
    %v5369 = vpop.f32.mrf.mxu0
    %v5370 = vadd.f32 %v4761, %v5369
    %v5371 = vpop.f32.mrf.mxu0
    %v5372 = vadd.f32 %v4757, %v5371
    %v5373 = vpop.f32.mrf.mxu0
    %v5374 = vadd.f32 %v4761, %v5373
    %5375 = vmatprep.mubr.bf16.mxu0 %v4618
    %5376 = vmatmul.mubr.bf16.gmra.mxu0 %v4617
    %v5377 = vpop.f32.mrf.mxu0
    %v5378 = vadd.f32 %v4757, %v5377
    %v5379 = vpop.f32.mrf.mxu0
    %v5380 = vadd.f32 %v4761, %v5379
    %v5381 = vpop.f32.mrf.mxu0
    %v5382 = vadd.f32 %v4757, %v5381
    %v5383 = vpop.f32.mrf.mxu0
    %v5384 = vadd.f32 %v4761, %v5383
    %5385 = vmatprep.mubr.bf16.mxu0 %v4621
    %5386 = vmatmul.mubr.bf16.gmra.mxu0 %v4620
    %v5387 = vpop.f32.mrf.mxu0
    %v5388 = vadd.f32 %v4757, %v5387
    %v5389 = vpop.f32.mrf.mxu0
    %v5390 = vadd.f32 %v4761, %v5389
    %v5391 = vpop.f32.mrf.mxu0
    %v5392 = vadd.f32 %v4757, %v5391
    %v5393 = vpop.f32.mrf.mxu0
    %v5394 = vadd.f32 %v4761, %v5393
    %5395 = vmatprep.mubr.bf16.mxu0 %v4624
    %5396 = vmatmul.mubr.bf16.gmra.mxu0 %v4623
    %v5397 = vpop.f32.mrf.mxu0
    %v5398 = vadd.f32 %v4757, %v5397
    %v5399 = vpop.f32.mrf.mxu0
    %v5400 = vadd.f32 %v4761, %v5399
    %v5401 = vpop.f32.mrf.mxu0
    %v5402 = vadd.f32 %v4757, %v5401
    %v5403 = vpop.f32.mrf.mxu0
    %v5404 = vadd.f32 %v4761, %v5403
    %5405 = vmatprep.mubr.bf16.mxu0 %v4627
    %5406 = vmatmul.mubr.bf16.gmra.mxu0 %v4626
    %v5407 = vpop.f32.mrf.mxu0
    %v5408 = vadd.f32 %v4757, %v5407
    %v5409 = vpop.f32.mrf.mxu0
    %v5410 = vadd.f32 %v4761, %v5409
    %v5411 = vpop.f32.mrf.mxu0
    %v5412 = vadd.f32 %v4757, %v5411
    %v5413 = vpop.f32.mrf.mxu0
    %v5414 = vadd.f32 %v4761, %v5413
    %5415 = vmatprep.mubr.bf16.mxu0 %v4630
    %5416 = vmatmul.mubr.bf16.gmra.mxu0 %v4629
    %v5417 = vpop.f32.mrf.mxu0
    %v5418 = vadd.f32 %v4757, %v5417
    %v5419 = vpop.f32.mrf.mxu0
    %v5420 = vadd.f32 %v4761, %v5419
    %v5421 = vpop.f32.mrf.mxu0
    %v5422 = vadd.f32 %v4757, %v5421
    %v5423 = vpop.f32.mrf.mxu0
    %v5424 = vadd.f32 %v4761, %v5423
    %5425 = vmatprep.mubr.bf16.mxu0 %v4633
    %5426 = vmatmul.mubr.bf16.gmra.mxu0 %v4632
    %v5427 = vpop.f32.mrf.mxu0
    %v5428 = vadd.f32 %v4757, %v5427
    %v5429 = vpop.f32.mrf.mxu0
    %v5430 = vadd.f32 %v4761, %v5429
    %v5431 = vpop.f32.mrf.mxu0
    %v5432 = vadd.f32 %v4757, %v5431
    %v5433 = vpop.f32.mrf.mxu0
    %v5434 = vadd.f32 %v4761, %v5433
    %5435 = vmatprep.mubr.bf16.mxu0 %v4636
    %5436 = vmatmul.mubr.bf16.gmra.mxu0 %v4635
    %v5437 = vpop.f32.mrf.mxu0
    %v5438 = vadd.f32 %v4757, %v5437
    %v5439 = vpop.f32.mrf.mxu0
    %v5440 = vadd.f32 %v4761, %v5439
    %v5441 = vpop.f32.mrf.mxu0
    %v5442 = vadd.f32 %v4757, %v5441
    %v5443 = vpop.f32.mrf.mxu0
    %v5444 = vadd.f32 %v4761, %v5443
    %5445 = vmatprep.mubr.bf16.mxu0 %v4639
    %5446 = vmatmul.mubr.bf16.gmra.mxu0 %v4638
    %v5447 = vpop.f32.mrf.mxu0
    %v5448 = vadd.f32 %v4757, %v5447
    %v5449 = vpop.f32.mrf.mxu0
    %v5450 = vadd.f32 %v4761, %v5449
    %v5451 = vpop.f32.mrf.mxu0
    %v5452 = vadd.f32 %v4757, %v5451
    %v5453 = vpop.f32.mrf.mxu0
    %v5454 = vadd.f32 %v4761, %v5453
    %5455 = vmatprep.mubr.bf16.mxu0 %v4642
    %5456 = vmatmul.mubr.bf16.gmra.mxu0 %v4641
    %v5457 = vpop.f32.mrf.mxu0
    %v5458 = vadd.f32 %v4757, %v5457
    %v5459 = vpop.f32.mrf.mxu0
    %v5460 = vadd.f32 %v4761, %v5459
    %v5461 = vpop.f32.mrf.mxu0
    %v5462 = vadd.f32 %v4757, %v5461
    %v5463 = vpop.f32.mrf.mxu0
    %v5464 = vadd.f32 %v4761, %v5463
    %5465 = vmatprep.mubr.bf16.mxu0 %v4645
    %5466 = vmatmul.mubr.bf16.gmra.mxu0 %v4644
    %v5467 = vpop.f32.mrf.mxu0
    %v5468 = vadd.f32 %v4757, %v5467
    %v5469 = vpop.f32.mrf.mxu0
    %v5470 = vadd.f32 %v4761, %v5469
    %v5471 = vpop.f32.mrf.mxu0
    %v5472 = vadd.f32 %v4757, %v5471
    %v5473 = vpop.f32.mrf.mxu0
    %v5474 = vadd.f32 %v4761, %v5473
    %5475 = vmatprep.mubr.bf16.mxu0 %v4648
    %5476 = vmatmul.mubr.bf16.gmra.mxu0 %v4647
    %v5477 = vpop.f32.mrf.mxu0
    %v5478 = vadd.f32 %v4757, %v5477
    %v5479 = vpop.f32.mrf.mxu0
    %v5480 = vadd.f32 %v4761, %v5479
    %v5481 = vpop.f32.mrf.mxu0
    %v5482 = vadd.f32 %v4757, %v5481
    %v5483 = vpop.f32.mrf.mxu0
    %v5484 = vadd.f32 %v4761, %v5483
    %5485 = vmatprep.mubr.bf16.mxu0 %v4651
    %5486 = vmatmul.mubr.bf16.gmra.mxu0 %v4650
    %v5487 = vpop.f32.mrf.mxu0
    %v5488 = vadd.f32 %v4757, %v5487
    %v5489 = vpop.f32.mrf.mxu0
    %v5490 = vadd.f32 %v4761, %v5489
    %v5491 = vpop.f32.mrf.mxu0
    %v5492 = vadd.f32 %v4757, %v5491
    %v5493 = vpop.f32.mrf.mxu0
    %v5494 = vadd.f32 %v4761, %v5493
    %5495 = vmatprep.mubr.bf16.mxu0 %v4654
    %5496 = vmatmul.mubr.bf16.gmra.mxu0 %v4653
    %v5497 = vpop.f32.mrf.mxu0
    %v5498 = vadd.f32 %v4757, %v5497
    %v5499 = vpop.f32.mrf.mxu0
    %v5500 = vadd.f32 %v4761, %v5499
    %v5501 = vpop.f32.mrf.mxu0
    %v5502 = vadd.f32 %v4757, %v5501
    %v5503 = vpop.f32.mrf.mxu0
    %v5504 = vadd.f32 %v4761, %v5503
    %5505 = vdwg.mxu0
    %5506 = vmatprep.subr.bf16.mxu0 %v5079
    %5507 = vmatpush1.bf16.msra.mxu0 %v5078
    %5508 = vmatprep.subr.bf16.mxu0 %v5076
    %5509 = vmatpush1.bf16.msra.mxu0 %v5075
    %5510 = vmatprep.subr.bf16.mxu0 %v5073
    %5511 = vmatpush1.bf16.msra.mxu0 %v5072
    %5512 = vmatprep.subr.bf16.mxu0 %v5070
    %5513 = vmatpush1.bf16.msra.mxu0 %v5069
    %5514 = vmatprep.subr.bf16.mxu0 %v5067
    %5515 = vmatpush1.bf16.msra.mxu0 %v5066
    %5516 = vmatprep.subr.bf16.mxu0 %v5064
    %5517 = vmatpush1.bf16.msra.mxu0 %v5063
    %5518 = vmatprep.subr.bf16.mxu0 %v5061
    %5519 = vmatpush1.bf16.msra.mxu0 %v5060
    %5520 = vmatprep.subr.bf16.mxu0 %v5058
    %5521 = vmatpush1.bf16.msra.mxu0 %v5057
    %5522 = vmatprep.subr.bf16.mxu0 0
    %5523 = vmatpush2.bf16.msra.mxu0 0
    %5524 = vmatprep.subr.bf16.mxu0 0
    %5525 = vmatpush2.bf16.msra.mxu0 0
    %5526 = vmatprep.subr.bf16.mxu0 0
    %5527 = vmatpush2.bf16.msra.mxu0 0
    %5528 = vmatprep.subr.bf16.mxu0 0
    %5529 = vmatpush2.bf16.msra.mxu0 0
    %5530 = vmatprep.subr.bf16.mxu0 0
    %5531 = vmatpush2.bf16.msra.mxu0 0
    %5532 = vmatprep.subr.bf16.mxu0 0
    %5533 = vmatpush2.bf16.msra.mxu0 0
    %5534 = vmatprep.subr.bf16.mxu0 0
    %5535 = vmatpush2.bf16.msra.mxu0 0
    %5536 = vmatprep.subr.bf16.mxu0 0
    %5537 = vmatpush2.bf16.msra.mxu0 0
    %5538 = vmatprep.mubr.bf16.mxu0 0
    %5539 = vmatmul.mubr.bf16.gmra.mxu0 %v4562
    %v5540 = vpop.f32.mrf.mxu0
    %v5541 = vadd.f32 %v5188, %v5540
    %v5542 = vpop.f32.mrf.mxu0
    %v5543 = vadd.f32 %v5190, %v5542
    %v5544 = vpop.f32.mrf.mxu0
    %v5545 = vadd.f32 %v5192, %v5544
    %v5546 = vpop.f32.mrf.mxu0
    %v5547 = vadd.f32 %v5194, %v5546
    %5548 = vmatprep.mubr.bf16.mxu0 0
    %5549 = vmatmul.mubr.bf16.gmra.mxu0 %v4565
    %v5550 = vpop.f32.mrf.mxu0
    %v5551 = vadd.f32 %v5198, %v5550
    %v5552 = vpop.f32.mrf.mxu0
    %v5553 = vadd.f32 %v5200, %v5552
    %v5554 = vpop.f32.mrf.mxu0
    %v5555 = vadd.f32 %v5202, %v5554
    %v5556 = vpop.f32.mrf.mxu0
    %v5557 = vadd.f32 %v5204, %v5556
    %5558 = vmatprep.mubr.bf16.mxu0 0
    %5559 = vmatmul.mubr.bf16.gmra.mxu0 %v4568
    %v5560 = vpop.f32.mrf.mxu0
    %v5561 = vadd.f32 %v5208, %v5560
    %v5562 = vpop.f32.mrf.mxu0
    %v5563 = vadd.f32 %v5210, %v5562
    %v5564 = vpop.f32.mrf.mxu0
    %v5565 = vadd.f32 %v5212, %v5564
    %v5566 = vpop.f32.mrf.mxu0
    %v5567 = vadd.f32 %v5214, %v5566
    %5568 = vmatprep.mubr.bf16.mxu0 0
    %5569 = vmatmul.mubr.bf16.gmra.mxu0 %v4571
    %v5570 = vpop.f32.mrf.mxu0
    %v5571 = vadd.f32 %v5218, %v5570
    %v5572 = vpop.f32.mrf.mxu0
    %v5573 = vadd.f32 %v5220, %v5572
    %v5574 = vpop.f32.mrf.mxu0
    %v5575 = vadd.f32 %v5222, %v5574
    %v5576 = vpop.f32.mrf.mxu0
    %v5577 = vadd.f32 %v5224, %v5576
    %5578 = vmatprep.mubr.bf16.mxu0 0
    %5579 = vmatmul.mubr.bf16.gmra.mxu0 %v4574
    %v5580 = vpop.f32.mrf.mxu0
    %v5581 = vadd.f32 %v5228, %v5580
    %v5582 = vpop.f32.mrf.mxu0
    %v5583 = vadd.f32 %v5230, %v5582
    %v5584 = vpop.f32.mrf.mxu0
    %v5585 = vadd.f32 %v5232, %v5584
    %v5586 = vpop.f32.mrf.mxu0
    %v5587 = vadd.f32 %v5234, %v5586
    %5588 = vmatprep.mubr.bf16.mxu0 0
    %5589 = vmatmul.mubr.bf16.gmra.mxu0 %v4577
    %v5590 = vpop.f32.mrf.mxu0
    %v5591 = vadd.f32 %v5238, %v5590
    %v5592 = vpop.f32.mrf.mxu0
    %v5593 = vadd.f32 %v5240, %v5592
    %v5594 = vpop.f32.mrf.mxu0
    %v5595 = vadd.f32 %v5242, %v5594
    %v5596 = vpop.f32.mrf.mxu0
    %v5597 = vadd.f32 %v5244, %v5596
    %5598 = vmatprep.mubr.bf16.mxu0 0
    %5599 = vmatmul.mubr.bf16.gmra.mxu0 %v4580
    %v5600 = vpop.f32.mrf.mxu0
    %v5601 = vadd.f32 %v5248, %v5600
    %v5602 = vpop.f32.mrf.mxu0
    %v5603 = vadd.f32 %v5250, %v5602
    %v5604 = vpop.f32.mrf.mxu0
    %v5605 = vadd.f32 %v5252, %v5604
    %v5606 = vpop.f32.mrf.mxu0
    %v5607 = vadd.f32 %v5254, %v5606
    %5608 = vmatprep.mubr.bf16.mxu0 0
    %5609 = vmatmul.mubr.bf16.gmra.mxu0 %v4583
    %v5610 = vpop.f32.mrf.mxu0
    %v5611 = vadd.f32 %v5258, %v5610
    %v5612 = vpop.f32.mrf.mxu0
    %v5613 = vadd.f32 %v5260, %v5612
    %v5614 = vpop.f32.mrf.mxu0
    %v5615 = vadd.f32 %v5262, %v5614
    %v5616 = vpop.f32.mrf.mxu0
    %v5617 = vadd.f32 %v5264, %v5616
    %5618 = vmatprep.mubr.bf16.mxu0 0
    %5619 = vmatmul.mubr.bf16.gmra.mxu0 %v4586
    %v5620 = vpop.f32.mrf.mxu0
    %v5621 = vadd.f32 %v5268, %v5620
    %v5622 = vpop.f32.mrf.mxu0
    %v5623 = vadd.f32 %v5270, %v5622
    %v5624 = vpop.f32.mrf.mxu0
    %v5625 = vadd.f32 %v5272, %v5624
    %v5626 = vpop.f32.mrf.mxu0
    %v5627 = vadd.f32 %v5274, %v5626
    %5628 = vmatprep.mubr.bf16.mxu0 0
    %5629 = vmatmul.mubr.bf16.gmra.mxu0 %v4589
    %v5630 = vpop.f32.mrf.mxu0
    %v5631 = vadd.f32 %v5278, %v5630
    %v5632 = vpop.f32.mrf.mxu0
    %v5633 = vadd.f32 %v5280, %v5632
    %v5634 = vpop.f32.mrf.mxu0
    %v5635 = vadd.f32 %v5282, %v5634
    %v5636 = vpop.f32.mrf.mxu0
    %v5637 = vadd.f32 %v5284, %v5636
    %5638 = vmatprep.mubr.bf16.mxu0 0
    %5639 = vmatmul.mubr.bf16.gmra.mxu0 %v4592
    %v5640 = vpop.f32.mrf.mxu0
    %v5641 = vadd.f32 %v5288, %v5640
    %v5642 = vpop.f32.mrf.mxu0
    %v5643 = vadd.f32 %v5290, %v5642
    %v5644 = vpop.f32.mrf.mxu0
    %v5645 = vadd.f32 %v5292, %v5644
    %v5646 = vpop.f32.mrf.mxu0
    %v5647 = vadd.f32 %v5294, %v5646
    %5648 = vmatprep.mubr.bf16.mxu0 0
    %5649 = vmatmul.mubr.bf16.gmra.mxu0 %v4595
    %v5650 = vpop.f32.mrf.mxu0
    %v5651 = vadd.f32 %v5298, %v5650
    %v5652 = vpop.f32.mrf.mxu0
    %v5653 = vadd.f32 %v5300, %v5652
    %v5654 = vpop.f32.mrf.mxu0
    %v5655 = vadd.f32 %v5302, %v5654
    %v5656 = vpop.f32.mrf.mxu0
    %v5657 = vadd.f32 %v5304, %v5656
    %5658 = vmatprep.mubr.bf16.mxu0 0
    %5659 = vmatmul.mubr.bf16.gmra.mxu0 %v4598
    %v5660 = vpop.f32.mrf.mxu0
    %v5661 = vadd.f32 %v5308, %v5660
    %v5662 = vpop.f32.mrf.mxu0
    %v5663 = vadd.f32 %v5310, %v5662
    %v5664 = vpop.f32.mrf.mxu0
    %v5665 = vadd.f32 %v5312, %v5664
    %v5666 = vpop.f32.mrf.mxu0
    %v5667 = vadd.f32 %v5314, %v5666
    %5668 = vmatprep.mubr.bf16.mxu0 0
    %5669 = vmatmul.mubr.bf16.gmra.mxu0 %v4601
    %v5670 = vpop.f32.mrf.mxu0
    %v5671 = vadd.f32 %v5318, %v5670
    %v5672 = vpop.f32.mrf.mxu0
    %v5673 = vadd.f32 %v5320, %v5672
    %v5674 = vpop.f32.mrf.mxu0
    %v5675 = vadd.f32 %v5322, %v5674
    %v5676 = vpop.f32.mrf.mxu0
    %v5677 = vadd.f32 %v5324, %v5676
    %5678 = vmatprep.mubr.bf16.mxu0 0
    %5679 = vmatmul.mubr.bf16.gmra.mxu0 %v4604
    %v5680 = vpop.f32.mrf.mxu0
    %v5681 = vadd.f32 %v5328, %v5680
    %v5682 = vpop.f32.mrf.mxu0
    %v5683 = vadd.f32 %v5330, %v5682
    %v5684 = vpop.f32.mrf.mxu0
    %v5685 = vadd.f32 %v5332, %v5684
    %v5686 = vpop.f32.mrf.mxu0
    %v5687 = vadd.f32 %v5334, %v5686
    %5688 = vmatprep.mubr.bf16.mxu0 0
    %5689 = vmatmul.mubr.bf16.gmra.mxu0 %v4607
    %v5690 = vpop.f32.mrf.mxu0
    %v5691 = vadd.f32 %v5338, %v5690
    %v5692 = vpop.f32.mrf.mxu0
    %v5693 = vadd.f32 %v5340, %v5692
    %v5694 = vpop.f32.mrf.mxu0
    %v5695 = vadd.f32 %v5342, %v5694
    %v5696 = vpop.f32.mrf.mxu0
    %v5697 = vadd.f32 %v5344, %v5696
    %5698 = vmatprep.mubr.bf16.mxu0 0
    %5699 = vmatmul.mubr.bf16.gmra.mxu0 %v4610
    %v5700 = vpop.f32.mrf.mxu0
    %v5701 = vadd.f32 %v5348, %v5700
    %v5702 = vpop.f32.mrf.mxu0
    %v5703 = vadd.f32 %v5350, %v5702
    %v5704 = vpop.f32.mrf.mxu0
    %v5705 = vadd.f32 %v5352, %v5704
    %v5706 = vpop.f32.mrf.mxu0
    %v5707 = vadd.f32 %v5354, %v5706
    %5708 = vmatprep.mubr.bf16.mxu0 0
    %5709 = vmatmul.mubr.bf16.gmra.mxu0 %v4613
    %v5710 = vpop.f32.mrf.mxu0
    %v5711 = vadd.f32 %v5358, %v5710
    %v5712 = vpop.f32.mrf.mxu0
    %v5713 = vadd.f32 %v5360, %v5712
    %v5714 = vpop.f32.mrf.mxu0
    %v5715 = vadd.f32 %v5362, %v5714
    %v5716 = vpop.f32.mrf.mxu0
    %v5717 = vadd.f32 %v5364, %v5716
    %5718 = vmatprep.mubr.bf16.mxu0 0
    %5719 = vmatmul.mubr.bf16.gmra.mxu0 %v4616
    %v5720 = vpop.f32.mrf.mxu0
    %v5721 = vadd.f32 %v5368, %v5720
    %v5722 = vpop.f32.mrf.mxu0
    %v5723 = vadd.f32 %v5370, %v5722
    %v5724 = vpop.f32.mrf.mxu0
    %v5725 = vadd.f32 %v5372, %v5724
    %v5726 = vpop.f32.mrf.mxu0
    %v5727 = vadd.f32 %v5374, %v5726
    %5728 = vmatprep.mubr.bf16.mxu0 0
    %5729 = vmatmul.mubr.bf16.gmra.mxu0 %v4619
    %v5730 = vpop.f32.mrf.mxu0
    %v5731 = vadd.f32 %v5378, %v5730
    %v5732 = vpop.f32.mrf.mxu0
    %v5733 = vadd.f32 %v5380, %v5732
    %v5734 = vpop.f32.mrf.mxu0
    %v5735 = vadd.f32 %v5382, %v5734
    %v5736 = vpop.f32.mrf.mxu0
    %v5737 = vadd.f32 %v5384, %v5736
    %5738 = vmatprep.mubr.bf16.mxu0 0
    %5739 = vmatmul.mubr.bf16.gmra.mxu0 %v4622
    %v5740 = vpop.f32.mrf.mxu0
    %v5741 = vadd.f32 %v5388, %v5740
    %v5742 = vpop.f32.mrf.mxu0
    %v5743 = vadd.f32 %v5390, %v5742
    %v5744 = vpop.f32.mrf.mxu0
    %v5745 = vadd.f32 %v5392, %v5744
    %v5746 = vpop.f32.mrf.mxu0
    %v5747 = vadd.f32 %v5394, %v5746
    %5748 = vmatprep.mubr.bf16.mxu0 0
    %5749 = vmatmul.mubr.bf16.gmra.mxu0 %v4625
    %v5750 = vpop.f32.mrf.mxu0
    %v5751 = vadd.f32 %v5398, %v5750
    %v5752 = vpop.f32.mrf.mxu0
    %v5753 = vadd.f32 %v5400, %v5752
    %v5754 = vpop.f32.mrf.mxu0
    %v5755 = vadd.f32 %v5402, %v5754
    %v5756 = vpop.f32.mrf.mxu0
    %v5757 = vadd.f32 %v5404, %v5756
    %5758 = vmatprep.mubr.bf16.mxu0 0
    %5759 = vmatmul.mubr.bf16.gmra.mxu0 %v4628
    %v5760 = vpop.f32.mrf.mxu0
    %v5761 = vadd.f32 %v5408, %v5760
    %v5762 = vpop.f32.mrf.mxu0
    %v5763 = vadd.f32 %v5410, %v5762
    %v5764 = vpop.f32.mrf.mxu0
    %v5765 = vadd.f32 %v5412, %v5764
    %v5766 = vpop.f32.mrf.mxu0
    %v5767 = vadd.f32 %v5414, %v5766
    %5768 = vmatprep.mubr.bf16.mxu0 0
    %5769 = vmatmul.mubr.bf16.gmra.mxu0 %v4631
    %v5770 = vpop.f32.mrf.mxu0
    %v5771 = vadd.f32 %v5418, %v5770
    %v5772 = vpop.f32.mrf.mxu0
    %v5773 = vadd.f32 %v5420, %v5772
    %v5774 = vpop.f32.mrf.mxu0
    %v5775 = vadd.f32 %v5422, %v5774
    %v5776 = vpop.f32.mrf.mxu0
    %v5777 = vadd.f32 %v5424, %v5776
    %5778 = vmatprep.mubr.bf16.mxu0 0
    %5779 = vmatmul.mubr.bf16.gmra.mxu0 %v4634
    %v5780 = vpop.f32.mrf.mxu0
    %v5781 = vadd.f32 %v5428, %v5780
    %v5782 = vpop.f32.mrf.mxu0
    %v5783 = vadd.f32 %v5430, %v5782
    %v5784 = vpop.f32.mrf.mxu0
    %v5785 = vadd.f32 %v5432, %v5784
    %v5786 = vpop.f32.mrf.mxu0
    %v5787 = vadd.f32 %v5434, %v5786
    %5788 = vmatprep.mubr.bf16.mxu0 0
    %5789 = vmatmul.mubr.bf16.gmra.mxu0 %v4637
    %v5790 = vpop.f32.mrf.mxu0
    %v5791 = vadd.f32 %v5438, %v5790
    %v5792 = vpop.f32.mrf.mxu0
    %v5793 = vadd.f32 %v5440, %v5792
    %v5794 = vpop.f32.mrf.mxu0
    %v5795 = vadd.f32 %v5442, %v5794
    %v5796 = vpop.f32.mrf.mxu0
    %v5797 = vadd.f32 %v5444, %v5796
    %5798 = vmatprep.mubr.bf16.mxu0 0
    %5799 = vmatmul.mubr.bf16.gmra.mxu0 %v4640
    %v5800 = vpop.f32.mrf.mxu0
    %v5801 = vadd.f32 %v5448, %v5800
    %v5802 = vpop.f32.mrf.mxu0
    %v5803 = vadd.f32 %v5450, %v5802
    %v5804 = vpop.f32.mrf.mxu0
    %v5805 = vadd.f32 %v5452, %v5804
    %v5806 = vpop.f32.mrf.mxu0
    %v5807 = vadd.f32 %v5454, %v5806
    %5808 = vmatprep.mubr.bf16.mxu0 0
    %5809 = vmatmul.mubr.bf16.gmra.mxu0 %v4643
    %v5810 = vpop.f32.mrf.mxu0
    %v5811 = vadd.f32 %v5458, %v5810
    %v5812 = vpop.f32.mrf.mxu0
    %v5813 = vadd.f32 %v5460, %v5812
    %v5814 = vpop.f32.mrf.mxu0
    %v5815 = vadd.f32 %v5462, %v5814
    %v5816 = vpop.f32.mrf.mxu0
    %v5817 = vadd.f32 %v5464, %v5816
    %5818 = vmatprep.mubr.bf16.mxu0 0
    %5819 = vmatmul.mubr.bf16.gmra.mxu0 %v4646
    %v5820 = vpop.f32.mrf.mxu0
    %v5821 = vadd.f32 %v5468, %v5820
    %v5822 = vpop.f32.mrf.mxu0
    %v5823 = vadd.f32 %v5470, %v5822
    %v5824 = vpop.f32.mrf.mxu0
    %v5825 = vadd.f32 %v5472, %v5824
    %v5826 = vpop.f32.mrf.mxu0
    %v5827 = vadd.f32 %v5474, %v5826
    %5828 = vmatprep.mubr.bf16.mxu0 0
    %5829 = vmatmul.mubr.bf16.gmra.mxu0 %v4649
    %v5830 = vpop.f32.mrf.mxu0
    %v5831 = vadd.f32 %v5478, %v5830
    %v5832 = vpop.f32.mrf.mxu0
    %v5833 = vadd.f32 %v5480, %v5832
    %v5834 = vpop.f32.mrf.mxu0
    %v5835 = vadd.f32 %v5482, %v5834
    %v5836 = vpop.f32.mrf.mxu0
    %v5837 = vadd.f32 %v5484, %v5836
    %5838 = vmatprep.mubr.bf16.mxu0 0
    %5839 = vmatmul.mubr.bf16.gmra.mxu0 %v4652
    %v5840 = vpop.f32.mrf.mxu0
    %v5841 = vadd.f32 %v5488, %v5840
    %v5842 = vpop.f32.mrf.mxu0
    %v5843 = vadd.f32 %v5490, %v5842
    %v5844 = vpop.f32.mrf.mxu0
    %v5845 = vadd.f32 %v5492, %v5844
    %v5846 = vpop.f32.mrf.mxu0
    %v5847 = vadd.f32 %v5494, %v5846
    %5848 = vmatprep.mubr.bf16.mxu0 0
    %5849 = vmatmul.mubr.bf16.gmra.mxu0 %v4655
    %v5850 = vpop.f32.mrf.mxu0
    %v5851 = vadd.f32 %v5498, %v5850
    %v5852 = vpop.f32.mrf.mxu0
    %v5853 = vadd.f32 %v5500, %v5852
    %v5854 = vpop.f32.mrf.mxu0
    %v5855 = vadd.f32 %v5502, %v5854
    %v5856 = vpop.f32.mrf.mxu0
    %v5857 = vadd.f32 %v5504, %v5856
    %5858 = vdwg.mxu0
    %5859 = vmatprep.subr.bf16.mxu0 0
    %5860 = vmatpush1.bf16.msra.mxu0 %v5032
    %5861 = vmatprep.subr.bf16.mxu0 0
    %5862 = vmatpush1.bf16.msra.mxu0 %v5029
    %5863 = vmatprep.subr.bf16.mxu0 0
    %5864 = vmatpush1.bf16.msra.mxu0 %v5026
    %5865 = vmatprep.subr.bf16.mxu0 0
    %5866 = vmatpush1.bf16.msra.mxu0 %v5023
    %5867 = vmatprep.subr.bf16.mxu0 0
    %5868 = vmatpush1.bf16.msra.mxu0 %v5020
    %5869 = vmatprep.subr.bf16.mxu0 0
    %5870 = vmatpush1.bf16.msra.mxu0 %v5017
    %5871 = vmatprep.subr.bf16.mxu0 0
    %5872 = vmatpush1.bf16.msra.mxu0 %v5014
    %5873 = vmatprep.subr.bf16.mxu0 0
    %5874 = vmatpush1.bf16.msra.mxu0 %v5011
    %5875 = vmatprep.subr.bf16.mxu0 0
    %5876 = vmatpush2.bf16.msra.mxu0 %v5056
    %5877 = vmatprep.subr.bf16.mxu0 0
    %5878 = vmatpush2.bf16.msra.mxu0 %v5053
    %5879 = vmatprep.subr.bf16.mxu0 0
    %5880 = vmatpush2.bf16.msra.mxu0 %v5050
    %5881 = vmatprep.subr.bf16.mxu0 0
    %5882 = vmatpush2.bf16.msra.mxu0 %v5047
    %5883 = vmatprep.subr.bf16.mxu0 0
    %5884 = vmatpush2.bf16.msra.mxu0 %v5044
    %5885 = vmatprep.subr.bf16.mxu0 0
    %5886 = vmatpush2.bf16.msra.mxu0 %v5041
    %5887 = vmatprep.subr.bf16.mxu0 0
    %5888 = vmatpush2.bf16.msra.mxu0 %v5038
    %5889 = vmatprep.subr.bf16.mxu0 0
    %5890 = vmatpush2.bf16.msra.mxu0 %v5035
    %5891 = vmatprep.mubr.bf16.mxu0 %v4561
    %5892 = vmatmul.mubr.bf16.gmra.mxu0 %v4560
    %v5893 = vpop.f32.mrf.mxu0
    %v5894 = vadd.f32 %v4765, %v5893
    %v5895 = vpop.f32.mrf.mxu0
    %v5896 = vpop.f32.mrf.mxu0
    %v5897 = vadd.f32 %v4765, %v5896
    %v5898 = vpop.f32.mrf.mxu0
    %5899 = vmatprep.mubr.bf16.mxu0 %v4564
    %5900 = vmatmul.mubr.bf16.gmra.mxu0 %v4563
    %v5901 = vpop.f32.mrf.mxu0
    %v5902 = vadd.f32 %v4765, %v5901
    %v5903 = vpop.f32.mrf.mxu0
    %v5904 = vpop.f32.mrf.mxu0
    %v5905 = vadd.f32 %v4765, %v5904
    %v5906 = vpop.f32.mrf.mxu0
    %5907 = vmatprep.mubr.bf16.mxu0 %v4567
    %5908 = vmatmul.mubr.bf16.gmra.mxu0 %v4566
    %v5909 = vpop.f32.mrf.mxu0
    %v5910 = vadd.f32 %v4765, %v5909
    %v5911 = vpop.f32.mrf.mxu0
    %v5912 = vpop.f32.mrf.mxu0
    %v5913 = vadd.f32 %v4765, %v5912
    %v5914 = vpop.f32.mrf.mxu0
    %5915 = vmatprep.mubr.bf16.mxu0 %v4570
    %5916 = vmatmul.mubr.bf16.gmra.mxu0 %v4569
    %v5917 = vpop.f32.mrf.mxu0
    %v5918 = vadd.f32 %v4765, %v5917
    %v5919 = vpop.f32.mrf.mxu0
    %v5920 = vpop.f32.mrf.mxu0
    %v5921 = vadd.f32 %v4765, %v5920
    %v5922 = vpop.f32.mrf.mxu0
    %5923 = vmatprep.mubr.bf16.mxu0 %v4573
    %5924 = vmatmul.mubr.bf16.gmra.mxu0 %v4572
    %v5925 = vpop.f32.mrf.mxu0
    %v5926 = vadd.f32 %v4765, %v5925
    %v5927 = vpop.f32.mrf.mxu0
    %v5928 = vpop.f32.mrf.mxu0
    %v5929 = vadd.f32 %v4765, %v5928
    %v5930 = vpop.f32.mrf.mxu0
    %5931 = vmatprep.mubr.bf16.mxu0 %v4576
    %5932 = vmatmul.mubr.bf16.gmra.mxu0 %v4575
    %v5933 = vpop.f32.mrf.mxu0
    %v5934 = vadd.f32 %v4765, %v5933
    %v5935 = vpop.f32.mrf.mxu0
    %v5936 = vpop.f32.mrf.mxu0
    %v5937 = vadd.f32 %v4765, %v5936
    %v5938 = vpop.f32.mrf.mxu0
    %5939 = vmatprep.mubr.bf16.mxu0 %v4579
    %5940 = vmatmul.mubr.bf16.gmra.mxu0 %v4578
    %v5941 = vpop.f32.mrf.mxu0
    %v5942 = vadd.f32 %v4765, %v5941
    %v5943 = vpop.f32.mrf.mxu0
    %v5944 = vpop.f32.mrf.mxu0
    %v5945 = vadd.f32 %v4765, %v5944
    %v5946 = vpop.f32.mrf.mxu0
    %5947 = vmatprep.mubr.bf16.mxu0 %v4582
    %5948 = vmatmul.mubr.bf16.gmra.mxu0 %v4581
    %v5949 = vpop.f32.mrf.mxu0
    %v5950 = vadd.f32 %v4765, %v5949
    %v5951 = vpop.f32.mrf.mxu0
    %v5952 = vpop.f32.mrf.mxu0
    %v5953 = vadd.f32 %v4765, %v5952
    %v5954 = vpop.f32.mrf.mxu0
    %5955 = vmatprep.mubr.bf16.mxu0 %v4585
    %5956 = vmatmul.mubr.bf16.gmra.mxu0 %v4584
    %v5957 = vpop.f32.mrf.mxu0
    %v5958 = vadd.f32 %v4765, %v5957
    %v5959 = vpop.f32.mrf.mxu0
    %v5960 = vpop.f32.mrf.mxu0
    %v5961 = vadd.f32 %v4765, %v5960
    %v5962 = vpop.f32.mrf.mxu0
    %5963 = vmatprep.mubr.bf16.mxu0 %v4588
    %5964 = vmatmul.mubr.bf16.gmra.mxu0 %v4587
    %v5965 = vpop.f32.mrf.mxu0
    %v5966 = vadd.f32 %v4765, %v5965
    %v5967 = vpop.f32.mrf.mxu0
    %v5968 = vpop.f32.mrf.mxu0
    %v5969 = vadd.f32 %v4765, %v5968
    %v5970 = vpop.f32.mrf.mxu0
    %5971 = vmatprep.mubr.bf16.mxu0 %v4591
    %5972 = vmatmul.mubr.bf16.gmra.mxu0 %v4590
    %v5973 = vpop.f32.mrf.mxu0
    %v5974 = vadd.f32 %v4765, %v5973
    %v5975 = vpop.f32.mrf.mxu0
    %v5976 = vpop.f32.mrf.mxu0
    %v5977 = vadd.f32 %v4765, %v5976
    %v5978 = vpop.f32.mrf.mxu0
    %5979 = vmatprep.mubr.bf16.mxu0 %v4594
    %5980 = vmatmul.mubr.bf16.gmra.mxu0 %v4593
    %v5981 = vpop.f32.mrf.mxu0
    %v5982 = vadd.f32 %v4765, %v5981
    %v5983 = vpop.f32.mrf.mxu0
    %v5984 = vpop.f32.mrf.mxu0
    %v5985 = vadd.f32 %v4765, %v5984
    %v5986 = vpop.f32.mrf.mxu0
    %5987 = vmatprep.mubr.bf16.mxu0 %v4597
    %5988 = vmatmul.mubr.bf16.gmra.mxu0 %v4596
    %v5989 = vpop.f32.mrf.mxu0
    %v5990 = vadd.f32 %v4765, %v5989
    %v5991 = vpop.f32.mrf.mxu0
    %v5992 = vpop.f32.mrf.mxu0
    %v5993 = vadd.f32 %v4765, %v5992
    %v5994 = vpop.f32.mrf.mxu0
    %5995 = vmatprep.mubr.bf16.mxu0 %v4600
    %5996 = vmatmul.mubr.bf16.gmra.mxu0 %v4599
    %v5997 = vpop.f32.mrf.mxu0
    %v5998 = vadd.f32 %v4765, %v5997
    %v5999 = vpop.f32.mrf.mxu0
    %v6000 = vpop.f32.mrf.mxu0
    %v6001 = vadd.f32 %v4765, %v6000
    %v6002 = vpop.f32.mrf.mxu0
    %6003 = vmatprep.mubr.bf16.mxu0 %v4603
    %6004 = vmatmul.mubr.bf16.gmra.mxu0 %v4602
    %v6005 = vpop.f32.mrf.mxu0
    %v6006 = vadd.f32 %v4765, %v6005
    %v6007 = vpop.f32.mrf.mxu0
    %v6008 = vpop.f32.mrf.mxu0
    %v6009 = vadd.f32 %v4765, %v6008
    %v6010 = vpop.f32.mrf.mxu0
    %6011 = vmatprep.mubr.bf16.mxu0 %v4606
    %6012 = vmatmul.mubr.bf16.gmra.mxu0 %v4605
    %v6013 = vpop.f32.mrf.mxu0
    %v6014 = vadd.f32 %v4765, %v6013
    %v6015 = vpop.f32.mrf.mxu0
    %v6016 = vpop.f32.mrf.mxu0
    %v6017 = vadd.f32 %v4765, %v6016
    %v6018 = vpop.f32.mrf.mxu0
    %6019 = vmatprep.mubr.bf16.mxu0 %v4609
    %6020 = vmatmul.mubr.bf16.gmra.mxu0 %v4608
    %v6021 = vpop.f32.mrf.mxu0
    %v6022 = vadd.f32 %v4765, %v6021
    %v6023 = vpop.f32.mrf.mxu0
    %v6024 = vpop.f32.mrf.mxu0
    %v6025 = vadd.f32 %v4765, %v6024
    %v6026 = vpop.f32.mrf.mxu0
    %6027 = vmatprep.mubr.bf16.mxu0 %v4612
    %6028 = vmatmul.mubr.bf16.gmra.mxu0 %v4611
    %v6029 = vpop.f32.mrf.mxu0
    %v6030 = vadd.f32 %v4765, %v6029
    %v6031 = vpop.f32.mrf.mxu0
    %v6032 = vpop.f32.mrf.mxu0
    %v6033 = vadd.f32 %v4765, %v6032
    %v6034 = vpop.f32.mrf.mxu0
    %6035 = vmatprep.mubr.bf16.mxu0 %v4615
    %6036 = vmatmul.mubr.bf16.gmra.mxu0 %v4614
    %v6037 = vpop.f32.mrf.mxu0
    %v6038 = vadd.f32 %v4765, %v6037
    %v6039 = vpop.f32.mrf.mxu0
    %v6040 = vpop.f32.mrf.mxu0
    %v6041 = vadd.f32 %v4765, %v6040
    %v6042 = vpop.f32.mrf.mxu0
    %6043 = vmatprep.mubr.bf16.mxu0 %v4618
    %6044 = vmatmul.mubr.bf16.gmra.mxu0 %v4617
    %v6045 = vpop.f32.mrf.mxu0
    %v6046 = vadd.f32 %v4765, %v6045
    %v6047 = vpop.f32.mrf.mxu0
    %v6048 = vpop.f32.mrf.mxu0
    %v6049 = vadd.f32 %v4765, %v6048
    %v6050 = vpop.f32.mrf.mxu0
    %6051 = vmatprep.mubr.bf16.mxu0 %v4621
    %6052 = vmatmul.mubr.bf16.gmra.mxu0 %v4620
    %v6053 = vpop.f32.mrf.mxu0
    %v6054 = vadd.f32 %v4765, %v6053
    %v6055 = vpop.f32.mrf.mxu0
    %v6056 = vpop.f32.mrf.mxu0
    %v6057 = vadd.f32 %v4765, %v6056
    %v6058 = vpop.f32.mrf.mxu0
    %6059 = vmatprep.mubr.bf16.mxu0 %v4624
    %6060 = vmatmul.mubr.bf16.gmra.mxu0 %v4623
    %v6061 = vpop.f32.mrf.mxu0
    %v6062 = vadd.f32 %v4765, %v6061
    %v6063 = vpop.f32.mrf.mxu0
    %v6064 = vpop.f32.mrf.mxu0
    %v6065 = vadd.f32 %v4765, %v6064
    %v6066 = vpop.f32.mrf.mxu0
    %6067 = vmatprep.mubr.bf16.mxu0 %v4627
    %6068 = vmatmul.mubr.bf16.gmra.mxu0 %v4626
    %v6069 = vpop.f32.mrf.mxu0
    %v6070 = vadd.f32 %v4765, %v6069
    %v6071 = vpop.f32.mrf.mxu0
    %v6072 = vpop.f32.mrf.mxu0
    %v6073 = vadd.f32 %v4765, %v6072
    %v6074 = vpop.f32.mrf.mxu0
    %6075 = vmatprep.mubr.bf16.mxu0 %v4630
    %6076 = vmatmul.mubr.bf16.gmra.mxu0 %v4629
    %v6077 = vpop.f32.mrf.mxu0
    %v6078 = vadd.f32 %v4765, %v6077
    %v6079 = vpop.f32.mrf.mxu0
    %v6080 = vpop.f32.mrf.mxu0
    %v6081 = vadd.f32 %v4765, %v6080
    %v6082 = vpop.f32.mrf.mxu0
    %6083 = vmatprep.mubr.bf16.mxu0 %v4633
    %6084 = vmatmul.mubr.bf16.gmra.mxu0 %v4632
    %v6085 = vpop.f32.mrf.mxu0
    %v6086 = vadd.f32 %v4765, %v6085
    %v6087 = vpop.f32.mrf.mxu0
    %v6088 = vpop.f32.mrf.mxu0
    %v6089 = vadd.f32 %v4765, %v6088
    %v6090 = vpop.f32.mrf.mxu0
    %6091 = vmatprep.mubr.bf16.mxu0 %v4636
    %6092 = vmatmul.mubr.bf16.gmra.mxu0 %v4635
    %v6093 = vpop.f32.mrf.mxu0
    %v6094 = vadd.f32 %v4765, %v6093
    %v6095 = vpop.f32.mrf.mxu0
    %v6096 = vpop.f32.mrf.mxu0
    %v6097 = vadd.f32 %v4765, %v6096
    %v6098 = vpop.f32.mrf.mxu0
    %6099 = vmatprep.mubr.bf16.mxu0 %v4639
    %6100 = vmatmul.mubr.bf16.gmra.mxu0 %v4638
    %v6101 = vpop.f32.mrf.mxu0
    %v6102 = vadd.f32 %v4765, %v6101
    %v6103 = vpop.f32.mrf.mxu0
    %v6104 = vpop.f32.mrf.mxu0
    %v6105 = vadd.f32 %v4765, %v6104
    %v6106 = vpop.f32.mrf.mxu0
    %6107 = vmatprep.mubr.bf16.mxu0 %v4642
    %6108 = vmatmul.mubr.bf16.gmra.mxu0 %v4641
    %v6109 = vpop.f32.mrf.mxu0
    %v6110 = vadd.f32 %v4765, %v6109
    %v6111 = vpop.f32.mrf.mxu0
    %v6112 = vpop.f32.mrf.mxu0
    %v6113 = vadd.f32 %v4765, %v6112
    %v6114 = vpop.f32.mrf.mxu0
    %6115 = vmatprep.mubr.bf16.mxu0 %v4645
    %6116 = vmatmul.mubr.bf16.gmra.mxu0 %v4644
    %v6117 = vpop.f32.mrf.mxu0
    %v6118 = vadd.f32 %v4765, %v6117
    %v6119 = vpop.f32.mrf.mxu0
    %v6120 = vpop.f32.mrf.mxu0
    %v6121 = vadd.f32 %v4765, %v6120
    %v6122 = vpop.f32.mrf.mxu0
    %6123 = vmatprep.mubr.bf16.mxu0 %v4648
    %6124 = vmatmul.mubr.bf16.gmra.mxu0 %v4647
    %v6125 = vpop.f32.mrf.mxu0
    %v6126 = vadd.f32 %v4765, %v6125
    %v6127 = vpop.f32.mrf.mxu0
    %v6128 = vpop.f32.mrf.mxu0
    %v6129 = vadd.f32 %v4765, %v6128
    %v6130 = vpop.f32.mrf.mxu0
    %6131 = vmatprep.mubr.bf16.mxu0 %v4651
    %6132 = vmatmul.mubr.bf16.gmra.mxu0 %v4650
    %v6133 = vpop.f32.mrf.mxu0
    %v6134 = vadd.f32 %v4765, %v6133
    %v6135 = vpop.f32.mrf.mxu0
    %v6136 = vpop.f32.mrf.mxu0
    %v6137 = vadd.f32 %v4765, %v6136
    %v6138 = vpop.f32.mrf.mxu0
    %6139 = vmatprep.mubr.bf16.mxu0 %v4654
    %6140 = vmatmul.mubr.bf16.gmra.mxu0 %v4653
    %v6141 = vpop.f32.mrf.mxu0
    %v6142 = vadd.f32 %v4765, %v6141
    %v6143 = vpop.f32.mrf.mxu0
    %v6144 = vpop.f32.mrf.mxu0
    %v6145 = vadd.f32 %v4765, %v6144
    %v6146 = vpop.f32.mrf.mxu0
    %6147 = vdwg.mxu0
    %6148 = vmatprep.subr.bf16.mxu0 0
    %6149 = vmatpush1.bf16.msra.mxu0 %v5080
    %6150 = vmatprep.subr.bf16.mxu0 0
    %6151 = vmatpush1.bf16.msra.mxu0 %v5077
    %6152 = vmatprep.subr.bf16.mxu0 0
    %6153 = vmatpush1.bf16.msra.mxu0 %v5074
    %6154 = vmatprep.subr.bf16.mxu0 0
    %6155 = vmatpush1.bf16.msra.mxu0 %v5071
    %6156 = vmatprep.subr.bf16.mxu0 0
    %6157 = vmatpush1.bf16.msra.mxu0 %v5068
    %6158 = vmatprep.subr.bf16.mxu0 0
    %6159 = vmatpush1.bf16.msra.mxu0 %v5065
    %6160 = vmatprep.subr.bf16.mxu0 0
    %6161 = vmatpush1.bf16.msra.mxu0 %v5062
    %6162 = vmatprep.subr.bf16.mxu0 0
    %6163 = vmatpush1.bf16.msra.mxu0 %v5059
    %6164 = vmatprep.subr.bf16.mxu0 0
    %6165 = vmatpush2.bf16.msra.mxu0 0
    %6166 = vmatprep.subr.bf16.mxu0 0
    %6167 = vmatpush2.bf16.msra.mxu0 0
    %6168 = vmatprep.subr.bf16.mxu0 0
    %6169 = vmatpush2.bf16.msra.mxu0 0
    %6170 = vmatprep.subr.bf16.mxu0 0
    %6171 = vmatpush2.bf16.msra.mxu0 0
    %6172 = vmatprep.subr.bf16.mxu0 0
    %6173 = vmatpush2.bf16.msra.mxu0 0
    %6174 = vmatprep.subr.bf16.mxu0 0
    %6175 = vmatpush2.bf16.msra.mxu0 0
    %6176 = vmatprep.subr.bf16.mxu0 0
    %6177 = vmatpush2.bf16.msra.mxu0 0
    %6178 = vmatprep.subr.bf16.mxu0 0
    %6179 = vmatpush2.bf16.msra.mxu0 0
    %6180 = vmatprep.mubr.bf16.mxu0 0
    %6181 = vmatmul.mubr.bf16.gmra.mxu0 %v4562
    %v6182 = vpop.f32.mrf.mxu0
    %v6183 = vadd.f32 %v5894, %v6182
    %v6184 = vpop.f32.mrf.mxu0
    %v6185 = vpop.f32.mrf.mxu0
    %v6186 = vadd.f32 %v5897, %v6185
    %v6187 = vpop.f32.mrf.mxu0
    %6188 = vmatprep.mubr.bf16.mxu0 0
    %6189 = vmatmul.mubr.bf16.gmra.mxu0 %v4565
    %v6190 = vpop.f32.mrf.mxu0
    %v6191 = vadd.f32 %v5902, %v6190
    %v6192 = vpop.f32.mrf.mxu0
    %v6193 = vpop.f32.mrf.mxu0
    %v6194 = vadd.f32 %v5905, %v6193
    %v6195 = vpop.f32.mrf.mxu0
    %6196 = vmatprep.mubr.bf16.mxu0 0
    %6197 = vmatmul.mubr.bf16.gmra.mxu0 %v4568
    %v6198 = vpop.f32.mrf.mxu0
    %v6199 = vadd.f32 %v5910, %v6198
    %v6200 = vpop.f32.mrf.mxu0
    %v6201 = vpop.f32.mrf.mxu0
    %v6202 = vadd.f32 %v5913, %v6201
    %v6203 = vpop.f32.mrf.mxu0
    %6204 = vmatprep.mubr.bf16.mxu0 0
    %6205 = vmatmul.mubr.bf16.gmra.mxu0 %v4571
    %v6206 = vpop.f32.mrf.mxu0
    %v6207 = vadd.f32 %v5918, %v6206
    %v6208 = vpop.f32.mrf.mxu0
    %v6209 = vpop.f32.mrf.mxu0
    %v6210 = vadd.f32 %v5921, %v6209
    %v6211 = vpop.f32.mrf.mxu0
    %6212 = vmatprep.mubr.bf16.mxu0 0
    %6213 = vmatmul.mubr.bf16.gmra.mxu0 %v4574
    %v6214 = vpop.f32.mrf.mxu0
    %v6215 = vadd.f32 %v5926, %v6214
    %v6216 = vpop.f32.mrf.mxu0
    %v6217 = vpop.f32.mrf.mxu0
    %v6218 = vadd.f32 %v5929, %v6217
    %v6219 = vpop.f32.mrf.mxu0
    %6220 = vmatprep.mubr.bf16.mxu0 0
    %6221 = vmatmul.mubr.bf16.gmra.mxu0 %v4577
    %v6222 = vpop.f32.mrf.mxu0
    %v6223 = vadd.f32 %v5934, %v6222
    %v6224 = vpop.f32.mrf.mxu0
    %v6225 = vpop.f32.mrf.mxu0
    %v6226 = vadd.f32 %v5937, %v6225
    %v6227 = vpop.f32.mrf.mxu0
    %6228 = vmatprep.mubr.bf16.mxu0 0
    %6229 = vmatmul.mubr.bf16.gmra.mxu0 %v4580
    %v6230 = vpop.f32.mrf.mxu0
    %v6231 = vadd.f32 %v5942, %v6230
    %v6232 = vpop.f32.mrf.mxu0
    %v6233 = vpop.f32.mrf.mxu0
    %v6234 = vadd.f32 %v5945, %v6233
    %v6235 = vpop.f32.mrf.mxu0
    %6236 = vmatprep.mubr.bf16.mxu0 0
    %6237 = vmatmul.mubr.bf16.gmra.mxu0 %v4583
    %v6238 = vpop.f32.mrf.mxu0
    %v6239 = vadd.f32 %v5950, %v6238
    %v6240 = vpop.f32.mrf.mxu0
    %v6241 = vpop.f32.mrf.mxu0
    %v6242 = vadd.f32 %v5953, %v6241
    %v6243 = vpop.f32.mrf.mxu0
    %6244 = vmatprep.mubr.bf16.mxu0 0
    %6245 = vmatmul.mubr.bf16.gmra.mxu0 %v4586
    %v6246 = vpop.f32.mrf.mxu0
    %v6247 = vadd.f32 %v5958, %v6246
    %v6248 = vpop.f32.mrf.mxu0
    %v6249 = vpop.f32.mrf.mxu0
    %v6250 = vadd.f32 %v5961, %v6249
    %v6251 = vpop.f32.mrf.mxu0
    %6252 = vmatprep.mubr.bf16.mxu0 0
    %6253 = vmatmul.mubr.bf16.gmra.mxu0 %v4589
    %v6254 = vpop.f32.mrf.mxu0
    %v6255 = vadd.f32 %v5966, %v6254
    %v6256 = vpop.f32.mrf.mxu0
    %v6257 = vpop.f32.mrf.mxu0
    %v6258 = vadd.f32 %v5969, %v6257
    %v6259 = vpop.f32.mrf.mxu0
    %6260 = vmatprep.mubr.bf16.mxu0 0
    %6261 = vmatmul.mubr.bf16.gmra.mxu0 %v4592
    %v6262 = vpop.f32.mrf.mxu0
    %v6263 = vadd.f32 %v5974, %v6262
    %v6264 = vpop.f32.mrf.mxu0
    %v6265 = vpop.f32.mrf.mxu0
    %v6266 = vadd.f32 %v5977, %v6265
    %v6267 = vpop.f32.mrf.mxu0
    %6268 = vmatprep.mubr.bf16.mxu0 0
    %6269 = vmatmul.mubr.bf16.gmra.mxu0 %v4595
    %v6270 = vpop.f32.mrf.mxu0
    %v6271 = vadd.f32 %v5982, %v6270
    %v6272 = vpop.f32.mrf.mxu0
    %v6273 = vpop.f32.mrf.mxu0
    %v6274 = vadd.f32 %v5985, %v6273
    %v6275 = vpop.f32.mrf.mxu0
    %6276 = vmatprep.mubr.bf16.mxu0 0
    %6277 = vmatmul.mubr.bf16.gmra.mxu0 %v4598
    %v6278 = vpop.f32.mrf.mxu0
    %v6279 = vadd.f32 %v5990, %v6278
    %v6280 = vpop.f32.mrf.mxu0
    %v6281 = vpop.f32.mrf.mxu0
    %v6282 = vadd.f32 %v5993, %v6281
    %v6283 = vpop.f32.mrf.mxu0
    %6284 = vmatprep.mubr.bf16.mxu0 0
    %6285 = vmatmul.mubr.bf16.gmra.mxu0 %v4601
    %v6286 = vpop.f32.mrf.mxu0
    %v6287 = vadd.f32 %v5998, %v6286
    %v6288 = vpop.f32.mrf.mxu0
    %v6289 = vpop.f32.mrf.mxu0
    %v6290 = vadd.f32 %v6001, %v6289
    %v6291 = vpop.f32.mrf.mxu0
    %6292 = vmatprep.mubr.bf16.mxu0 0
    %6293 = vmatmul.mubr.bf16.gmra.mxu0 %v4604
    %v6294 = vpop.f32.mrf.mxu0
    %v6295 = vadd.f32 %v6006, %v6294
    %v6296 = vpop.f32.mrf.mxu0
    %v6297 = vpop.f32.mrf.mxu0
    %v6298 = vadd.f32 %v6009, %v6297
    %v6299 = vpop.f32.mrf.mxu0
    %6300 = vmatprep.mubr.bf16.mxu0 0
    %6301 = vmatmul.mubr.bf16.gmra.mxu0 %v4607
    %v6302 = vpop.f32.mrf.mxu0
    %v6303 = vadd.f32 %v6014, %v6302
    %v6304 = vpop.f32.mrf.mxu0
    %v6305 = vpop.f32.mrf.mxu0
    %v6306 = vadd.f32 %v6017, %v6305
    %v6307 = vpop.f32.mrf.mxu0
    %6308 = vmatprep.mubr.bf16.mxu0 0
    %6309 = vmatmul.mubr.bf16.gmra.mxu0 %v4610
    %v6310 = vpop.f32.mrf.mxu0
    %v6311 = vadd.f32 %v6022, %v6310
    %v6312 = vpop.f32.mrf.mxu0
    %v6313 = vpop.f32.mrf.mxu0
    %v6314 = vadd.f32 %v6025, %v6313
    %v6315 = vpop.f32.mrf.mxu0
    %6316 = vmatprep.mubr.bf16.mxu0 0
    %6317 = vmatmul.mubr.bf16.gmra.mxu0 %v4613
    %v6318 = vpop.f32.mrf.mxu0
    %v6319 = vadd.f32 %v6030, %v6318
    %v6320 = vpop.f32.mrf.mxu0
    %v6321 = vpop.f32.mrf.mxu0
    %v6322 = vadd.f32 %v6033, %v6321
    %v6323 = vpop.f32.mrf.mxu0
    %6324 = vmatprep.mubr.bf16.mxu0 0
    %6325 = vmatmul.mubr.bf16.gmra.mxu0 %v4616
    %v6326 = vpop.f32.mrf.mxu0
    %v6327 = vadd.f32 %v6038, %v6326
    %v6328 = vpop.f32.mrf.mxu0
    %v6329 = vpop.f32.mrf.mxu0
    %v6330 = vadd.f32 %v6041, %v6329
    %v6331 = vpop.f32.mrf.mxu0
    %6332 = vmatprep.mubr.bf16.mxu0 0
    %6333 = vmatmul.mubr.bf16.gmra.mxu0 %v4619
    %v6334 = vpop.f32.mrf.mxu0
    %v6335 = vadd.f32 %v6046, %v6334
    %v6336 = vpop.f32.mrf.mxu0
    %v6337 = vpop.f32.mrf.mxu0
    %v6338 = vadd.f32 %v6049, %v6337
    %v6339 = vpop.f32.mrf.mxu0
    %6340 = vmatprep.mubr.bf16.mxu0 0
    %6341 = vmatmul.mubr.bf16.gmra.mxu0 %v4622
    %v6342 = vpop.f32.mrf.mxu0
    %v6343 = vadd.f32 %v6054, %v6342
    %v6344 = vpop.f32.mrf.mxu0
    %v6345 = vpop.f32.mrf.mxu0
    %v6346 = vadd.f32 %v6057, %v6345
    %v6347 = vpop.f32.mrf.mxu0
    %6348 = vmatprep.mubr.bf16.mxu0 0
    %6349 = vmatmul.mubr.bf16.gmra.mxu0 %v4625
    %v6350 = vpop.f32.mrf.mxu0
    %v6351 = vadd.f32 %v6062, %v6350
    %v6352 = vpop.f32.mrf.mxu0
    %v6353 = vpop.f32.mrf.mxu0
    %v6354 = vadd.f32 %v6065, %v6353
    %v6355 = vpop.f32.mrf.mxu0
    %6356 = vmatprep.mubr.bf16.mxu0 0
    %6357 = vmatmul.mubr.bf16.gmra.mxu0 %v4628
    %v6358 = vpop.f32.mrf.mxu0
    %v6359 = vadd.f32 %v6070, %v6358
    %v6360 = vpop.f32.mrf.mxu0
    %v6361 = vpop.f32.mrf.mxu0
    %v6362 = vadd.f32 %v6073, %v6361
    %v6363 = vpop.f32.mrf.mxu0
    %6364 = vmatprep.mubr.bf16.mxu0 0
    %6365 = vmatmul.mubr.bf16.gmra.mxu0 %v4631
    %v6366 = vpop.f32.mrf.mxu0
    %v6367 = vadd.f32 %v6078, %v6366
    %v6368 = vpop.f32.mrf.mxu0
    %v6369 = vpop.f32.mrf.mxu0
    %v6370 = vadd.f32 %v6081, %v6369
    %v6371 = vpop.f32.mrf.mxu0
    %6372 = vmatprep.mubr.bf16.mxu0 0
    %6373 = vmatmul.mubr.bf16.gmra.mxu0 %v4634
    %v6374 = vpop.f32.mrf.mxu0
    %v6375 = vadd.f32 %v6086, %v6374
    %v6376 = vpop.f32.mrf.mxu0
    %v6377 = vpop.f32.mrf.mxu0
    %v6378 = vadd.f32 %v6089, %v6377
    %v6379 = vpop.f32.mrf.mxu0
    %6380 = vmatprep.mubr.bf16.mxu0 0
    %6381 = vmatmul.mubr.bf16.gmra.mxu0 %v4637
    %v6382 = vpop.f32.mrf.mxu0
    %v6383 = vadd.f32 %v6094, %v6382
    %v6384 = vpop.f32.mrf.mxu0
    %v6385 = vpop.f32.mrf.mxu0
    %v6386 = vadd.f32 %v6097, %v6385
    %v6387 = vpop.f32.mrf.mxu0
    %6388 = vmatprep.mubr.bf16.mxu0 0
    %6389 = vmatmul.mubr.bf16.gmra.mxu0 %v4640
    %v6390 = vpop.f32.mrf.mxu0
    %v6391 = vadd.f32 %v6102, %v6390
    %v6392 = vpop.f32.mrf.mxu0
    %v6393 = vpop.f32.mrf.mxu0
    %v6394 = vadd.f32 %v6105, %v6393
    %v6395 = vpop.f32.mrf.mxu0
    %6396 = vmatprep.mubr.bf16.mxu0 0
    %6397 = vmatmul.mubr.bf16.gmra.mxu0 %v4643
    %v6398 = vpop.f32.mrf.mxu0
    %v6399 = vadd.f32 %v6110, %v6398
    %v6400 = vpop.f32.mrf.mxu0
    %v6401 = vpop.f32.mrf.mxu0
    %v6402 = vadd.f32 %v6113, %v6401
    %v6403 = vpop.f32.mrf.mxu0
    %6404 = vmatprep.mubr.bf16.mxu0 0
    %6405 = vmatmul.mubr.bf16.gmra.mxu0 %v4646
    %v6406 = vpop.f32.mrf.mxu0
    %v6407 = vadd.f32 %v6118, %v6406
    %v6408 = vpop.f32.mrf.mxu0
    %v6409 = vpop.f32.mrf.mxu0
    %v6410 = vadd.f32 %v6121, %v6409
    %v6411 = vpop.f32.mrf.mxu0
    %6412 = vmatprep.mubr.bf16.mxu0 0
    %6413 = vmatmul.mubr.bf16.gmra.mxu0 %v4649
    %v6414 = vpop.f32.mrf.mxu0
    %v6415 = vadd.f32 %v6126, %v6414
    %v6416 = vpop.f32.mrf.mxu0
    %v6417 = vpop.f32.mrf.mxu0
    %v6418 = vadd.f32 %v6129, %v6417
    %v6419 = vpop.f32.mrf.mxu0
    %6420 = vmatprep.mubr.bf16.mxu0 0
    %6421 = vmatmul.mubr.bf16.gmra.mxu0 %v4652
    %v6422 = vpop.f32.mrf.mxu0
    %v6423 = vadd.f32 %v6134, %v6422
    %v6424 = vpop.f32.mrf.mxu0
    %v6425 = vpop.f32.mrf.mxu0
    %v6426 = vadd.f32 %v6137, %v6425
    %v6427 = vpop.f32.mrf.mxu0
    %6428 = vmatprep.mubr.bf16.mxu0 0
    %6429 = vmatmul.mubr.bf16.gmra.mxu0 %v4655
    %v6430 = vpop.f32.mrf.mxu0
    %v6431 = vadd.f32 %v6142, %v6430
    %v6432 = vpop.f32.mrf.mxu0
    %v6433 = vpop.f32.mrf.mxu0
    %v6434 = vadd.f32 %v6145, %v6433
    %v6435 = vpop.f32.mrf.mxu0
    %6436 = vdwg.mxu0
    %v6437 = vmax.f32 %v5541, 0.0
    %v6438 = vmax.f32 %v5543, 0.0
    %v6439 = vmax.f32 %v6183, 0.0
    %v6440 = vmax.f32 %v5545, 0.0
    %v6441 = vmax.f32 %v5547, 0.0
    %v6442 = vmax.f32 %v6186, 0.0
    %v6443 = vmax.f32 %v5551, 0.0
    %v6444 = vmax.f32 %v5553, 0.0
    %v6445 = vmax.f32 %v6191, 0.0
    %v6446 = vmax.f32 %v5555, 0.0
    %v6447 = vmax.f32 %v5557, 0.0
    %v6448 = vmax.f32 %v6194, 0.0
    %v6449 = vmax.f32 %v5561, 0.0
    %v6450 = vmax.f32 %v5563, 0.0
    %v6451 = vmax.f32 %v6199, 0.0
    %v6452 = vmax.f32 %v5565, 0.0
    %v6453 = vmax.f32 %v5567, 0.0
    %v6454 = vmax.f32 %v6202, 0.0
    %v6455 = vmax.f32 %v5571, 0.0
    %v6456 = vmax.f32 %v5573, 0.0
    %v6457 = vmax.f32 %v6207, 0.0
    %v6458 = vmax.f32 %v5575, 0.0
    %v6459 = vmax.f32 %v5577, 0.0
    %v6460 = vmax.f32 %v6210, 0.0
    %v6461 = vmax.f32 %v5581, 0.0
    %v6462 = vmax.f32 %v5583, 0.0
    %v6463 = vmax.f32 %v6215, 0.0
    %v6464 = vmax.f32 %v5585, 0.0
    %v6465 = vmax.f32 %v5587, 0.0
    %v6466 = vmax.f32 %v6218, 0.0
    %v6467 = vmax.f32 %v5591, 0.0
    %v6468 = vmax.f32 %v5593, 0.0
    %v6469 = vmax.f32 %v6223, 0.0
    %v6470 = vmax.f32 %v5595, 0.0
    %v6471 = vmax.f32 %v5597, 0.0
    %v6472 = vmax.f32 %v6226, 0.0
    %v6473 = vmax.f32 %v5601, 0.0
    %v6474 = vmax.f32 %v5603, 0.0
    %v6475 = vmax.f32 %v6231, 0.0
    %v6476 = vmax.f32 %v5605, 0.0
    %v6477 = vmax.f32 %v5607, 0.0
    %v6478 = vmax.f32 %v6234, 0.0
    %v6479 = vmax.f32 %v5611, 0.0
    %v6480 = vmax.f32 %v5613, 0.0
    %v6481 = vmax.f32 %v6239, 0.0
    %v6482 = vmax.f32 %v5615, 0.0
    %v6483 = vmax.f32 %v5617, 0.0
    %v6484 = vmax.f32 %v6242, 0.0
    %v6485 = vmax.f32 %v5621, 0.0
    %v6486 = vmax.f32 %v5623, 0.0
    %v6487 = vmax.f32 %v6247, 0.0
    %v6488 = vmax.f32 %v5625, 0.0
    %v6489 = vmax.f32 %v5627, 0.0
    %v6490 = vmax.f32 %v6250, 0.0
    %v6491 = vmax.f32 %v5631, 0.0
    %v6492 = vmax.f32 %v5633, 0.0
    %v6493 = vmax.f32 %v6255, 0.0
    %v6494 = vmax.f32 %v5635, 0.0
    %v6495 = vmax.f32 %v5637, 0.0
    %v6496 = vmax.f32 %v6258, 0.0
    %v6497 = vmax.f32 %v5641, 0.0
    %v6498 = vmax.f32 %v5643, 0.0
    %v6499 = vmax.f32 %v6263, 0.0
    %v6500 = vmax.f32 %v5645, 0.0
    %v6501 = vmax.f32 %v5647, 0.0
    %v6502 = vmax.f32 %v6266, 0.0
    %v6503 = vmax.f32 %v5651, 0.0
    %v6504 = vmax.f32 %v5653, 0.0
    %v6505 = vmax.f32 %v6271, 0.0
    %v6506 = vmax.f32 %v5655, 0.0
    %v6507 = vmax.f32 %v5657, 0.0
    %v6508 = vmax.f32 %v6274, 0.0
    %v6509 = vmax.f32 %v5661, 0.0
    %v6510 = vmax.f32 %v5663, 0.0
    %v6511 = vmax.f32 %v6279, 0.0
    %v6512 = vmax.f32 %v5665, 0.0
    %v6513 = vmax.f32 %v5667, 0.0
    %v6514 = vmax.f32 %v6282, 0.0
    %v6515 = vmax.f32 %v5671, 0.0
    %v6516 = vmax.f32 %v5673, 0.0
    %v6517 = vmax.f32 %v6287, 0.0
    %v6518 = vmax.f32 %v5675, 0.0
    %v6519 = vmax.f32 %v5677, 0.0
    %v6520 = vmax.f32 %v6290, 0.0
    %v6521 = vmax.f32 %v5681, 0.0
    %v6522 = vmax.f32 %v5683, 0.0
    %v6523 = vmax.f32 %v6295, 0.0
    %v6524 = vmax.f32 %v5685, 0.0
    %v6525 = vmax.f32 %v5687, 0.0
    %v6526 = vmax.f32 %v6298, 0.0
    %v6527 = vmax.f32 %v5691, 0.0
    %v6528 = vmax.f32 %v5693, 0.0
    %v6529 = vmax.f32 %v6303, 0.0
    %v6530 = vmax.f32 %v5695, 0.0
    %v6531 = vmax.f32 %v5697, 0.0
    %v6532 = vmax.f32 %v6306, 0.0
    %v6533 = vmax.f32 %v5701, 0.0
    %v6534 = vmax.f32 %v5703, 0.0
    %v6535 = vmax.f32 %v6311, 0.0
    %v6536 = vmax.f32 %v5705, 0.0
    %v6537 = vmax.f32 %v5707, 0.0
    %v6538 = vmax.f32 %v6314, 0.0
    %v6539 = vmax.f32 %v5711, 0.0
    %v6540 = vmax.f32 %v5713, 0.0
    %v6541 = vmax.f32 %v6319, 0.0
    %v6542 = vmax.f32 %v5715, 0.0
    %v6543 = vmax.f32 %v5717, 0.0
    %v6544 = vmax.f32 %v6322, 0.0
    %v6545 = vmax.f32 %v5721, 0.0
    %v6546 = vmax.f32 %v5723, 0.0
    %v6547 = vmax.f32 %v6327, 0.0
    %v6548 = vmax.f32 %v5725, 0.0
    %v6549 = vmax.f32 %v5727, 0.0
    %v6550 = vmax.f32 %v6330, 0.0
    %v6551 = vmax.f32 %v5731, 0.0
    %v6552 = vmax.f32 %v5733, 0.0
    %v6553 = vmax.f32 %v6335, 0.0
    %v6554 = vmax.f32 %v5735, 0.0
    %v6555 = vmax.f32 %v5737, 0.0
    %v6556 = vmax.f32 %v6338, 0.0
    %v6557 = vmax.f32 %v5741, 0.0
    %v6558 = vmax.f32 %v5743, 0.0
    %v6559 = vmax.f32 %v6343, 0.0
    %v6560 = vmax.f32 %v5745, 0.0
    %v6561 = vmax.f32 %v5747, 0.0
    %v6562 = vmax.f32 %v6346, 0.0
    %v6563 = vmax.f32 %v5751, 0.0
    %v6564 = vmax.f32 %v5753, 0.0
    %v6565 = vmax.f32 %v6351, 0.0
    %v6566 = vmax.f32 %v5755, 0.0
    %v6567 = vmax.f32 %v5757, 0.0
    %v6568 = vmax.f32 %v6354, 0.0
    %v6569 = vmax.f32 %v5761, 0.0
    %v6570 = vmax.f32 %v5763, 0.0
    %v6571 = vmax.f32 %v6359, 0.0
    %v6572 = vmax.f32 %v5765, 0.0
    %v6573 = vmax.f32 %v5767, 0.0
    %v6574 = vmax.f32 %v6362, 0.0
    %v6575 = vmax.f32 %v5771, 0.0
    %v6576 = vmax.f32 %v5773, 0.0
    %v6577 = vmax.f32 %v6367, 0.0
    %v6578 = vmax.f32 %v5775, 0.0
    %v6579 = vmax.f32 %v5777, 0.0
    %v6580 = vmax.f32 %v6370, 0.0
    %v6581 = vmax.f32 %v5781, 0.0
    %v6582 = vmax.f32 %v5783, 0.0
    %v6583 = vmax.f32 %v6375, 0.0
    %v6584 = vmax.f32 %v5785, 0.0
    %v6585 = vmax.f32 %v5787, 0.0
    %v6586 = vmax.f32 %v6378, 0.0
    %v6587 = vmax.f32 %v5791, 0.0
    %v6588 = vmax.f32 %v5793, 0.0
    %v6589 = vmax.f32 %v6383, 0.0
    %v6590 = vmax.f32 %v5795, 0.0
    %v6591 = vmax.f32 %v5797, 0.0
    %v6592 = vmax.f32 %v6386, 0.0
    %v6593 = vmax.f32 %v5801, 0.0
    %v6594 = vmax.f32 %v5803, 0.0
    %v6595 = vmax.f32 %v6391, 0.0
    %v6596 = vmax.f32 %v5805, 0.0
    %v6597 = vmax.f32 %v5807, 0.0
    %v6598 = vmax.f32 %v6394, 0.0
    %v6599 = vmax.f32 %v5811, 0.0
    %v6600 = vmax.f32 %v5813, 0.0
    %v6601 = vmax.f32 %v6399, 0.0
    %v6602 = vmax.f32 %v5815, 0.0
    %v6603 = vmax.f32 %v5817, 0.0
    %v6604 = vmax.f32 %v6402, 0.0
    %v6605 = vmax.f32 %v5821, 0.0
    %v6606 = vmax.f32 %v5823, 0.0
    %v6607 = vmax.f32 %v6407, 0.0
    %v6608 = vmax.f32 %v5825, 0.0
    %v6609 = vmax.f32 %v5827, 0.0
    %v6610 = vmax.f32 %v6410, 0.0
    %v6611 = vmax.f32 %v5831, 0.0
    %v6612 = vmax.f32 %v5833, 0.0
    %v6613 = vmax.f32 %v6415, 0.0
    %v6614 = vmax.f32 %v5835, 0.0
    %v6615 = vmax.f32 %v5837, 0.0
    %v6616 = vmax.f32 %v6418, 0.0
    %v6617 = vmax.f32 %v5841, 0.0
    %v6618 = vmax.f32 %v5843, 0.0
    %v6619 = vmax.f32 %v6423, 0.0
    %v6620 = vmax.f32 %v5845, 0.0
    %v6621 = vmax.f32 %v5847, 0.0
    %v6622 = vmax.f32 %v6426, 0.0
    %v6623 = vmax.f32 %v5851, 0.0
    %v6624 = vmax.f32 %v5853, 0.0
    %v6625 = vmax.f32 %v6431, 0.0
    %v6626 = vmax.f32 %v5855, 0.0
    %v6627 = vmax.f32 %v5857, 0.0
    %v6628 = vmax.f32 %v6434, 0.0
    %v6629 = vpack.c.bf16 %v6440, %v6437
    %v6630 = vpack.c.bf16 %v6441, %v6438
    %v6631 = vpack.c.bf16 %v6442, %v6439
    %v6632 = vpack.c.bf16 %v6446, %v6443
    %v6633 = vpack.c.bf16 %v6447, %v6444
    %v6634 = vpack.c.bf16 %v6448, %v6445
    %v6635 = vpack.c.bf16 %v6452, %v6449
    %v6636 = vpack.c.bf16 %v6453, %v6450
    %v6637 = vpack.c.bf16 %v6454, %v6451
    %v6638 = vpack.c.bf16 %v6458, %v6455
    %v6639 = vpack.c.bf16 %v6459, %v6456
    %v6640 = vpack.c.bf16 %v6460, %v6457
    %v6641 = vpack.c.bf16 %v6464, %v6461
    %v6642 = vpack.c.bf16 %v6465, %v6462
    %v6643 = vpack.c.bf16 %v6466, %v6463
    %v6644 = vpack.c.bf16 %v6470, %v6467
    %v6645 = vpack.c.bf16 %v6471, %v6468
    %v6646 = vpack.c.bf16 %v6472, %v6469
    %v6647 = vpack.c.bf16 %v6476, %v6473
    %v6648 = vpack.c.bf16 %v6477, %v6474
    %v6649 = vpack.c.bf16 %v6478, %v6475
    %v6650 = vpack.c.bf16 %v6482, %v6479
    %v6651 = vpack.c.bf16 %v6483, %v6480
    %v6652 = vpack.c.bf16 %v6484, %v6481
    %v6653 = vpack.c.bf16 %v6488, %v6485
    %v6654 = vpack.c.bf16 %v6489, %v6486
    %v6655 = vpack.c.bf16 %v6490, %v6487
    %v6656 = vpack.c.bf16 %v6494, %v6491
    %v6657 = vpack.c.bf16 %v6495, %v6492
    %v6658 = vpack.c.bf16 %v6496, %v6493
    %v6659 = vpack.c.bf16 %v6500, %v6497
    %v6660 = vpack.c.bf16 %v6501, %v6498
    %v6661 = vpack.c.bf16 %v6502, %v6499
    %v6662 = vpack.c.bf16 %v6506, %v6503
    %v6663 = vpack.c.bf16 %v6507, %v6504
    %v6664 = vpack.c.bf16 %v6508, %v6505
    %v6665 = vpack.c.bf16 %v6512, %v6509
    %v6666 = vpack.c.bf16 %v6513, %v6510
    %v6667 = vpack.c.bf16 %v6514, %v6511
    %v6668 = vpack.c.bf16 %v6518, %v6515
    %v6669 = vpack.c.bf16 %v6519, %v6516
    %v6670 = vpack.c.bf16 %v6520, %v6517
    %v6671 = vpack.c.bf16 %v6524, %v6521
    %v6672 = vpack.c.bf16 %v6525, %v6522
    %v6673 = vpack.c.bf16 %v6526, %v6523
    %v6674 = vpack.c.bf16 %v6530, %v6527
    %v6675 = vpack.c.bf16 %v6531, %v6528
    %v6676 = vpack.c.bf16 %v6532, %v6529
    %v6677 = vpack.c.bf16 %v6536, %v6533
    %v6678 = vpack.c.bf16 %v6537, %v6534
    %v6679 = vpack.c.bf16 %v6538, %v6535
    %v6680 = vpack.c.bf16 %v6542, %v6539
    %v6681 = vpack.c.bf16 %v6543, %v6540
    %v6682 = vpack.c.bf16 %v6544, %v6541
    %v6683 = vpack.c.bf16 %v6548, %v6545
    %v6684 = vpack.c.bf16 %v6549, %v6546
    %v6685 = vpack.c.bf16 %v6550, %v6547
    %v6686 = vpack.c.bf16 %v6554, %v6551
    %v6687 = vpack.c.bf16 %v6555, %v6552
    %v6688 = vpack.c.bf16 %v6556, %v6553
    %v6689 = vpack.c.bf16 %v6560, %v6557
    %v6690 = vpack.c.bf16 %v6561, %v6558
    %v6691 = vpack.c.bf16 %v6562, %v6559
    %v6692 = vpack.c.bf16 %v6566, %v6563
    %v6693 = vpack.c.bf16 %v6567, %v6564
    %v6694 = vpack.c.bf16 %v6568, %v6565
    %v6695 = vpack.c.bf16 %v6572, %v6569
    %v6696 = vpack.c.bf16 %v6573, %v6570
    %v6697 = vpack.c.bf16 %v6574, %v6571
    %v6698 = vpack.c.bf16 %v6578, %v6575
    %v6699 = vpack.c.bf16 %v6579, %v6576
    %v6700 = vpack.c.bf16 %v6580, %v6577
    %v6701 = vpack.c.bf16 %v6584, %v6581
    %v6702 = vpack.c.bf16 %v6585, %v6582
    %v6703 = vpack.c.bf16 %v6586, %v6583
    %v6704 = vpack.c.bf16 %v6590, %v6587
    %v6705 = vpack.c.bf16 %v6591, %v6588
    %v6706 = vpack.c.bf16 %v6592, %v6589
    %v6707 = vpack.c.bf16 %v6596, %v6593
    %v6708 = vpack.c.bf16 %v6597, %v6594
    %v6709 = vpack.c.bf16 %v6598, %v6595
    %v6710 = vpack.c.bf16 %v6602, %v6599
    %v6711 = vpack.c.bf16 %v6603, %v6600
    %v6712 = vpack.c.bf16 %v6604, %v6601
    %v6713 = vpack.c.bf16 %v6608, %v6605
    %v6714 = vpack.c.bf16 %v6609, %v6606
    %v6715 = vpack.c.bf16 %v6610, %v6607
    %v6716 = vpack.c.bf16 %v6614, %v6611
    %v6717 = vpack.c.bf16 %v6615, %v6612
    %v6718 = vpack.c.bf16 %v6616, %v6613
    %v6719 = vpack.c.bf16 %v6620, %v6617
    %v6720 = vpack.c.bf16 %v6621, %v6618
    %v6721 = vpack.c.bf16 %v6622, %v6619
    %v6722 = vpack.c.bf16 %v6626, %v6623
    %v6723 = vpack.c.bf16 %v6627, %v6624
    %v6724 = vpack.c.bf16 %v6628, %v6625
    %v6725 = vld [vmem:[%s5] sm:$0xff]
    %v6726 = vld [vmem:[%s5 + $0x8] sm:$0xff]
    %v6727 = vld [vmem:[%s5 + $0x10] sm:$0xff]
    %v6728 = vld [vmem:[%s5 + $0x18] sm:$0xff]
    %v6729 = vld [vmem:[%s5 + $0x20] sm:$0xff]
    %v6730 = vld [vmem:[%s5 + $0x28] sm:$0xff]
    %v6731 = vld [vmem:[%s5 + $0x30] sm:$0xff]
    %v6732 = vld [vmem:[%s5 + $0x38] sm:$0xff]
    %v6733 = vld [vmem:[%s5 + $0x40] sm:$0xff]
    %v6734 = vld [vmem:[%s5 + $0x48] sm:$0xff]
    %v6735 = vld [vmem:[%s5 + $0x50] sm:$0xff]
    %v6736 = vld [vmem:[%s5 + $0x58] sm:$0xff]
    %v6737 = vld [vmem:[%s5 + $0x60] sm:$0xff]
    %v6738 = vld [vmem:[%s5 + $0x68] sm:$0xff]
    %v6739 = vld [vmem:[%s5 + $0x70] sm:$0xff]
    %v6740 = vld [vmem:[%s5 + $0x78] sm:$0xff]
    %v6741 = vld [vmem:[%s5 + $0x80] sm:$0xff]
    %v6742 = vld [vmem:[%s5 + $0x88] sm:$0xff]
    %v6743 = vld [vmem:[%s5 + $0x90] sm:$0xff]
    %v6744 = vld [vmem:[%s5 + $0x98] sm:$0xff]
    %v6745 = vld [vmem:[%s5 + $0xa0] sm:$0xff]
    %v6746 = vld [vmem:[%s5 + $0xa8] sm:$0xff]
    %v6747 = vld [vmem:[%s5 + $0xb0] sm:$0xff]
    %v6748 = vld [vmem:[%s5 + $0xb8] sm:$0xff]
    %v6749 = vld [vmem:[%s5 + $0xc0] sm:$0xff]
    %v6750 = vld [vmem:[%s5 + $0xc8] sm:$0xff]
    %v6751 = vld [vmem:[%s5 + $0xd0] sm:$0xff]
    %v6752 = vld [vmem:[%s5 + $0xd8] sm:$0xff]
    %v6753 = vld [vmem:[%s5 + $0xe0] sm:$0xff]
    %v6754 = vld [vmem:[%s5 + $0xe8] sm:$0xff]
    %v6755 = vld [vmem:[%s5 + $0xf0] sm:$0xff]
    %v6756 = vld [vmem:[%s5 + $0xf8] sm:$0xff]
    %v6757 = vld [vmem:[%s5 + $0x100] sm:$0xff]
    %v6758 = vld [vmem:[%s5 + $0x108] sm:$0xff]
    %v6759 = vld [vmem:[%s5 + $0x110] sm:$0xff]
    %v6760 = vld [vmem:[%s5 + $0x118] sm:$0xff]
    %v6761 = vld [vmem:[%s5 + $0x120] sm:$0xff]
    %v6762 = vld [vmem:[%s5 + $0x128] sm:$0xff]
    %v6763 = vld [vmem:[%s5 + $0x130] sm:$0xff]
    %v6764 = vld [vmem:[%s5 + $0x138] sm:$0xff]
    %v6765 = vld [vmem:[%s5 + $0x140] sm:$0xff]
    %v6766 = vld [vmem:[%s5 + $0x148] sm:$0xff]
    %v6767 = vld [vmem:[%s5 + $0x150] sm:$0xff]
    %v6768 = vld [vmem:[%s5 + $0x158] sm:$0xff]
    %v6769 = vld [vmem:[%s5 + $0x160] sm:$0xff]
    %v6770 = vld [vmem:[%s5 + $0x168] sm:$0xff]
    %v6771 = vld [vmem:[%s5 + $0x170] sm:$0xff]
    %v6772 = vld [vmem:[%s5 + $0x178] sm:$0xff]
    %v6773 = vld [vmem:[%s6] sm:$0x3]
    %v6775 = vlaneseq
    %v6776 = vshrl.u32 %v6775, 7
    %v6777 = vsub.s32 0, %v6776
    %v6778 = vrot.slane %v6773, %v6777
    %v6779 = vlaneseq
    %v6780 = vshrl.u32 %v6779, 7
    %v6781 = vsub.s32 1, %v6780
    %v6782 = vrot.slane %v6773, %v6781
    %v6833 = vunpack.c.l.b16 %v6725
    %v6834 = vunpack.c.h.b16 %v6725
    %v6835 = vunpack.c.l.b16 %v6726
    %v6836 = vunpack.c.h.b16 %v6726
    %v6837 = vunpack.c.l.b16 %v6727
    %v6838 = vunpack.c.h.b16 %v6727
    %v6839 = vunpack.c.l.b16 %v6728
    %v6840 = vunpack.c.h.b16 %v6728
    %v6841 = vunpack.c.l.b16 %v6729
    %v6842 = vunpack.c.h.b16 %v6729
    %v6843 = vunpack.c.l.b16 %v6730
    %v6844 = vunpack.c.h.b16 %v6730
    %v6845 = vunpack.c.l.b16 %v6731
    %v6846 = vunpack.c.h.b16 %v6731
    %v6847 = vunpack.c.l.b16 %v6732
    %v6848 = vunpack.c.h.b16 %v6732
    %v6849 = vunpack.c.l.b16 %v6733
    %v6850 = vunpack.c.h.b16 %v6733
    %v6851 = vunpack.c.l.b16 %v6734
    %v6852 = vunpack.c.h.b16 %v6734
    %v6853 = vunpack.c.l.b16 %v6735
    %v6854 = vunpack.c.h.b16 %v6735
    %v6855 = vunpack.c.l.b16 %v6736
    %v6856 = vunpack.c.h.b16 %v6736
    %v6857 = vunpack.c.l.b16 %v6737
    %v6858 = vunpack.c.h.b16 %v6737
    %v6859 = vunpack.c.l.b16 %v6738
    %v6860 = vunpack.c.h.b16 %v6738
    %v6861 = vunpack.c.l.b16 %v6739
    %v6862 = vunpack.c.h.b16 %v6739
    %v6863 = vunpack.c.l.b16 %v6740
    %v6864 = vunpack.c.h.b16 %v6740
    %v6865 = vunpack.c.l.b16 %v6741
    %v6866 = vunpack.c.h.b16 %v6741
    %v6867 = vunpack.c.l.b16 %v6742
    %v6868 = vunpack.c.h.b16 %v6742
    %v6869 = vunpack.c.l.b16 %v6743
    %v6870 = vunpack.c.h.b16 %v6743
    %v6871 = vunpack.c.l.b16 %v6744
    %v6872 = vunpack.c.h.b16 %v6744
    %v6873 = vunpack.c.l.b16 %v6745
    %v6874 = vunpack.c.h.b16 %v6745
    %v6875 = vunpack.c.l.b16 %v6746
    %v6876 = vunpack.c.h.b16 %v6746
    %v6877 = vunpack.c.l.b16 %v6747
    %v6878 = vunpack.c.h.b16 %v6747
    %v6879 = vunpack.c.l.b16 %v6748
    %v6880 = vunpack.c.h.b16 %v6748
    %v6881 = vunpack.c.l.b16 %v6749
    %v6882 = vunpack.c.h.b16 %v6749
    %v6883 = vunpack.c.l.b16 %v6750
    %v6884 = vunpack.c.h.b16 %v6750
    %v6885 = vunpack.c.l.b16 %v6751
    %v6886 = vunpack.c.h.b16 %v6751
    %v6887 = vunpack.c.l.b16 %v6752
    %v6888 = vunpack.c.h.b16 %v6752
    %v6889 = vunpack.c.l.b16 %v6753
    %v6890 = vunpack.c.h.b16 %v6753
    %v6891 = vunpack.c.l.b16 %v6754
    %v6892 = vunpack.c.h.b16 %v6754
    %v6893 = vunpack.c.l.b16 %v6755
    %v6894 = vunpack.c.h.b16 %v6755
    %v6895 = vunpack.c.l.b16 %v6756
    %v6896 = vunpack.c.h.b16 %v6756
    %v6897 = vunpack.c.l.b16 %v6757
    %v6898 = vunpack.c.h.b16 %v6757
    %v6899 = vunpack.c.l.b16 %v6758
    %v6900 = vunpack.c.h.b16 %v6758
    %v6901 = vunpack.c.l.b16 %v6759
    %v6902 = vunpack.c.h.b16 %v6759
    %v6903 = vunpack.c.l.b16 %v6760
    %v6904 = vunpack.c.h.b16 %v6760
    %v6905 = vunpack.c.l.b16 %v6761
    %v6906 = vunpack.c.h.b16 %v6761
    %v6907 = vunpack.c.l.b16 %v6762
    %v6908 = vunpack.c.h.b16 %v6762
    %v6909 = vunpack.c.l.b16 %v6763
    %v6910 = vunpack.c.h.b16 %v6763
    %v6911 = vunpack.c.l.b16 %v6764
    %v6912 = vunpack.c.h.b16 %v6764
    %v6913 = vunpack.c.l.b16 %v6765
    %v6914 = vunpack.c.h.b16 %v6765
    %v6915 = vunpack.c.l.b16 %v6766
    %v6916 = vunpack.c.h.b16 %v6766
    %v6917 = vunpack.c.l.b16 %v6767
    %v6918 = vunpack.c.h.b16 %v6767
    %v6919 = vunpack.c.l.b16 %v6768
    %v6920 = vunpack.c.h.b16 %v6768
    %v6921 = vunpack.c.l.b16 %v6769
    %v6922 = vunpack.c.h.b16 %v6769
    %v6923 = vunpack.c.l.b16 %v6770
    %v6924 = vunpack.c.h.b16 %v6770
    %v6925 = vunpack.c.l.b16 %v6771
    %v6926 = vunpack.c.h.b16 %v6771
    %v6927 = vunpack.c.l.b16 %v6772
    %v6928 = vunpack.c.h.b16 %v6772
    %v6929 = vpack.c.b16 %v6835, %v6833
    %v6930 = vpack.c.b16 %v6836, %v6834
    %v6931 = vpack.c.b16 %v6839, %v6837
    %v6932 = vpack.c.b16 %v6840, %v6838
    %v6933 = vpack.c.b16 %v6843, %v6841
    %v6934 = vpack.c.b16 %v6844, %v6842
    %v6935 = vpack.c.b16 %v6847, %v6845
    %v6936 = vpack.c.b16 %v6848, %v6846
    %v6937 = vpack.c.b16 %v6851, %v6849
    %v6938 = vpack.c.b16 %v6852, %v6850
    %v6939 = vpack.c.b16 %v6855, %v6853
    %v6940 = vpack.c.b16 %v6856, %v6854
    %v6941 = vpack.c.b16 %v6859, %v6857
    %v6942 = vpack.c.b16 %v6860, %v6858
    %v6943 = vpack.c.b16 %v6863, %v6861
    %v6944 = vpack.c.b16 %v6864, %v6862
    %v6945 = vpack.c.b16 %v6867, %v6865
    %v6946 = vpack.c.b16 %v6868, %v6866
    %v6947 = vpack.c.b16 %v6871, %v6869
    %v6948 = vpack.c.b16 %v6872, %v6870
    %v6949 = vpack.c.b16 %v6875, %v6873
    %v6950 = vpack.c.b16 %v6876, %v6874
    %v6951 = vpack.c.b16 %v6879, %v6877
    %v6952 = vpack.c.b16 %v6880, %v6878
    %v6953 = vpack.c.b16 %v6883, %v6881
    %v6954 = vpack.c.b16 %v6884, %v6882
    %v6955 = vpack.c.b16 %v6887, %v6885
    %v6956 = vpack.c.b16 %v6888, %v6886
    %v6957 = vpack.c.b16 %v6891, %v6889
    %v6958 = vpack.c.b16 %v6892, %v6890
    %v6959 = vpack.c.b16 %v6895, %v6893
    %v6960 = vpack.c.b16 %v6896, %v6894
    %v6961 = vpack.c.b16 %v6899, %v6897
    %v6962 = vpack.c.b16 %v6900, %v6898
    %v6963 = vpack.c.b16 %v6903, %v6901
    %v6964 = vpack.c.b16 %v6904, %v6902
    %v6965 = vpack.c.b16 %v6907, %v6905
    %v6966 = vpack.c.b16 %v6908, %v6906
    %v6967 = vpack.c.b16 %v6911, %v6909
    %v6968 = vpack.c.b16 %v6912, %v6910
    %v6969 = vpack.c.b16 %v6915, %v6913
    %v6970 = vpack.c.b16 %v6916, %v6914
    %v6971 = vpack.c.b16 %v6919, %v6917
    %v6972 = vpack.c.b16 %v6920, %v6918
    %v6973 = vpack.c.b16 %v6923, %v6921
    %v6974 = vpack.c.b16 %v6924, %v6922
    %v6975 = vpack.c.b16 %v6927, %v6925
    %v6976 = vpack.c.b16 %v6928, %v6926
    %7025 = vmatprep.subr.bf16.mxu0 %v6944
    %7026 = vmatpush1.bf16.msra.mxu0 %v6943
    %7027 = vmatprep.subr.bf16.mxu0 %v6942
    %7028 = vmatpush1.bf16.msra.mxu0 %v6941
    %7029 = vmatprep.subr.bf16.mxu0 %v6940
    %7030 = vmatpush1.bf16.msra.mxu0 %v6939
    %7031 = vmatprep.subr.bf16.mxu0 %v6938
    %7032 = vmatpush1.bf16.msra.mxu0 %v6937
    %7033 = vmatprep.subr.bf16.mxu0 %v6936
    %7034 = vmatpush1.bf16.msra.mxu0 %v6935
    %7035 = vmatprep.subr.bf16.mxu0 %v6934
    %7036 = vmatpush1.bf16.msra.mxu0 %v6933
    %7037 = vmatprep.subr.bf16.mxu0 %v6932
    %7038 = vmatpush1.bf16.msra.mxu0 %v6931
    %7039 = vmatprep.subr.bf16.mxu0 %v6930
    %7040 = vmatpush1.bf16.msra.mxu0 %v6929
    %7041 = vmatprep.subr.bf16.mxu0 %v6960
    %7042 = vmatpush2.bf16.msra.mxu0 %v6959
    %7043 = vmatprep.subr.bf16.mxu0 %v6958
    %7044 = vmatpush2.bf16.msra.mxu0 %v6957
    %7045 = vmatprep.subr.bf16.mxu0 %v6956
    %7046 = vmatpush2.bf16.msra.mxu0 %v6955
    %7047 = vmatprep.subr.bf16.mxu0 %v6954
    %7048 = vmatpush2.bf16.msra.mxu0 %v6953
    %7049 = vmatprep.subr.bf16.mxu0 %v6952
    %7050 = vmatpush2.bf16.msra.mxu0 %v6951
    %7051 = vmatprep.subr.bf16.mxu0 %v6950
    %7052 = vmatpush2.bf16.msra.mxu0 %v6949
    %7053 = vmatprep.subr.bf16.mxu0 %v6948
    %7054 = vmatpush2.bf16.msra.mxu0 %v6947
    %7055 = vmatprep.subr.bf16.mxu0 %v6946
    %7056 = vmatpush2.bf16.msra.mxu0 %v6945
    %7057 = vmatprep.mubr.bf16.mxu0 %v6630
    %7058 = vmatmul.mubr.bf16.gmra.mxu0 %v6629
    %v7059 = vpop.f32.mrf.mxu0
    %v7060 = vadd.f32 %v6778, %v7059
    %v7061 = vpop.f32.mrf.mxu0
    %v7062 = vadd.f32 %v6782, %v7061
    %v7063 = vpop.f32.mrf.mxu0
    %v7064 = vadd.f32 %v6778, %v7063
    %v7065 = vpop.f32.mrf.mxu0
    %v7066 = vadd.f32 %v6782, %v7065
    %7067 = vmatprep.mubr.bf16.mxu0 %v6633
    %7068 = vmatmul.mubr.bf16.gmra.mxu0 %v6632
    %v7069 = vpop.f32.mrf.mxu0
    %v7070 = vadd.f32 %v6778, %v7069
    %v7071 = vpop.f32.mrf.mxu0
    %v7072 = vadd.f32 %v6782, %v7071
    %v7073 = vpop.f32.mrf.mxu0
    %v7074 = vadd.f32 %v6778, %v7073
    %v7075 = vpop.f32.mrf.mxu0
    %v7076 = vadd.f32 %v6782, %v7075
    %7077 = vmatprep.mubr.bf16.mxu0 %v6636
    %7078 = vmatmul.mubr.bf16.gmra.mxu0 %v6635
    %v7079 = vpop.f32.mrf.mxu0
    %v7080 = vadd.f32 %v6778, %v7079
    %v7081 = vpop.f32.mrf.mxu0
    %v7082 = vadd.f32 %v6782, %v7081
    %v7083 = vpop.f32.mrf.mxu0
    %v7084 = vadd.f32 %v6778, %v7083
    %v7085 = vpop.f32.mrf.mxu0
    %v7086 = vadd.f32 %v6782, %v7085
    %7087 = vmatprep.mubr.bf16.mxu0 %v6639
    %7088 = vmatmul.mubr.bf16.gmra.mxu0 %v6638
    %v7089 = vpop.f32.mrf.mxu0
    %v7090 = vadd.f32 %v6778, %v7089
    %v7091 = vpop.f32.mrf.mxu0
    %v7092 = vadd.f32 %v6782, %v7091
    %v7093 = vpop.f32.mrf.mxu0
    %v7094 = vadd.f32 %v6778, %v7093
    %v7095 = vpop.f32.mrf.mxu0
    %v7096 = vadd.f32 %v6782, %v7095
    %7097 = vmatprep.mubr.bf16.mxu0 %v6642
    %7098 = vmatmul.mubr.bf16.gmra.mxu0 %v6641
    %v7099 = vpop.f32.mrf.mxu0
    %v7100 = vadd.f32 %v6778, %v7099
    %v7101 = vpop.f32.mrf.mxu0
    %v7102 = vadd.f32 %v6782, %v7101
    %v7103 = vpop.f32.mrf.mxu0
    %v7104 = vadd.f32 %v6778, %v7103
    %v7105 = vpop.f32.mrf.mxu0
    %v7106 = vadd.f32 %v6782, %v7105
    %7107 = vmatprep.mubr.bf16.mxu0 %v6645
    %7108 = vmatmul.mubr.bf16.gmra.mxu0 %v6644
    %v7109 = vpop.f32.mrf.mxu0
    %v7110 = vadd.f32 %v6778, %v7109
    %v7111 = vpop.f32.mrf.mxu0
    %v7112 = vadd.f32 %v6782, %v7111
    %v7113 = vpop.f32.mrf.mxu0
    %v7114 = vadd.f32 %v6778, %v7113
    %v7115 = vpop.f32.mrf.mxu0
    %v7116 = vadd.f32 %v6782, %v7115
    %7117 = vmatprep.mubr.bf16.mxu0 %v6648
    %7118 = vmatmul.mubr.bf16.gmra.mxu0 %v6647
    %v7119 = vpop.f32.mrf.mxu0
    %v7120 = vadd.f32 %v6778, %v7119
    %v7121 = vpop.f32.mrf.mxu0
    %v7122 = vadd.f32 %v6782, %v7121
    %v7123 = vpop.f32.mrf.mxu0
    %v7124 = vadd.f32 %v6778, %v7123
    %v7125 = vpop.f32.mrf.mxu0
    %v7126 = vadd.f32 %v6782, %v7125
    %7127 = vmatprep.mubr.bf16.mxu0 %v6651
    %7128 = vmatmul.mubr.bf16.gmra.mxu0 %v6650
    %v7129 = vpop.f32.mrf.mxu0
    %v7130 = vadd.f32 %v6778, %v7129
    %v7131 = vpop.f32.mrf.mxu0
    %v7132 = vadd.f32 %v6782, %v7131
    %v7133 = vpop.f32.mrf.mxu0
    %v7134 = vadd.f32 %v6778, %v7133
    %v7135 = vpop.f32.mrf.mxu0
    %v7136 = vadd.f32 %v6782, %v7135
    %7137 = vmatprep.mubr.bf16.mxu0 %v6654
    %7138 = vmatmul.mubr.bf16.gmra.mxu0 %v6653
    %v7139 = vpop.f32.mrf.mxu0
    %v7140 = vadd.f32 %v6778, %v7139
    %v7141 = vpop.f32.mrf.mxu0
    %v7142 = vadd.f32 %v6782, %v7141
    %v7143 = vpop.f32.mrf.mxu0
    %v7144 = vadd.f32 %v6778, %v7143
    %v7145 = vpop.f32.mrf.mxu0
    %v7146 = vadd.f32 %v6782, %v7145
    %7147 = vmatprep.mubr.bf16.mxu0 %v6657
    %7148 = vmatmul.mubr.bf16.gmra.mxu0 %v6656
    %v7149 = vpop.f32.mrf.mxu0
    %v7150 = vadd.f32 %v6778, %v7149
    %v7151 = vpop.f32.mrf.mxu0
    %v7152 = vadd.f32 %v6782, %v7151
    %v7153 = vpop.f32.mrf.mxu0
    %v7154 = vadd.f32 %v6778, %v7153
    %v7155 = vpop.f32.mrf.mxu0
    %v7156 = vadd.f32 %v6782, %v7155
    %7157 = vmatprep.mubr.bf16.mxu0 %v6660
    %7158 = vmatmul.mubr.bf16.gmra.mxu0 %v6659
    %v7159 = vpop.f32.mrf.mxu0
    %v7160 = vadd.f32 %v6778, %v7159
    %v7161 = vpop.f32.mrf.mxu0
    %v7162 = vadd.f32 %v6782, %v7161
    %v7163 = vpop.f32.mrf.mxu0
    %v7164 = vadd.f32 %v6778, %v7163
    %v7165 = vpop.f32.mrf.mxu0
    %v7166 = vadd.f32 %v6782, %v7165
    %7167 = vmatprep.mubr.bf16.mxu0 %v6663
    %7168 = vmatmul.mubr.bf16.gmra.mxu0 %v6662
    %v7169 = vpop.f32.mrf.mxu0
    %v7170 = vadd.f32 %v6778, %v7169
    %v7171 = vpop.f32.mrf.mxu0
    %v7172 = vadd.f32 %v6782, %v7171
    %v7173 = vpop.f32.mrf.mxu0
    %v7174 = vadd.f32 %v6778, %v7173
    %v7175 = vpop.f32.mrf.mxu0
    %v7176 = vadd.f32 %v6782, %v7175
    %7177 = vmatprep.mubr.bf16.mxu0 %v6666
    %7178 = vmatmul.mubr.bf16.gmra.mxu0 %v6665
    %v7179 = vpop.f32.mrf.mxu0
    %v7180 = vadd.f32 %v6778, %v7179
    %v7181 = vpop.f32.mrf.mxu0
    %v7182 = vadd.f32 %v6782, %v7181
    %v7183 = vpop.f32.mrf.mxu0
    %v7184 = vadd.f32 %v6778, %v7183
    %v7185 = vpop.f32.mrf.mxu0
    %v7186 = vadd.f32 %v6782, %v7185
    %7187 = vmatprep.mubr.bf16.mxu0 %v6669
    %7188 = vmatmul.mubr.bf16.gmra.mxu0 %v6668
    %v7189 = vpop.f32.mrf.mxu0
    %v7190 = vadd.f32 %v6778, %v7189
    %v7191 = vpop.f32.mrf.mxu0
    %v7192 = vadd.f32 %v6782, %v7191
    %v7193 = vpop.f32.mrf.mxu0
    %v7194 = vadd.f32 %v6778, %v7193
    %v7195 = vpop.f32.mrf.mxu0
    %v7196 = vadd.f32 %v6782, %v7195
    %7197 = vmatprep.mubr.bf16.mxu0 %v6672
    %7198 = vmatmul.mubr.bf16.gmra.mxu0 %v6671
    %v7199 = vpop.f32.mrf.mxu0
    %v7200 = vadd.f32 %v6778, %v7199
    %v7201 = vpop.f32.mrf.mxu0
    %v7202 = vadd.f32 %v6782, %v7201
    %v7203 = vpop.f32.mrf.mxu0
    %v7204 = vadd.f32 %v6778, %v7203
    %v7205 = vpop.f32.mrf.mxu0
    %v7206 = vadd.f32 %v6782, %v7205
    %7207 = vmatprep.mubr.bf16.mxu0 %v6675
    %7208 = vmatmul.mubr.bf16.gmra.mxu0 %v6674
    %v7209 = vpop.f32.mrf.mxu0
    %v7210 = vadd.f32 %v6778, %v7209
    %v7211 = vpop.f32.mrf.mxu0
    %v7212 = vadd.f32 %v6782, %v7211
    %v7213 = vpop.f32.mrf.mxu0
    %v7214 = vadd.f32 %v6778, %v7213
    %v7215 = vpop.f32.mrf.mxu0
    %v7216 = vadd.f32 %v6782, %v7215
    %7217 = vmatprep.mubr.bf16.mxu0 %v6678
    %7218 = vmatmul.mubr.bf16.gmra.mxu0 %v6677
    %v7219 = vpop.f32.mrf.mxu0
    %v7220 = vadd.f32 %v6778, %v7219
    %v7221 = vpop.f32.mrf.mxu0
    %v7222 = vadd.f32 %v6782, %v7221
    %v7223 = vpop.f32.mrf.mxu0
    %v7224 = vadd.f32 %v6778, %v7223
    %v7225 = vpop.f32.mrf.mxu0
    %v7226 = vadd.f32 %v6782, %v7225
    %7227 = vmatprep.mubr.bf16.mxu0 %v6681
    %7228 = vmatmul.mubr.bf16.gmra.mxu0 %v6680
    %v7229 = vpop.f32.mrf.mxu0
    %v7230 = vadd.f32 %v6778, %v7229
    %v7231 = vpop.f32.mrf.mxu0
    %v7232 = vadd.f32 %v6782, %v7231
    %v7233 = vpop.f32.mrf.mxu0
    %v7234 = vadd.f32 %v6778, %v7233
    %v7235 = vpop.f32.mrf.mxu0
    %v7236 = vadd.f32 %v6782, %v7235
    %7237 = vmatprep.mubr.bf16.mxu0 %v6684
    %7238 = vmatmul.mubr.bf16.gmra.mxu0 %v6683
    %v7239 = vpop.f32.mrf.mxu0
    %v7240 = vadd.f32 %v6778, %v7239
    %v7241 = vpop.f32.mrf.mxu0
    %v7242 = vadd.f32 %v6782, %v7241
    %v7243 = vpop.f32.mrf.mxu0
    %v7244 = vadd.f32 %v6778, %v7243
    %v7245 = vpop.f32.mrf.mxu0
    %v7246 = vadd.f32 %v6782, %v7245
    %7247 = vmatprep.mubr.bf16.mxu0 %v6687
    %7248 = vmatmul.mubr.bf16.gmra.mxu0 %v6686
    %v7249 = vpop.f32.mrf.mxu0
    %v7250 = vadd.f32 %v6778, %v7249
    %v7251 = vpop.f32.mrf.mxu0
    %v7252 = vadd.f32 %v6782, %v7251
    %v7253 = vpop.f32.mrf.mxu0
    %v7254 = vadd.f32 %v6778, %v7253
    %v7255 = vpop.f32.mrf.mxu0
    %v7256 = vadd.f32 %v6782, %v7255
    %7257 = vmatprep.mubr.bf16.mxu0 %v6690
    %7258 = vmatmul.mubr.bf16.gmra.mxu0 %v6689
    %v7259 = vpop.f32.mrf.mxu0
    %v7260 = vadd.f32 %v6778, %v7259
    %v7261 = vpop.f32.mrf.mxu0
    %v7262 = vadd.f32 %v6782, %v7261
    %v7263 = vpop.f32.mrf.mxu0
    %v7264 = vadd.f32 %v6778, %v7263
    %v7265 = vpop.f32.mrf.mxu0
    %v7266 = vadd.f32 %v6782, %v7265
    %7267 = vmatprep.mubr.bf16.mxu0 %v6693
    %7268 = vmatmul.mubr.bf16.gmra.mxu0 %v6692
    %v7269 = vpop.f32.mrf.mxu0
    %v7270 = vadd.f32 %v6778, %v7269
    %v7271 = vpop.f32.mrf.mxu0
    %v7272 = vadd.f32 %v6782, %v7271
    %v7273 = vpop.f32.mrf.mxu0
    %v7274 = vadd.f32 %v6778, %v7273
    %v7275 = vpop.f32.mrf.mxu0
    %v7276 = vadd.f32 %v6782, %v7275
    %7277 = vmatprep.mubr.bf16.mxu0 %v6696
    %7278 = vmatmul.mubr.bf16.gmra.mxu0 %v6695
    %v7279 = vpop.f32.mrf.mxu0
    %v7280 = vadd.f32 %v6778, %v7279
    %v7281 = vpop.f32.mrf.mxu0
    %v7282 = vadd.f32 %v6782, %v7281
    %v7283 = vpop.f32.mrf.mxu0
    %v7284 = vadd.f32 %v6778, %v7283
    %v7285 = vpop.f32.mrf.mxu0
    %v7286 = vadd.f32 %v6782, %v7285
    %7287 = vmatprep.mubr.bf16.mxu0 %v6699
    %7288 = vmatmul.mubr.bf16.gmra.mxu0 %v6698
    %v7289 = vpop.f32.mrf.mxu0
    %v7290 = vadd.f32 %v6778, %v7289
    %v7291 = vpop.f32.mrf.mxu0
    %v7292 = vadd.f32 %v6782, %v7291
    %v7293 = vpop.f32.mrf.mxu0
    %v7294 = vadd.f32 %v6778, %v7293
    %v7295 = vpop.f32.mrf.mxu0
    %v7296 = vadd.f32 %v6782, %v7295
    %7297 = vmatprep.mubr.bf16.mxu0 %v6702
    %7298 = vmatmul.mubr.bf16.gmra.mxu0 %v6701
    %v7299 = vpop.f32.mrf.mxu0
    %v7300 = vadd.f32 %v6778, %v7299
    %v7301 = vpop.f32.mrf.mxu0
    %v7302 = vadd.f32 %v6782, %v7301
    %v7303 = vpop.f32.mrf.mxu0
    %v7304 = vadd.f32 %v6778, %v7303
    %v7305 = vpop.f32.mrf.mxu0
    %v7306 = vadd.f32 %v6782, %v7305
    %7307 = vmatprep.mubr.bf16.mxu0 %v6705
    %7308 = vmatmul.mubr.bf16.gmra.mxu0 %v6704
    %v7309 = vpop.f32.mrf.mxu0
    %v7310 = vadd.f32 %v6778, %v7309
    %v7311 = vpop.f32.mrf.mxu0
    %v7312 = vadd.f32 %v6782, %v7311
    %v7313 = vpop.f32.mrf.mxu0
    %v7314 = vadd.f32 %v6778, %v7313
    %v7315 = vpop.f32.mrf.mxu0
    %v7316 = vadd.f32 %v6782, %v7315
    %7317 = vmatprep.mubr.bf16.mxu0 %v6708
    %7318 = vmatmul.mubr.bf16.gmra.mxu0 %v6707
    %v7319 = vpop.f32.mrf.mxu0
    %v7320 = vadd.f32 %v6778, %v7319
    %v7321 = vpop.f32.mrf.mxu0
    %v7322 = vadd.f32 %v6782, %v7321
    %v7323 = vpop.f32.mrf.mxu0
    %v7324 = vadd.f32 %v6778, %v7323
    %v7325 = vpop.f32.mrf.mxu0
    %v7326 = vadd.f32 %v6782, %v7325
    %7327 = vmatprep.mubr.bf16.mxu0 %v6711
    %7328 = vmatmul.mubr.bf16.gmra.mxu0 %v6710
    %v7329 = vpop.f32.mrf.mxu0
    %v7330 = vadd.f32 %v6778, %v7329
    %v7331 = vpop.f32.mrf.mxu0
    %v7332 = vadd.f32 %v6782, %v7331
    %v7333 = vpop.f32.mrf.mxu0
    %v7334 = vadd.f32 %v6778, %v7333
    %v7335 = vpop.f32.mrf.mxu0
    %v7336 = vadd.f32 %v6782, %v7335
    %7337 = vmatprep.mubr.bf16.mxu0 %v6714
    %7338 = vmatmul.mubr.bf16.gmra.mxu0 %v6713
    %v7339 = vpop.f32.mrf.mxu0
    %v7340 = vadd.f32 %v6778, %v7339
    %v7341 = vpop.f32.mrf.mxu0
    %v7342 = vadd.f32 %v6782, %v7341
    %v7343 = vpop.f32.mrf.mxu0
    %v7344 = vadd.f32 %v6778, %v7343
    %v7345 = vpop.f32.mrf.mxu0
    %v7346 = vadd.f32 %v6782, %v7345
    %7347 = vmatprep.mubr.bf16.mxu0 %v6717
    %7348 = vmatmul.mubr.bf16.gmra.mxu0 %v6716
    %v7349 = vpop.f32.mrf.mxu0
    %v7350 = vadd.f32 %v6778, %v7349
    %v7351 = vpop.f32.mrf.mxu0
    %v7352 = vadd.f32 %v6782, %v7351
    %v7353 = vpop.f32.mrf.mxu0
    %v7354 = vadd.f32 %v6778, %v7353
    %v7355 = vpop.f32.mrf.mxu0
    %v7356 = vadd.f32 %v6782, %v7355
    %7357 = vmatprep.mubr.bf16.mxu0 %v6720
    %7358 = vmatmul.mubr.bf16.gmra.mxu0 %v6719
    %v7359 = vpop.f32.mrf.mxu0
    %v7360 = vadd.f32 %v6778, %v7359
    %v7361 = vpop.f32.mrf.mxu0
    %v7362 = vadd.f32 %v6782, %v7361
    %v7363 = vpop.f32.mrf.mxu0
    %v7364 = vadd.f32 %v6778, %v7363
    %v7365 = vpop.f32.mrf.mxu0
    %v7366 = vadd.f32 %v6782, %v7365
    %7367 = vmatprep.mubr.bf16.mxu0 %v6723
    %7368 = vmatmul.mubr.bf16.gmra.mxu0 %v6722
    %v7369 = vpop.f32.mrf.mxu0
    %v7370 = vadd.f32 %v6778, %v7369
    %v7371 = vpop.f32.mrf.mxu0
    %v7372 = vadd.f32 %v6782, %v7371
    %v7373 = vpop.f32.mrf.mxu0
    %v7374 = vadd.f32 %v6778, %v7373
    %v7375 = vpop.f32.mrf.mxu0
    %v7376 = vadd.f32 %v6782, %v7375
    %7377 = vdwg.mxu0
    %7378 = vmatprep.subr.bf16.mxu0 %v6976
    %7379 = vmatpush1.bf16.msra.mxu0 %v6975
    %7380 = vmatprep.subr.bf16.mxu0 %v6974
    %7381 = vmatpush1.bf16.msra.mxu0 %v6973
    %7382 = vmatprep.subr.bf16.mxu0 %v6972
    %7383 = vmatpush1.bf16.msra.mxu0 %v6971
    %7384 = vmatprep.subr.bf16.mxu0 %v6970
    %7385 = vmatpush1.bf16.msra.mxu0 %v6969
    %7386 = vmatprep.subr.bf16.mxu0 %v6968
    %7387 = vmatpush1.bf16.msra.mxu0 %v6967
    %7388 = vmatprep.subr.bf16.mxu0 %v6966
    %7389 = vmatpush1.bf16.msra.mxu0 %v6965
    %7390 = vmatprep.subr.bf16.mxu0 %v6964
    %7391 = vmatpush1.bf16.msra.mxu0 %v6963
    %7392 = vmatprep.subr.bf16.mxu0 %v6962
    %7393 = vmatpush1.bf16.msra.mxu0 %v6961
    %7394 = vmatprep.subr.bf16.mxu0 0
    %7395 = vmatpush2.bf16.msra.mxu0 0
    %7396 = vmatprep.subr.bf16.mxu0 0
    %7397 = vmatpush2.bf16.msra.mxu0 0
    %7398 = vmatprep.subr.bf16.mxu0 0
    %7399 = vmatpush2.bf16.msra.mxu0 0
    %7400 = vmatprep.subr.bf16.mxu0 0
    %7401 = vmatpush2.bf16.msra.mxu0 0
    %7402 = vmatprep.subr.bf16.mxu0 0
    %7403 = vmatpush2.bf16.msra.mxu0 0
    %7404 = vmatprep.subr.bf16.mxu0 0
    %7405 = vmatpush2.bf16.msra.mxu0 0
    %7406 = vmatprep.subr.bf16.mxu0 0
    %7407 = vmatpush2.bf16.msra.mxu0 0
    %7408 = vmatprep.subr.bf16.mxu0 0
    %7409 = vmatpush2.bf16.msra.mxu0 0
    %7410 = vmatprep.mubr.bf16.mxu0 0
    %7411 = vmatmul.mubr.bf16.gmra.mxu0 %v6631
    %v7412 = vpop.f32.mrf.mxu0
    %v7413 = vadd.f32 %v7060, %v7412
    %v7414 = vpop.f32.mrf.mxu0
    %v7415 = vadd.f32 %v7062, %v7414
    %v7416 = vpop.f32.mrf.mxu0
    %v7417 = vadd.f32 %v7064, %v7416
    %v7418 = vpop.f32.mrf.mxu0
    %v7419 = vadd.f32 %v7066, %v7418
    %7420 = vmatprep.mubr.bf16.mxu0 0
    %7421 = vmatmul.mubr.bf16.gmra.mxu0 %v6634
    %v7422 = vpop.f32.mrf.mxu0
    %v7423 = vadd.f32 %v7070, %v7422
    %v7424 = vpop.f32.mrf.mxu0
    %v7425 = vadd.f32 %v7072, %v7424
    %v7426 = vpop.f32.mrf.mxu0
    %v7427 = vadd.f32 %v7074, %v7426
    %v7428 = vpop.f32.mrf.mxu0
    %v7429 = vadd.f32 %v7076, %v7428
    %7430 = vmatprep.mubr.bf16.mxu0 0
    %7431 = vmatmul.mubr.bf16.gmra.mxu0 %v6637
    %v7432 = vpop.f32.mrf.mxu0
    %v7433 = vadd.f32 %v7080, %v7432
    %v7434 = vpop.f32.mrf.mxu0
    %v7435 = vadd.f32 %v7082, %v7434
    %v7436 = vpop.f32.mrf.mxu0
    %v7437 = vadd.f32 %v7084, %v7436
    %v7438 = vpop.f32.mrf.mxu0
    %v7439 = vadd.f32 %v7086, %v7438
    %7440 = vmatprep.mubr.bf16.mxu0 0
    %7441 = vmatmul.mubr.bf16.gmra.mxu0 %v6640
    %v7442 = vpop.f32.mrf.mxu0
    %v7443 = vadd.f32 %v7090, %v7442
    %v7444 = vpop.f32.mrf.mxu0
    %v7445 = vadd.f32 %v7092, %v7444
    %v7446 = vpop.f32.mrf.mxu0
    %v7447 = vadd.f32 %v7094, %v7446
    %v7448 = vpop.f32.mrf.mxu0
    %v7449 = vadd.f32 %v7096, %v7448
    %7450 = vmatprep.mubr.bf16.mxu0 0
    %7451 = vmatmul.mubr.bf16.gmra.mxu0 %v6643
    %v7452 = vpop.f32.mrf.mxu0
    %v7453 = vadd.f32 %v7100, %v7452
    %v7454 = vpop.f32.mrf.mxu0
    %v7455 = vadd.f32 %v7102, %v7454
    %v7456 = vpop.f32.mrf.mxu0
    %v7457 = vadd.f32 %v7104, %v7456
    %v7458 = vpop.f32.mrf.mxu0
    %v7459 = vadd.f32 %v7106, %v7458
    %7460 = vmatprep.mubr.bf16.mxu0 0
    %7461 = vmatmul.mubr.bf16.gmra.mxu0 %v6646
    %v7462 = vpop.f32.mrf.mxu0
    %v7463 = vadd.f32 %v7110, %v7462
    %v7464 = vpop.f32.mrf.mxu0
    %v7465 = vadd.f32 %v7112, %v7464
    %v7466 = vpop.f32.mrf.mxu0
    %v7467 = vadd.f32 %v7114, %v7466
    %v7468 = vpop.f32.mrf.mxu0
    %v7469 = vadd.f32 %v7116, %v7468
    %7470 = vmatprep.mubr.bf16.mxu0 0
    %7471 = vmatmul.mubr.bf16.gmra.mxu0 %v6649
    %v7472 = vpop.f32.mrf.mxu0
    %v7473 = vadd.f32 %v7120, %v7472
    %v7474 = vpop.f32.mrf.mxu0
    %v7475 = vadd.f32 %v7122, %v7474
    %v7476 = vpop.f32.mrf.mxu0
    %v7477 = vadd.f32 %v7124, %v7476
    %v7478 = vpop.f32.mrf.mxu0
    %v7479 = vadd.f32 %v7126, %v7478
    %7480 = vmatprep.mubr.bf16.mxu0 0
    %7481 = vmatmul.mubr.bf16.gmra.mxu0 %v6652
    %v7482 = vpop.f32.mrf.mxu0
    %v7483 = vadd.f32 %v7130, %v7482
    %v7484 = vpop.f32.mrf.mxu0
    %v7485 = vadd.f32 %v7132, %v7484
    %v7486 = vpop.f32.mrf.mxu0
    %v7487 = vadd.f32 %v7134, %v7486
    %v7488 = vpop.f32.mrf.mxu0
    %v7489 = vadd.f32 %v7136, %v7488
    %7490 = vmatprep.mubr.bf16.mxu0 0
    %7491 = vmatmul.mubr.bf16.gmra.mxu0 %v6655
    %v7492 = vpop.f32.mrf.mxu0
    %v7493 = vadd.f32 %v7140, %v7492
    %v7494 = vpop.f32.mrf.mxu0
    %v7495 = vadd.f32 %v7142, %v7494
    %v7496 = vpop.f32.mrf.mxu0
    %v7497 = vadd.f32 %v7144, %v7496
    %v7498 = vpop.f32.mrf.mxu0
    %v7499 = vadd.f32 %v7146, %v7498
    %7500 = vmatprep.mubr.bf16.mxu0 0
    %7501 = vmatmul.mubr.bf16.gmra.mxu0 %v6658
    %v7502 = vpop.f32.mrf.mxu0
    %v7503 = vadd.f32 %v7150, %v7502
    %v7504 = vpop.f32.mrf.mxu0
    %v7505 = vadd.f32 %v7152, %v7504
    %v7506 = vpop.f32.mrf.mxu0
    %v7507 = vadd.f32 %v7154, %v7506
    %v7508 = vpop.f32.mrf.mxu0
    %v7509 = vadd.f32 %v7156, %v7508
    %7510 = vmatprep.mubr.bf16.mxu0 0
    %7511 = vmatmul.mubr.bf16.gmra.mxu0 %v6661
    %v7512 = vpop.f32.mrf.mxu0
    %v7513 = vadd.f32 %v7160, %v7512
    %v7514 = vpop.f32.mrf.mxu0
    %v7515 = vadd.f32 %v7162, %v7514
    %v7516 = vpop.f32.mrf.mxu0
    %v7517 = vadd.f32 %v7164, %v7516
    %v7518 = vpop.f32.mrf.mxu0
    %v7519 = vadd.f32 %v7166, %v7518
    %7520 = vmatprep.mubr.bf16.mxu0 0
    %7521 = vmatmul.mubr.bf16.gmra.mxu0 %v6664
    %v7522 = vpop.f32.mrf.mxu0
    %v7523 = vadd.f32 %v7170, %v7522
    %v7524 = vpop.f32.mrf.mxu0
    %v7525 = vadd.f32 %v7172, %v7524
    %v7526 = vpop.f32.mrf.mxu0
    %v7527 = vadd.f32 %v7174, %v7526
    %v7528 = vpop.f32.mrf.mxu0
    %v7529 = vadd.f32 %v7176, %v7528
    %7530 = vmatprep.mubr.bf16.mxu0 0
    %7531 = vmatmul.mubr.bf16.gmra.mxu0 %v6667
    %v7532 = vpop.f32.mrf.mxu0
    %v7533 = vadd.f32 %v7180, %v7532
    %v7534 = vpop.f32.mrf.mxu0
    %v7535 = vadd.f32 %v7182, %v7534
    %v7536 = vpop.f32.mrf.mxu0
    %v7537 = vadd.f32 %v7184, %v7536
    %v7538 = vpop.f32.mrf.mxu0
    %v7539 = vadd.f32 %v7186, %v7538
    %7540 = vmatprep.mubr.bf16.mxu0 0
    %7541 = vmatmul.mubr.bf16.gmra.mxu0 %v6670
    %v7542 = vpop.f32.mrf.mxu0
    %v7543 = vadd.f32 %v7190, %v7542
    %v7544 = vpop.f32.mrf.mxu0
    %v7545 = vadd.f32 %v7192, %v7544
    %v7546 = vpop.f32.mrf.mxu0
    %v7547 = vadd.f32 %v7194, %v7546
    %v7548 = vpop.f32.mrf.mxu0
    %v7549 = vadd.f32 %v7196, %v7548
    %7550 = vmatprep.mubr.bf16.mxu0 0
    %7551 = vmatmul.mubr.bf16.gmra.mxu0 %v6673
    %v7552 = vpop.f32.mrf.mxu0
    %v7553 = vadd.f32 %v7200, %v7552
    %v7554 = vpop.f32.mrf.mxu0
    %v7555 = vadd.f32 %v7202, %v7554
    %v7556 = vpop.f32.mrf.mxu0
    %v7557 = vadd.f32 %v7204, %v7556
    %v7558 = vpop.f32.mrf.mxu0
    %v7559 = vadd.f32 %v7206, %v7558
    %7560 = vmatprep.mubr.bf16.mxu0 0
    %7561 = vmatmul.mubr.bf16.gmra.mxu0 %v6676
    %v7562 = vpop.f32.mrf.mxu0
    %v7563 = vadd.f32 %v7210, %v7562
    %v7564 = vpop.f32.mrf.mxu0
    %v7565 = vadd.f32 %v7212, %v7564
    %v7566 = vpop.f32.mrf.mxu0
    %v7567 = vadd.f32 %v7214, %v7566
    %v7568 = vpop.f32.mrf.mxu0
    %v7569 = vadd.f32 %v7216, %v7568
    %7570 = vmatprep.mubr.bf16.mxu0 0
    %7571 = vmatmul.mubr.bf16.gmra.mxu0 %v6679
    %v7572 = vpop.f32.mrf.mxu0
    %v7573 = vadd.f32 %v7220, %v7572
    %v7574 = vpop.f32.mrf.mxu0
    %v7575 = vadd.f32 %v7222, %v7574
    %v7576 = vpop.f32.mrf.mxu0
    %v7577 = vadd.f32 %v7224, %v7576
    %v7578 = vpop.f32.mrf.mxu0
    %v7579 = vadd.f32 %v7226, %v7578
    %7580 = vmatprep.mubr.bf16.mxu0 0
    %7581 = vmatmul.mubr.bf16.gmra.mxu0 %v6682
    %v7582 = vpop.f32.mrf.mxu0
    %v7583 = vadd.f32 %v7230, %v7582
    %v7584 = vpop.f32.mrf.mxu0
    %v7585 = vadd.f32 %v7232, %v7584
    %v7586 = vpop.f32.mrf.mxu0
    %v7587 = vadd.f32 %v7234, %v7586
    %v7588 = vpop.f32.mrf.mxu0
    %v7589 = vadd.f32 %v7236, %v7588
    %7590 = vmatprep.mubr.bf16.mxu0 0
    %7591 = vmatmul.mubr.bf16.gmra.mxu0 %v6685
    %v7592 = vpop.f32.mrf.mxu0
    %v7593 = vadd.f32 %v7240, %v7592
    %v7594 = vpop.f32.mrf.mxu0
    %v7595 = vadd.f32 %v7242, %v7594
    %v7596 = vpop.f32.mrf.mxu0
    %v7597 = vadd.f32 %v7244, %v7596
    %v7598 = vpop.f32.mrf.mxu0
    %v7599 = vadd.f32 %v7246, %v7598
    %7600 = vmatprep.mubr.bf16.mxu0 0
    %7601 = vmatmul.mubr.bf16.gmra.mxu0 %v6688
    %v7602 = vpop.f32.mrf.mxu0
    %v7603 = vadd.f32 %v7250, %v7602
    %v7604 = vpop.f32.mrf.mxu0
    %v7605 = vadd.f32 %v7252, %v7604
    %v7606 = vpop.f32.mrf.mxu0
    %v7607 = vadd.f32 %v7254, %v7606
    %v7608 = vpop.f32.mrf.mxu0
    %v7609 = vadd.f32 %v7256, %v7608
    %7610 = vmatprep.mubr.bf16.mxu0 0
    %7611 = vmatmul.mubr.bf16.gmra.mxu0 %v6691
    %v7612 = vpop.f32.mrf.mxu0
    %v7613 = vadd.f32 %v7260, %v7612
    %v7614 = vpop.f32.mrf.mxu0
    %v7615 = vadd.f32 %v7262, %v7614
    %v7616 = vpop.f32.mrf.mxu0
    %v7617 = vadd.f32 %v7264, %v7616
    %v7618 = vpop.f32.mrf.mxu0
    %v7619 = vadd.f32 %v7266, %v7618
    %7620 = vmatprep.mubr.bf16.mxu0 0
    %7621 = vmatmul.mubr.bf16.gmra.mxu0 %v6694
    %v7622 = vpop.f32.mrf.mxu0
    %v7623 = vadd.f32 %v7270, %v7622
    %v7624 = vpop.f32.mrf.mxu0
    %v7625 = vadd.f32 %v7272, %v7624
    %v7626 = vpop.f32.mrf.mxu0
    %v7627 = vadd.f32 %v7274, %v7626
    %v7628 = vpop.f32.mrf.mxu0
    %v7629 = vadd.f32 %v7276, %v7628
    %7630 = vmatprep.mubr.bf16.mxu0 0
    %7631 = vmatmul.mubr.bf16.gmra.mxu0 %v6697
    %v7632 = vpop.f32.mrf.mxu0
    %v7633 = vadd.f32 %v7280, %v7632
    %v7634 = vpop.f32.mrf.mxu0
    %v7635 = vadd.f32 %v7282, %v7634
    %v7636 = vpop.f32.mrf.mxu0
    %v7637 = vadd.f32 %v7284, %v7636
    %v7638 = vpop.f32.mrf.mxu0
    %v7639 = vadd.f32 %v7286, %v7638
    %7640 = vmatprep.mubr.bf16.mxu0 0
    %7641 = vmatmul.mubr.bf16.gmra.mxu0 %v6700
    %v7642 = vpop.f32.mrf.mxu0
    %v7643 = vadd.f32 %v7290, %v7642
    %v7644 = vpop.f32.mrf.mxu0
    %v7645 = vadd.f32 %v7292, %v7644
    %v7646 = vpop.f32.mrf.mxu0
    %v7647 = vadd.f32 %v7294, %v7646
    %v7648 = vpop.f32.mrf.mxu0
    %v7649 = vadd.f32 %v7296, %v7648
    %7650 = vmatprep.mubr.bf16.mxu0 0
    %7651 = vmatmul.mubr.bf16.gmra.mxu0 %v6703
    %v7652 = vpop.f32.mrf.mxu0
    %v7653 = vadd.f32 %v7300, %v7652
    %v7654 = vpop.f32.mrf.mxu0
    %v7655 = vadd.f32 %v7302, %v7654
    %v7656 = vpop.f32.mrf.mxu0
    %v7657 = vadd.f32 %v7304, %v7656
    %v7658 = vpop.f32.mrf.mxu0
    %v7659 = vadd.f32 %v7306, %v7658
    %7660 = vmatprep.mubr.bf16.mxu0 0
    %7661 = vmatmul.mubr.bf16.gmra.mxu0 %v6706
    %v7662 = vpop.f32.mrf.mxu0
    %v7663 = vadd.f32 %v7310, %v7662
    %v7664 = vpop.f32.mrf.mxu0
    %v7665 = vadd.f32 %v7312, %v7664
    %v7666 = vpop.f32.mrf.mxu0
    %v7667 = vadd.f32 %v7314, %v7666
    %v7668 = vpop.f32.mrf.mxu0
    %v7669 = vadd.f32 %v7316, %v7668
    %7670 = vmatprep.mubr.bf16.mxu0 0
    %7671 = vmatmul.mubr.bf16.gmra.mxu0 %v6709
    %v7672 = vpop.f32.mrf.mxu0
    %v7673 = vadd.f32 %v7320, %v7672
    %v7674 = vpop.f32.mrf.mxu0
    %v7675 = vadd.f32 %v7322, %v7674
    %v7676 = vpop.f32.mrf.mxu0
    %v7677 = vadd.f32 %v7324, %v7676
    %v7678 = vpop.f32.mrf.mxu0
    %v7679 = vadd.f32 %v7326, %v7678
    %7680 = vmatprep.mubr.bf16.mxu0 0
    %7681 = vmatmul.mubr.bf16.gmra.mxu0 %v6712
    %v7682 = vpop.f32.mrf.mxu0
    %v7683 = vadd.f32 %v7330, %v7682
    %v7684 = vpop.f32.mrf.mxu0
    %v7685 = vadd.f32 %v7332, %v7684
    %v7686 = vpop.f32.mrf.mxu0
    %v7687 = vadd.f32 %v7334, %v7686
    %v7688 = vpop.f32.mrf.mxu0
    %v7689 = vadd.f32 %v7336, %v7688
    %7690 = vmatprep.mubr.bf16.mxu0 0
    %7691 = vmatmul.mubr.bf16.gmra.mxu0 %v6715
    %v7692 = vpop.f32.mrf.mxu0
    %v7693 = vadd.f32 %v7340, %v7692
    %v7694 = vpop.f32.mrf.mxu0
    %v7695 = vadd.f32 %v7342, %v7694
    %v7696 = vpop.f32.mrf.mxu0
    %v7697 = vadd.f32 %v7344, %v7696
    %v7698 = vpop.f32.mrf.mxu0
    %v7699 = vadd.f32 %v7346, %v7698
    %7700 = vmatprep.mubr.bf16.mxu0 0
    %7701 = vmatmul.mubr.bf16.gmra.mxu0 %v6718
    %v7702 = vpop.f32.mrf.mxu0
    %v7703 = vadd.f32 %v7350, %v7702
    %v7704 = vpop.f32.mrf.mxu0
    %v7705 = vadd.f32 %v7352, %v7704
    %v7706 = vpop.f32.mrf.mxu0
    %v7707 = vadd.f32 %v7354, %v7706
    %v7708 = vpop.f32.mrf.mxu0
    %v7709 = vadd.f32 %v7356, %v7708
    %7710 = vmatprep.mubr.bf16.mxu0 0
    %7711 = vmatmul.mubr.bf16.gmra.mxu0 %v6721
    %v7712 = vpop.f32.mrf.mxu0
    %v7713 = vadd.f32 %v7360, %v7712
    %v7714 = vpop.f32.mrf.mxu0
    %v7715 = vadd.f32 %v7362, %v7714
    %v7716 = vpop.f32.mrf.mxu0
    %v7717 = vadd.f32 %v7364, %v7716
    %v7718 = vpop.f32.mrf.mxu0
    %v7719 = vadd.f32 %v7366, %v7718
    %7720 = vmatprep.mubr.bf16.mxu0 0
    %7721 = vmatmul.mubr.bf16.gmra.mxu0 %v6724
    %v7722 = vpop.f32.mrf.mxu0
    %v7723 = vadd.f32 %v7370, %v7722
    %v7724 = vpop.f32.mrf.mxu0
    %v7725 = vadd.f32 %v7372, %v7724
    %v7726 = vpop.f32.mrf.mxu0
    %v7727 = vadd.f32 %v7374, %v7726
    %v7728 = vpop.f32.mrf.mxu0
    %v7729 = vadd.f32 %v7376, %v7728
    %7730 = vdwg.mxu0
    %v7731 = vmax.f32 %v7413, 0.0
    %v7732 = vmax.f32 %v7415, 0.0
    %v7733 = vmax.f32 %v7417, 0.0
    %v7734 = vmax.f32 %v7419, 0.0
    %v7735 = vmax.f32 %v7423, 0.0
    %v7736 = vmax.f32 %v7425, 0.0
    %v7737 = vmax.f32 %v7427, 0.0
    %v7738 = vmax.f32 %v7429, 0.0
    %v7739 = vmax.f32 %v7433, 0.0
    %v7740 = vmax.f32 %v7435, 0.0
    %v7741 = vmax.f32 %v7437, 0.0
    %v7742 = vmax.f32 %v7439, 0.0
    %v7743 = vmax.f32 %v7443, 0.0
    %v7744 = vmax.f32 %v7445, 0.0
    %v7745 = vmax.f32 %v7447, 0.0
    %v7746 = vmax.f32 %v7449, 0.0
    %v7747 = vmax.f32 %v7453, 0.0
    %v7748 = vmax.f32 %v7455, 0.0
    %v7749 = vmax.f32 %v7457, 0.0
    %v7750 = vmax.f32 %v7459, 0.0
    %v7751 = vmax.f32 %v7463, 0.0
    %v7752 = vmax.f32 %v7465, 0.0
    %v7753 = vmax.f32 %v7467, 0.0
    %v7754 = vmax.f32 %v7469, 0.0
    %v7755 = vmax.f32 %v7473, 0.0
    %v7756 = vmax.f32 %v7475, 0.0
    %v7757 = vmax.f32 %v7477, 0.0
    %v7758 = vmax.f32 %v7479, 0.0
    %v7759 = vmax.f32 %v7483, 0.0
    %v7760 = vmax.f32 %v7485, 0.0
    %v7761 = vmax.f32 %v7487, 0.0
    %v7762 = vmax.f32 %v7489, 0.0
    %v7763 = vmax.f32 %v7493, 0.0
    %v7764 = vmax.f32 %v7495, 0.0
    %v7765 = vmax.f32 %v7497, 0.0
    %v7766 = vmax.f32 %v7499, 0.0
    %v7767 = vmax.f32 %v7503, 0.0
    %v7768 = vmax.f32 %v7505, 0.0
    %v7769 = vmax.f32 %v7507, 0.0
    %v7770 = vmax.f32 %v7509, 0.0
    %v7771 = vmax.f32 %v7513, 0.0
    %v7772 = vmax.f32 %v7515, 0.0
    %v7773 = vmax.f32 %v7517, 0.0
    %v7774 = vmax.f32 %v7519, 0.0
    %v7775 = vmax.f32 %v7523, 0.0
    %v7776 = vmax.f32 %v7525, 0.0
    %v7777 = vmax.f32 %v7527, 0.0
    %v7778 = vmax.f32 %v7529, 0.0
    %v7779 = vmax.f32 %v7533, 0.0
    %v7780 = vmax.f32 %v7535, 0.0
    %v7781 = vmax.f32 %v7537, 0.0
    %v7782 = vmax.f32 %v7539, 0.0
    %v7783 = vmax.f32 %v7543, 0.0
    %v7784 = vmax.f32 %v7545, 0.0
    %v7785 = vmax.f32 %v7547, 0.0
    %v7786 = vmax.f32 %v7549, 0.0
    %v7787 = vmax.f32 %v7553, 0.0
    %v7788 = vmax.f32 %v7555, 0.0
    %v7789 = vmax.f32 %v7557, 0.0
    %v7790 = vmax.f32 %v7559, 0.0
    %v7791 = vmax.f32 %v7563, 0.0
    %v7792 = vmax.f32 %v7565, 0.0
    %v7793 = vmax.f32 %v7567, 0.0
    %v7794 = vmax.f32 %v7569, 0.0
    %v7795 = vmax.f32 %v7573, 0.0
    %v7796 = vmax.f32 %v7575, 0.0
    %v7797 = vmax.f32 %v7577, 0.0
    %v7798 = vmax.f32 %v7579, 0.0
    %v7799 = vmax.f32 %v7583, 0.0
    %v7800 = vmax.f32 %v7585, 0.0
    %v7801 = vmax.f32 %v7587, 0.0
    %v7802 = vmax.f32 %v7589, 0.0
    %v7803 = vmax.f32 %v7593, 0.0
    %v7804 = vmax.f32 %v7595, 0.0
    %v7805 = vmax.f32 %v7597, 0.0
    %v7806 = vmax.f32 %v7599, 0.0
    %v7807 = vmax.f32 %v7603, 0.0
    %v7808 = vmax.f32 %v7605, 0.0
    %v7809 = vmax.f32 %v7607, 0.0
    %v7810 = vmax.f32 %v7609, 0.0
    %v7811 = vmax.f32 %v7613, 0.0
    %v7812 = vmax.f32 %v7615, 0.0
    %v7813 = vmax.f32 %v7617, 0.0
    %v7814 = vmax.f32 %v7619, 0.0
    %v7815 = vmax.f32 %v7623, 0.0
    %v7816 = vmax.f32 %v7625, 0.0
    %v7817 = vmax.f32 %v7627, 0.0
    %v7818 = vmax.f32 %v7629, 0.0
    %v7819 = vmax.f32 %v7633, 0.0
    %v7820 = vmax.f32 %v7635, 0.0
    %v7821 = vmax.f32 %v7637, 0.0
    %v7822 = vmax.f32 %v7639, 0.0
    %v7823 = vmax.f32 %v7643, 0.0
    %v7824 = vmax.f32 %v7645, 0.0
    %v7825 = vmax.f32 %v7647, 0.0
    %v7826 = vmax.f32 %v7649, 0.0
    %v7827 = vmax.f32 %v7653, 0.0
    %v7828 = vmax.f32 %v7655, 0.0
    %v7829 = vmax.f32 %v7657, 0.0
    %v7830 = vmax.f32 %v7659, 0.0
    %v7831 = vmax.f32 %v7663, 0.0
    %v7832 = vmax.f32 %v7665, 0.0
    %v7833 = vmax.f32 %v7667, 0.0
    %v7834 = vmax.f32 %v7669, 0.0
    %v7835 = vmax.f32 %v7673, 0.0
    %v7836 = vmax.f32 %v7675, 0.0
    %v7837 = vmax.f32 %v7677, 0.0
    %v7838 = vmax.f32 %v7679, 0.0
    %v7839 = vmax.f32 %v7683, 0.0
    %v7840 = vmax.f32 %v7685, 0.0
    %v7841 = vmax.f32 %v7687, 0.0
    %v7842 = vmax.f32 %v7689, 0.0
    %v7843 = vmax.f32 %v7693, 0.0
    %v7844 = vmax.f32 %v7695, 0.0
    %v7845 = vmax.f32 %v7697, 0.0
    %v7846 = vmax.f32 %v7699, 0.0
    %v7847 = vmax.f32 %v7703, 0.0
    %v7848 = vmax.f32 %v7705, 0.0
    %v7849 = vmax.f32 %v7707, 0.0
    %v7850 = vmax.f32 %v7709, 0.0
    %v7851 = vmax.f32 %v7713, 0.0
    %v7852 = vmax.f32 %v7715, 0.0
    %v7853 = vmax.f32 %v7717, 0.0
    %v7854 = vmax.f32 %v7719, 0.0
    %v7855 = vmax.f32 %v7723, 0.0
    %v7856 = vmax.f32 %v7725, 0.0
    %v7857 = vmax.f32 %v7727, 0.0
    %v7858 = vmax.f32 %v7729, 0.0
    %v7859 = vpack.c.bf16 %v7733, %v7731
    %v7860 = vpack.c.bf16 %v7734, %v7732
    %v7861 = vpack.c.bf16 %v7737, %v7735
    %v7862 = vpack.c.bf16 %v7738, %v7736
    %v7863 = vpack.c.bf16 %v7741, %v7739
    %v7864 = vpack.c.bf16 %v7742, %v7740
    %v7865 = vpack.c.bf16 %v7745, %v7743
    %v7866 = vpack.c.bf16 %v7746, %v7744
    %v7867 = vpack.c.bf16 %v7749, %v7747
    %v7868 = vpack.c.bf16 %v7750, %v7748
    %v7869 = vpack.c.bf16 %v7753, %v7751
    %v7870 = vpack.c.bf16 %v7754, %v7752
    %v7871 = vpack.c.bf16 %v7757, %v7755
    %v7872 = vpack.c.bf16 %v7758, %v7756
    %v7873 = vpack.c.bf16 %v7761, %v7759
    %v7874 = vpack.c.bf16 %v7762, %v7760
    %v7875 = vpack.c.bf16 %v7765, %v7763
    %v7876 = vpack.c.bf16 %v7766, %v7764
    %v7877 = vpack.c.bf16 %v7769, %v7767
    %v7878 = vpack.c.bf16 %v7770, %v7768
    %v7879 = vpack.c.bf16 %v7773, %v7771
    %v7880 = vpack.c.bf16 %v7774, %v7772
    %v7881 = vpack.c.bf16 %v7777, %v7775
    %v7882 = vpack.c.bf16 %v7778, %v7776
    %v7883 = vpack.c.bf16 %v7781, %v7779
    %v7884 = vpack.c.bf16 %v7782, %v7780
    %v7885 = vpack.c.bf16 %v7785, %v7783
    %v7886 = vpack.c.bf16 %v7786, %v7784
    %v7887 = vpack.c.bf16 %v7789, %v7787
    %v7888 = vpack.c.bf16 %v7790, %v7788
    %v7889 = vpack.c.bf16 %v7793, %v7791
    %v7890 = vpack.c.bf16 %v7794, %v7792
    %v7891 = vpack.c.bf16 %v7797, %v7795
    %v7892 = vpack.c.bf16 %v7798, %v7796
    %v7893 = vpack.c.bf16 %v7801, %v7799
    %v7894 = vpack.c.bf16 %v7802, %v7800
    %v7895 = vpack.c.bf16 %v7805, %v7803
    %v7896 = vpack.c.bf16 %v7806, %v7804
    %v7897 = vpack.c.bf16 %v7809, %v7807
    %v7898 = vpack.c.bf16 %v7810, %v7808
    %v7899 = vpack.c.bf16 %v7813, %v7811
    %v7900 = vpack.c.bf16 %v7814, %v7812
    %v7901 = vpack.c.bf16 %v7817, %v7815
    %v7902 = vpack.c.bf16 %v7818, %v7816
    %v7903 = vpack.c.bf16 %v7821, %v7819
    %v7904 = vpack.c.bf16 %v7822, %v7820
    %v7905 = vpack.c.bf16 %v7825, %v7823
    %v7906 = vpack.c.bf16 %v7826, %v7824
    %v7907 = vpack.c.bf16 %v7829, %v7827
    %v7908 = vpack.c.bf16 %v7830, %v7828
    %v7909 = vpack.c.bf16 %v7833, %v7831
    %v7910 = vpack.c.bf16 %v7834, %v7832
    %v7911 = vpack.c.bf16 %v7837, %v7835
    %v7912 = vpack.c.bf16 %v7838, %v7836
    %v7913 = vpack.c.bf16 %v7841, %v7839
    %v7914 = vpack.c.bf16 %v7842, %v7840
    %v7915 = vpack.c.bf16 %v7845, %v7843
    %v7916 = vpack.c.bf16 %v7846, %v7844
    %v7917 = vpack.c.bf16 %v7849, %v7847
    %v7918 = vpack.c.bf16 %v7850, %v7848
    %v7919 = vpack.c.bf16 %v7853, %v7851
    %v7920 = vpack.c.bf16 %v7854, %v7852
    %v7921 = vpack.c.bf16 %v7857, %v7855
    %v7922 = vpack.c.bf16 %v7858, %v7856
    %v7923 = vld [vmem:[%s7] sm:$0xff]
    %v7924 = vld [vmem:[%s7 + $0x8] sm:$0xff]
    %v7925 = vld [vmem:[%s8] sm:$0xff]
    %v7926 = vld [vmem:[%s8 + $0x8] sm:$0xff]
    %7928 = vset.pattern.permute.xlu0 0
    %7929 = vperm.xlu0 %7928, %v7925
    %v7930 = vpop.permute.xlu0 %7929
    %7933 = vset.pattern.permute.xlu0 0
    %7934 = vperm.xlu0 %7933, %v7926
    %v7935 = vpop.permute.xlu0 %7934
    %v7938 = vunpack.c.l.b16 %v7923
    %v7939 = vunpack.c.h.b16 %v7923
    %v7940 = vunpack.c.l.b16 %v7924
    %v7941 = vunpack.c.h.b16 %v7924
    %v7942 = vpack.c.b16 %v7940, %v7938
    %v7943 = vpack.c.b16 %v7941, %v7939
    %7946 = vmatprep.subr.bf16.mxu0 %v7874
    %7947 = vmatpush1.bf16.xpose.msra.mxu0 %v7873
    %7948 = vmatprep.subr.bf16.mxu0 %v7872
    %7949 = vmatpush1.bf16.xpose.msra.mxu0 %v7871
    %7950 = vmatprep.subr.bf16.mxu0 %v7870
    %7951 = vmatpush1.bf16.xpose.msra.mxu0 %v7869
    %7952 = vmatprep.subr.bf16.mxu0 %v7868
    %7953 = vmatpush1.bf16.xpose.msra.mxu0 %v7867
    %7954 = vmatprep.subr.bf16.mxu0 %v7866
    %7955 = vmatpush1.bf16.xpose.msra.mxu0 %v7865
    %7956 = vmatprep.subr.bf16.mxu0 %v7864
    %7957 = vmatpush1.bf16.xpose.msra.mxu0 %v7863
    %7958 = vmatprep.subr.bf16.mxu0 %v7862
    %7959 = vmatpush1.bf16.xpose.msra.mxu0 %v7861
    %7960 = vmatprep.subr.bf16.mxu0 %v7860
    %7961 = vmatpush1.bf16.xpose.msra.mxu0 %v7859
    %7962 = vmatprep.subr.bf16.mxu0 %v7890
    %7963 = vmatpush2.bf16.xpose.msra.mxu0 %v7889
    %7964 = vmatprep.subr.bf16.mxu0 %v7888
    %7965 = vmatpush2.bf16.xpose.msra.mxu0 %v7887
    %7966 = vmatprep.subr.bf16.mxu0 %v7886
    %7967 = vmatpush2.bf16.xpose.msra.mxu0 %v7885
    %7968 = vmatprep.subr.bf16.mxu0 %v7884
    %7969 = vmatpush2.bf16.xpose.msra.mxu0 %v7883
    %7970 = vmatprep.subr.bf16.mxu0 %v7882
    %7971 = vmatpush2.bf16.xpose.msra.mxu0 %v7881
    %7972 = vmatprep.subr.bf16.mxu0 %v7880
    %7973 = vmatpush2.bf16.xpose.msra.mxu0 %v7879
    %7974 = vmatprep.subr.bf16.mxu0 %v7878
    %7975 = vmatpush2.bf16.xpose.msra.mxu0 %v7877
    %7976 = vmatprep.subr.bf16.mxu0 %v7876
    %7977 = vmatpush2.bf16.xpose.msra.mxu0 %v7875
    %7978 = vmatprep.mubr.bf16.mxu0 %v7943
    %7979 = vmatmul.mubr.bf16.gmra.mxu0 %v7942
    %v7980 = vpop.f32.mrf.mxu0
    %v7981 = vadd.f32 %v7930, %v7980
    %v7982 = vpop.f32.mrf.mxu0
    %v7983 = vadd.f32 %v7930, %v7982
    %v7984 = vpop.f32.mrf.mxu0
    %v7985 = vpop.f32.mrf.mxu0
    %7986 = vdwg.mxu0
    %7987 = vmatprep.subr.bf16.mxu0 %v7906
    %7988 = vmatpush1.bf16.xpose.msra.mxu0 %v7905
    %7989 = vmatprep.subr.bf16.mxu0 %v7904
    %7990 = vmatpush1.bf16.xpose.msra.mxu0 %v7903
    %7991 = vmatprep.subr.bf16.mxu0 %v7902
    %7992 = vmatpush1.bf16.xpose.msra.mxu0 %v7901
    %7993 = vmatprep.subr.bf16.mxu0 %v7900
    %7994 = vmatpush1.bf16.xpose.msra.mxu0 %v7899
    %7995 = vmatprep.subr.bf16.mxu0 %v7898
    %7996 = vmatpush1.bf16.xpose.msra.mxu0 %v7897
    %7997 = vmatprep.subr.bf16.mxu0 %v7896
    %7998 = vmatpush1.bf16.xpose.msra.mxu0 %v7895
    %7999 = vmatprep.subr.bf16.mxu0 %v7894
    %8000 = vmatpush1.bf16.xpose.msra.mxu0 %v7893
    %8001 = vmatprep.subr.bf16.mxu0 %v7892
    %8002 = vmatpush1.bf16.xpose.msra.mxu0 %v7891
    %8003 = vmatprep.subr.bf16.mxu0 %v7922
    %8004 = vmatpush2.bf16.xpose.msra.mxu0 %v7921
    %8005 = vmatprep.subr.bf16.mxu0 %v7920
    %8006 = vmatpush2.bf16.xpose.msra.mxu0 %v7919
    %8007 = vmatprep.subr.bf16.mxu0 %v7918
    %8008 = vmatpush2.bf16.xpose.msra.mxu0 %v7917
    %8009 = vmatprep.subr.bf16.mxu0 %v7916
    %8010 = vmatpush2.bf16.xpose.msra.mxu0 %v7915
    %8011 = vmatprep.subr.bf16.mxu0 %v7914
    %8012 = vmatpush2.bf16.xpose.msra.mxu0 %v7913
    %8013 = vmatprep.subr.bf16.mxu0 %v7912
    %8014 = vmatpush2.bf16.xpose.msra.mxu0 %v7911
    %8015 = vmatprep.subr.bf16.mxu0 %v7910
    %8016 = vmatpush2.bf16.xpose.msra.mxu0 %v7909
    %8017 = vmatprep.subr.bf16.mxu0 %v7908
    %8018 = vmatpush2.bf16.xpose.msra.mxu0 %v7907
    %8019 = vmatprep.mubr.bf16.mxu0 %v7943
    %8020 = vmatmul.mubr.bf16.gmra.mxu0 %v7942
    %v8021 = vpop.f32.mrf.mxu0
    %v8022 = vadd.f32 %v7930, %v8021
    %v8023 = vpop.f32.mrf.mxu0
    %v8024 = vadd.f32 %v7930, %v8023
    %v8025 = vpop.f32.mrf.mxu0
    %v8026 = vpop.f32.mrf.mxu0
    %8027 = vdwg.mxu0
    %v8028 = vxor.u32 %v7981, 2147483648
    %v8029 = vxor.u32 %v7983, 2147483648
    %v8030 = vxor.u32 %v8022, 2147483648
    %v8031 = vxor.u32 %v8024, 2147483648
    %v8032 = vmul.f32 %v8028, 1.442695
    %v8033 = vpow.pop %v8032
    %v8034 = vmul.f32 %v8029, 1.442695
    %v8035 = vpow.pop %v8034
    %v8036 = vmul.f32 %v8030, 1.442695
    %v8037 = vpow.pop %v8036
    %v8038 = vmul.f32 %v8031, 1.442695
    %v8039 = vpow.pop %v8038
    %v8040 = vadd.f32 %v8033, 1.0
    %v8041 = vadd.f32 %v8035, 1.0
    %v8042 = vadd.f32 %v8037, 1.0
    %v8043 = vadd.f32 %v8039, 1.0
    %v8044 = vrcp.pop %v8040
    %v8045 = vmul.f32 1.0, %v8044
    %v8046 = vrcp.pop %v8041
    %v8047 = vmul.f32 1.0, %v8046
    %v8048 = vrcp.pop %v8042
    %v8049 = vmul.f32 1.0, %v8048
    %v8050 = vrcp.pop %v8043
    %v8051 = vmul.f32 1.0, %v8050
    %v8056 = vcombine.low %v8045, %v8047
    %v8057 = vcombine.low %v8049, %v8051
    %v8059 = vunpack.c.l.s4 1966171168
    %v8060 = vunpack.c.0.s8 %v8059
    %v8061 = vlaneseq
    %v8062 = vshrl.u32 %v8061, 7
    %v8063 = vsub.s32 %v8060, %v8062
    %v8064 = vrot.slane %v8056, %v8063
    %v8066 = vunpack.c.l.s4 1966171168
    %v8067 = vunpack.c.0.s8 %v8066
    %v8068 = vlaneseq
    %v8069 = vshrl.u32 %v8068, 7
    %v8070 = vsub.s32 %v8067, %v8069
    %v8071 = vrot.slane %v8057, %v8070
    %v8072 = vcombine.low %v8064, %v8071
    %v8074 = vunpack.c.l.s4 1966171168
    %v8075 = vunpack.c.0.s8 %v8074
    %v8076 = vlaneseq
    %v8077 = vshrl.u32 %v8076, 7
    %v8078 = vsub.s32 %v8075, %v8077
    %v8079 = vrot.slane %v8072, %v8078
    %v8081 = vlaneseq
    %vm8082 = vcmp.ge.s32.totalorder %v8081, 0
    %vm8083 = vcmp.lt.s32.totalorder %v8081, 512
    %vm8084 = vmand %vm8082, %vm8083
    %8085 = vst.msk [vmem:[#allocation2] sm:$0xf] %vm8084, %v8079
    // Predicated region
    $region38: #{discriminator_forward.1} parent=1 // pred_check
      _
    $region39: #{discriminator_forward.1} parent=1 // pred_check_branch
      %8087 = sbr.rel (0) target = $region41
    $region40: #{discriminator_forward.1} parent=1 // pred_region
      %s8089 = ssub.s32 64, 64
      %8090 = vsyncadd [#allocation3], %s8089
      %s8092 = sshll.u32 [#allocation2], 4
      %s8093 = int_to_ptr.vmem [resolvable:$true] %s8092
      %8095 = dma.vmem_to_hbm [thread:$0]  %s8093, 64, %s9, [#allocation3]
    $region41: #{discriminator_forward.1} parent=1 // pred_fallthru
      _
    // Predicated region
    $region42: #{discriminator_forward.1} parent=1 // pred_check
      _
    $region43: #{discriminator_forward.1} parent=1 // pred_check_branch
      %8097 = sbr.rel (0) target = $region45
    $region44: #{discriminator_forward.1} parent=1 // pred_region
      %8098 = dma.done [#allocation3], 64
    $region45: #{discriminator_forward.1} parent=1 // pred_fallthru
      _
    %8099 = vsyncpa [#allocation3], 1

</llo_original>
